<compile_context>
chip_gen: v5e
topology: v5e:2x2
jax: 0.10.0
libtpu: 0.0.40
codegen_flags: <defaults>
</compile_context>

<pallas_src>
import functools
import math

import jax
import jax.numpy as jnp
from jax.experimental import pallas as pl
from jax.experimental.pallas import tpu as pltpu


_TARGET_ROWS = 256          # target matmul M rows per grid step (batch-collapsed)


# --------------------------------------------------------------------------
# Hardware-aware knobs (generation-dependent VMEM, Buffered(1) feature probe)
# --------------------------------------------------------------------------

def _vmem_limit_bytes():
    try:
        cap = int(pltpu.get_tpu_info().vmem_capacity_bytes)
    except Exception:
        cap = 64 * 1024 * 1024        # conservative fallback: v7x-sized part
    # leave headroom for Mosaic internal scratch; cap the request on 128 MiB parts
    return max(32 * 1024 * 1024, min(cap - 16 * 1024 * 1024, 100 * 1024 * 1024))


_VMEM_LIMIT = _vmem_limit_bytes()


def _probe_buffered1():
    """Check pipeline_mode=pl.Buffered(1) works on this jax/Mosaic; else fall back."""
    try:
        spec = pl.BlockSpec((8, 128), lambda i: (0, 0), pipeline_mode=pl.Buffered(1))

        def k(x_ref, o_ref):
            o_ref[...] = x_ref[...] + 1.0

        out = pl.pallas_call(
            k,
            out_shape=jax.ShapeDtypeStruct((8, 128), jnp.float32),
            grid=(2,),
            in_specs=[spec],
            out_specs=pl.BlockSpec((8, 128), lambda i: (0, 0)),
        )(jnp.zeros((8, 128), jnp.float32))
        jax.block_until_ready(out)
        return True
    except Exception:
        return False


_BUFFERED1_OK = _probe_buffered1()


def _const_spec(shape):
    """BlockSpec for a block whose index never changes (weights / biases / codes).

    Single-buffered when supported: these blocks are DMA'd once and stay resident,
    so double-buffering them only doubles their VMEM footprint.
    """
    idx = lambda *_: (0,) * len(shape)
    if _BUFFERED1_OK:
        return pl.BlockSpec(shape, idx, pipeline_mode=pl.Buffered(1))
    return pl.BlockSpec(shape, idx)


def _cparams(semantics):
    return pltpu.CompilerParams(
        dimension_semantics=semantics,
        vmem_limit_bytes=_VMEM_LIMIT,
    )


def _round_up(n, m):
    return ((n + m - 1) // m) * m


def _pick_tile(n, cap):
    """Largest tile <= cap (multiple of 8) dividing n, else n (no padded tiles)."""
    if n <= cap:
        return n
    for t in range(cap - cap % 8, 7, -8):
        if n % t == 0:
            return t
    return n


# --------------------------------------------------------------------------
# In-kernel helpers (f32 math, bf16 MXU operands with f32 accumulation)
# --------------------------------------------------------------------------

def _mm(x, w):
    # x: f32 activation tile (cast to bf16 here); w: weight already pre-cast to bf16
    # in the wrapper (astype is a no-op if dtype already matches).
    return jnp.dot(x.astype(jnp.bfloat16), w.astype(jnp.bfloat16),
                   preferred_element_type=jnp.float32)


def _layernorm(x, g, b, eps=1e-5):
    mean = jnp.mean(x, axis=-1, keepdims=True)
    xc = x - mean
    var = jnp.mean(xc * xc, axis=-1, keepdims=True)
    return xc * jax.lax.rsqrt(var + eps) * g + b


def _gelu(x):
    # tanh-approx GELU (EUP path). torch.nn.GELU() defaults to exact erf; the
    # difference is ~1e-3 relative and acceptable for this eval-mode forward.
    return jax.nn.gelu(x, approximate=True)


def _head_masks(nhead, e):
    lane = jax.lax.broadcasted_iota(jnp.int32, (1, e), 1)
    dh = e // nhead
    return [((lane >= h * dh) & (lane < (h + 1) * dh)).astype(jnp.float32)
            for h in range(nhead)]


def _mha_2d(q, k, v, masks, scale):
    """Multi-head SDPA, single sequence; q:(M,E), k/v:(Nk,E). Heads via lane masks
    (endorsed for E <= 128); k/v bf16 casts hoisted out of the head loop; head
    output masked on the (M,E) side (cheaper than masking v when M < Nk)."""
    kb = k.astype(jnp.bfloat16)
    vb = v.astype(jnp.bfloat16)
    o = jnp.zeros(q.shape, jnp.float32)
    for m in masks:
        s = jax.lax.dot_general((q * m).astype(jnp.bfloat16), kb,
                                (((1,), (1,)), ((), ())),
                                preferred_element_type=jnp.float32) * scale
        mx = jnp.max(s, axis=-1, keepdims=True)
        p = jnp.exp(s - mx)
        p = p * pl.reciprocal(jnp.sum(p, axis=-1, keepdims=True), approx=True)
        o = o + jax.lax.dot_general(p.astype(jnp.bfloat16), vb,
                                    (((1,), (0,)), ((), ())),
                                    preferred_element_type=jnp.float32) * m
    return o


def _mha_3d(q3, k3, v3, masks, scale):
    """Batched multi-head SDPA; q3/k3/v3: (bt, N, E). Only the SDPA is per-batch."""
    kb = k3.astype(jnp.bfloat16)
    vb = v3.astype(jnp.bfloat16)
    o = jnp.zeros(q3.shape, jnp.float32)
    for m in masks:
        s = jnp.einsum('bqd,bkd->bqk', (q3 * m).astype(jnp.bfloat16), kb,
                       preferred_element_type=jnp.float32) * scale
        mx = jnp.max(s, axis=-1, keepdims=True)
        p = jnp.exp(s - mx)
        p = p * pl.reciprocal(jnp.sum(p, axis=-1, keepdims=True), approx=True)
        o = o + jnp.einsum('bqk,bkd->bqd', p.astype(jnp.bfloat16), vb,
                           preferred_element_type=jnp.float32) * m
    return o


# --------------------------------------------------------------------------
# Pallas kernels
# --------------------------------------------------------------------------

def _encode_kernel(x_ref, w_ref, b_ref, pos_ref, o_ref):
    # patch-embedding linear fused with position-code add.
    x = x_ref[0].astype(jnp.float32)
    y = _mm(x, w_ref[...]) + b_ref[...] + pos_ref[0].astype(jnp.float32)
    o_ref[0] = y.astype(o_ref.dtype)


def _encoder_layer_kernel(x_ref, g1_ref, c1_ref, wq_ref, bq_ref, wk_ref, bk_ref,
                          wv_ref, bv_ref, wo_ref, bo_ref, g2_ref, c2_ref,
                          w1_ref, d1_ref, w2_ref, d2_ref, o_ref, *, nhead, scale):
    # Full TransformerEncoderLayer (norm_first):
    #   x = x + MHA(LN1(x)); x = x + Linear2(GELU(Linear1(LN2(x))))
    # LN / projections / MLP are batch-collapsed; only SDPA is per-batch.
    bt, n, e = x_ref.shape
    x = x_ref[...].astype(jnp.float32).reshape(bt * n, e)
    xn = _layernorm(x, g1_ref[...], c1_ref[...])
    q = _mm(xn, wq_ref[...]) + bq_ref[...]
    k = _mm(xn, wk_ref[...]) + bk_ref[...]
    v = _mm(xn, wv_ref[...]) + bv_ref[...]
    masks = _head_masks(nhead, e)
    o3 = _mha_3d(q.reshape(bt, n, e), k.reshape(bt, n, e), v.reshape(bt, n, e),
                 masks, scale)
    x = x + _mm(o3.reshape(bt * n, e), wo_ref[...]) + bo_ref[...]
    xn2 = _layernorm(x, g2_ref[...], c2_ref[...])
    h = _gelu(_mm(xn2, w1_ref[...]) + d1_ref[...])
    x = x + _mm(h, w2_ref[...]) + d2_ref[...]
    o_ref[...] = x.reshape(bt, n, e).astype(o_ref.dtype)


def _cross_flash_kernel(q_ref, qg_ref, qb_ref, wq_ref, bq_ref,
                        kv_ref, kvg_ref, kvb_ref, wk_ref, bk_ref,
                        wv_ref, bv_ref, wo_ref, bo_ref,
                        mg_ref, mb_ref, w1_ref, b1_ref, w2_ref, b2_ref,
                        o_ref, qn_sc, qp_sc, m_sc, l_sc, acc_sc,
                        *, nhead, scale, query_residual):
    # CrossAttention (encoder->latent) fully fused with its MLP; the kv/sequence
    # axis is grid-tiled ("arbitrary") with an online-softmax accumulator so VMEM
    # stays bounded for long token streams.
    kk = pl.program_id(1)
    nq, e = qn_sc.shape
    masks = _head_masks(nhead, e)

    @pl.when(kk == 0)
    def _():
        # Reference CrossAttention re-assigns q = q_norm(q); the +q residual is the
        # post-LayerNorm query, which is what we stash here.
        qn = _layernorm(q_ref[0].astype(jnp.float32), qg_ref[...], qb_ref[...])
        qn_sc[...] = qn
        qp_sc[...] = _mm(qn, wq_ref[...]) + bq_ref[...]
        m_sc[...] = jnp.full(m_sc.shape, -jnp.inf, jnp.float32)
        l_sc[...] = jnp.zeros(l_sc.shape, jnp.float32)
        acc_sc[...] = jnp.zeros(acc_sc.shape, jnp.float32)

    kvn = _layernorm(kv_ref[0].astype(jnp.float32), kvg_ref[...], kvb_ref[...])
    k = _mm(kvn, wk_ref[...]) + bk_ref[...]
    v = _mm(kvn, wv_ref[...]) + bv_ref[...]
    kb = k.astype(jnp.bfloat16)
    vb = v.astype(jnp.bfloat16)
    q = qp_sc[...]

    for h, msk in enumerate(masks):
        s = jax.lax.dot_general((q * msk).astype(jnp.bfloat16), kb,
                                (((1,), (1,)), ((), ())),
                                preferred_element_type=jnp.float32) * scale
        m_prev = m_sc[h]
        m_new = jnp.maximum(m_prev, jnp.max(s, axis=-1, keepdims=True))
        alpha = jnp.exp(m_prev - m_new)
        p = jnp.exp(s - m_new)
        l_sc[h] = alpha * l_sc[h] + jnp.sum(p, axis=-1, keepdims=True)
        pv = jax.lax.dot_general(p.astype(jnp.bfloat16), vb,
                                 (((1,), (0,)), ((), ())),
                                 preferred_element_type=jnp.float32) * msk
        acc_sc[...] = acc_sc[...] * jnp.where(msk > 0.0, alpha, 1.0) + pv
        m_sc[h] = m_new

    @pl.when(kk == pl.num_programs(1) - 1)
    def _():
        inv = jnp.zeros((nq, e), jnp.float32)
        for h, msk in enumerate(masks):
            inv = inv + msk * pl.reciprocal(l_sc[h], approx=True)
        attn = _mm(acc_sc[...] * inv, wo_ref[...]) + bo_ref[...]
        if query_residual:
            attn = attn + qn_sc[...]
        xn = _layernorm(attn, mg_ref[...], mb_ref[...])
        hid = _gelu(_mm(xn, w1_ref[...]) + b1_ref[...])
        out = attn + _mm(hid, w2_ref[...]) + b2_ref[...]
        o_ref[0] = out.astype(o_ref.dtype)


def _cross_decode_kernel(q_ref, qg_ref, qb_ref, wq_ref, bq_ref,
                         kv_ref, kvg_ref, kvb_ref, wk_ref, bk_ref,
                         wv_ref, bv_ref, wo_ref, bo_ref,
                         mg_ref, mb_ref, w1_ref, b1_ref, w2_ref, b2_ref,
                         wt_ref, tb_ref, o_ref, *, nhead, scale, query_residual):
    # CrossAttention (latent->decoder) fused with its MLP and the ensemble tail
    # linear (tail columns padded to a 128-lane multiple for unmasked stores).
    # The (possibly long) query axis is grid-tiled; kv (latents) is small and held.
    e = q_ref.shape[2]
    qn = _layernorm(q_ref[0].astype(jnp.float32), qg_ref[...], qb_ref[...])
    q = _mm(qn, wq_ref[...]) + bq_ref[...]
    kvn = _layernorm(kv_ref[0].astype(jnp.float32), kvg_ref[...], kvb_ref[...])
    k = _mm(kvn, wk_ref[...]) + bk_ref[...]
    v = _mm(kvn, wv_ref[...]) + bv_ref[...]
    masks = _head_masks(nhead, e)
    o = _mha_2d(q, k, v, masks, scale)
    attn = _mm(o, wo_ref[...]) + bo_ref[...]
    if query_residual:
        attn = attn + qn
    xn = _layernorm(attn, mg_ref[...], mb_ref[...])
    hid = _gelu(_mm(xn, w1_ref[...]) + b1_ref[...])
    y = attn + _mm(hid, w2_ref[...]) + b2_ref[...]
    o_ref[0] = (_mm(y, wt_ref[...]) + tb_ref[...]).astype(o_ref.dtype)


# --------------------------------------------------------------------------
# Wrappers (pallas_call plumbing)
# --------------------------------------------------------------------------

def encode_tokens(tokens, w, b, pos):
    B, S, D = tokens.shape
    E = w.shape[1]
    ts = _pick_tile(S, 512)
    grid = (B, pl.cdiv(S, ts))
    return pl.pallas_call(
        _encode_kernel,
        out_shape=jax.ShapeDtypeStruct((B, S, E), jnp.bfloat16),
        grid=grid,
        in_specs=[
            pl.BlockSpec((1, ts, D), lambda b_, s_: (b_, s_, 0)),
            _const_spec((D, E)),
            _const_spec((1, E)),
            pl.BlockSpec((1, ts, E), lambda b_, s_: (0, s_, 0)),
        ],
        out_specs=pl.BlockSpec((1, ts, E), lambda b_, s_: (b_, s_, 0)),
        compiler_params=_cparams(("parallel", "parallel")),
    )(tokens, w, b.reshape(1, E), pos)


def transformer_layer(x, lp, nhead):
    B, N, E = x.shape
    F = lp["w1"].shape[1]
    scale = 1.0 / math.sqrt(E // nhead)
    bt = max(1, min(B, max(1, _TARGET_ROWS // N)))     # batch-collapse to ~256 M rows
    grid = (pl.cdiv(B, bt),)
    a = lp["attn"]
    in_specs = [
        pl.BlockSpec((bt, N, E), lambda i: (i, 0, 0)),
        _const_spec((1, E)), _const_spec((1, E)),                # ln1
        _const_spec((E, E)), _const_spec((1, E)),                # q
        _const_spec((E, E)), _const_spec((1, E)),                # k
        _const_spec((E, E)), _const_spec((1, E)),                # v
        _const_spec((E, E)), _const_spec((1, E)),                # out-proj
        _const_spec((1, E)), _const_spec((1, E)),                # ln2
        _const_spec((E, F)), _const_spec((1, F)),                # mlp w1
        _const_spec((F, E)), _const_spec((1, E)),                # mlp w2
    ]
    return pl.pallas_call(
        functools.partial(_encoder_layer_kernel, nhead=nhead, scale=scale),
        out_shape=jax.ShapeDtypeStruct((B, N, E), jnp.bfloat16),
        grid=grid,
        in_specs=in_specs,
        out_specs=pl.BlockSpec((bt, N, E), lambda i: (i, 0, 0)),
        compiler_params=_cparams(("parallel",)),
    )(x,
      lp["ln1_g"].reshape(1, E), lp["ln1_b"].reshape(1, E),
      a["wq"], a["bq"].reshape(1, E),
      a["wk"], a["bk"].reshape(1, E),
      a["wv"], a["bv"].reshape(1, E),
      a["wo"], a["bo"].reshape(1, E),
      lp["ln2_g"].reshape(1, E), lp["ln2_b"].reshape(1, E),
      lp["w1"], lp["b1"].reshape(1, F),
      lp["w2"], lp["b2"].reshape(1, E))


def cross_attention_encode(q_codes, kv, p, nhead):
    """Fused CrossAttention(query_residual=True) + MLP; kv axis flash-tiled."""
    B, Nk, E = kv.shape
    _, Nq, _ = q_codes.shape
    F = p["mlp_w1"].shape[1]
    scale = 1.0 / math.sqrt(E // nhead)
    tk = _pick_tile(Nk, 512)
    grid = (B, pl.cdiv(Nk, tk))
    a = p["attn"]
    in_specs = [
        _const_spec((1, Nq, E)),                                 # latent codes (batch-shared)
        _const_spec((1, E)), _const_spec((1, E)),                # q LayerNorm
        _const_spec((E, E)), _const_spec((1, E)),                # wq, bq
        pl.BlockSpec((1, tk, E), lambda b_, kk: (b_, kk, 0)),    # kv tile
        _const_spec((1, E)), _const_spec((1, E)),                # kv LayerNorm
        _const_spec((E, E)), _const_spec((1, E)),                # wk, bk
        _const_spec((E, E)), _const_spec((1, E)),                # wv, bv
        _const_spec((E, E)), _const_spec((1, E)),                # wo, bo
        _const_spec((1, E)), _const_spec((1, E)),                # mlp LayerNorm
        _const_spec((E, F)), _const_spec((1, F)),                # mlp w1
        _const_spec((F, E)), _const_spec((1, E)),                # mlp w2
    ]
    return pl.pallas_call(
        functools.partial(_cross_flash_kernel, nhead=nhead, scale=scale,
                          query_residual=True),
        out_shape=jax.ShapeDtypeStruct((B, Nq, E), jnp.bfloat16),
        grid=grid,
        in_specs=in_specs,
        out_specs=pl.BlockSpec((1, Nq, E), lambda b_, kk: (b_, 0, 0)),
        scratch_shapes=[
            pltpu.VMEM((Nq, E), jnp.float32),            # LN'd query (residual)
            pltpu.VMEM((Nq, E), jnp.float32),            # projected query
            pltpu.VMEM((nhead, Nq, 1), jnp.float32),     # per-head running max
            pltpu.VMEM((nhead, Nq, 1), jnp.float32),     # per-head running sum
            pltpu.VMEM((Nq, E), jnp.float32),            # output accumulator
        ],
        compiler_params=_cparams(("parallel", "arbitrary")),
    )(q_codes,
      p["q_ln_g"].reshape(1, E), p["q_ln_b"].reshape(1, E),
      a["wq"], a["bq"].reshape(1, E),
      kv,
      p["kv_ln_g"].reshape(1, E), p["kv_ln_b"].reshape(1, E),
      a["wk"], a["bk"].reshape(1, E),
      a["wv"], a["bv"].reshape(1, E),
      a["wo"], a["bo"].reshape(1, E),
      p["mlp_ln_g"].reshape(1, E), p["mlp_ln_b"].reshape(1, E),
      p["mlp_w1"], p["mlp_b1"].reshape(1, F),
      p["mlp_w2"], p["mlp_b2"].reshape(1, E))


def cross_attention_decode(q_codes, kv, p, tail_w, tail_b, nhead, query_residual=False):
    """Fused CrossAttention(query_residual=False) + MLP + ensemble tail linear."""
    B, Nk, E = kv.shape
    _, Nq, _ = q_codes.shape
    F = p["mlp_w1"].shape[1]
    dout = tail_w.shape[1]
    dout_p = _round_up(dout, 128)                        # lane-dense output slab
    tw = jnp.pad(tail_w, ((0, 0), (0, dout_p - dout)))
    tb = jnp.pad(tail_b, (0, dout_p - dout)).reshape(1, dout_p)
    scale = 1.0 / math.sqrt(E // nhead)
    tq = _pick_tile(Nq, 256)
    grid = (B, pl.cdiv(Nq, tq))
    a = p["attn"]
    in_specs = [
        pl.BlockSpec((1, tq, E), lambda b_, qi: (0, qi, 0)),   # query codes (batch-shared)
        _const_spec((1, E)), _const_spec((1, E)),              # q LayerNorm
        _const_spec((E, E)), _const_spec((1, E)),              # wq, bq
        pl.BlockSpec((1, Nk, E), lambda b_, qi: (b_, 0, 0)),   # latents (small kv)
        _const_spec((1, E)), _const_spec((1, E)),              # kv LayerNorm
        _const_spec((E, E)), _const_spec((1, E)),              # wk, bk
        _const_spec((E, E)), _const_spec((1, E)),              # wv, bv
        _const_spec((E, E)), _const_spec((1, E)),              # wo, bo
        _const_spec((1, E)), _const_spec((1, E)),              # mlp LayerNorm
        _const_spec((E, F)), _const_spec((1, F)),              # mlp w1
        _const_spec((F, E)), _const_spec((1, E)),              # mlp w2
        _const_spec((E, dout_p)), _const_spec((1, dout_p)),    # padded tail
    ]
    out = pl.pallas_call(
        functools.partial(_cross_decode_kernel, nhead=nhead, scale=scale,
                          query_residual=query_residual),
        out_shape=jax.ShapeDtypeStruct((B, Nq, dout_p), jnp.float32),
        grid=grid,
        in_specs=in_specs,
        out_specs=pl.BlockSpec((1, tq, dout_p), lambda b_, qi: (b_, qi, 0)),
        compiler_params=_cparams(("parallel", "parallel")),
    )(q_codes,
      p["q_ln_g"].reshape(1, E), p["q_ln_b"].reshape(1, E),
      a["wq"], a["bq"].reshape(1, E),
      kv,
      p["kv_ln_g"].reshape(1, E), p["kv_ln_b"].reshape(1, E),
      a["wk"], a["bk"].reshape(1, E),
      a["wv"], a["bv"].reshape(1, E),
      a["wo"], a["bo"].reshape(1, E),
      p["mlp_ln_g"].reshape(1, E), p["mlp_ln_b"].reshape(1, E),
      p["mlp_w1"], p["mlp_b1"].reshape(1, F),
      p["mlp_w2"], p["mlp_b2"].reshape(1, E),
      tw, tb)
    return out[..., :dout]


# --------------------------------------------------------------------------
# Model glue (pure layout ops stay in XLA)
# --------------------------------------------------------------------------

def _cast_params(params):
    # Weight matrices & learned codes -> bf16 once per forward, outside every
    # pallas_call (MXU-native operands, half the weight HBM traffic / VMEM).
    # 1-D biases and LayerNorm params stay f32 (negligible traffic, added in f32).
    return jax.tree_util.tree_map(
        lambda a: a.astype(jnp.bfloat16) if a.ndim >= 2 else a, params)


def patchify(data, cfg):
    # b c (t pt) (h ph) (w pw) -> b (t h w) (c pt ph pw)
    B, C = data.shape[:2]
    T, H, W = cfg["T"], cfg["H"], cfg["W"]
    pt, ph, pw = cfg["pt"], cfg["ph"], cfg["pw"]
    x = data.reshape(B, C, T, pt, H, ph, W, pw)
    x = x.transpose(0, 2, 4, 6, 1, 3, 5, 7)
    return x.reshape(B, T * H * W, C * pt * ph * pw)


def depatchify(x, cfg):
    # b (e t h w) (c pt ph pw) -> b e c (t pt) (h ph) (w pw)
    B = x.shape[0]
    E = cfg["num_tails"]
    C = cfg["num_variables"]
    T, H, W = cfg["T"], cfg["H"], cfg["W"]
    pt, ph, pw = cfg["pt"], cfg["ph"], cfg["pw"]
    x = x.reshape(B, E, T, H, W, C, pt, ph, pw)
    x = x.transpose(0, 1, 5, 2, 6, 3, 7, 4, 8)
    return x.reshape(B, E, C, T * pt, H * ph, W * pw)


def make_forward(cfg):
    nhead = cfg["nhead"]
    num_latents = cfg["num_latents"]

    @jax.jit
    def forward(params, data):
        p = _cast_params(params)
        tokens = patchify(data, cfg)                                    # (B, S, token_dim)
        tokens = encode_tokens(tokens, p["enc_w"], p["enc_b"],
                               p["position_codes"])                     # +pos fused, bf16 out
        # TODO(synk): structured_dropout is training-only token subsampling; eval path skips it.

        x = cross_attention_encode(p["latent_codes"], tokens, p["enc2lat"], nhead)

        for lp in p["layers"]:
            x = transformer_layer(x, lp, nhead)

        lat = x[:, :num_latents]
        registers = x[:, num_latents:]

        out = cross_attention_decode(p["query_codes"], lat, p["lat2dec"],
                                     p["tail_w"], p["tail_b"], nhead,
                                     query_residual=False)
        out = depatchify(out, cfg)
        return out.astype(jnp.float32), registers.astype(jnp.float32)

    return forward


# --------------------------------------------------------------------------
# Deterministic parameter initialization (shapes from the module __init__)
# --------------------------------------------------------------------------

def init_params(key, cfg):
    keys = iter(jax.random.split(key, 128))

    def xavier(din, dout):
        lim = math.sqrt(6.0 / (din + dout))
        return jax.random.uniform(next(keys), (din, dout), jnp.float32, -lim, lim)

    def zeros(*shape):
        return jnp.zeros(shape, jnp.float32)

    def ones(*shape):
        return jnp.ones(shape, jnp.float32)

    def codes(*shape):
        return cfg["sigma"] * jax.random.normal(next(keys), shape, jnp.float32)

    E = cfg["num_channels"]
    F = cfg["dim_feedforward"]
    token_dim = cfg["token_dim"]
    S = cfg["max_seq_len"]

    def attn_params():
        return {
            "wq": xavier(E, E), "bq": zeros(E),
            "wk": xavier(E, E), "bk": zeros(E),
            "wv": xavier(E, E), "bv": zeros(E),
            "wo": xavier(E, E), "bo": zeros(E),
        }

    def cross_attn_params():
        return {
            "q_ln_g": ones(E), "q_ln_b": zeros(E),
            "kv_ln_g": ones(E), "kv_ln_b": zeros(E),
            "attn": attn_params(),
            "mlp_ln_g": ones(E), "mlp_ln_b": zeros(E),
            "mlp_w1": xavier(E, F), "mlp_b1": zeros(F),
            "mlp_w2": xavier(F, E), "mlp_b2": zeros(E),
        }

    def layer_params():
        return {
            "ln1_g": ones(E), "ln1_b": zeros(E),
            "attn": attn_params(),
            "ln2_g": ones(E), "ln2_b": zeros(E),
            "w1": xavier(E, F), "b1": zeros(F),
            "w2": xavier(F, E), "b2": zeros(E),
        }

    return {
        "position_codes": codes(1, S, E),
        "latent_codes": codes(1, cfg["num_latents"] + cfg["num_registers"], E),
        "query_codes": codes(1, S * cfg["num_tails"], E),   # ensemble_mode='query'
        "enc_w": xavier(token_dim, E), "enc_b": zeros(E),
        "enc2lat": cross_attn_params(),
        "layers": [layer_params() for _ in range(cfg["num_layers"])],
        "lat2dec": cross_attn_params(),
        "tail_w": xavier(E, token_dim), "tail_b": zeros(token_dim),
    }


# --------------------------------------------------------------------------
# Demo
# --------------------------------------------------------------------------

if __name__ == "__main__":
    domain_size = (4, 8, 8)      # (T*pt, H*ph, W*pw)
    token_size = (1, 4, 4)       # (pt, ph, pw)
    num_variables = 2
    cfg = {
        "num_variables": num_variables,
        "num_tails": 2,
        "num_latents": 7,
        "num_registers": 1,
        "num_layers": 2,
        "num_channels": 32,
        "nhead": 4,
        "dim_feedforward": 64,
        "sigma": 0.02,
        "pt": token_size[0], "ph": token_size[1], "pw": token_size[2],
        "T": domain_size[0] // token_size[0],
        "H": domain_size[1] // token_size[1],
        "W": domain_size[2] // token_size[2],
    }
    cfg["token_dim"] = math.prod(token_size) * num_variables              # 32
    cfg["max_seq_len"] = math.prod(domain_size) // math.prod(token_size)  # 16

    key = jax.random.PRNGKey(0)
    k_param, k_data = jax.random.split(key)
    params = init_params(k_param, cfg)

    B = 2
    data = jax.random.normal(
        k_data, (B, num_variables) + domain_size, jnp.float32)           # (2, 2, 4, 8, 8)

    forward = make_forward(cfg)
    out, registers = forward(params, data)
    jax.block_until_ready((out, registers))

    assert out.shape == (B, cfg["num_tails"], num_variables) + domain_size, out.shape
    assert registers.shape == (B, cfg["num_registers"], cfg["num_channels"]), registers.shape
    assert bool(jnp.all(jnp.isfinite(out))) and bool(jnp.all(jnp.isfinite(registers)))
    print("KERNEL_OK")
</pallas_src>

<mosaic_0001>
module attributes {stable_mosaic.version = 11 : i64} {
  func.func @k(%arg0: i32, %arg1: memref<8x128xf32, #tpu.memory_space<vmem>>, %arg2: memref<8x128xf32, #tpu.memory_space<vmem>>) attributes {dimension_semantics = [#tpu.dimension_semantics<arbitrary>], iteration_bounds = array<i64: 2>, scalar_prefetch = 0 : i64, scratch_operands = 0 : i64, tpu.core_type = #tpu.core_type<tc>, window_params = [{pipeline_mode = #tpu.pipeline_mode<synchronous>, transform_indices = @transform_0, window_bounds = array<i64: 8, 128>}, {pipeline_mode = #tpu.pipeline_mode<synchronous>, transform_indices = @transform_1, window_bounds = array<i64: 8, 128>}]} {
    %c0 = arith.constant 0 : index
    %c0_0 = arith.constant 0 : index
    %0 = vector.load %arg1[%c0, %c0_0] : memref<8x128xf32, #tpu.memory_space<vmem>>, vector<8x128xf32>
    %cst = arith.constant 1.000000e+00 : f32
    %1 = vector.broadcast %cst : f32 to vector<8x128xf32>
    %2 = arith.addf %0, %1 : vector<8x128xf32>
    %c0_1 = arith.constant 0 : index
    %c0_2 = arith.constant 0 : index
    %3 = vector.load %arg2[%c0_1, %c0_2] : memref<8x128xf32, #tpu.memory_space<vmem>>, vector<8x128xf32>
    tpu.vector_store %arg2[%c0_1, %c0_2], %2 {strides = array<i32>} : memref<8x128xf32, #tpu.memory_space<vmem>>, vector<8x128xf32>,
    return
  }
  func.func @transform_0(%arg0: i32) -> (i32, i32) {
    %c0_i32 = arith.constant 0 : i32
    %c0_i32_0 = arith.constant 0 : i32
    %c0_i32_1 = arith.constant 0 : i32
    return %c0_i32, %c0_i32_0 : i32, i32
  }
  func.func @transform_1(%arg0: i32) -> (i32, i32) {
    %c0_i32 = arith.constant 0 : i32
    %c0_i32_0 = arith.constant 0 : i32
    %c0_i32_1 = arith.constant 0 : i32
    return %c0_i32, %c0_i32_0 : i32, i32
  }
}

module attributes {stable_mosaic.version = 11 : i64} {
  func.func @_encode_kernel(%arg0: i32, %arg1: i32, %arg2: memref<1x16x32xf32, #tpu.memory_space<vmem>>, %arg3: memref<32x32xbf16, #tpu.memory_space<vmem>>, %arg4: memref<1x32xf32, #tpu.memory_space<vmem>>, %arg5: memref<1x16x32xbf16, #tpu.memory_space<vmem>>, %arg6: memref<1x16x32xbf16, #tpu.memory_space<vmem>>) attributes {dimension_semantics = [#tpu.dimension_semantics<parallel>, #tpu.dimension_semantics<parallel>], iteration_bounds = array<i64: 2, 1>, scalar_prefetch = 0 : i64, scratch_operands = 0 : i64, tpu.core_type = #tpu.core_type<tc>, window_params = [{transform_indices = @transform_0, window_bounds = array<i64: 1, 16, 32>}, {pipeline_mode = #tpu.pipeline_mode<synchronous>, transform_indices = @transform_1, window_bounds = array<i64: 32, 32>}, {pipeline_mode = #tpu.pipeline_mode<synchronous>, transform_indices = @transform_2, window_bounds = array<i64: 1, 32>}, {transform_indices = @transform_3, window_bounds = array<i64: 1, 16, 32>}, {transform_indices = @transform_4, window_bounds = array<i64: 1, 16, 32>}]} {
    %c0 = arith.constant 0 : index
    %c0_0 = arith.constant 0 : index
    %c0_1 = arith.constant 0 : index
    %0 = vector.load %arg2[%c0, %c0_0, %c0_1] : memref<1x16x32xf32, #tpu.memory_space<vmem>>, vector<1x16x32xf32>
    %1 = vector.shape_cast %0 : vector<1x16x32xf32> to vector<16x32xf32>
    %c0_2 = arith.constant 0 : index
    %c0_3 = arith.constant 0 : index
    %2 = vector.load %arg3[%c0_2, %c0_3] : memref<32x32xbf16, #tpu.memory_space<vmem>>, vector<32x32xbf16>
    %3 = arith.truncf %1 : vector<16x32xf32> to vector<16x32xbf16>
    %cst = arith.constant dense<0.000000e+00> : vector<16x32xf32>
    %4 = tpu.matmul %3, %2, %cst {dimension_numbers = #tpu.dot_dimension_numbers<[1], [0], [0], [1], [0, 0, 1, 1], [], []>} : vector<16x32xbf16>, vector<32x32xbf16>, vector<16x32xf32> -> vector<16x32xf32>
    %c0_4 = arith.constant 0 : index
    %c0_5 = arith.constant 0 : index
    %5 = vector.load %arg4[%c0_4, %c0_5] : memref<1x32xf32, #tpu.memory_space<vmem>>, vector<1x32xf32>
    %6 = vector.broadcast %5 : vector<1x32xf32> to vector<16x32xf32>
    %7 = arith.addf %4, %6 : vector<16x32xf32>
    %c0_6 = arith.constant 0 : index
    %c0_7 = arith.constant 0 : index
    %c0_8 = arith.constant 0 : index
    %8 = vector.load %arg5[%c0_6, %c0_7, %c0_8] : memref<1x16x32xbf16, #tpu.memory_space<vmem>>, vector<1x16x32xbf16>
    %9 = vector.shape_cast %8 : vector<1x16x32xbf16> to vector<16x32xbf16>
    %10 = arith.extf %9 : vector<16x32xbf16> to vector<16x32xf32>
    %11 = arith.addf %7, %10 : vector<16x32xf32>
    %12 = arith.truncf %11 : vector<16x32xf32> to vector<16x32xbf16>
    %c0_9 = arith.constant 0 : index
    %c0_10 = arith.constant 0 : index
    %c0_11 = arith.constant 0 : index
    %13 = vector.load %arg6[%c0_9, %c0_10, %c0_11] : memref<1x16x32xbf16, #tpu.memory_space<vmem>>, vector<1x16x32xbf16>
    %14 = vector.shape_cast %13 : vector<1x16x32xbf16> to vector<16x32xbf16>
    %15 = vector.shape_cast %12 : vector<16x32xbf16> to vector<1x16x32xbf16>
    tpu.vector_store %arg6[%c0_9, %c0_10, %c0_11], %15 {strides = array<i32>} : memref<1x16x32xbf16, #tpu.memory_space<vmem>>, vector<1x16x32xbf16>,
    return
  }
  func.func @transform_0(%arg0: i32, %arg1: i32) -> (i32, i32, i32) {
    %c0_i32 = arith.constant 0 : i32
    %c0_i32_0 = arith.constant 0 : i32
    return %arg0, %arg1, %c0_i32 : i32, i32, i32
  }
  func.func @transform_1(%arg0: i32, %arg1: i32) -> (i32, i32) {
    %c0_i32 = arith.constant 0 : i32
    %c0_i32_0 = arith.constant 0 : i32
    %c0_i32_1 = arith.constant 0 : i32
    return %c0_i32, %c0_i32_0 : i32, i32
  }
  func.func @transform_2(%arg0: i32, %arg1: i32) -> (i32, i32) {
    %c0_i32 = arith.constant 0 : i32
    %c0_i32_0 = arith.constant 0 : i32
    %c0_i32_1 = arith.constant 0 : i32
    return %c0_i32, %c0_i32_0 : i32, i32
  }
  func.func @transform_3(%arg0: i32, %arg1: i32) -> (i32, i32, i32) {
    %c0_i32 = arith.constant 0 : i32
    %c0_i32_0 = arith.constant 0 : i32
    %c0_i32_1 = arith.constant 0 : i32
    return %c0_i32, %arg1, %c0_i32_0 : i32, i32, i32
  }
  func.func @transform_4(%arg0: i32, %arg1: i32) -> (i32, i32, i32) {
    %c0_i32 = arith.constant 0 : i32
    %c0_i32_0 = arith.constant 0 : i32
    return %arg0, %arg1, %c0_i32 : i32, i32, i32
  }
}

module attributes {stable_mosaic.version = 11 : i64} {
  func.func @_encoder_layer_kernel(%arg0: i32, %arg1: memref<2x8x32xbf16, #tpu.memory_space<vmem>>, %arg2: memref<1x32xf32, #tpu.memory_space<vmem>>, %arg3: memref<1x32xf32, #tpu.memory_space<vmem>>, %arg4: memref<32x32xbf16, #tpu.memory_space<vmem>>, %arg5: memref<1x32xf32, #tpu.memory_space<vmem>>, %arg6: memref<32x32xbf16, #tpu.memory_space<vmem>>, %arg7: memref<1x32xf32, #tpu.memory_space<vmem>>, %arg8: memref<32x32xbf16, #tpu.memory_space<vmem>>, %arg9: memref<1x32xf32, #tpu.memory_space<vmem>>, %arg10: memref<32x32xbf16, #tpu.memory_space<vmem>>, %arg11: memref<1x32xf32, #tpu.memory_space<vmem>>, %arg12: memref<1x32xf32, #tpu.memory_space<vmem>>, %arg13: memref<1x32xf32, #tpu.memory_space<vmem>>, %arg14: memref<32x64xbf16, #tpu.memory_space<vmem>>, %arg15: memref<1x64xf32, #tpu.memory_space<vmem>>, %arg16: memref<64x32xbf16, #tpu.memory_space<vmem>>, %arg17: memref<1x32xf32, #tpu.memory_space<vmem>>, %arg18: memref<2x8x32xbf16, #tpu.memory_space<vmem>>) attributes {dimension_semantics = [#tpu.dimension_semantics<parallel>], iteration_bounds = array<i64: 1>, scalar_prefetch = 0 : i64, scratch_operands = 0 : i64, tpu.core_type = #tpu.core_type<tc>, window_params = [{transform_indices = @transform_0, window_bounds = array<i64: 2, 8, 32>}, {pipeline_mode = #tpu.pipeline_mode<synchronous>, transform_indices = @transform_1, window_bounds = array<i64: 1, 32>}, {pipeline_mode = #tpu.pipeline_mode<synchronous>, transform_indices = @transform_2, window_bounds = array<i64: 1, 32>}, {pipeline_mode = #tpu.pipeline_mode<synchronous>, transform_indices = @transform_3, window_bounds = array<i64: 32, 32>}, {pipeline_mode = #tpu.pipeline_mode<synchronous>, transform_indices = @transform_4, window_bounds = array<i64: 1, 32>}, {pipeline_mode = #tpu.pipeline_mode<synchronous>, transform_indices = @transform_5, window_bounds = array<i64: 32, 32>}, {pipeline_mode = #tpu.pipeline_mode<synchronous>, transform_indices = @transform_6, window_bounds = array<i64: 1, 32>}, {pipeline_mode = #tpu.pipeline_mode<synchronous>, transform_indices = @transform_7, window_bounds = array<i64: 32, 32>}, {pipeline_mode = #tpu.pipeline_mode<synchronous>, transform_indices = @transform_8, window_bounds = array<i64: 1, 32>}, {pipeline_mode = #tpu.pipeline_mode<synchronous>, transform_indices = @transform_9, window_bounds = array<i64: 32, 32>}, {pipeline_mode = #tpu.pipeline_mode<synchronous>, transform_indices = @transform_10, window_bounds = array<i64: 1, 32>}, {pipeline_mode = #tpu.pipeline_mode<synchronous>, transform_indices = @transform_11, window_bounds = array<i64: 1, 32>}, {pipeline_mode = #tpu.pipeline_mode<synchronous>, transform_indices = @transform_12, window_bounds = array<i64: 1, 32>}, {pipeline_mode = #tpu.pipeline_mode<synchronous>, transform_indices = @transform_13, window_bounds = array<i64: 32, 64>}, {pipeline_mode = #tpu.pipeline_mode<synchronous>, transform_indices = @transform_14, window_bounds = array<i64: 1, 64>}, {pipeline_mode = #tpu.pipeline_mode<synchronous>, transform_indices = @transform_15, window_bounds = array<i64: 64, 32>}, {pipeline_mode = #tpu.pipeline_mode<synchronous>, transform_indices = @transform_16, window_bounds = array<i64: 1, 32>}, {transform_indices = @transform_17, window_bounds = array<i64: 2, 8, 32>}]} {
    %c0 = arith.constant 0 : index
    %c0_0 = arith.constant 0 : index
    %c0_1 = arith.constant 0 : index
    %0 = vector.load %arg1[%c0, %c0_0, %c0_1] : memref<2x8x32xbf16, #tpu.memory_space<vmem>>, vector<2x8x32xbf16>
    %1 = arith.extf %0 : vector<2x8x32xbf16> to vector<2x8x32xf32>
    %2 = vector.shape_cast %1 : vector<2x8x32xf32> to vector<16x32xf32>
    %c0_2 = arith.constant 0 : index
    %c0_3 = arith.constant 0 : index
    %3 = vector.load %arg2[%c0_2, %c0_3] : memref<1x32xf32, #tpu.memory_space<vmem>>, vector<1x32xf32>
    %c0_4 = arith.constant 0 : index
    %c0_5 = arith.constant 0 : index
    %4 = vector.load %arg3[%c0_4, %c0_5] : memref<1x32xf32, #tpu.memory_space<vmem>>, vector<1x32xf32>
    %cst = arith.constant dense<0.000000e+00> : vector<16xf32>
    %5 = vector.multi_reduction <add>, %2, %cst [1] : vector<16x32xf32> to vector<16xf32>
    %6 = vector.shape_cast %5 : vector<16xf32> to vector<16x1xf32>
    %cst_6 = arith.constant 3.200000e+01 : f32
    %7 = vector.broadcast %cst_6 : f32 to vector<16x1xf32>
    %8 = arith.divf %6, %7 : vector<16x1xf32>
    %9 = vector.broadcast %8 : vector<16x1xf32> to vector<16x32xf32>
    %10 = arith.subf %2, %9 : vector<16x32xf32>
    %11 = arith.mulf %10, %10 : vector<16x32xf32>
    %cst_7 = arith.constant dense<0.000000e+00> : vector<16xf32>
    %12 = vector.multi_reduction <add>, %11, %cst_7 [1] : vector<16x32xf32> to vector<16xf32>
    %13 = vector.shape_cast %12 : vector<16xf32> to vector<16x1xf32>
    %cst_8 = arith.constant 3.200000e+01 : f32
    %14 = vector.broadcast %cst_8 : f32 to vector<16x1xf32>
    %15 = arith.divf %13, %14 : vector<16x1xf32>
    %cst_9 = arith.constant 9.99999974E-6 : f32
    %16 = vector.broadcast %cst_9 : f32 to vector<16x1xf32>
    %17 = arith.addf %15, %16 : vector<16x1xf32>
    %18 = math.rsqrt %17 : vector<16x1xf32>
    %19 = vector.broadcast %18 : vector<16x1xf32> to vector<16x32xf32>
    %20 = arith.mulf %10, %19 : vector<16x32xf32>
    %21 = vector.broadcast %3 : vector<1x32xf32> to vector<16x32xf32>
    %22 = arith.mulf %20, %21 : vector<16x32xf32>
    %23 = vector.broadcast %4 : vector<1x32xf32> to vector<16x32xf32>
    %24 = arith.addf %22, %23 : vector<16x32xf32>
    %c0_10 = arith.constant 0 : index
    %c0_11 = arith.constant 0 : index
    %25 = vector.load %arg4[%c0_10, %c0_11] : memref<32x32xbf16, #tpu.memory_space<vmem>>, vector<32x32xbf16>
    %26 = arith.truncf %24 : vector<16x32xf32> to vector<16x32xbf16>
    %cst_12 = arith.constant dense<0.000000e+00> : vector<16x32xf32>
    %27 = tpu.matmul %26, %25, %cst_12 {dimension_numbers = #tpu.dot_dimension_numbers<[1], [0], [0], [1], [0, 0, 1, 1], [], []>} : vector<16x32xbf16>, vector<32x32xbf16>, vector<16x32xf32> -> vector<16x32xf32>
    %c0_13 = arith.constant 0 : index
    %c0_14 = arith.constant 0 : index
    %28 = vector.load %arg5[%c0_13, %c0_14] : memref<1x32xf32, #tpu.memory_space<vmem>>, vector<1x32xf32>
    %29 = vector.broadcast %28 : vector<1x32xf32> to vector<16x32xf32>
    %30 = arith.addf %27, %29 : vector<16x32xf32>
    %c0_15 = arith.constant 0 : index
    %c0_16 = arith.constant 0 : index
    %31 = vector.load %arg6[%c0_15, %c0_16] : memref<32x32xbf16, #tpu.memory_space<vmem>>, vector<32x32xbf16>
    %32 = arith.truncf %24 : vector<16x32xf32> to vector<16x32xbf16>
    %cst_17 = arith.constant dense<0.000000e+00> : vector<16x32xf32>
    %33 = tpu.matmul %32, %31, %cst_17 {dimension_numbers = #tpu.dot_dimension_numbers<[1], [0], [0], [1], [0, 0, 1, 1], [], []>} : vector<16x32xbf16>, vector<32x32xbf16>, vector<16x32xf32> -> vector<16x32xf32>
    %c0_18 = arith.constant 0 : index
    %c0_19 = arith.constant 0 : index
    %34 = vector.load %arg7[%c0_18, %c0_19] : memref<1x32xf32, #tpu.memory_space<vmem>>, vector<1x32xf32>
    %35 = vector.broadcast %34 : vector<1x32xf32> to vector<16x32xf32>
    %36 = arith.addf %33, %35 : vector<16x32xf32>
    %c0_20 = arith.constant 0 : index
    %c0_21 = arith.constant 0 : index
    %37 = vector.load %arg8[%c0_20, %c0_21] : memref<32x32xbf16, #tpu.memory_space<vmem>>, vector<32x32xbf16>
    %38 = arith.truncf %24 : vector<16x32xf32> to vector<16x32xbf16>
    %cst_22 = arith.constant dense<0.000000e+00> : vector<16x32xf32>
    %39 = tpu.matmul %38, %37, %cst_22 {dimension_numbers = #tpu.dot_dimension_numbers<[1], [0], [0], [1], [0, 0, 1, 1], [], []>} : vector<16x32xbf16>, vector<32x32xbf16>, vector<16x32xf32> -> vector<16x32xf32>
    %c0_23 = arith.constant 0 : index
    %c0_24 = arith.constant 0 : index
    %40 = vector.load %arg9[%c0_23, %c0_24] : memref<1x32xf32, #tpu.memory_space<vmem>>, vector<1x32xf32>
    %41 = vector.broadcast %40 : vector<1x32xf32> to vector<16x32xf32>
    %42 = arith.addf %39, %41 : vector<16x32xf32>
    %43 = tpu.iota {dimensions = array<i32: 1>} : vector<1x32xi32>
    %c0_i32 = arith.constant 0 : i32
    %44 = vector.broadcast %c0_i32 : i32 to vector<1x32xi32>
    %45 = arith.cmpi sge, %43, %44 : vector<1x32xi32>
    %c8_i32 = arith.constant 8 : i32
    %46 = vector.broadcast %c8_i32 : i32 to vector<1x32xi32>
    %47 = arith.cmpi slt, %43, %46 : vector<1x32xi32>
    %48 = arith.andi %45, %47 : vector<1x32xi1>
    %49 = arith.extui %48 : vector<1x32xi1> to vector<1x32xi32>
    %50 = arith.sitofp %49 : vector<1x32xi32> to vector<1x32xf32>
    %c8_i32_25 = arith.constant 8 : i32
    %51 = vector.broadcast %c8_i32_25 : i32 to vector<1x32xi32>
    %52 = arith.cmpi sge, %43, %51 : vector<1x32xi32>
    %c16_i32 = arith.constant 16 : i32
    %53 = vector.broadcast %c16_i32 : i32 to vector<1x32xi32>
    %54 = arith.cmpi slt, %43, %53 : vector<1x32xi32>
    %55 = arith.andi %52, %54 : vector<1x32xi1>
    %56 = arith.extui %55 : vector<1x32xi1> to vector<1x32xi32>
    %57 = arith.sitofp %56 : vector<1x32xi32> to vector<1x32xf32>
    %c16_i32_26 = arith.constant 16 : i32
    %58 = vector.broadcast %c16_i32_26 : i32 to vector<1x32xi32>
    %59 = arith.cmpi sge, %43, %58 : vector<1x32xi32>
    %c24_i32 = arith.constant 24 : i32
    %60 = vector.broadcast %c24_i32 : i32 to vector<1x32xi32>
    %61 = arith.cmpi slt, %43, %60 : vector<1x32xi32>
    %62 = arith.andi %59, %61 : vector<1x32xi1>
    %63 = arith.extui %62 : vector<1x32xi1> to vector<1x32xi32>
    %64 = arith.sitofp %63 : vector<1x32xi32> to vector<1x32xf32>
    %c24_i32_27 = arith.constant 24 : i32
    %65 = vector.broadcast %c24_i32_27 : i32 to vector<1x32xi32>
    %66 = arith.cmpi sge, %43, %65 : vector<1x32xi32>
    %c32_i32 = arith.constant 32 : i32
    %67 = vector.broadcast %c32_i32 : i32 to vector<1x32xi32>
    %68 = arith.cmpi slt, %43, %67 : vector<1x32xi32>
    %69 = arith.andi %66, %68 : vector<1x32xi1>
    %70 = arith.extui %69 : vector<1x32xi1> to vector<1x32xi32>
    %71 = arith.sitofp %70 : vector<1x32xi32> to vector<1x32xf32>
    %72 = vector.shape_cast %30 : vector<16x32xf32> to vector<2x8x32xf32>
    %73 = vector.shape_cast %36 : vector<16x32xf32> to vector<2x8x32xf32>
    %74 = vector.shape_cast %42 : vector<16x32xf32> to vector<2x8x32xf32>
    %75 = arith.truncf %73 : vector<2x8x32xf32> to vector<2x8x32xbf16>
    %76 = arith.truncf %74 : vector<2x8x32xf32> to vector<2x8x32xbf16>
    %cst_28 = arith.constant 0.000000e+00 : f32
    %77 = vector.broadcast %cst_28 : f32 to vector<2x8x32xf32>
    %78 = vector.shape_cast %50 : vector<1x32xf32> to vector<1x1x32xf32>
    %79 = vector.broadcast %78 : vector<1x1x32xf32> to vector<2x8x32xf32>
    %80 = arith.mulf %72, %79 : vector<2x8x32xf32>
    %81 = arith.truncf %80 : vector<2x8x32xf32> to vector<2x8x32xbf16>
    "tpu.trace_start"() <{level = 10 : i32, message = "bqd,bkd->bqk"}> : () -> ()
    %cst_29 = arith.constant dense<0.000000e+00> : vector<2x8x8xf32>
    %82 = tpu.matmul %81, %75, %cst_29 {dimension_numbers = #tpu.dot_dimension_numbers<[2], [2], [1], [1], [0, 0, 0, 1, 1, 1], [0], [0]>} : vector<2x8x32xbf16>, vector<2x8x32xbf16>, vector<2x8x8xf32> -> vector<2x8x8xf32>
    "tpu.trace_stop"() : () -> ()
    %cst_30 = arith.constant 0.353553385 : f32
    %83 = vector.broadcast %cst_30 : f32 to vector<2x8x8xf32>
    %84 = arith.mulf %82, %83 : vector<2x8x8xf32>
    %cst_31 = arith.constant dense<0xFF800000> : vector<2x8xf32>
    %85 = vector.multi_reduction <maximumf>, %84, %cst_31 [2] : vector<2x8x8xf32> to vector<2x8xf32>
    %86 = vector.shape_cast %85 : vector<2x8xf32> to vector<2x8x1xf32>
    %87 = vector.broadcast %86 : vector<2x8x1xf32> to vector<2x8x8xf32>
    %88 = arith.subf %84, %87 : vector<2x8x8xf32>
    %89 = math.exp %88 : vector<2x8x8xf32>
    %cst_32 = arith.constant dense<0.000000e+00> : vector<2x8xf32>
    %90 = vector.multi_reduction <add>, %89, %cst_32 [2] : vector<2x8x8xf32> to vector<2x8xf32>
    %91 = vector.shape_cast %90 : vector<2x8xf32> to vector<2x8x1xf32>
    %92 = tpu.reciprocal %91 {approx = true} : vector<2x8x1xf32> -> vector<2x8x1xf32>
    %93 = vector.broadcast %92 : vector<2x8x1xf32> to vector<2x8x8xf32>
    %94 = arith.mulf %89, %93 : vector<2x8x8xf32>
    %95 = arith.truncf %94 : vector<2x8x8xf32> to vector<2x8x8xbf16>
    "tpu.trace_start"() <{level = 10 : i32, message = "bqk,bkd->bqd"}> : () -> ()
    %cst_33 = arith.constant dense<0.000000e+00> : vector<2x8x32xf32>
    %96 = tpu.matmul %95, %76, %cst_33 {dimension_numbers = #tpu.dot_dimension_numbers<[2], [1], [1], [2], [0, 0, 0, 1, 1, 2], [0], [0]>} : vector<2x8x8xbf16>, vector<2x8x32xbf16>, vector<2x8x32xf32> -> vector<2x8x32xf32>
    "tpu.trace_stop"() : () -> ()
    %97 = vector.shape_cast %50 : vector<1x32xf32> to vector<1x1x32xf32>
    %98 = vector.broadcast %97 : vector<1x1x32xf32> to vector<2x8x32xf32>
    %99 = arith.mulf %96, %98 : vector<2x8x32xf32>
    %100 = arith.addf %77, %99 : vector<2x8x32xf32>
    %101 = vector.shape_cast %57 : vector<1x32xf32> to vector<1x1x32xf32>
    %102 = vector.broadcast %101 : vector<1x1x32xf32> to vector<2x8x32xf32>
    %103 = arith.mulf %72, %102 : vector<2x8x32xf32>
    %104 = arith.truncf %103 : vector<2x8x32xf32> to vector<2x8x32xbf16>
    "tpu.trace_start"() <{level = 10 : i32, message = "bqd,bkd->bqk"}> : () -> ()
    %cst_34 = arith.constant dense<0.000000e+00> : vector<2x8x8xf32>
    %105 = tpu.matmul %104, %75, %cst_34 {dimension_numbers = #tpu.dot_dimension_numbers<[2], [2], [1], [1], [0, 0, 0, 1, 1, 1], [0], [0]>} : vector<2x8x32xbf16>, vector<2x8x32xbf16>, vector<2x8x8xf32> -> vector<2x8x8xf32>
    "tpu.trace_stop"() : () -> ()
    %cst_35 = arith.constant 0.353553385 : f32
    %106 = vector.broadcast %cst_35 : f32 to vector<2x8x8xf32>
    %107 = arith.mulf %105, %106 : vector<2x8x8xf32>
    %cst_36 = arith.constant dense<0xFF800000> : vector<2x8xf32>
    %108 = vector.multi_reduction <maximumf>, %107, %cst_36 [2] : vector<2x8x8xf32> to vector<2x8xf32>
    %109 = vector.shape_cast %108 : vector<2x8xf32> to vector<2x8x1xf32>
    %110 = vector.broadcast %109 : vector<2x8x1xf32> to vector<2x8x8xf32>
    %111 = arith.subf %107, %110 : vector<2x8x8xf32>
    %112 = math.exp %111 : vector<2x8x8xf32>
    %cst_37 = arith.constant dense<0.000000e+00> : vector<2x8xf32>
    %113 = vector.multi_reduction <add>, %112, %cst_37 [2] : vector<2x8x8xf32> to vector<2x8xf32>
    %114 = vector.shape_cast %113 : vector<2x8xf32> to vector<2x8x1xf32>
    %115 = tpu.reciprocal %114 {approx = true} : vector<2x8x1xf32> -> vector<2x8x1xf32>
    %116 = vector.broadcast %115 : vector<2x8x1xf32> to vector<2x8x8xf32>
    %117 = arith.mulf %112, %116 : vector<2x8x8xf32>
    %118 = arith.truncf %117 : vector<2x8x8xf32> to vector<2x8x8xbf16>
    "tpu.trace_start"() <{level = 10 : i32, message = "bqk,bkd->bqd"}> : () -> ()
    %cst_38 = arith.constant dense<0.000000e+00> : vector<2x8x32xf32>
    %119 = tpu.matmul %118, %76, %cst_38 {dimension_numbers = #tpu.dot_dimension_numbers<[2], [1], [1], [2], [0, 0, 0, 1, 1, 2], [0], [0]>} : vector<2x8x8xbf16>, vector<2x8x32xbf16>, vector<2x8x32xf32> -> vector<2x8x32xf32>
    "tpu.trace_stop"() : () -> ()
    %120 = vector.shape_cast %57 : vector<1x32xf32> to vector<1x1x32xf32>
    %121 = vector.broadcast %120 : vector<1x1x32xf32> to vector<2x8x32xf32>
    %122 = arith.mulf %119, %121 : vector<2x8x32xf32>
    %123 = arith.addf %100, %122 : vector<2x8x32xf32>
    %124 = vector.shape_cast %64 : vector<1x32xf32> to vector<1x1x32xf32>
    %125 = vector.broadcast %124 : vector<1x1x32xf32> to vector<2x8x32xf32>
    %126 = arith.mulf %72, %125 : vector<2x8x32xf32>
    %127 = arith.truncf %126 : vector<2x8x32xf32> to vector<2x8x32xbf16>
    "tpu.trace_start"() <{level = 10 : i32, message = "bqd,bkd->bqk"}> : () -> ()
    %cst_39 = arith.constant dense<0.000000e+00> : vector<2x8x8xf32>
    %128 = tpu.matmul %127, %75, %cst_39 {dimension_numbers = #tpu.dot_dimension_numbers<[2], [2], [1], [1], [0, 0, 0, 1, 1, 1], [0], [0]>} : vector<2x8x32xbf16>, vector<2x8x32xbf16>, vector<2x8x8xf32> -> vector<2x8x8xf32>
    "tpu.trace_stop"() : () -> ()
    %cst_40 = arith.constant 0.353553385 : f32
    %129 = vector.broadcast %cst_40 : f32 to vector<2x8x8xf32>
    %130 = arith.mulf %128, %129 : vector<2x8x8xf32>
    %cst_41 = arith.constant dense<0xFF800000> : vector<2x8xf32>
    %131 = vector.multi_reduction <maximumf>, %130, %cst_41 [2] : vector<2x8x8xf32> to vector<2x8xf32>
    %132 = vector.shape_cast %131 : vector<2x8xf32> to vector<2x8x1xf32>
    %133 = vector.broadcast %132 : vector<2x8x1xf32> to vector<2x8x8xf32>
    %134 = arith.subf %130, %133 : vector<2x8x8xf32>
    %135 = math.exp %134 : vector<2x8x8xf32>
    %cst_42 = arith.constant dense<0.000000e+00> : vector<2x8xf32>
    %136 = vector.multi_reduction <add>, %135, %cst_42 [2] : vector<2x8x8xf32> to vector<2x8xf32>
    %137 = vector.shape_cast %136 : vector<2x8xf32> to vector<2x8x1xf32>
    %138 = tpu.reciprocal %137 {approx = true} : vector<2x8x1xf32> -> vector<2x8x1xf32>
    %139 = vector.broadcast %138 : vector<2x8x1xf32> to vector<2x8x8xf32>
    %140 = arith.mulf %135, %139 : vector<2x8x8xf32>
    %141 = arith.truncf %140 : vector<2x8x8xf32> to vector<2x8x8xbf16>
    "tpu.trace_start"() <{level = 10 : i32, message = "bqk,bkd->bqd"}> : () -> ()
    %cst_43 = arith.constant dense<0.000000e+00> : vector<2x8x32xf32>
    %142 = tpu.matmul %141, %76, %cst_43 {dimension_numbers = #tpu.dot_dimension_numbers<[2], [1], [1], [2], [0, 0, 0, 1, 1, 2], [0], [0]>} : vector<2x8x8xbf16>, vector<2x8x32xbf16>, vector<2x8x32xf32> -> vector<2x8x32xf32>
    "tpu.trace_stop"() : () -> ()
    %143 = vector.shape_cast %64 : vector<1x32xf32> to vector<1x1x32xf32>
    %144 = vector.broadcast %143 : vector<1x1x32xf32> to vector<2x8x32xf32>
    %145 = arith.mulf %142, %144 : vector<2x8x32xf32>
    %146 = arith.addf %123, %145 : vector<2x8x32xf32>
    %147 = vector.shape_cast %71 : vector<1x32xf32> to vector<1x1x32xf32>
    %148 = vector.broadcast %147 : vector<1x1x32xf32> to vector<2x8x32xf32>
    %149 = arith.mulf %72, %148 : vector<2x8x32xf32>
    %150 = arith.truncf %149 : vector<2x8x32xf32> to vector<2x8x32xbf16>
    "tpu.trace_start"() <{level = 10 : i32, message = "bqd,bkd->bqk"}> : () -> ()
    %cst_44 = arith.constant dense<0.000000e+00> : vector<2x8x8xf32>
    %151 = tpu.matmul %150, %75, %cst_44 {dimension_numbers = #tpu.dot_dimension_numbers<[2], [2], [1], [1], [0, 0, 0, 1, 1, 1], [0], [0]>} : vector<2x8x32xbf16>, vector<2x8x32xbf16>, vector<2x8x8xf32> -> vector<2x8x8xf32>
    "tpu.trace_stop"() : () -> ()
    %cst_45 = arith.constant 0.353553385 : f32
    %152 = vector.broadcast %cst_45 : f32 to vector<2x8x8xf32>
    %153 = arith.mulf %151, %152 : vector<2x8x8xf32>
    %cst_46 = arith.constant dense<0xFF800000> : vector<2x8xf32>
    %154 = vector.multi_reduction <maximumf>, %153, %cst_46 [2] : vector<2x8x8xf32> to vector<2x8xf32>
    %155 = vector.shape_cast %154 : vector<2x8xf32> to vector<2x8x1xf32>
    %156 = vector.broadcast %155 : vector<2x8x1xf32> to vector<2x8x8xf32>
    %157 = arith.subf %153, %156 : vector<2x8x8xf32>
    %158 = math.exp %157 : vector<2x8x8xf32>
    %cst_47 = arith.constant dense<0.000000e+00> : vector<2x8xf32>
    %159 = vector.multi_reduction <add>, %158, %cst_47 [2] : vector<2x8x8xf32> to vector<2x8xf32>
    %160 = vector.shape_cast %159 : vector<2x8xf32> to vector<2x8x1xf32>
    %161 = tpu.reciprocal %160 {approx = true} : vector<2x8x1xf32> -> vector<2x8x1xf32>
    %162 = vector.broadcast %161 : vector<2x8x1xf32> to vector<2x8x8xf32>
    %163 = arith.mulf %158, %162 : vector<2x8x8xf32>
    %164 = arith.truncf %163 : vector<2x8x8xf32> to vector<2x8x8xbf16>
    "tpu.trace_start"() <{level = 10 : i32, message = "bqk,bkd->bqd"}> : () -> ()
    %cst_48 = arith.constant dense<0.000000e+00> : vector<2x8x32xf32>
    %165 = tpu.matmul %164, %76, %cst_48 {dimension_numbers = #tpu.dot_dimension_numbers<[2], [1], [1], [2], [0, 0, 0, 1, 1, 2], [0], [0]>} : vector<2x8x8xbf16>, vector<2x8x32xbf16>, vector<2x8x32xf32> -> vector<2x8x32xf32>
    "tpu.trace_stop"() : () -> ()
    %166 = vector.shape_cast %71 : vector<1x32xf32> to vector<1x1x32xf32>
    %167 = vector.broadcast %166 : vector<1x1x32xf32> to vector<2x8x32xf32>
    %168 = arith.mulf %165, %167 : vector<2x8x32xf32>
    %169 = arith.addf %146, %168 : vector<2x8x32xf32>
    %170 = vector.shape_cast %169 : vector<2x8x32xf32> to vector<16x32xf32>
    %c0_49 = arith.constant 0 : index
    %c0_50 = arith.constant 0 : index
    %171 = vector.load %arg10[%c0_49, %c0_50] : memref<32x32xbf16, #tpu.memory_space<vmem>>, vector<32x32xbf16>
    %172 = arith.truncf %170 : vector<16x32xf32> to vector<16x32xbf16>
    %cst_51 = arith.constant dense<0.000000e+00> : vector<16x32xf32>
    %173 = tpu.matmul %172, %171, %cst_51 {dimension_numbers = #tpu.dot_dimension_numbers<[1], [0], [0], [1], [0, 0, 1, 1], [], []>} : vector<16x32xbf16>, vector<32x32xbf16>, vector<16x32xf32> -> vector<16x32xf32>
    %174 = arith.addf %2, %173 : vector<16x32xf32>
    %c0_52 = arith.constant 0 : index
    %c0_53 = arith.constant 0 : index
    %175 = vector.load %arg11[%c0_52, %c0_53] : memref<1x32xf32, #tpu.memory_space<vmem>>, vector<1x32xf32>
    %176 = vector.broadcast %175 : vector<1x32xf32> to vector<16x32xf32>
    %177 = arith.addf %174, %176 : vector<16x32xf32>
    %c0_54 = arith.constant 0 : index
    %c0_55 = arith.constant 0 : index
    %178 = vector.load %arg12[%c0_54, %c0_55] : memref<1x32xf32, #tpu.memory_space<vmem>>, vector<1x32xf32>
    %c0_56 = arith.constant 0 : index
    %c0_57 = arith.constant 0 : index
    %179 = vector.load %arg13[%c0_56, %c0_57] : memref<1x32xf32, #tpu.memory_space<vmem>>, vector<1x32xf32>
    %cst_58 = arith.constant dense<0.000000e+00> : vector<16xf32>
    %180 = vector.multi_reduction <add>, %177, %cst_58 [1] : vector<16x32xf32> to vector<16xf32>
    %181 = vector.shape_cast %180 : vector<16xf32> to vector<16x1xf32>
    %cst_59 = arith.constant 3.200000e+01 : f32
    %182 = vector.broadcast %cst_59 : f32 to vector<16x1xf32>
    %183 = arith.divf %181, %182 : vector<16x1xf32>
    %184 = vector.broadcast %183 : vector<16x1xf32> to vector<16x32xf32>
    %185 = arith.subf %177, %184 : vector<16x32xf32>
    %186 = arith.mulf %185, %185 : vector<16x32xf32>
    %cst_60 = arith.constant dense<0.000000e+00> : vector<16xf32>
    %187 = vector.multi_reduction <add>, %186, %cst_60 [1] : vector<16x32xf32> to vector<16xf32>
    %188 = vector.shape_cast %187 : vector<16xf32> to vector<16x1xf32>
    %cst_61 = arith.constant 3.200000e+01 : f32
    %189 = vector.broadcast %cst_61 : f32 to vector<16x1xf32>
    %190 = arith.divf %188, %189 : vector<16x1xf32>
    %cst_62 = arith.constant 9.99999974E-6 : f32
    %191 = vector.broadcast %cst_62 : f32 to vector<16x1xf32>
    %192 = arith.addf %190, %191 : vector<16x1xf32>
    %193 = math.rsqrt %192 : vector<16x1xf32>
    %194 = vector.broadcast %193 : vector<16x1xf32> to vector<16x32xf32>
    %195 = arith.mulf %185, %194 : vector<16x32xf32>
    %196 = vector.broadcast %178 : vector<1x32xf32> to vector<16x32xf32>
    %197 = arith.mulf %195, %196 : vector<16x32xf32>
    %198 = vector.broadcast %179 : vector<1x32xf32> to vector<16x32xf32>
    %199 = arith.addf %197, %198 : vector<16x32xf32>
    %c0_63 = arith.constant 0 : index
    %c0_64 = arith.constant 0 : index
    %200 = vector.load %arg14[%c0_63, %c0_64] : memref<32x64xbf16, #tpu.memory_space<vmem>>, vector<32x64xbf16>
    %201 = arith.truncf %199 : vector<16x32xf32> to vector<16x32xbf16>
    %cst_65 = arith.constant dense<0.000000e+00> : vector<16x64xf32>
    %202 = tpu.matmul %201, %200, %cst_65 {dimension_numbers = #tpu.dot_dimension_numbers<[1], [0], [0], [1], [0, 0, 1, 1], [], []>} : vector<16x32xbf16>, vector<32x64xbf16>, vector<16x64xf32> -> vector<16x64xf32>
    %c0_66 = arith.constant 0 : index
    %c0_67 = arith.constant 0 : index
    %203 = vector.load %arg15[%c0_66, %c0_67] : memref<1x64xf32, #tpu.memory_space<vmem>>, vector<1x64xf32>
    %204 = vector.broadcast %203 : vector<1x64xf32> to vector<16x64xf32>
    %205 = arith.addf %202, %204 : vector<16x64xf32>
    %206 = arith.mulf %205, %205 : vector<16x64xf32>
    %207 = arith.mulf %205, %206 : vector<16x64xf32>
    %cst_68 = arith.constant 4.471500e-02 : f32
    %208 = vector.broadcast %cst_68 : f32 to vector<16x64xf32>
    %209 = arith.mulf %208, %207 : vector<16x64xf32>
    %210 = arith.addf %205, %209 : vector<16x64xf32>
    %cst_69 = arith.constant 0.797884583 : f32
    %211 = vector.broadcast %cst_69 : f32 to vector<16x64xf32>
    %212 = arith.mulf %211, %210 : vector<16x64xf32>
    %213 = math.tanh %212 : vector<16x64xf32>
    %cst_70 = arith.constant 1.000000e+00 : f32
    %214 = vector.broadcast %cst_70 : f32 to vector<16x64xf32>
    %215 = arith.addf %214, %213 : vector<16x64xf32>
    %cst_71 = arith.constant 5.000000e-01 : f32
    %216 = vector.broadcast %cst_71 : f32 to vector<16x64xf32>
    %217 = arith.mulf %216, %215 : vector<16x64xf32>
    %218 = arith.mulf %205, %217 : vector<16x64xf32>
    %c0_72 = arith.constant 0 : index
    %c0_73 = arith.constant 0 : index
    %219 = vector.load %arg16[%c0_72, %c0_73] : memref<64x32xbf16, #tpu.memory_space<vmem>>, vector<64x32xbf16>
    %220 = arith.truncf %218 : vector<16x64xf32> to vector<16x64xbf16>
    %cst_74 = arith.constant dense<0.000000e+00> : vector<16x32xf32>
    %221 = tpu.matmul %220, %219, %cst_74 {dimension_numbers = #tpu.dot_dimension_numbers<[1], [0], [0], [1], [0, 0, 1, 1], [], []>} : vector<16x64xbf16>, vector<64x32xbf16>, vector<16x32xf32> -> vector<16x32xf32>
    %222 = arith.addf %177, %221 : vector<16x32xf32>
    %c0_75 = arith.constant 0 : index
    %c0_76 = arith.constant 0 : index
    %223 = vector.load %arg17[%c0_75, %c0_76] : memref<1x32xf32, #tpu.memory_space<vmem>>, vector<1x32xf32>
    %224 = vector.broadcast %223 : vector<1x32xf32> to vector<16x32xf32>
    %225 = arith.addf %222, %224 : vector<16x32xf32>
    %226 = vector.shape_cast %225 : vector<16x32xf32> to vector<2x8x32xf32>
    %227 = arith.truncf %226 : vector<2x8x32xf32> to vector<2x8x32xbf16>
    %c0_77 = arith.constant 0 : index
    %c0_78 = arith.constant 0 : index
    %c0_79 = arith.constant 0 : index
    %228 = vector.load %arg18[%c0_77, %c0_78, %c0_79] : memref<2x8x32xbf16, #tpu.memory_space<vmem>>, vector<2x8x32xbf16>
    tpu.vector_store %arg18[%c0_77, %c0_78, %c0_79], %227 {strides = array<i32>} : memref<2x8x32xbf16, #tpu.memory_space<vmem>>, vector<2x8x32xbf16>,
    return
  }
  func.func @transform_0(%arg0: i32) -> (i32, i32, i32) {
    %c0_i32 = arith.constant 0 : i32
    %c0_i32_0 = arith.constant 0 : i32
    %c0_i32_1 = arith.constant 0 : i32
    return %arg0, %c0_i32, %c0_i32_0 : i32, i32, i32
  }
  func.func @transform_1(%arg0: i32) -> (i32, i32) {
    %c0_i32 = arith.constant 0 : i32
    %c0_i32_0 = arith.constant 0 : i32
    %c0_i32_1 = arith.constant 0 : i32
    return %c0_i32, %c0_i32_0 : i32, i32
  }
  func.func @transform_2(%arg0: i32) -> (i32, i32) {
    %c0_i32 = arith.constant 0 : i32
    %c0_i32_0 = arith.constant 0 : i32
    %c0_i32_1 = arith.constant 0 : i32
    return %c0_i32, %c0_i32_0 : i32, i32
  }
  func.func @transform_3(%arg0: i32) -> (i32, i32) {
    %c0_i32 = arith.constant 0 : i32
    %c0_i32_0 = arith.constant 0 : i32
    %c0_i32_1 = arith.constant 0 : i32
    return %c0_i32, %c0_i32_0 : i32, i32
  }
  func.func @transform_4(%arg0: i32) -> (i32, i32) {
    %c0_i32 = arith.constant 0 : i32
    %c0_i32_0 = arith.constant 0 : i32
    %c0_i32_1 = arith.constant 0 : i32
    return %c0_i32, %c0_i32_0 : i32, i32
  }
  func.func @transform_5(%arg0: i32) -> (i32, i32) {
    %c0_i32 = arith.constant 0 : i32
    %c0_i32_0 = arith.constant 0 : i32
    %c0_i32_1 = arith.constant 0 : i32
    return %c0_i32, %c0_i32_0 : i32, i32
  }
  func.func @transform_6(%arg0: i32) -> (i32, i32) {
    %c0_i32 = arith.constant 0 : i32
    %c0_i32_0 = arith.constant 0 : i32
    %c0_i32_1 = arith.constant 0 : i32
    return %c0_i32, %c0_i32_0 : i32, i32
  }
  func.func @transform_7(%arg0: i32) -> (i32, i32) {
    %c0_i32 = arith.constant 0 : i32
    %c0_i32_0 = arith.constant 0 : i32
    %c0_i32_1 = arith.constant 0 : i32
    return %c0_i32, %c0_i32_0 : i32, i32
  }
  func.func @transform_8(%arg0: i32) -> (i32, i32) {
    %c0_i32 = arith.constant 0 : i32
    %c0_i32_0 = arith.constant 0 : i32
    %c0_i32_1 = arith.constant 0 : i32
    return %c0_i32, %c0_i32_0 : i32, i32
  }
  func.func @transform_9(%arg0: i32) -> (i32, i32) {
    %c0_i32 = arith.constant 0 : i32
    %c0_i32_0 = arith.constant 0 : i32
    %c0_i32_1 = arith.constant 0 : i32
    return %c0_i32, %c0_i32_0 : i32, i32
  }
  func.func @transform_10(%arg0: i32) -> (i32, i32) {
    %c0_i32 = arith.constant 0 : i32
    %c0_i32_0 = arith.constant 0 : i32
    %c0_i32_1 = arith.constant 0 : i32
    return %c0_i32, %c0_i32_0 : i32, i32
  }
  func.func @transform_11(%arg0: i32) -> (i32, i32) {
    %c0_i32 = arith.constant 0 : i32
    %c0_i32_0 = arith.constant 0 : i32
    %c0_i32_1 = arith.constant 0 : i32
    return %c0_i32, %c0_i32_0 : i32, i32
  }
  func.func @transform_12(%arg0: i32) -> (i32, i32) {
    %c0_i32 = arith.constant 0 : i32
    %c0_i32_0 = arith.constant 0 : i32
    %c0_i32_1 = arith.constant 0 : i32
    return %c0_i32, %c0_i32_0 : i32, i32
  }
  func.func @transform_13(%arg0: i32) -> (i32, i32) {
    %c0_i32 = arith.constant 0 : i32
    %c0_i32_0 = arith.constant 0 : i32
    %c0_i32_1 = arith.constant 0 : i32
    return %c0_i32, %c0_i32_0 : i32, i32
  }
  func.func @transform_14(%arg0: i32) -> (i32, i32) {
    %c0_i32 = arith.constant 0 : i32
    %c0_i32_0 = arith.constant 0 : i32
    %c0_i32_1 = arith.constant 0 : i32
    return %c0_i32, %c0_i32_0 : i32, i32
  }
  func.func @transform_15(%arg0: i32) -> (i32, i32) {
    %c0_i32 = arith.constant 0 : i32
    %c0_i32_0 = arith.constant 0 : i32
    %c0_i32_1 = arith.constant 0 : i32
    return %c0_i32, %c0_i32_0 : i32, i32
  }
  func.func @transform_16(%arg0: i32) -> (i32, i32) {
    %c0_i32 = arith.constant 0 : i32
    %c0_i32_0 = arith.constant 0 : i32
    %c0_i32_1 = arith.constant 0 : i32
    return %c0_i32, %c0_i32_0 : i32, i32
  }
  func.func @transform_17(%arg0: i32) -> (i32, i32, i32) {
    %c0_i32 = arith.constant 0 : i32
    %c0_i32_0 = arith.constant 0 : i32
    %c0_i32_1 = arith.constant 0 : i32
    return %arg0, %c0_i32, %c0_i32_0 : i32, i32, i32
  }
}

module attributes {stable_mosaic.version = 11 : i64} {
  func.func @_cross_flash_kernel(%arg0: i32, %arg1: i32, %arg2: memref<1x8x32xbf16, #tpu.memory_space<vmem>>, %arg3: memref<1x32xf32, #tpu.memory_space<vmem>>, %arg4: memref<1x32xf32, #tpu.memory_space<vmem>>, %arg5: memref<32x32xbf16, #tpu.memory_space<vmem>>, %arg6: memref<1x32xf32, #tpu.memory_space<vmem>>, %arg7: memref<1x16x32xbf16, #tpu.memory_space<vmem>>, %arg8: memref<1x32xf32, #tpu.memory_space<vmem>>, %arg9: memref<1x32xf32, #tpu.memory_space<vmem>>, %arg10: memref<32x32xbf16, #tpu.memory_space<vmem>>, %arg11: memref<1x32xf32, #tpu.memory_space<vmem>>, %arg12: memref<32x32xbf16, #tpu.memory_space<vmem>>, %arg13: memref<1x32xf32, #tpu.memory_space<vmem>>, %arg14: memref<32x32xbf16, #tpu.memory_space<vmem>>, %arg15: memref<1x32xf32, #tpu.memory_space<vmem>>, %arg16: memref<1x32xf32, #tpu.memory_space<vmem>>, %arg17: memref<1x32xf32, #tpu.memory_space<vmem>>, %arg18: memref<32x64xbf16, #tpu.memory_space<vmem>>, %arg19: memref<1x64xf32, #tpu.memory_space<vmem>>, %arg20: memref<64x32xbf16, #tpu.memory_space<vmem>>, %arg21: memref<1x32xf32, #tpu.memory_space<vmem>>, %arg22: memref<1x8x32xbf16, #tpu.memory_space<vmem>>, %arg23: memref<8x32xf32, #tpu.memory_space<vmem>>, %arg24: memref<8x32xf32, #tpu.memory_space<vmem>>, %arg25: memref<4x8x1xf32, #tpu.memory_space<vmem>>, %arg26: memref<4x8x1xf32, #tpu.memory_space<vmem>>, %arg27: memref<8x32xf32, #tpu.memory_space<vmem>>) attributes {dimension_semantics = [#tpu.dimension_semantics<parallel>, #tpu.dimension_semantics<arbitrary>], iteration_bounds = array<i64: 2, 1>, scalar_prefetch = 0 : i64, scratch_operands = 5 : i64, tpu.core_type = #tpu.core_type<tc>, window_params = [{pipeline_mode = #tpu.pipeline_mode<synchronous>, transform_indices = @transform_0, window_bounds = array<i64: 1, 8, 32>}, {pipeline_mode = #tpu.pipeline_mode<synchronous>, transform_indices = @transform_1, window_bounds = array<i64: 1, 32>}, {pipeline_mode = #tpu.pipeline_mode<synchronous>, transform_indices = @transform_2, window_bounds = array<i64: 1, 32>}, {pipeline_mode = #tpu.pipeline_mode<synchronous>, transform_indices = @transform_3, window_bounds = array<i64: 32, 32>}, {pipeline_mode = #tpu.pipeline_mode<synchronous>, transform_indices = @transform_4, window_bounds = array<i64: 1, 32>}, {transform_indices = @transform_5, window_bounds = array<i64: 1, 16, 32>}, {pipeline_mode = #tpu.pipeline_mode<synchronous>, transform_indices = @transform_6, window_bounds = array<i64: 1, 32>}, {pipeline_mode = #tpu.pipeline_mode<synchronous>, transform_indices = @transform_7, window_bounds = array<i64: 1, 32>}, {pipeline_mode = #tpu.pipeline_mode<synchronous>, transform_indices = @transform_8, window_bounds = array<i64: 32, 32>}, {pipeline_mode = #tpu.pipeline_mode<synchronous>, transform_indices = @transform_9, window_bounds = array<i64: 1, 32>}, {pipeline_mode = #tpu.pipeline_mode<synchronous>, transform_indices = @transform_10, window_bounds = array<i64: 32, 32>}, {pipeline_mode = #tpu.pipeline_mode<synchronous>, transform_indices = @transform_11, window_bounds = array<i64: 1, 32>}, {pipeline_mode = #tpu.pipeline_mode<synchronous>, transform_indices = @transform_12, window_bounds = array<i64: 32, 32>}, {pipeline_mode = #tpu.pipeline_mode<synchronous>, transform_indices = @transform_13, window_bounds = array<i64: 1, 32>}, {pipeline_mode = #tpu.pipeline_mode<synchronous>, transform_indices = @transform_14, window_bounds = array<i64: 1, 32>}, {pipeline_mode = #tpu.pipeline_mode<synchronous>, transform_indices = @transform_15, window_bounds = array<i64: 1, 32>}, {pipeline_mode = #tpu.pipeline_mode<synchronous>, transform_indices = @transform_16, window_bounds = array<i64: 32, 64>}, {pipeline_mode = #tpu.pipeline_mode<synchronous>, transform_indices = @transform_17, window_bounds = array<i64: 1, 64>}, {pipeline_mode = #tpu.pipeline_mode<synchronous>, transform_indices = @transform_18, window_bounds = array<i64: 64, 32>}, {pipeline_mode = #tpu.pipeline_mode<synchronous>, transform_indices = @transform_19, window_bounds = array<i64: 1, 32>}, {transform_indices = @transform_20, window_bounds = array<i64: 1, 8, 32>}]} {
    %0 = tpu.iota {dimensions = array<i32: 1>} : vector<1x32xi32>
    %c0_i32 = arith.constant 0 : i32
    %1 = vector.broadcast %c0_i32 : i32 to vector<1x32xi32>
    %2 = arith.cmpi sge, %0, %1 : vector<1x32xi32>
    %c8_i32 = arith.constant 8 : i32
    %3 = vector.broadcast %c8_i32 : i32 to vector<1x32xi32>
    %4 = arith.cmpi slt, %0, %3 : vector<1x32xi32>
    %5 = arith.andi %2, %4 : vector<1x32xi1>
    %6 = arith.extui %5 : vector<1x32xi1> to vector<1x32xi32>
    %7 = arith.sitofp %6 : vector<1x32xi32> to vector<1x32xf32>
    %c8_i32_0 = arith.constant 8 : i32
    %8 = vector.broadcast %c8_i32_0 : i32 to vector<1x32xi32>
    %9 = arith.cmpi sge, %0, %8 : vector<1x32xi32>
    %c16_i32 = arith.constant 16 : i32
    %10 = vector.broadcast %c16_i32 : i32 to vector<1x32xi32>
    %11 = arith.cmpi slt, %0, %10 : vector<1x32xi32>
    %12 = arith.andi %9, %11 : vector<1x32xi1>
    %13 = arith.extui %12 : vector<1x32xi1> to vector<1x32xi32>
    %14 = arith.sitofp %13 : vector<1x32xi32> to vector<1x32xf32>
    %c16_i32_1 = arith.constant 16 : i32
    %15 = vector.broadcast %c16_i32_1 : i32 to vector<1x32xi32>
    %16 = arith.cmpi sge, %0, %15 : vector<1x32xi32>
    %c24_i32 = arith.constant 24 : i32
    %17 = vector.broadcast %c24_i32 : i32 to vector<1x32xi32>
    %18 = arith.cmpi slt, %0, %17 : vector<1x32xi32>
    %19 = arith.andi %16, %18 : vector<1x32xi1>
    %20 = arith.extui %19 : vector<1x32xi1> to vector<1x32xi32>
    %21 = arith.sitofp %20 : vector<1x32xi32> to vector<1x32xf32>
    %c24_i32_2 = arith.constant 24 : i32
    %22 = vector.broadcast %c24_i32_2 : i32 to vector<1x32xi32>
    %23 = arith.cmpi sge, %0, %22 : vector<1x32xi32>
    %c32_i32 = arith.constant 32 : i32
    %24 = vector.broadcast %c32_i32 : i32 to vector<1x32xi32>
    %25 = arith.cmpi slt, %0, %24 : vector<1x32xi32>
    %26 = arith.andi %23, %25 : vector<1x32xi1>
    %27 = arith.extui %26 : vector<1x32xi1> to vector<1x32xi32>
    %28 = arith.sitofp %27 : vector<1x32xi32> to vector<1x32xf32>
    %c0_i32_3 = arith.constant 0 : i32
    %29 = arith.cmpi eq, %arg1, %c0_i32_3 : i32
    %30 = arith.extui %29 : i1 to i32
    %c0_i32_4 = arith.constant 0 : i32
    %31 = arith.cmpi ne, %30, %c0_i32_4 : i32
    scf.if %31 {
      %c0_118 = arith.constant 0 : index
      %c0_119 = arith.constant 0 : index
      %c0_120 = arith.constant 0 : index
      %251 = vector.load %arg2[%c0_118, %c0_119, %c0_120] : memref<1x8x32xbf16, #tpu.memory_space<vmem>>, vector<1x8x32xbf16>
      %252 = vector.shape_cast %251 : vector<1x8x32xbf16> to vector<8x32xbf16>
      %253 = arith.extf %252 : vector<8x32xbf16> to vector<8x32xf32>
      %c0_121 = arith.constant 0 : index
      %c0_122 = arith.constant 0 : index
      %254 = vector.load %arg3[%c0_121, %c0_122] : memref<1x32xf32, #tpu.memory_space<vmem>>, vector<1x32xf32>
      %c0_123 = arith.constant 0 : index
      %c0_124 = arith.constant 0 : index
      %255 = vector.load %arg4[%c0_123, %c0_124] : memref<1x32xf32, #tpu.memory_space<vmem>>, vector<1x32xf32>
      %cst_125 = arith.constant dense<0.000000e+00> : vector<8xf32>
      %256 = vector.multi_reduction <add>, %253, %cst_125 [1] : vector<8x32xf32> to vector<8xf32>
      %257 = vector.shape_cast %256 : vector<8xf32> to vector<8x1xf32>
      %cst_126 = arith.constant 3.200000e+01 : f32
      %258 = vector.broadcast %cst_126 : f32 to vector<8x1xf32>
      %259 = arith.divf %257, %258 : vector<8x1xf32>
      %260 = vector.broadcast %259 : vector<8x1xf32> to vector<8x32xf32>
      %261 = arith.subf %253, %260 : vector<8x32xf32>
      %262 = arith.mulf %261, %261 : vector<8x32xf32>
      %cst_127 = arith.constant dense<0.000000e+00> : vector<8xf32>
      %263 = vector.multi_reduction <add>, %262, %cst_127 [1] : vector<8x32xf32> to vector<8xf32>
      %264 = vector.shape_cast %263 : vector<8xf32> to vector<8x1xf32>
      %cst_128 = arith.constant 3.200000e+01 : f32
      %265 = vector.broadcast %cst_128 : f32 to vector<8x1xf32>
      %266 = arith.divf %264, %265 : vector<8x1xf32>
      %cst_129 = arith.constant 9.99999974E-6 : f32
      %267 = vector.broadcast %cst_129 : f32 to vector<8x1xf32>
      %268 = arith.addf %266, %267 : vector<8x1xf32>
      %269 = math.rsqrt %268 : vector<8x1xf32>
      %270 = vector.broadcast %269 : vector<8x1xf32> to vector<8x32xf32>
      %271 = arith.mulf %261, %270 : vector<8x32xf32>
      %272 = vector.broadcast %254 : vector<1x32xf32> to vector<8x32xf32>
      %273 = arith.mulf %271, %272 : vector<8x32xf32>
      %274 = vector.broadcast %255 : vector<1x32xf32> to vector<8x32xf32>
      %275 = arith.addf %273, %274 : vector<8x32xf32>
      %c0_130 = arith.constant 0 : index
      %c0_131 = arith.constant 0 : index
      %276 = vector.load %arg23[%c0_130, %c0_131] : memref<8x32xf32, #tpu.memory_space<vmem>>, vector<8x32xf32>
      tpu.vector_store %arg23[%c0_130, %c0_131], %275 {strides = array<i32>} : memref<8x32xf32, #tpu.memory_space<vmem>>, vector<8x32xf32>,
      %c0_132 = arith.constant 0 : index
      %c0_133 = arith.constant 0 : index
      %277 = vector.load %arg5[%c0_132, %c0_133] : memref<32x32xbf16, #tpu.memory_space<vmem>>, vector<32x32xbf16>
      %278 = arith.truncf %275 : vector<8x32xf32> to vector<8x32xbf16>
      %cst_134 = arith.constant dense<0.000000e+00> : vector<8x32xf32>
      %279 = tpu.matmul %278, %277, %cst_134 {dimension_numbers = #tpu.dot_dimension_numbers<[1], [0], [0], [1], [0, 0, 1, 1], [], []>} : vector<8x32xbf16>, vector<32x32xbf16>, vector<8x32xf32> -> vector<8x32xf32>
      %c0_135 = arith.constant 0 : index
      %c0_136 = arith.constant 0 : index
      %280 = vector.load %arg6[%c0_135, %c0_136] : memref<1x32xf32, #tpu.memory_space<vmem>>, vector<1x32xf32>
      %281 = vector.broadcast %280 : vector<1x32xf32> to vector<8x32xf32>
      %282 = arith.addf %279, %281 : vector<8x32xf32>
      %c0_137 = arith.constant 0 : index
      %c0_138 = arith.constant 0 : index
      %283 = vector.load %arg24[%c0_137, %c0_138] : memref<8x32xf32, #tpu.memory_space<vmem>>, vector<8x32xf32>
      tpu.vector_store %arg24[%c0_137, %c0_138], %282 {strides = array<i32>} : memref<8x32xf32, #tpu.memory_space<vmem>>, vector<8x32xf32>,
      %cst_139 = arith.constant 0xFF800000 : f32
      %284 = vector.broadcast %cst_139 : f32 to vector<4x8x1xf32>
      %c0_140 = arith.constant 0 : index
      %c0_141 = arith.constant 0 : index
      %c0_142 = arith.constant 0 : index
      %285 = vector.load %arg25[%c0_140, %c0_141, %c0_142] : memref<4x8x1xf32, #tpu.memory_space<vmem>>, vector<4x8x1xf32>
      tpu.vector_store %arg25[%c0_140, %c0_141, %c0_142], %284 {strides = array<i32>} : memref<4x8x1xf32, #tpu.memory_space<vmem>>, vector<4x8x1xf32>,
      %cst_143 = arith.constant 0.000000e+00 : f32
      %286 = vector.broadcast %cst_143 : f32 to vector<4x8x1xf32>
      %c0_144 = arith.constant 0 : index
      %c0_145 = arith.constant 0 : index
      %c0_146 = arith.constant 0 : index
      %287 = vector.load %arg26[%c0_144, %c0_145, %c0_146] : memref<4x8x1xf32, #tpu.memory_space<vmem>>, vector<4x8x1xf32>
      tpu.vector_store %arg26[%c0_144, %c0_145, %c0_146], %286 {strides = array<i32>} : memref<4x8x1xf32, #tpu.memory_space<vmem>>, vector<4x8x1xf32>,
      %cst_147 = arith.constant 0.000000e+00 : f32
      %288 = vector.broadcast %cst_147 : f32 to vector<8x32xf32>
      %c0_148 = arith.constant 0 : index
      %c0_149 = arith.constant 0 : index
      %289 = vector.load %arg27[%c0_148, %c0_149] : memref<8x32xf32, #tpu.memory_space<vmem>>, vector<8x32xf32>
      tpu.vector_store %arg27[%c0_148, %c0_149], %288 {strides = array<i32>} : memref<8x32xf32, #tpu.memory_space<vmem>>, vector<8x32xf32>,
    } else {
    }
    %c0 = arith.constant 0 : index
    %c0_5 = arith.constant 0 : index
    %c0_6 = arith.constant 0 : index
    %32 = vector.load %arg7[%c0, %c0_5, %c0_6] : memref<1x16x32xbf16, #tpu.memory_space<vmem>>, vector<1x16x32xbf16>
    %33 = vector.shape_cast %32 : vector<1x16x32xbf16> to vector<16x32xbf16>
    %34 = arith.extf %33 : vector<16x32xbf16> to vector<16x32xf32>
    %c0_7 = arith.constant 0 : index
    %c0_8 = arith.constant 0 : index
    %35 = vector.load %arg8[%c0_7, %c0_8] : memref<1x32xf32, #tpu.memory_space<vmem>>, vector<1x32xf32>
    %c0_9 = arith.constant 0 : index
    %c0_10 = arith.constant 0 : index
    %36 = vector.load %arg9[%c0_9, %c0_10] : memref<1x32xf32, #tpu.memory_space<vmem>>, vector<1x32xf32>
    %cst = arith.constant dense<0.000000e+00> : vector<16xf32>
    %37 = vector.multi_reduction <add>, %34, %cst [1] : vector<16x32xf32> to vector<16xf32>
    %38 = vector.shape_cast %37 : vector<16xf32> to vector<16x1xf32>
    %cst_11 = arith.constant 3.200000e+01 : f32
    %39 = vector.broadcast %cst_11 : f32 to vector<16x1xf32>
    %40 = arith.divf %38, %39 : vector<16x1xf32>
    %41 = vector.broadcast %40 : vector<16x1xf32> to vector<16x32xf32>
    %42 = arith.subf %34, %41 : vector<16x32xf32>
    %43 = arith.mulf %42, %42 : vector<16x32xf32>
    %cst_12 = arith.constant dense<0.000000e+00> : vector<16xf32>
    %44 = vector.multi_reduction <add>, %43, %cst_12 [1] : vector<16x32xf32> to vector<16xf32>
    %45 = vector.shape_cast %44 : vector<16xf32> to vector<16x1xf32>
    %cst_13 = arith.constant 3.200000e+01 : f32
    %46 = vector.broadcast %cst_13 : f32 to vector<16x1xf32>
    %47 = arith.divf %45, %46 : vector<16x1xf32>
    %cst_14 = arith.constant 9.99999974E-6 : f32
    %48 = vector.broadcast %cst_14 : f32 to vector<16x1xf32>
    %49 = arith.addf %47, %48 : vector<16x1xf32>
    %50 = math.rsqrt %49 : vector<16x1xf32>
    %51 = vector.broadcast %50 : vector<16x1xf32> to vector<16x32xf32>
    %52 = arith.mulf %42, %51 : vector<16x32xf32>
    %53 = vector.broadcast %35 : vector<1x32xf32> to vector<16x32xf32>
    %54 = arith.mulf %52, %53 : vector<16x32xf32>
    %55 = vector.broadcast %36 : vector<1x32xf32> to vector<16x32xf32>
    %56 = arith.addf %54, %55 : vector<16x32xf32>
    %c0_15 = arith.constant 0 : index
    %c0_16 = arith.constant 0 : index
    %57 = vector.load %arg10[%c0_15, %c0_16] : memref<32x32xbf16, #tpu.memory_space<vmem>>, vector<32x32xbf16>
    %58 = arith.truncf %56 : vector<16x32xf32> to vector<16x32xbf16>
    %cst_17 = arith.constant dense<0.000000e+00> : vector<16x32xf32>
    %59 = tpu.matmul %58, %57, %cst_17 {dimension_numbers = #tpu.dot_dimension_numbers<[1], [0], [0], [1], [0, 0, 1, 1], [], []>} : vector<16x32xbf16>, vector<32x32xbf16>, vector<16x32xf32> -> vector<16x32xf32>
    %c0_18 = arith.constant 0 : index
    %c0_19 = arith.constant 0 : index
    %60 = vector.load %arg11[%c0_18, %c0_19] : memref<1x32xf32, #tpu.memory_space<vmem>>, vector<1x32xf32>
    %61 = vector.broadcast %60 : vector<1x32xf32> to vector<16x32xf32>
    %62 = arith.addf %59, %61 : vector<16x32xf32>
    %c0_20 = arith.constant 0 : index
    %c0_21 = arith.constant 0 : index
    %63 = vector.load %arg12[%c0_20, %c0_21] : memref<32x32xbf16, #tpu.memory_space<vmem>>, vector<32x32xbf16>
    %64 = arith.truncf %56 : vector<16x32xf32> to vector<16x32xbf16>
    %cst_22 = arith.constant dense<0.000000e+00> : vector<16x32xf32>
    %65 = tpu.matmul %64, %63, %cst_22 {dimension_numbers = #tpu.dot_dimension_numbers<[1], [0], [0], [1], [0, 0, 1, 1], [], []>} : vector<16x32xbf16>, vector<32x32xbf16>, vector<16x32xf32> -> vector<16x32xf32>
    %c0_23 = arith.constant 0 : index
    %c0_24 = arith.constant 0 : index
    %66 = vector.load %arg13[%c0_23, %c0_24] : memref<1x32xf32, #tpu.memory_space<vmem>>, vector<1x32xf32>
    %67 = vector.broadcast %66 : vector<1x32xf32> to vector<16x32xf32>
    %68 = arith.addf %65, %67 : vector<16x32xf32>
    %69 = arith.truncf %62 : vector<16x32xf32> to vector<16x32xbf16>
    %70 = arith.truncf %68 : vector<16x32xf32> to vector<16x32xbf16>
    %c0_25 = arith.constant 0 : index
    %c0_26 = arith.constant 0 : index
    %71 = vector.load %arg24[%c0_25, %c0_26] : memref<8x32xf32, #tpu.memory_space<vmem>>, vector<8x32xf32>
    %72 = vector.broadcast %7 : vector<1x32xf32> to vector<8x32xf32>
    %73 = arith.mulf %71, %72 : vector<8x32xf32>
    %74 = arith.truncf %73 : vector<8x32xf32> to vector<8x32xbf16>
    %cst_27 = arith.constant dense<0.000000e+00> : vector<8x16xf32>
    %75 = tpu.matmul %74, %69, %cst_27 {dimension_numbers = #tpu.dot_dimension_numbers<[1], [1], [0], [0], [0, 0, 1, 0], [], []>} : vector<8x32xbf16>, vector<16x32xbf16>, vector<8x16xf32> -> vector<8x16xf32>
    %cst_28 = arith.constant 0.353553385 : f32
    %76 = vector.broadcast %cst_28 : f32 to vector<8x16xf32>
    %77 = arith.mulf %75, %76 : vector<8x16xf32>
    %c0_29 = arith.constant 0 : index
    %c0_30 = arith.constant 0 : index
    %c0_31 = arith.constant 0 : index
    %78 = vector.load %arg25[%c0_29, %c0_30, %c0_31] : memref<4x8x1xf32, #tpu.memory_space<vmem>>, vector<1x8x1xf32>
    %79 = vector.shape_cast %78 : vector<1x8x1xf32> to vector<8x1xf32>
    %cst_32 = arith.constant dense<0xFF800000> : vector<8xf32>
    %80 = vector.multi_reduction <maximumf>, %77, %cst_32 [1] : vector<8x16xf32> to vector<8xf32>
    %81 = vector.shape_cast %80 : vector<8xf32> to vector<8x1xf32>
    %82 = arith.maximumf %79, %81 : vector<8x1xf32>
    %83 = arith.subf %79, %82 : vector<8x1xf32>
    %84 = math.exp %83 : vector<8x1xf32>
    %85 = vector.broadcast %82 : vector<8x1xf32> to vector<8x16xf32>
    %86 = arith.subf %77, %85 : vector<8x16xf32>
    %87 = math.exp %86 : vector<8x16xf32>
    %c0_33 = arith.constant 0 : index
    %c0_34 = arith.constant 0 : index
    %c0_35 = arith.constant 0 : index
    %88 = vector.load %arg26[%c0_33, %c0_34, %c0_35] : memref<4x8x1xf32, #tpu.memory_space<vmem>>, vector<1x8x1xf32>
    %89 = vector.shape_cast %88 : vector<1x8x1xf32> to vector<8x1xf32>
    %90 = arith.mulf %84, %89 : vector<8x1xf32>
    %cst_36 = arith.constant dense<0.000000e+00> : vector<8xf32>
    %91 = vector.multi_reduction <add>, %87, %cst_36 [1] : vector<8x16xf32> to vector<8xf32>
    %92 = vector.shape_cast %91 : vector<8xf32> to vector<8x1xf32>
    %93 = arith.addf %90, %92 : vector<8x1xf32>
    %c0_37 = arith.constant 0 : index
    %c0_38 = arith.constant 0 : index
    %c0_39 = arith.constant 0 : index
    %94 = vector.load %arg26[%c0_37, %c0_38, %c0_39] : memref<4x8x1xf32, #tpu.memory_space<vmem>>, vector<1x8x1xf32>
    %95 = vector.shape_cast %94 : vector<1x8x1xf32> to vector<8x1xf32>
    %96 = vector.shape_cast %93 : vector<8x1xf32> to vector<1x8x1xf32>
    tpu.vector_store %arg26[%c0_37, %c0_38, %c0_39], %96 {strides = array<i32>} : memref<4x8x1xf32, #tpu.memory_space<vmem>>, vector<1x8x1xf32>,
    %97 = arith.truncf %87 : vector<8x16xf32> to vector<8x16xbf16>
    %cst_40 = arith.constant dense<0.000000e+00> : vector<8x32xf32>
    %98 = tpu.matmul %97, %70, %cst_40 {dimension_numbers = #tpu.dot_dimension_numbers<[1], [0], [0], [1], [0, 0, 1, 1], [], []>} : vector<8x16xbf16>, vector<16x32xbf16>, vector<8x32xf32> -> vector<8x32xf32>
    %99 = vector.broadcast %7 : vector<1x32xf32> to vector<8x32xf32>
    %100 = arith.mulf %98, %99 : vector<8x32xf32>
    %c0_41 = arith.constant 0 : index
    %c0_42 = arith.constant 0 : index
    %101 = vector.load %arg27[%c0_41, %c0_42] : memref<8x32xf32, #tpu.memory_space<vmem>>, vector<8x32xf32>
    %cst_43 = arith.constant 0.000000e+00 : f32
    %102 = vector.broadcast %cst_43 : f32 to vector<1x32xf32>
    %103 = arith.cmpf ogt, %7, %102 : vector<1x32xf32>
    %cst_44 = arith.constant 1.000000e+00 : f32
    %104 = vector.shape_cast %103 : vector<1x32xi1> to vector<1x32xi1>
    %105 = vector.broadcast %104 : vector<1x32xi1> to vector<8x32xi1>
    %106 = vector.shape_cast %84 : vector<8x1xf32> to vector<8x1xf32>
    %107 = vector.broadcast %106 : vector<8x1xf32> to vector<8x32xf32>
    %108 = vector.broadcast %cst_44 : f32 to vector<8x32xf32>
    %109 = arith.select %105, %107, %108 : vector<8x32xi1>, vector<8x32xf32>
    %110 = arith.mulf %101, %109 : vector<8x32xf32>
    %111 = arith.addf %110, %100 : vector<8x32xf32>
    %c0_45 = arith.constant 0 : index
    %c0_46 = arith.constant 0 : index
    %112 = vector.load %arg27[%c0_45, %c0_46] : memref<8x32xf32, #tpu.memory_space<vmem>>, vector<8x32xf32>
    tpu.vector_store %arg27[%c0_45, %c0_46], %111 {strides = array<i32>} : memref<8x32xf32, #tpu.memory_space<vmem>>, vector<8x32xf32>,
    %c0_47 = arith.constant 0 : index
    %c0_48 = arith.constant 0 : index
    %c0_49 = arith.constant 0 : index
    %113 = vector.load %arg25[%c0_47, %c0_48, %c0_49] : memref<4x8x1xf32, #tpu.memory_space<vmem>>, vector<1x8x1xf32>
    %114 = vector.shape_cast %113 : vector<1x8x1xf32> to vector<8x1xf32>
    %115 = vector.shape_cast %82 : vector<8x1xf32> to vector<1x8x1xf32>
    tpu.vector_store %arg25[%c0_47, %c0_48, %c0_49], %115 {strides = array<i32>} : memref<4x8x1xf32, #tpu.memory_space<vmem>>, vector<1x8x1xf32>,
    %116 = vector.broadcast %14 : vector<1x32xf32> to vector<8x32xf32>
    %117 = arith.mulf %71, %116 : vector<8x32xf32>
    %118 = arith.truncf %117 : vector<8x32xf32> to vector<8x32xbf16>
    %cst_50 = arith.constant dense<0.000000e+00> : vector<8x16xf32>
    %119 = tpu.matmul %118, %69, %cst_50 {dimension_numbers = #tpu.dot_dimension_numbers<[1], [1], [0], [0], [0, 0, 1, 0], [], []>} : vector<8x32xbf16>, vector<16x32xbf16>, vector<8x16xf32> -> vector<8x16xf32>
    %cst_51 = arith.constant 0.353553385 : f32
    %120 = vector.broadcast %cst_51 : f32 to vector<8x16xf32>
    %121 = arith.mulf %119, %120 : vector<8x16xf32>
    %c1 = arith.constant 1 : index
    %c0_52 = arith.constant 0 : index
    %c0_53 = arith.constant 0 : index
    %122 = vector.load %arg25[%c1, %c0_52, %c0_53] : memref<4x8x1xf32, #tpu.memory_space<vmem>>, vector<1x8x1xf32>
    %123 = vector.shape_cast %122 : vector<1x8x1xf32> to vector<8x1xf32>
    %cst_54 = arith.constant dense<0xFF800000> : vector<8xf32>
    %124 = vector.multi_reduction <maximumf>, %121, %cst_54 [1] : vector<8x16xf32> to vector<8xf32>
    %125 = vector.shape_cast %124 : vector<8xf32> to vector<8x1xf32>
    %126 = arith.maximumf %123, %125 : vector<8x1xf32>
    %127 = arith.subf %123, %126 : vector<8x1xf32>
    %128 = math.exp %127 : vector<8x1xf32>
    %129 = vector.broadcast %126 : vector<8x1xf32> to vector<8x16xf32>
    %130 = arith.subf %121, %129 : vector<8x16xf32>
    %131 = math.exp %130 : vector<8x16xf32>
    %c1_55 = arith.constant 1 : index
    %c0_56 = arith.constant 0 : index
    %c0_57 = arith.constant 0 : index
    %132 = vector.load %arg26[%c1_55, %c0_56, %c0_57] : memref<4x8x1xf32, #tpu.memory_space<vmem>>, vector<1x8x1xf32>
    %133 = vector.shape_cast %132 : vector<1x8x1xf32> to vector<8x1xf32>
    %134 = arith.mulf %128, %133 : vector<8x1xf32>
    %cst_58 = arith.constant dense<0.000000e+00> : vector<8xf32>
    %135 = vector.multi_reduction <add>, %131, %cst_58 [1] : vector<8x16xf32> to vector<8xf32>
    %136 = vector.shape_cast %135 : vector<8xf32> to vector<8x1xf32>
    %137 = arith.addf %134, %136 : vector<8x1xf32>
    %c1_59 = arith.constant 1 : index
    %c0_60 = arith.constant 0 : index
    %c0_61 = arith.constant 0 : index
    %138 = vector.load %arg26[%c1_59, %c0_60, %c0_61] : memref<4x8x1xf32, #tpu.memory_space<vmem>>, vector<1x8x1xf32>
    %139 = vector.shape_cast %138 : vector<1x8x1xf32> to vector<8x1xf32>
    %140 = vector.shape_cast %137 : vector<8x1xf32> to vector<1x8x1xf32>
    tpu.vector_store %arg26[%c1_59, %c0_60, %c0_61], %140 {strides = array<i32>} : memref<4x8x1xf32, #tpu.memory_space<vmem>>, vector<1x8x1xf32>,
    %141 = arith.truncf %131 : vector<8x16xf32> to vector<8x16xbf16>
    %cst_62 = arith.constant dense<0.000000e+00> : vector<8x32xf32>
    %142 = tpu.matmul %141, %70, %cst_62 {dimension_numbers = #tpu.dot_dimension_numbers<[1], [0], [0], [1], [0, 0, 1, 1], [], []>} : vector<8x16xbf16>, vector<16x32xbf16>, vector<8x32xf32> -> vector<8x32xf32>
    %143 = vector.broadcast %14 : vector<1x32xf32> to vector<8x32xf32>
    %144 = arith.mulf %142, %143 : vector<8x32xf32>
    %c0_63 = arith.constant 0 : index
    %c0_64 = arith.constant 0 : index
    %145 = vector.load %arg27[%c0_63, %c0_64] : memref<8x32xf32, #tpu.memory_space<vmem>>, vector<8x32xf32>
    %cst_65 = arith.constant 0.000000e+00 : f32
    %146 = vector.broadcast %cst_65 : f32 to vector<1x32xf32>
    %147 = arith.cmpf ogt, %14, %146 : vector<1x32xf32>
    %cst_66 = arith.constant 1.000000e+00 : f32
    %148 = vector.shape_cast %147 : vector<1x32xi1> to vector<1x32xi1>
    %149 = vector.broadcast %148 : vector<1x32xi1> to vector<8x32xi1>
    %150 = vector.shape_cast %128 : vector<8x1xf32> to vector<8x1xf32>
    %151 = vector.broadcast %150 : vector<8x1xf32> to vector<8x32xf32>
    %152 = vector.broadcast %cst_66 : f32 to vector<8x32xf32>
    %153 = arith.select %149, %151, %152 : vector<8x32xi1>, vector<8x32xf32>
    %154 = arith.mulf %145, %153 : vector<8x32xf32>
    %155 = arith.addf %154, %144 : vector<8x32xf32>
    %c0_67 = arith.constant 0 : index
    %c0_68 = arith.constant 0 : index
    %156 = vector.load %arg27[%c0_67, %c0_68] : memref<8x32xf32, #tpu.memory_space<vmem>>, vector<8x32xf32>
    tpu.vector_store %arg27[%c0_67, %c0_68], %155 {strides = array<i32>} : memref<8x32xf32, #tpu.memory_space<vmem>>, vector<8x32xf32>,
    %c1_69 = arith.constant 1 : index
    %c0_70 = arith.constant 0 : index
    %c0_71 = arith.constant 0 : index
    %157 = vector.load %arg25[%c1_69, %c0_70, %c0_71] : memref<4x8x1xf32, #tpu.memory_space<vmem>>, vector<1x8x1xf32>
    %158 = vector.shape_cast %157 : vector<1x8x1xf32> to vector<8x1xf32>
    %159 = vector.shape_cast %126 : vector<8x1xf32> to vector<1x8x1xf32>
    tpu.vector_store %arg25[%c1_69, %c0_70, %c0_71], %159 {strides = array<i32>} : memref<4x8x1xf32, #tpu.memory_space<vmem>>, vector<1x8x1xf32>,
    %160 = vector.broadcast %21 : vector<1x32xf32> to vector<8x32xf32>
    %161 = arith.mulf %71, %160 : vector<8x32xf32>
    %162 = arith.truncf %161 : vector<8x32xf32> to vector<8x32xbf16>
    %cst_72 = arith.constant dense<0.000000e+00> : vector<8x16xf32>
    %163 = tpu.matmul %162, %69, %cst_72 {dimension_numbers = #tpu.dot_dimension_numbers<[1], [1], [0], [0], [0, 0, 1, 0], [], []>} : vector<8x32xbf16>, vector<16x32xbf16>, vector<8x16xf32> -> vector<8x16xf32>
    %cst_73 = arith.constant 0.353553385 : f32
    %164 = vector.broadcast %cst_73 : f32 to vector<8x16xf32>
    %165 = arith.mulf %163, %164 : vector<8x16xf32>
    %c2 = arith.constant 2 : index
    %c0_74 = arith.constant 0 : index
    %c0_75 = arith.constant 0 : index
    %166 = vector.load %arg25[%c2, %c0_74, %c0_75] : memref<4x8x1xf32, #tpu.memory_space<vmem>>, vector<1x8x1xf32>
    %167 = vector.shape_cast %166 : vector<1x8x1xf32> to vector<8x1xf32>
    %cst_76 = arith.constant dense<0xFF800000> : vector<8xf32>
    %168 = vector.multi_reduction <maximumf>, %165, %cst_76 [1] : vector<8x16xf32> to vector<8xf32>
    %169 = vector.shape_cast %168 : vector<8xf32> to vector<8x1xf32>
    %170 = arith.maximumf %167, %169 : vector<8x1xf32>
    %171 = arith.subf %167, %170 : vector<8x1xf32>
    %172 = math.exp %171 : vector<8x1xf32>
    %173 = vector.broadcast %170 : vector<8x1xf32> to vector<8x16xf32>
    %174 = arith.subf %165, %173 : vector<8x16xf32>
    %175 = math.exp %174 : vector<8x16xf32>
    %c2_77 = arith.constant 2 : index
    %c0_78 = arith.constant 0 : index
    %c0_79 = arith.constant 0 : index
    %176 = vector.load %arg26[%c2_77, %c0_78, %c0_79] : memref<4x8x1xf32, #tpu.memory_space<vmem>>, vector<1x8x1xf32>
    %177 = vector.shape_cast %176 : vector<1x8x1xf32> to vector<8x1xf32>
    %178 = arith.mulf %172, %177 : vector<8x1xf32>
    %cst_80 = arith.constant dense<0.000000e+00> : vector<8xf32>
    %179 = vector.multi_reduction <add>, %175, %cst_80 [1] : vector<8x16xf32> to vector<8xf32>
    %180 = vector.shape_cast %179 : vector<8xf32> to vector<8x1xf32>
    %181 = arith.addf %178, %180 : vector<8x1xf32>
    %c2_81 = arith.constant 2 : index
    %c0_82 = arith.constant 0 : index
    %c0_83 = arith.constant 0 : index
    %182 = vector.load %arg26[%c2_81, %c0_82, %c0_83] : memref<4x8x1xf32, #tpu.memory_space<vmem>>, vector<1x8x1xf32>
    %183 = vector.shape_cast %182 : vector<1x8x1xf32> to vector<8x1xf32>
    %184 = vector.shape_cast %181 : vector<8x1xf32> to vector<1x8x1xf32>
    tpu.vector_store %arg26[%c2_81, %c0_82, %c0_83], %184 {strides = array<i32>} : memref<4x8x1xf32, #tpu.memory_space<vmem>>, vector<1x8x1xf32>,
    %185 = arith.truncf %175 : vector<8x16xf32> to vector<8x16xbf16>
    %cst_84 = arith.constant dense<0.000000e+00> : vector<8x32xf32>
    %186 = tpu.matmul %185, %70, %cst_84 {dimension_numbers = #tpu.dot_dimension_numbers<[1], [0], [0], [1], [0, 0, 1, 1], [], []>} : vector<8x16xbf16>, vector<16x32xbf16>, vector<8x32xf32> -> vector<8x32xf32>
    %187 = vector.broadcast %21 : vector<1x32xf32> to vector<8x32xf32>
    %188 = arith.mulf %186, %187 : vector<8x32xf32>
    %c0_85 = arith.constant 0 : index
    %c0_86 = arith.constant 0 : index
    %189 = vector.load %arg27[%c0_85, %c0_86] : memref<8x32xf32, #tpu.memory_space<vmem>>, vector<8x32xf32>
    %cst_87 = arith.constant 0.000000e+00 : f32
    %190 = vector.broadcast %cst_87 : f32 to vector<1x32xf32>
    %191 = arith.cmpf ogt, %21, %190 : vector<1x32xf32>
    %cst_88 = arith.constant 1.000000e+00 : f32
    %192 = vector.shape_cast %191 : vector<1x32xi1> to vector<1x32xi1>
    %193 = vector.broadcast %192 : vector<1x32xi1> to vector<8x32xi1>
    %194 = vector.shape_cast %172 : vector<8x1xf32> to vector<8x1xf32>
    %195 = vector.broadcast %194 : vector<8x1xf32> to vector<8x32xf32>
    %196 = vector.broadcast %cst_88 : f32 to vector<8x32xf32>
    %197 = arith.select %193, %195, %196 : vector<8x32xi1>, vector<8x32xf32>
    %198 = arith.mulf %189, %197 : vector<8x32xf32>
    %199 = arith.addf %198, %188 : vector<8x32xf32>
    %c0_89 = arith.constant 0 : index
    %c0_90 = arith.constant 0 : index
    %200 = vector.load %arg27[%c0_89, %c0_90] : memref<8x32xf32, #tpu.memory_space<vmem>>, vector<8x32xf32>
    tpu.vector_store %arg27[%c0_89, %c0_90], %199 {strides = array<i32>} : memref<8x32xf32, #tpu.memory_space<vmem>>, vector<8x32xf32>,
    %c2_91 = arith.constant 2 : index
    %c0_92 = arith.constant 0 : index
    %c0_93 = arith.constant 0 : index
    %201 = vector.load %arg25[%c2_91, %c0_92, %c0_93] : memref<4x8x1xf32, #tpu.memory_space<vmem>>, vector<1x8x1xf32>
    %202 = vector.shape_cast %201 : vector<1x8x1xf32> to vector<8x1xf32>
    %203 = vector.shape_cast %170 : vector<8x1xf32> to vector<1x8x1xf32>
    tpu.vector_store %arg25[%c2_91, %c0_92, %c0_93], %203 {strides = array<i32>} : memref<4x8x1xf32, #tpu.memory_space<vmem>>, vector<1x8x1xf32>,
    %204 = vector.broadcast %28 : vector<1x32xf32> to vector<8x32xf32>
    %205 = arith.mulf %71, %204 : vector<8x32xf32>
    %206 = arith.truncf %205 : vector<8x32xf32> to vector<8x32xbf16>
    %cst_94 = arith.constant dense<0.000000e+00> : vector<8x16xf32>
    %207 = tpu.matmul %206, %69, %cst_94 {dimension_numbers = #tpu.dot_dimension_numbers<[1], [1], [0], [0], [0, 0, 1, 0], [], []>} : vector<8x32xbf16>, vector<16x32xbf16>, vector<8x16xf32> -> vector<8x16xf32>
    %cst_95 = arith.constant 0.353553385 : f32
    %208 = vector.broadcast %cst_95 : f32 to vector<8x16xf32>
    %209 = arith.mulf %207, %208 : vector<8x16xf32>
    %c3 = arith.constant 3 : index
    %c0_96 = arith.constant 0 : index
    %c0_97 = arith.constant 0 : index
    %210 = vector.load %arg25[%c3, %c0_96, %c0_97] : memref<4x8x1xf32, #tpu.memory_space<vmem>>, vector<1x8x1xf32>
    %211 = vector.shape_cast %210 : vector<1x8x1xf32> to vector<8x1xf32>
    %cst_98 = arith.constant dense<0xFF800000> : vector<8xf32>
    %212 = vector.multi_reduction <maximumf>, %209, %cst_98 [1] : vector<8x16xf32> to vector<8xf32>
    %213 = vector.shape_cast %212 : vector<8xf32> to vector<8x1xf32>
    %214 = arith.maximumf %211, %213 : vector<8x1xf32>
    %215 = arith.subf %211, %214 : vector<8x1xf32>
    %216 = math.exp %215 : vector<8x1xf32>
    %217 = vector.broadcast %214 : vector<8x1xf32> to vector<8x16xf32>
    %218 = arith.subf %209, %217 : vector<8x16xf32>
    %219 = math.exp %218 : vector<8x16xf32>
    %c3_99 = arith.constant 3 : index
    %c0_100 = arith.constant 0 : index
    %c0_101 = arith.constant 0 : index
    %220 = vector.load %arg26[%c3_99, %c0_100, %c0_101] : memref<4x8x1xf32, #tpu.memory_space<vmem>>, vector<1x8x1xf32>
    %221 = vector.shape_cast %220 : vector<1x8x1xf32> to vector<8x1xf32>
    %222 = arith.mulf %216, %221 : vector<8x1xf32>
    %cst_102 = arith.constant dense<0.000000e+00> : vector<8xf32>
    %223 = vector.multi_reduction <add>, %219, %cst_102 [1] : vector<8x16xf32> to vector<8xf32>
    %224 = vector.shape_cast %223 : vector<8xf32> to vector<8x1xf32>
    %225 = arith.addf %222, %224 : vector<8x1xf32>
    %c3_103 = arith.constant 3 : index
    %c0_104 = arith.constant 0 : index
    %c0_105 = arith.constant 0 : index
    %226 = vector.load %arg26[%c3_103, %c0_104, %c0_105] : memref<4x8x1xf32, #tpu.memory_space<vmem>>, vector<1x8x1xf32>
    %227 = vector.shape_cast %226 : vector<1x8x1xf32> to vector<8x1xf32>
    %228 = vector.shape_cast %225 : vector<8x1xf32> to vector<1x8x1xf32>
    tpu.vector_store %arg26[%c3_103, %c0_104, %c0_105], %228 {strides = array<i32>} : memref<4x8x1xf32, #tpu.memory_space<vmem>>, vector<1x8x1xf32>,
    %229 = arith.truncf %219 : vector<8x16xf32> to vector<8x16xbf16>
    %cst_106 = arith.constant dense<0.000000e+00> : vector<8x32xf32>
    %230 = tpu.matmul %229, %70, %cst_106 {dimension_numbers = #tpu.dot_dimension_numbers<[1], [0], [0], [1], [0, 0, 1, 1], [], []>} : vector<8x16xbf16>, vector<16x32xbf16>, vector<8x32xf32> -> vector<8x32xf32>
    %231 = vector.broadcast %28 : vector<1x32xf32> to vector<8x32xf32>
    %232 = arith.mulf %230, %231 : vector<8x32xf32>
    %c0_107 = arith.constant 0 : index
    %c0_108 = arith.constant 0 : index
    %233 = vector.load %arg27[%c0_107, %c0_108] : memref<8x32xf32, #tpu.memory_space<vmem>>, vector<8x32xf32>
    %cst_109 = arith.constant 0.000000e+00 : f32
    %234 = vector.broadcast %cst_109 : f32 to vector<1x32xf32>
    %235 = arith.cmpf ogt, %28, %234 : vector<1x32xf32>
    %cst_110 = arith.constant 1.000000e+00 : f32
    %236 = vector.shape_cast %235 : vector<1x32xi1> to vector<1x32xi1>
    %237 = vector.broadcast %236 : vector<1x32xi1> to vector<8x32xi1>
    %238 = vector.shape_cast %216 : vector<8x1xf32> to vector<8x1xf32>
    %239 = vector.broadcast %238 : vector<8x1xf32> to vector<8x32xf32>
    %240 = vector.broadcast %cst_110 : f32 to vector<8x32xf32>
    %241 = arith.select %237, %239, %240 : vector<8x32xi1>, vector<8x32xf32>
    %242 = arith.mulf %233, %241 : vector<8x32xf32>
    %243 = arith.addf %242, %232 : vector<8x32xf32>
    %c0_111 = arith.constant 0 : index
    %c0_112 = arith.constant 0 : index
    %244 = vector.load %arg27[%c0_111, %c0_112] : memref<8x32xf32, #tpu.memory_space<vmem>>, vector<8x32xf32>
    tpu.vector_store %arg27[%c0_111, %c0_112], %243 {strides = array<i32>} : memref<8x32xf32, #tpu.memory_space<vmem>>, vector<8x32xf32>,
    %c3_113 = arith.constant 3 : index
    %c0_114 = arith.constant 0 : index
    %c0_115 = arith.constant 0 : index
    %245 = vector.load %arg25[%c3_113, %c0_114, %c0_115] : memref<4x8x1xf32, #tpu.memory_space<vmem>>, vector<1x8x1xf32>
    %246 = vector.shape_cast %245 : vector<1x8x1xf32> to vector<8x1xf32>
    %247 = vector.shape_cast %214 : vector<8x1xf32> to vector<1x8x1xf32>
    tpu.vector_store %arg25[%c3_113, %c0_114, %c0_115], %247 {strides = array<i32>} : memref<4x8x1xf32, #tpu.memory_space<vmem>>, vector<1x8x1xf32>,
    %c0_i32_116 = arith.constant 0 : i32
    %248 = arith.cmpi eq, %arg1, %c0_i32_116 : i32
    %249 = arith.extui %248 : i1 to i32
    %c0_i32_117 = arith.constant 0 : i32
    %250 = arith.cmpi ne, %249, %c0_i32_117 : i32
    scf.if %250 {
      %cst_118 = arith.constant 0.000000e+00 : f32
      %251 = vector.broadcast %cst_118 : f32 to vector<8x32xf32>
      %c0_119 = arith.constant 0 : index
      %c0_120 = arith.constant 0 : index
      %c0_121 = arith.constant 0 : index
      %252 = vector.load %arg26[%c0_119, %c0_120, %c0_121] : memref<4x8x1xf32, #tpu.memory_space<vmem>>, vector<1x8x1xf32>
      %253 = vector.shape_cast %252 : vector<1x8x1xf32> to vector<8x1xf32>
      %254 = tpu.reciprocal %253 {approx = true} : vector<8x1xf32> -> vector<8x1xf32>
      %255 = vector.broadcast %7 : vector<1x32xf32> to vector<8x32xf32>
      %256 = vector.broadcast %254 : vector<8x1xf32> to vector<8x32xf32>
      %257 = arith.mulf %255, %256 : vector<8x32xf32>
      %258 = arith.addf %251, %257 : vector<8x32xf32>
      %c1_122 = arith.constant 1 : index
      %c0_123 = arith.constant 0 : index
      %c0_124 = arith.constant 0 : index
      %259 = vector.load %arg26[%c1_122, %c0_123, %c0_124] : memref<4x8x1xf32, #tpu.memory_space<vmem>>, vector<1x8x1xf32>
      %260 = vector.shape_cast %259 : vector<1x8x1xf32> to vector<8x1xf32>
      %261 = tpu.reciprocal %260 {approx = true} : vector<8x1xf32> -> vector<8x1xf32>
      %262 = vector.broadcast %14 : vector<1x32xf32> to vector<8x32xf32>
      %263 = vector.broadcast %261 : vector<8x1xf32> to vector<8x32xf32>
      %264 = arith.mulf %262, %263 : vector<8x32xf32>
      %265 = arith.addf %258, %264 : vector<8x32xf32>
      %c2_125 = arith.constant 2 : index
      %c0_126 = arith.constant 0 : index
      %c0_127 = arith.constant 0 : index
      %266 = vector.load %arg26[%c2_125, %c0_126, %c0_127] : memref<4x8x1xf32, #tpu.memory_space<vmem>>, vector<1x8x1xf32>
      %267 = vector.shape_cast %266 : vector<1x8x1xf32> to vector<8x1xf32>
      %268 = tpu.reciprocal %267 {approx = true} : vector<8x1xf32> -> vector<8x1xf32>
      %269 = vector.broadcast %21 : vector<1x32xf32> to vector<8x32xf32>
      %270 = vector.broadcast %268 : vector<8x1xf32> to vector<8x32xf32>
      %271 = arith.mulf %269, %270 : vector<8x32xf32>
      %272 = arith.addf %265, %271 : vector<8x32xf32>
      %c3_128 = arith.constant 3 : index
      %c0_129 = arith.constant 0 : index
      %c0_130 = arith.constant 0 : index
      %273 = vector.load %arg26[%c3_128, %c0_129, %c0_130] : memref<4x8x1xf32, #tpu.memory_space<vmem>>, vector<1x8x1xf32>
      %274 = vector.shape_cast %273 : vector<1x8x1xf32> to vector<8x1xf32>
      %275 = tpu.reciprocal %274 {approx = true} : vector<8x1xf32> -> vector<8x1xf32>
      %276 = vector.broadcast %28 : vector<1x32xf32> to vector<8x32xf32>
      %277 = vector.broadcast %275 : vector<8x1xf32> to vector<8x32xf32>
      %278 = arith.mulf %276, %277 : vector<8x32xf32>
      %279 = arith.addf %272, %278 : vector<8x32xf32>
      %c0_131 = arith.constant 0 : index
      %c0_132 = arith.constant 0 : index
      %280 = vector.load %arg27[%c0_131, %c0_132] : memref<8x32xf32, #tpu.memory_space<vmem>>, vector<8x32xf32>
      %281 = arith.mulf %280, %279 : vector<8x32xf32>
      %c0_133 = arith.constant 0 : index
      %c0_134 = arith.constant 0 : index
      %282 = vector.load %arg14[%c0_133, %c0_134] : memref<32x32xbf16, #tpu.memory_space<vmem>>, vector<32x32xbf16>
      %283 = arith.truncf %281 : vector<8x32xf32> to vector<8x32xbf16>
      %cst_135 = arith.constant dense<0.000000e+00> : vector<8x32xf32>
      %284 = tpu.matmul %283, %282, %cst_135 {dimension_numbers = #tpu.dot_dimension_numbers<[1], [0], [0], [1], [0, 0, 1, 1], [], []>} : vector<8x32xbf16>, vector<32x32xbf16>, vector<8x32xf32> -> vector<8x32xf32>
      %c0_136 = arith.constant 0 : index
      %c0_137 = arith.constant 0 : index
      %285 = vector.load %arg15[%c0_136, %c0_137] : memref<1x32xf32, #tpu.memory_space<vmem>>, vector<1x32xf32>
      %286 = vector.broadcast %285 : vector<1x32xf32> to vector<8x32xf32>
      %287 = arith.addf %284, %286 : vector<8x32xf32>
      %c0_138 = arith.constant 0 : index
      %c0_139 = arith.constant 0 : index
      %288 = vector.load %arg23[%c0_138, %c0_139] : memref<8x32xf32, #tpu.memory_space<vmem>>, vector<8x32xf32>
      %289 = arith.addf %287, %288 : vector<8x32xf32>
      %c0_140 = arith.constant 0 : index
      %c0_141 = arith.constant 0 : index
      %290 = vector.load %arg16[%c0_140, %c0_141] : memref<1x32xf32, #tpu.memory_space<vmem>>, vector<1x32xf32>
      %c0_142 = arith.constant 0 : index
      %c0_143 = arith.constant 0 : index
      %291 = vector.load %arg17[%c0_142, %c0_143] : memref<1x32xf32, #tpu.memory_space<vmem>>, vector<1x32xf32>
      %cst_144 = arith.constant dense<0.000000e+00> : vector<8xf32>
      %292 = vector.multi_reduction <add>, %289, %cst_144 [1] : vector<8x32xf32> to vector<8xf32>
      %293 = vector.shape_cast %292 : vector<8xf32> to vector<8x1xf32>
      %cst_145 = arith.constant 3.200000e+01 : f32
      %294 = vector.broadcast %cst_145 : f32 to vector<8x1xf32>
      %295 = arith.divf %293, %294 : vector<8x1xf32>
      %296 = vector.broadcast %295 : vector<8x1xf32> to vector<8x32xf32>
      %297 = arith.subf %289, %296 : vector<8x32xf32>
      %298 = arith.mulf %297, %297 : vector<8x32xf32>
      %cst_146 = arith.constant dense<0.000000e+00> : vector<8xf32>
      %299 = vector.multi_reduction <add>, %298, %cst_146 [1] : vector<8x32xf32> to vector<8xf32>
      %300 = vector.shape_cast %299 : vector<8xf32> to vector<8x1xf32>
      %cst_147 = arith.constant 3.200000e+01 : f32
      %301 = vector.broadcast %cst_147 : f32 to vector<8x1xf32>
      %302 = arith.divf %300, %301 : vector<8x1xf32>
      %cst_148 = arith.constant 9.99999974E-6 : f32
      %303 = vector.broadcast %cst_148 : f32 to vector<8x1xf32>
      %304 = arith.addf %302, %303 : vector<8x1xf32>
      %305 = math.rsqrt %304 : vector<8x1xf32>
      %306 = vector.broadcast %305 : vector<8x1xf32> to vector<8x32xf32>
      %307 = arith.mulf %297, %306 : vector<8x32xf32>
      %308 = vector.broadcast %290 : vector<1x32xf32> to vector<8x32xf32>
      %309 = arith.mulf %307, %308 : vector<8x32xf32>
      %310 = vector.broadcast %291 : vector<1x32xf32> to vector<8x32xf32>
      %311 = arith.addf %309, %310 : vector<8x32xf32>
      %c0_149 = arith.constant 0 : index
      %c0_150 = arith.constant 0 : index
      %312 = vector.load %arg18[%c0_149, %c0_150] : memref<32x64xbf16, #tpu.memory_space<vmem>>, vector<32x64xbf16>
      %313 = arith.truncf %311 : vector<8x32xf32> to vector<8x32xbf16>
      %cst_151 = arith.constant dense<0.000000e+00> : vector<8x64xf32>
      %314 = tpu.matmul %313, %312, %cst_151 {dimension_numbers = #tpu.dot_dimension_numbers<[1], [0], [0], [1], [0, 0, 1, 1], [], []>} : vector<8x32xbf16>, vector<32x64xbf16>, vector<8x64xf32> -> vector<8x64xf32>
      %c0_152 = arith.constant 0 : index
      %c0_153 = arith.constant 0 : index
      %315 = vector.load %arg19[%c0_152, %c0_153] : memref<1x64xf32, #tpu.memory_space<vmem>>, vector<1x64xf32>
      %316 = vector.broadcast %315 : vector<1x64xf32> to vector<8x64xf32>
      %317 = arith.addf %314, %316 : vector<8x64xf32>
      %318 = arith.mulf %317, %317 : vector<8x64xf32>
      %319 = arith.mulf %317, %318 : vector<8x64xf32>
      %cst_154 = arith.constant 4.471500e-02 : f32
      %320 = vector.broadcast %cst_154 : f32 to vector<8x64xf32>
      %321 = arith.mulf %320, %319 : vector<8x64xf32>
      %322 = arith.addf %317, %321 : vector<8x64xf32>
      %cst_155 = arith.constant 0.797884583 : f32
      %323 = vector.broadcast %cst_155 : f32 to vector<8x64xf32>
      %324 = arith.mulf %323, %322 : vector<8x64xf32>
      %325 = math.tanh %324 : vector<8x64xf32>
      %cst_156 = arith.constant 1.000000e+00 : f32
      %326 = vector.broadcast %cst_156 : f32 to vector<8x64xf32>
      %327 = arith.addf %326, %325 : vector<8x64xf32>
      %cst_157 = arith.constant 5.000000e-01 : f32
      %328 = vector.broadcast %cst_157 : f32 to vector<8x64xf32>
      %329 = arith.mulf %328, %327 : vector<8x64xf32>
      %330 = arith.mulf %317, %329 : vector<8x64xf32>
      %c0_158 = arith.constant 0 : index
      %c0_159 = arith.constant 0 : index
      %331 = vector.load %arg20[%c0_158, %c0_159] : memref<64x32xbf16, #tpu.memory_space<vmem>>, vector<64x32xbf16>
      %332 = arith.truncf %330 : vector<8x64xf32> to vector<8x64xbf16>
      %cst_160 = arith.constant dense<0.000000e+00> : vector<8x32xf32>
      %333 = tpu.matmul %332, %331, %cst_160 {dimension_numbers = #tpu.dot_dimension_numbers<[1], [0], [0], [1], [0, 0, 1, 1], [], []>} : vector<8x64xbf16>, vector<64x32xbf16>, vector<8x32xf32> -> vector<8x32xf32>
      %334 = arith.addf %289, %333 : vector<8x32xf32>
      %c0_161 = arith.constant 0 : index
      %c0_162 = arith.constant 0 : index
      %335 = vector.load %arg21[%c0_161, %c0_162] : memref<1x32xf32, #tpu.memory_space<vmem>>, vector<1x32xf32>
      %336 = vector.broadcast %335 : vector<1x32xf32> to vector<8x32xf32>
      %337 = arith.addf %334, %336 : vector<8x32xf32>
      %338 = arith.truncf %337 : vector<8x32xf32> to vector<8x32xbf16>
      %c0_163 = arith.constant 0 : index
      %c0_164 = arith.constant 0 : index
      %c0_165 = arith.constant 0 : index
      %339 = vector.load %arg22[%c0_163, %c0_164, %c0_165] : memref<1x8x32xbf16, #tpu.memory_space<vmem>>, vector<1x8x32xbf16>
      %340 = vector.shape_cast %339 : vector<1x8x32xbf16> to vector<8x32xbf16>
      %341 = vector.shape_cast %338 : vector<8x32xbf16> to vector<1x8x32xbf16>
      tpu.vector_store %arg22[%c0_163, %c0_164, %c0_165], %341 {strides = array<i32>} : memref<1x8x32xbf16, #tpu.memory_space<vmem>>, vector<1x8x32xbf16>,
    } else {
    }
    return
  }
  func.func @transform_0(%arg0: i32, %arg1: i32) -> (i32, i32, i32) {
    %c0_i32 = arith.constant 0 : i32
    %c0_i32_0 = arith.constant 0 : i32
    %c0_i32_1 = arith.constant 0 : i32
    %c0_i32_2 = arith.constant 0 : i32
    return %c0_i32, %c0_i32_0, %c0_i32_1 : i32, i32, i32
  }
  func.func @transform_1(%arg0: i32, %arg1: i32) -> (i32, i32) {
    %c0_i32 = arith.constant 0 : i32
    %c0_i32_0 = arith.constant 0 : i32
    %c0_i32_1 = arith.constant 0 : i32
    return %c0_i32, %c0_i32_0 : i32, i32
  }
  func.func @transform_2(%arg0: i32, %arg1: i32) -> (i32, i32) {
    %c0_i32 = arith.constant 0 : i32
    %c0_i32_0 = arith.constant 0 : i32
    %c0_i32_1 = arith.constant 0 : i32
    return %c0_i32, %c0_i32_0 : i32, i32
  }
  func.func @transform_3(%arg0: i32, %arg1: i32) -> (i32, i32) {
    %c0_i32 = arith.constant 0 : i32
    %c0_i32_0 = arith.constant 0 : i32
    %c0_i32_1 = arith.constant 0 : i32
    return %c0_i32, %c0_i32_0 : i32, i32
  }
  func.func @transform_4(%arg0: i32, %arg1: i32) -> (i32, i32) {
    %c0_i32 = arith.constant 0 : i32
    %c0_i32_0 = arith.constant 0 : i32
    %c0_i32_1 = arith.constant 0 : i32
    return %c0_i32, %c0_i32_0 : i32, i32
  }
  func.func @transform_5(%arg0: i32, %arg1: i32) -> (i32, i32, i32) {
    %c0_i32 = arith.constant 0 : i32
    %c0_i32_0 = arith.constant 0 : i32
    return %arg0, %arg1, %c0_i32 : i32, i32, i32
  }
  func.func @transform_6(%arg0: i32, %arg1: i32) -> (i32, i32) {
    %c0_i32 = arith.constant 0 : i32
    %c0_i32_0 = arith.constant 0 : i32
    %c0_i32_1 = arith.constant 0 : i32
    return %c0_i32, %c0_i32_0 : i32, i32
  }
  func.func @transform_7(%arg0: i32, %arg1: i32) -> (i32, i32) {
    %c0_i32 = arith.constant 0 : i32
    %c0_i32_0 = arith.constant 0 : i32
    %c0_i32_1 = arith.constant 0 : i32
    return %c0_i32, %c0_i32_0 : i32, i32
  }
  func.func @transform_8(%arg0: i32, %arg1: i32) -> (i32, i32) {
    %c0_i32 = arith.constant 0 : i32
    %c0_i32_0 = arith.constant 0 : i32
    %c0_i32_1 = arith.constant 0 : i32
    return %c0_i32, %c0_i32_0 : i32, i32
  }
  func.func @transform_9(%arg0: i32, %arg1: i32) -> (i32, i32) {
    %c0_i32 = arith.constant 0 : i32
    %c0_i32_0 = arith.constant 0 : i32
    %c0_i32_1 = arith.constant 0 : i32
    return %c0_i32, %c0_i32_0 : i32, i32
  }
  func.func @transform_10(%arg0: i32, %arg1: i32) -> (i32, i32) {
    %c0_i32 = arith.constant 0 : i32
    %c0_i32_0 = arith.constant 0 : i32
    %c0_i32_1 = arith.constant 0 : i32
    return %c0_i32, %c0_i32_0 : i32, i32
  }
  func.func @transform_11(%arg0: i32, %arg1: i32) -> (i32, i32) {
    %c0_i32 = arith.constant 0 : i32
    %c0_i32_0 = arith.constant 0 : i32
    %c0_i32_1 = arith.constant 0 : i32
    return %c0_i32, %c0_i32_0 : i32, i32
  }
  func.func @transform_12(%arg0: i32, %arg1: i32) -> (i32, i32) {
    %c0_i32 = arith.constant 0 : i32
    %c0_i32_0 = arith.constant 0 : i32
    %c0_i32_1 = arith.constant 0 : i32
    return %c0_i32, %c0_i32_0 : i32, i32
  }
  func.func @transform_13(%arg0: i32, %arg1: i32) -> (i32, i32) {
    %c0_i32 = arith.constant 0 : i32
    %c0_i32_0 = arith.constant 0 : i32
    %c0_i32_1 = arith.constant 0 : i32
    return %c0_i32, %c0_i32_0 : i32, i32
  }
  func.func @transform_14(%arg0: i32, %arg1: i32) -> (i32, i32) {
    %c0_i32 = arith.constant 0 : i32
    %c0_i32_0 = arith.constant 0 : i32
    %c0_i32_1 = arith.constant 0 : i32
    return %c0_i32, %c0_i32_0 : i32, i32
  }
  func.func @transform_15(%arg0: i32, %arg1: i32) -> (i32, i32) {
    %c0_i32 = arith.constant 0 : i32
    %c0_i32_0 = arith.constant 0 : i32
    %c0_i32_1 = arith.constant 0 : i32
    return %c0_i32, %c0_i32_0 : i32, i32
  }
  func.func @transform_16(%arg0: i32, %arg1: i32) -> (i32, i32) {
    %c0_i32 = arith.constant 0 : i32
    %c0_i32_0 = arith.constant 0 : i32
    %c0_i32_1 = arith.constant 0 : i32
    return %c0_i32, %c0_i32_0 : i32, i32
  }
  func.func @transform_17(%arg0: i32, %arg1: i32) -> (i32, i32) {
    %c0_i32 = arith.constant 0 : i32
    %c0_i32_0 = arith.constant 0 : i32
    %c0_i32_1 = arith.constant 0 : i32
    return %c0_i32, %c0_i32_0 : i32, i32
  }
  func.func @transform_18(%arg0: i32, %arg1: i32) -> (i32, i32) {
    %c0_i32 = arith.constant 0 : i32
    %c0_i32_0 = arith.constant 0 : i32
    %c0_i32_1 = arith.constant 0 : i32
    return %c0_i32, %c0_i32_0 : i32, i32
  }
  func.func @transform_19(%arg0: i32, %arg1: i32) -> (i32, i32) {
    %c0_i32 = arith.constant 0 : i32
    %c0_i32_0 = arith.constant 0 : i32
    %c0_i32_1 = arith.constant 0 : i32
    return %c0_i32, %c0_i32_0 : i32, i32
  }
  func.func @transform_20(%arg0: i32, %arg1: i32) -> (i32, i32, i32) {
    %c0_i32 = arith.constant 0 : i32
    %c0_i32_0 = arith.constant 0 : i32
    %c0_i32_1 = arith.constant 0 : i32
    return %arg0, %c0_i32, %c0_i32_0 : i32, i32, i32
  }
}

module attributes {stable_mosaic.version = 11 : i64} {
  func.func @_cross_decode_kernel(%arg0: i32, %arg1: i32, %arg2: memref<1x32x32xbf16, #tpu.memory_space<vmem>>, %arg3: memref<1x32xf32, #tpu.memory_space<vmem>>, %arg4: memref<1x32xf32, #tpu.memory_space<vmem>>, %arg5: memref<32x32xbf16, #tpu.memory_space<vmem>>, %arg6: memref<1x32xf32, #tpu.memory_space<vmem>>, %arg7: memref<1x7x32xbf16, #tpu.memory_space<vmem>>, %arg8: memref<1x32xf32, #tpu.memory_space<vmem>>, %arg9: memref<1x32xf32, #tpu.memory_space<vmem>>, %arg10: memref<32x32xbf16, #tpu.memory_space<vmem>>, %arg11: memref<1x32xf32, #tpu.memory_space<vmem>>, %arg12: memref<32x32xbf16, #tpu.memory_space<vmem>>, %arg13: memref<1x32xf32, #tpu.memory_space<vmem>>, %arg14: memref<32x32xbf16, #tpu.memory_space<vmem>>, %arg15: memref<1x32xf32, #tpu.memory_space<vmem>>, %arg16: memref<1x32xf32, #tpu.memory_space<vmem>>, %arg17: memref<1x32xf32, #tpu.memory_space<vmem>>, %arg18: memref<32x64xbf16, #tpu.memory_space<vmem>>, %arg19: memref<1x64xf32, #tpu.memory_space<vmem>>, %arg20: memref<64x32xbf16, #tpu.memory_space<vmem>>, %arg21: memref<1x32xf32, #tpu.memory_space<vmem>>, %arg22: memref<32x128xbf16, #tpu.memory_space<vmem>>, %arg23: memref<1x128xf32, #tpu.memory_space<vmem>>, %arg24: memref<1x32x128xf32, #tpu.memory_space<vmem>>) attributes {dimension_semantics = [#tpu.dimension_semantics<parallel>, #tpu.dimension_semantics<parallel>], iteration_bounds = array<i64: 2, 1>, scalar_prefetch = 0 : i64, scratch_operands = 0 : i64, tpu.core_type = #tpu.core_type<tc>, window_params = [{transform_indices = @transform_0, window_bounds = array<i64: 1, 32, 32>}, {pipeline_mode = #tpu.pipeline_mode<synchronous>, transform_indices = @transform_1, window_bounds = array<i64: 1, 32>}, {pipeline_mode = #tpu.pipeline_mode<synchronous>, transform_indices = @transform_2, window_bounds = array<i64: 1, 32>}, {pipeline_mode = #tpu.pipeline_mode<synchronous>, transform_indices = @transform_3, window_bounds = array<i64: 32, 32>}, {pipeline_mode = #tpu.pipeline_mode<synchronous>, transform_indices = @transform_4, window_bounds = array<i64: 1, 32>}, {transform_indices = @transform_5, window_bounds = array<i64: 1, 7, 32>}, {pipeline_mode = #tpu.pipeline_mode<synchronous>, transform_indices = @transform_6, window_bounds = array<i64: 1, 32>}, {pipeline_mode = #tpu.pipeline_mode<synchronous>, transform_indices = @transform_7, window_bounds = array<i64: 1, 32>}, {pipeline_mode = #tpu.pipeline_mode<synchronous>, transform_indices = @transform_8, window_bounds = array<i64: 32, 32>}, {pipeline_mode = #tpu.pipeline_mode<synchronous>, transform_indices = @transform_9, window_bounds = array<i64: 1, 32>}, {pipeline_mode = #tpu.pipeline_mode<synchronous>, transform_indices = @transform_10, window_bounds = array<i64: 32, 32>}, {pipeline_mode = #tpu.pipeline_mode<synchronous>, transform_indices = @transform_11, window_bounds = array<i64: 1, 32>}, {pipeline_mode = #tpu.pipeline_mode<synchronous>, transform_indices = @transform_12, window_bounds = array<i64: 32, 32>}, {pipeline_mode = #tpu.pipeline_mode<synchronous>, transform_indices = @transform_13, window_bounds = array<i64: 1, 32>}, {pipeline_mode = #tpu.pipeline_mode<synchronous>, transform_indices = @transform_14, window_bounds = array<i64: 1, 32>}, {pipeline_mode = #tpu.pipeline_mode<synchronous>, transform_indices = @transform_15, window_bounds = array<i64: 1, 32>}, {pipeline_mode = #tpu.pipeline_mode<synchronous>, transform_indices = @transform_16, window_bounds = array<i64: 32, 64>}, {pipeline_mode = #tpu.pipeline_mode<synchronous>, transform_indices = @transform_17, window_bounds = array<i64: 1, 64>}, {pipeline_mode = #tpu.pipeline_mode<synchronous>, transform_indices = @transform_18, window_bounds = array<i64: 64, 32>}, {pipeline_mode = #tpu.pipeline_mode<synchronous>, transform_indices = @transform_19, window_bounds = array<i64: 1, 32>}, {pipeline_mode = #tpu.pipeline_mode<synchronous>, transform_indices = @transform_20, window_bounds = array<i64: 32, 128>}, {pipeline_mode = #tpu.pipeline_mode<synchronous>, transform_indices = @transform_21, window_bounds = array<i64: 1, 128>}, {transform_indices = @transform_22, window_bounds = array<i64: 1, 32, 128>}]} {
    %c0 = arith.constant 0 : index
    %c0_0 = arith.constant 0 : index
    %c0_1 = arith.constant 0 : index
    %0 = vector.load %arg2[%c0, %c0_0, %c0_1] : memref<1x32x32xbf16, #tpu.memory_space<vmem>>, vector<1x32x32xbf16>
    %1 = vector.shape_cast %0 : vector<1x32x32xbf16> to vector<32x32xbf16>
    %2 = arith.extf %1 : vector<32x32xbf16> to vector<32x32xf32>
    %c0_2 = arith.constant 0 : index
    %c0_3 = arith.constant 0 : index
    %3 = vector.load %arg3[%c0_2, %c0_3] : memref<1x32xf32, #tpu.memory_space<vmem>>, vector<1x32xf32>
    %c0_4 = arith.constant 0 : index
    %c0_5 = arith.constant 0 : index
    %4 = vector.load %arg4[%c0_4, %c0_5] : memref<1x32xf32, #tpu.memory_space<vmem>>, vector<1x32xf32>
    %cst = arith.constant dense<0.000000e+00> : vector<32xf32>
    %5 = vector.multi_reduction <add>, %2, %cst [1] : vector<32x32xf32> to vector<32xf32>
    %6 = vector.shape_cast %5 : vector<32xf32> to vector<32x1xf32>
    %cst_6 = arith.constant 3.200000e+01 : f32
    %7 = vector.broadcast %cst_6 : f32 to vector<32x1xf32>
    %8 = arith.divf %6, %7 : vector<32x1xf32>
    %9 = vector.broadcast %8 : vector<32x1xf32> to vector<32x32xf32>
    %10 = arith.subf %2, %9 : vector<32x32xf32>
    %11 = arith.mulf %10, %10 : vector<32x32xf32>
    %cst_7 = arith.constant dense<0.000000e+00> : vector<32xf32>
    %12 = vector.multi_reduction <add>, %11, %cst_7 [1] : vector<32x32xf32> to vector<32xf32>
    %13 = vector.shape_cast %12 : vector<32xf32> to vector<32x1xf32>
    %cst_8 = arith.constant 3.200000e+01 : f32
    %14 = vector.broadcast %cst_8 : f32 to vector<32x1xf32>
    %15 = arith.divf %13, %14 : vector<32x1xf32>
    %cst_9 = arith.constant 9.99999974E-6 : f32
    %16 = vector.broadcast %cst_9 : f32 to vector<32x1xf32>
    %17 = arith.addf %15, %16 : vector<32x1xf32>
    %18 = math.rsqrt %17 : vector<32x1xf32>
    %19 = vector.broadcast %18 : vector<32x1xf32> to vector<32x32xf32>
    %20 = arith.mulf %10, %19 : vector<32x32xf32>
    %21 = vector.broadcast %3 : vector<1x32xf32> to vector<32x32xf32>
    %22 = arith.mulf %20, %21 : vector<32x32xf32>
    %23 = vector.broadcast %4 : vector<1x32xf32> to vector<32x32xf32>
    %24 = arith.addf %22, %23 : vector<32x32xf32>
    %c0_10 = arith.constant 0 : index
    %c0_11 = arith.constant 0 : index
    %25 = vector.load %arg5[%c0_10, %c0_11] : memref<32x32xbf16, #tpu.memory_space<vmem>>, vector<32x32xbf16>
    %26 = arith.truncf %24 : vector<32x32xf32> to vector<32x32xbf16>
    %cst_12 = arith.constant dense<0.000000e+00> : vector<32x32xf32>
    %27 = tpu.matmul %26, %25, %cst_12 {dimension_numbers = #tpu.dot_dimension_numbers<[1], [0], [0], [1], [0, 0, 1, 1], [], []>} : vector<32x32xbf16>, vector<32x32xbf16>, vector<32x32xf32> -> vector<32x32xf32>
    %c0_13 = arith.constant 0 : index
    %c0_14 = arith.constant 0 : index
    %28 = vector.load %arg6[%c0_13, %c0_14] : memref<1x32xf32, #tpu.memory_space<vmem>>, vector<1x32xf32>
    %29 = vector.broadcast %28 : vector<1x32xf32> to vector<32x32xf32>
    %30 = arith.addf %27, %29 : vector<32x32xf32>
    %c0_15 = arith.constant 0 : index
    %c0_16 = arith.constant 0 : index
    %c0_17 = arith.constant 0 : index
    %31 = vector.load %arg7[%c0_15, %c0_16, %c0_17] : memref<1x7x32xbf16, #tpu.memory_space<vmem>>, vector<1x7x32xbf16>
    %32 = vector.shape_cast %31 : vector<1x7x32xbf16> to vector<7x32xbf16>
    %33 = arith.extf %32 : vector<7x32xbf16> to vector<7x32xf32>
    %c0_18 = arith.constant 0 : index
    %c0_19 = arith.constant 0 : index
    %34 = vector.load %arg8[%c0_18, %c0_19] : memref<1x32xf32, #tpu.memory_space<vmem>>, vector<1x32xf32>
    %c0_20 = arith.constant 0 : index
    %c0_21 = arith.constant 0 : index
    %35 = vector.load %arg9[%c0_20, %c0_21] : memref<1x32xf32, #tpu.memory_space<vmem>>, vector<1x32xf32>
    %cst_22 = arith.constant dense<0.000000e+00> : vector<7xf32>
    %36 = vector.multi_reduction <add>, %33, %cst_22 [1] : vector<7x32xf32> to vector<7xf32>
    %37 = vector.shape_cast %36 : vector<7xf32> to vector<7x1xf32>
    %cst_23 = arith.constant 3.200000e+01 : f32
    %38 = vector.broadcast %cst_23 : f32 to vector<7x1xf32>
    %39 = arith.divf %37, %38 : vector<7x1xf32>
    %40 = vector.broadcast %39 : vector<7x1xf32> to vector<7x32xf32>
    %41 = arith.subf %33, %40 : vector<7x32xf32>
    %42 = arith.mulf %41, %41 : vector<7x32xf32>
    %cst_24 = arith.constant dense<0.000000e+00> : vector<7xf32>
    %43 = vector.multi_reduction <add>, %42, %cst_24 [1] : vector<7x32xf32> to vector<7xf32>
    %44 = vector.shape_cast %43 : vector<7xf32> to vector<7x1xf32>
    %cst_25 = arith.constant 3.200000e+01 : f32
    %45 = vector.broadcast %cst_25 : f32 to vector<7x1xf32>
    %46 = arith.divf %44, %45 : vector<7x1xf32>
    %cst_26 = arith.constant 9.99999974E-6 : f32
    %47 = vector.broadcast %cst_26 : f32 to vector<7x1xf32>
    %48 = arith.addf %46, %47 : vector<7x1xf32>
    %49 = math.rsqrt %48 : vector<7x1xf32>
    %50 = vector.broadcast %49 : vector<7x1xf32> to vector<7x32xf32>
    %51 = arith.mulf %41, %50 : vector<7x32xf32>
    %52 = vector.broadcast %34 : vector<1x32xf32> to vector<7x32xf32>
    %53 = arith.mulf %51, %52 : vector<7x32xf32>
    %54 = vector.broadcast %35 : vector<1x32xf32> to vector<7x32xf32>
    %55 = arith.addf %53, %54 : vector<7x32xf32>
    %c0_27 = arith.constant 0 : index
    %c0_28 = arith.constant 0 : index
    %56 = vector.load %arg10[%c0_27, %c0_28] : memref<32x32xbf16, #tpu.memory_space<vmem>>, vector<32x32xbf16>
    %57 = arith.truncf %55 : vector<7x32xf32> to vector<7x32xbf16>
    %cst_29 = arith.constant dense<0.000000e+00> : vector<7x32xf32>
    %58 = tpu.matmul %57, %56, %cst_29 {dimension_numbers = #tpu.dot_dimension_numbers<[1], [0], [0], [1], [0, 0, 1, 1], [], []>} : vector<7x32xbf16>, vector<32x32xbf16>, vector<7x32xf32> -> vector<7x32xf32>
    %c0_30 = arith.constant 0 : index
    %c0_31 = arith.constant 0 : index
    %59 = vector.load %arg11[%c0_30, %c0_31] : memref<1x32xf32, #tpu.memory_space<vmem>>, vector<1x32xf32>
    %60 = vector.broadcast %59 : vector<1x32xf32> to vector<7x32xf32>
    %61 = arith.addf %58, %60 : vector<7x32xf32>
    %c0_32 = arith.constant 0 : index
    %c0_33 = arith.constant 0 : index
    %62 = vector.load %arg12[%c0_32, %c0_33] : memref<32x32xbf16, #tpu.memory_space<vmem>>, vector<32x32xbf16>
    %63 = arith.truncf %55 : vector<7x32xf32> to vector<7x32xbf16>
    %cst_34 = arith.constant dense<0.000000e+00> : vector<7x32xf32>
    %64 = tpu.matmul %63, %62, %cst_34 {dimension_numbers = #tpu.dot_dimension_numbers<[1], [0], [0], [1], [0, 0, 1, 1], [], []>} : vector<7x32xbf16>, vector<32x32xbf16>, vector<7x32xf32> -> vector<7x32xf32>
    %c0_35 = arith.constant 0 : index
    %c0_36 = arith.constant 0 : index
    %65 = vector.load %arg13[%c0_35, %c0_36] : memref<1x32xf32, #tpu.memory_space<vmem>>, vector<1x32xf32>
    %66 = vector.broadcast %65 : vector<1x32xf32> to vector<7x32xf32>
    %67 = arith.addf %64, %66 : vector<7x32xf32>
    %68 = tpu.iota {dimensions = array<i32: 1>} : vector<1x32xi32>
    %c0_i32 = arith.constant 0 : i32
    %69 = vector.broadcast %c0_i32 : i32 to vector<1x32xi32>
    %70 = arith.cmpi sge, %68, %69 : vector<1x32xi32>
    %c8_i32 = arith.constant 8 : i32
    %71 = vector.broadcast %c8_i32 : i32 to vector<1x32xi32>
    %72 = arith.cmpi slt, %68, %71 : vector<1x32xi32>
    %73 = arith.andi %70, %72 : vector<1x32xi1>
    %74 = arith.extui %73 : vector<1x32xi1> to vector<1x32xi32>
    %75 = arith.sitofp %74 : vector<1x32xi32> to vector<1x32xf32>
    %c8_i32_37 = arith.constant 8 : i32
    %76 = vector.broadcast %c8_i32_37 : i32 to vector<1x32xi32>
    %77 = arith.cmpi sge, %68, %76 : vector<1x32xi32>
    %c16_i32 = arith.constant 16 : i32
    %78 = vector.broadcast %c16_i32 : i32 to vector<1x32xi32>
    %79 = arith.cmpi slt, %68, %78 : vector<1x32xi32>
    %80 = arith.andi %77, %79 : vector<1x32xi1>
    %81 = arith.extui %80 : vector<1x32xi1> to vector<1x32xi32>
    %82 = arith.sitofp %81 : vector<1x32xi32> to vector<1x32xf32>
    %c16_i32_38 = arith.constant 16 : i32
    %83 = vector.broadcast %c16_i32_38 : i32 to vector<1x32xi32>
    %84 = arith.cmpi sge, %68, %83 : vector<1x32xi32>
    %c24_i32 = arith.constant 24 : i32
    %85 = vector.broadcast %c24_i32 : i32 to vector<1x32xi32>
    %86 = arith.cmpi slt, %68, %85 : vector<1x32xi32>
    %87 = arith.andi %84, %86 : vector<1x32xi1>
    %88 = arith.extui %87 : vector<1x32xi1> to vector<1x32xi32>
    %89 = arith.sitofp %88 : vector<1x32xi32> to vector<1x32xf32>
    %c24_i32_39 = arith.constant 24 : i32
    %90 = vector.broadcast %c24_i32_39 : i32 to vector<1x32xi32>
    %91 = arith.cmpi sge, %68, %90 : vector<1x32xi32>
    %c32_i32 = arith.constant 32 : i32
    %92 = vector.broadcast %c32_i32 : i32 to vector<1x32xi32>
    %93 = arith.cmpi slt, %68, %92 : vector<1x32xi32>
    %94 = arith.andi %91, %93 : vector<1x32xi1>
    %95 = arith.extui %94 : vector<1x32xi1> to vector<1x32xi32>
    %96 = arith.sitofp %95 : vector<1x32xi32> to vector<1x32xf32>
    %97 = arith.truncf %61 : vector<7x32xf32> to vector<7x32xbf16>
    %98 = arith.truncf %67 : vector<7x32xf32> to vector<7x32xbf16>
    %cst_40 = arith.constant 0.000000e+00 : f32
    %99 = vector.broadcast %cst_40 : f32 to vector<32x32xf32>
    %100 = vector.broadcast %75 : vector<1x32xf32> to vector<32x32xf32>
    %101 = arith.mulf %30, %100 : vector<32x32xf32>
    %102 = arith.truncf %101 : vector<32x32xf32> to vector<32x32xbf16>
    %cst_41 = arith.constant dense<0.000000e+00> : vector<32x7xf32>
    %103 = tpu.matmul %102, %97, %cst_41 {dimension_numbers = #tpu.dot_dimension_numbers<[1], [1], [0], [0], [0, 0, 1, 0], [], []>} : vector<32x32xbf16>, vector<7x32xbf16>, vector<32x7xf32> -> vector<32x7xf32>
    %cst_42 = arith.constant 0.353553385 : f32
    %104 = vector.broadcast %cst_42 : f32 to vector<32x7xf32>
    %105 = arith.mulf %103, %104 : vector<32x7xf32>
    %cst_43 = arith.constant dense<0xFF800000> : vector<32xf32>
    %106 = vector.multi_reduction <maximumf>, %105, %cst_43 [1] : vector<32x7xf32> to vector<32xf32>
    %107 = vector.shape_cast %106 : vector<32xf32> to vector<32x1xf32>
    %108 = vector.broadcast %107 : vector<32x1xf32> to vector<32x7xf32>
    %109 = arith.subf %105, %108 : vector<32x7xf32>
    %110 = math.exp %109 : vector<32x7xf32>
    %cst_44 = arith.constant dense<0.000000e+00> : vector<32xf32>
    %111 = vector.multi_reduction <add>, %110, %cst_44 [1] : vector<32x7xf32> to vector<32xf32>
    %112 = vector.shape_cast %111 : vector<32xf32> to vector<32x1xf32>
    %113 = tpu.reciprocal %112 {approx = true} : vector<32x1xf32> -> vector<32x1xf32>
    %114 = vector.broadcast %113 : vector<32x1xf32> to vector<32x7xf32>
    %115 = arith.mulf %110, %114 : vector<32x7xf32>
    %116 = arith.truncf %115 : vector<32x7xf32> to vector<32x7xbf16>
    %cst_45 = arith.constant dense<0.000000e+00> : vector<32x32xf32>
    %117 = tpu.matmul %116, %98, %cst_45 {dimension_numbers = #tpu.dot_dimension_numbers<[1], [0], [0], [1], [0, 0, 1, 1], [], []>} : vector<32x7xbf16>, vector<7x32xbf16>, vector<32x32xf32> -> vector<32x32xf32>
    %118 = vector.broadcast %75 : vector<1x32xf32> to vector<32x32xf32>
    %119 = arith.mulf %117, %118 : vector<32x32xf32>
    %120 = arith.addf %99, %119 : vector<32x32xf32>
    %121 = vector.broadcast %82 : vector<1x32xf32> to vector<32x32xf32>
    %122 = arith.mulf %30, %121 : vector<32x32xf32>
    %123 = arith.truncf %122 : vector<32x32xf32> to vector<32x32xbf16>
    %cst_46 = arith.constant dense<0.000000e+00> : vector<32x7xf32>
    %124 = tpu.matmul %123, %97, %cst_46 {dimension_numbers = #tpu.dot_dimension_numbers<[1], [1], [0], [0], [0, 0, 1, 0], [], []>} : vector<32x32xbf16>, vector<7x32xbf16>, vector<32x7xf32> -> vector<32x7xf32>
    %cst_47 = arith.constant 0.353553385 : f32
    %125 = vector.broadcast %cst_47 : f32 to vector<32x7xf32>
    %126 = arith.mulf %124, %125 : vector<32x7xf32>
    %cst_48 = arith.constant dense<0xFF800000> : vector<32xf32>
    %127 = vector.multi_reduction <maximumf>, %126, %cst_48 [1] : vector<32x7xf32> to vector<32xf32>
    %128 = vector.shape_cast %127 : vector<32xf32> to vector<32x1xf32>
    %129 = vector.broadcast %128 : vector<32x1xf32> to vector<32x7xf32>
    %130 = arith.subf %126, %129 : vector<32x7xf32>
    %131 = math.exp %130 : vector<32x7xf32>
    %cst_49 = arith.constant dense<0.000000e+00> : vector<32xf32>
    %132 = vector.multi_reduction <add>, %131, %cst_49 [1] : vector<32x7xf32> to vector<32xf32>
    %133 = vector.shape_cast %132 : vector<32xf32> to vector<32x1xf32>
    %134 = tpu.reciprocal %133 {approx = true} : vector<32x1xf32> -> vector<32x1xf32>
    %135 = vector.broadcast %134 : vector<32x1xf32> to vector<32x7xf32>
    %136 = arith.mulf %131, %135 : vector<32x7xf32>
    %137 = arith.truncf %136 : vector<32x7xf32> to vector<32x7xbf16>
    %cst_50 = arith.constant dense<0.000000e+00> : vector<32x32xf32>
    %138 = tpu.matmul %137, %98, %cst_50 {dimension_numbers = #tpu.dot_dimension_numbers<[1], [0], [0], [1], [0, 0, 1, 1], [], []>} : vector<32x7xbf16>, vector<7x32xbf16>, vector<32x32xf32> -> vector<32x32xf32>
    %139 = vector.broadcast %82 : vector<1x32xf32> to vector<32x32xf32>
    %140 = arith.mulf %138, %139 : vector<32x32xf32>
    %141 = arith.addf %120, %140 : vector<32x32xf32>
    %142 = vector.broadcast %89 : vector<1x32xf32> to vector<32x32xf32>
    %143 = arith.mulf %30, %142 : vector<32x32xf32>
    %144 = arith.truncf %143 : vector<32x32xf32> to vector<32x32xbf16>
    %cst_51 = arith.constant dense<0.000000e+00> : vector<32x7xf32>
    %145 = tpu.matmul %144, %97, %cst_51 {dimension_numbers = #tpu.dot_dimension_numbers<[1], [1], [0], [0], [0, 0, 1, 0], [], []>} : vector<32x32xbf16>, vector<7x32xbf16>, vector<32x7xf32> -> vector<32x7xf32>
    %cst_52 = arith.constant 0.353553385 : f32
    %146 = vector.broadcast %cst_52 : f32 to vector<32x7xf32>
    %147 = arith.mulf %145, %146 : vector<32x7xf32>
    %cst_53 = arith.constant dense<0xFF800000> : vector<32xf32>
    %148 = vector.multi_reduction <maximumf>, %147, %cst_53 [1] : vector<32x7xf32> to vector<32xf32>
    %149 = vector.shape_cast %148 : vector<32xf32> to vector<32x1xf32>
    %150 = vector.broadcast %149 : vector<32x1xf32> to vector<32x7xf32>
    %151 = arith.subf %147, %150 : vector<32x7xf32>
    %152 = math.exp %151 : vector<32x7xf32>
    %cst_54 = arith.constant dense<0.000000e+00> : vector<32xf32>
    %153 = vector.multi_reduction <add>, %152, %cst_54 [1] : vector<32x7xf32> to vector<32xf32>
    %154 = vector.shape_cast %153 : vector<32xf32> to vector<32x1xf32>
    %155 = tpu.reciprocal %154 {approx = true} : vector<32x1xf32> -> vector<32x1xf32>
    %156 = vector.broadcast %155 : vector<32x1xf32> to vector<32x7xf32>
    %157 = arith.mulf %152, %156 : vector<32x7xf32>
    %158 = arith.truncf %157 : vector<32x7xf32> to vector<32x7xbf16>
    %cst_55 = arith.constant dense<0.000000e+00> : vector<32x32xf32>
    %159 = tpu.matmul %158, %98, %cst_55 {dimension_numbers = #tpu.dot_dimension_numbers<[1], [0], [0], [1], [0, 0, 1, 1], [], []>} : vector<32x7xbf16>, vector<7x32xbf16>, vector<32x32xf32> -> vector<32x32xf32>
    %160 = vector.broadcast %89 : vector<1x32xf32> to vector<32x32xf32>
    %161 = arith.mulf %159, %160 : vector<32x32xf32>
    %162 = arith.addf %141, %161 : vector<32x32xf32>
    %163 = vector.broadcast %96 : vector<1x32xf32> to vector<32x32xf32>
    %164 = arith.mulf %30, %163 : vector<32x32xf32>
    %165 = arith.truncf %164 : vector<32x32xf32> to vector<32x32xbf16>
    %cst_56 = arith.constant dense<0.000000e+00> : vector<32x7xf32>
    %166 = tpu.matmul %165, %97, %cst_56 {dimension_numbers = #tpu.dot_dimension_numbers<[1], [1], [0], [0], [0, 0, 1, 0], [], []>} : vector<32x32xbf16>, vector<7x32xbf16>, vector<32x7xf32> -> vector<32x7xf32>
    %cst_57 = arith.constant 0.353553385 : f32
    %167 = vector.broadcast %cst_57 : f32 to vector<32x7xf32>
    %168 = arith.mulf %166, %167 : vector<32x7xf32>
    %cst_58 = arith.constant dense<0xFF800000> : vector<32xf32>
    %169 = vector.multi_reduction <maximumf>, %168, %cst_58 [1] : vector<32x7xf32> to vector<32xf32>
    %170 = vector.shape_cast %169 : vector<32xf32> to vector<32x1xf32>
    %171 = vector.broadcast %170 : vector<32x1xf32> to vector<32x7xf32>
    %172 = arith.subf %168, %171 : vector<32x7xf32>
    %173 = math.exp %172 : vector<32x7xf32>
    %cst_59 = arith.constant dense<0.000000e+00> : vector<32xf32>
    %174 = vector.multi_reduction <add>, %173, %cst_59 [1] : vector<32x7xf32> to vector<32xf32>
    %175 = vector.shape_cast %174 : vector<32xf32> to vector<32x1xf32>
    %176 = tpu.reciprocal %175 {approx = true} : vector<32x1xf32> -> vector<32x1xf32>
    %177 = vector.broadcast %176 : vector<32x1xf32> to vector<32x7xf32>
    %178 = arith.mulf %173, %177 : vector<32x7xf32>
    %179 = arith.truncf %178 : vector<32x7xf32> to vector<32x7xbf16>
    %cst_60 = arith.constant dense<0.000000e+00> : vector<32x32xf32>
    %180 = tpu.matmul %179, %98, %cst_60 {dimension_numbers = #tpu.dot_dimension_numbers<[1], [0], [0], [1], [0, 0, 1, 1], [], []>} : vector<32x7xbf16>, vector<7x32xbf16>, vector<32x32xf32> -> vector<32x32xf32>
    %181 = vector.broadcast %96 : vector<1x32xf32> to vector<32x32xf32>
    %182 = arith.mulf %180, %181 : vector<32x32xf32>
    %183 = arith.addf %162, %182 : vector<32x32xf32>
    %c0_61 = arith.constant 0 : index
    %c0_62 = arith.constant 0 : index
    %184 = vector.load %arg14[%c0_61, %c0_62] : memref<32x32xbf16, #tpu.memory_space<vmem>>, vector<32x32xbf16>
    %185 = arith.truncf %183 : vector<32x32xf32> to vector<32x32xbf16>
    %cst_63 = arith.constant dense<0.000000e+00> : vector<32x32xf32>
    %186 = tpu.matmul %185, %184, %cst_63 {dimension_numbers = #tpu.dot_dimension_numbers<[1], [0], [0], [1], [0, 0, 1, 1], [], []>} : vector<32x32xbf16>, vector<32x32xbf16>, vector<32x32xf32> -> vector<32x32xf32>
    %c0_64 = arith.constant 0 : index
    %c0_65 = arith.constant 0 : index
    %187 = vector.load %arg15[%c0_64, %c0_65] : memref<1x32xf32, #tpu.memory_space<vmem>>, vector<1x32xf32>
    %188 = vector.broadcast %187 : vector<1x32xf32> to vector<32x32xf32>
    %189 = arith.addf %186, %188 : vector<32x32xf32>
    %c0_66 = arith.constant 0 : index
    %c0_67 = arith.constant 0 : index
    %190 = vector.load %arg16[%c0_66, %c0_67] : memref<1x32xf32, #tpu.memory_space<vmem>>, vector<1x32xf32>
    %c0_68 = arith.constant 0 : index
    %c0_69 = arith.constant 0 : index
    %191 = vector.load %arg17[%c0_68, %c0_69] : memref<1x32xf32, #tpu.memory_space<vmem>>, vector<1x32xf32>
    %cst_70 = arith.constant dense<0.000000e+00> : vector<32xf32>
    %192 = vector.multi_reduction <add>, %189, %cst_70 [1] : vector<32x32xf32> to vector<32xf32>
    %193 = vector.shape_cast %192 : vector<32xf32> to vector<32x1xf32>
    %cst_71 = arith.constant 3.200000e+01 : f32
    %194 = vector.broadcast %cst_71 : f32 to vector<32x1xf32>
    %195 = arith.divf %193, %194 : vector<32x1xf32>
    %196 = vector.broadcast %195 : vector<32x1xf32> to vector<32x32xf32>
    %197 = arith.subf %189, %196 : vector<32x32xf32>
    %198 = arith.mulf %197, %197 : vector<32x32xf32>
    %cst_72 = arith.constant dense<0.000000e+00> : vector<32xf32>
    %199 = vector.multi_reduction <add>, %198, %cst_72 [1] : vector<32x32xf32> to vector<32xf32>
    %200 = vector.shape_cast %199 : vector<32xf32> to vector<32x1xf32>
    %cst_73 = arith.constant 3.200000e+01 : f32
    %201 = vector.broadcast %cst_73 : f32 to vector<32x1xf32>
    %202 = arith.divf %200, %201 : vector<32x1xf32>
    %cst_74 = arith.constant 9.99999974E-6 : f32
    %203 = vector.broadcast %cst_74 : f32 to vector<32x1xf32>
    %204 = arith.addf %202, %203 : vector<32x1xf32>
    %205 = math.rsqrt %204 : vector<32x1xf32>
    %206 = vector.broadcast %205 : vector<32x1xf32> to vector<32x32xf32>
    %207 = arith.mulf %197, %206 : vector<32x32xf32>
    %208 = vector.broadcast %190 : vector<1x32xf32> to vector<32x32xf32>
    %209 = arith.mulf %207, %208 : vector<32x32xf32>
    %210 = vector.broadcast %191 : vector<1x32xf32> to vector<32x32xf32>
    %211 = arith.addf %209, %210 : vector<32x32xf32>
    %c0_75 = arith.constant 0 : index
    %c0_76 = arith.constant 0 : index
    %212 = vector.load %arg18[%c0_75, %c0_76] : memref<32x64xbf16, #tpu.memory_space<vmem>>, vector<32x64xbf16>
    %213 = arith.truncf %211 : vector<32x32xf32> to vector<32x32xbf16>
    %cst_77 = arith.constant dense<0.000000e+00> : vector<32x64xf32>
    %214 = tpu.matmul %213, %212, %cst_77 {dimension_numbers = #tpu.dot_dimension_numbers<[1], [0], [0], [1], [0, 0, 1, 1], [], []>} : vector<32x32xbf16>, vector<32x64xbf16>, vector<32x64xf32> -> vector<32x64xf32>
    %c0_78 = arith.constant 0 : index
    %c0_79 = arith.constant 0 : index
    %215 = vector.load %arg19[%c0_78, %c0_79] : memref<1x64xf32, #tpu.memory_space<vmem>>, vector<1x64xf32>
    %216 = vector.broadcast %215 : vector<1x64xf32> to vector<32x64xf32>
    %217 = arith.addf %214, %216 : vector<32x64xf32>
    %218 = arith.mulf %217, %217 : vector<32x64xf32>
    %219 = arith.mulf %217, %218 : vector<32x64xf32>
    %cst_80 = arith.constant 4.471500e-02 : f32
    %220 = vector.broadcast %cst_80 : f32 to vector<32x64xf32>
    %221 = arith.mulf %220, %219 : vector<32x64xf32>
    %222 = arith.addf %217, %221 : vector<32x64xf32>
    %cst_81 = arith.constant 0.797884583 : f32
    %223 = vector.broadcast %cst_81 : f32 to vector<32x64xf32>
    %224 = arith.mulf %223, %222 : vector<32x64xf32>
    %225 = math.tanh %224 : vector<32x64xf32>
    %cst_82 = arith.constant 1.000000e+00 : f32
    %226 = vector.broadcast %cst_82 : f32 to vector<32x64xf32>
    %227 = arith.addf %226, %225 : vector<32x64xf32>
    %cst_83 = arith.constant 5.000000e-01 : f32
    %228 = vector.broadcast %cst_83 : f32 to vector<32x64xf32>
    %229 = arith.mulf %228, %227 : vector<32x64xf32>
    %230 = arith.mulf %217, %229 : vector<32x64xf32>
    %c0_84 = arith.constant 0 : index
    %c0_85 = arith.constant 0 : index
    %231 = vector.load %arg20[%c0_84, %c0_85] : memref<64x32xbf16, #tpu.memory_space<vmem>>, vector<64x32xbf16>
    %232 = arith.truncf %230 : vector<32x64xf32> to vector<32x64xbf16>
    %cst_86 = arith.constant dense<0.000000e+00> : vector<32x32xf32>
    %233 = tpu.matmul %232, %231, %cst_86 {dimension_numbers = #tpu.dot_dimension_numbers<[1], [0], [0], [1], [0, 0, 1, 1], [], []>} : vector<32x64xbf16>, vector<64x32xbf16>, vector<32x32xf32> -> vector<32x32xf32>
    %234 = arith.addf %189, %233 : vector<32x32xf32>
    %c0_87 = arith.constant 0 : index
    %c0_88 = arith.constant 0 : index
    %235 = vector.load %arg21[%c0_87, %c0_88] : memref<1x32xf32, #tpu.memory_space<vmem>>, vector<1x32xf32>
    %236 = vector.broadcast %235 : vector<1x32xf32> to vector<32x32xf32>
    %237 = arith.addf %234, %236 : vector<32x32xf32>
    %c0_89 = arith.constant 0 : index
    %c0_90 = arith.constant 0 : index
    %238 = vector.load %arg22[%c0_89, %c0_90] : memref<32x128xbf16, #tpu.memory_space<vmem>>, vector<32x128xbf16>
    %239 = arith.truncf %237 : vector<32x32xf32> to vector<32x32xbf16>
    %cst_91 = arith.constant dense<0.000000e+00> : vector<32x128xf32>
    %240 = tpu.matmul %239, %238, %cst_91 {dimension_numbers = #tpu.dot_dimension_numbers<[1], [0], [0], [1], [0, 0, 1, 1], [], []>} : vector<32x32xbf16>, vector<32x128xbf16>, vector<32x128xf32> -> vector<32x128xf32>
    %c0_92 = arith.constant 0 : index
    %c0_93 = arith.constant 0 : index
    %241 = vector.load %arg23[%c0_92, %c0_93] : memref<1x128xf32, #tpu.memory_space<vmem>>, vector<1x128xf32>
    %242 = vector.broadcast %241 : vector<1x128xf32> to vector<32x128xf32>
    %243 = arith.addf %240, %242 : vector<32x128xf32>
    %c0_94 = arith.constant 0 : index
    %c0_95 = arith.constant 0 : index
    %c0_96 = arith.constant 0 : index
    %244 = vector.load %arg24[%c0_94, %c0_95, %c0_96] : memref<1x32x128xf32, #tpu.memory_space<vmem>>, vector<1x32x128xf32>
    %245 = vector.shape_cast %244 : vector<1x32x128xf32> to vector<32x128xf32>
    %246 = vector.shape_cast %243 : vector<32x128xf32> to vector<1x32x128xf32>
    tpu.vector_store %arg24[%c0_94, %c0_95, %c0_96], %246 {strides = array<i32>} : memref<1x32x128xf32, #tpu.memory_space<vmem>>, vector<1x32x128xf32>,
    return
  }
  func.func @transform_0(%arg0: i32, %arg1: i32) -> (i32, i32, i32) {
    %c0_i32 = arith.constant 0 : i32
    %c0_i32_0 = arith.constant 0 : i32
    %c0_i32_1 = arith.constant 0 : i32
    return %c0_i32, %arg1, %c0_i32_0 : i32, i32, i32
  }
  func.func @transform_1(%arg0: i32, %arg1: i32) -> (i32, i32) {
    %c0_i32 = arith.constant 0 : i32
    %c0_i32_0 = arith.constant 0 : i32
    %c0_i32_1 = arith.constant 0 : i32
    return %c0_i32, %c0_i32_0 : i32, i32
  }
  func.func @transform_2(%arg0: i32, %arg1: i32) -> (i32, i32) {
    %c0_i32 = arith.constant 0 : i32
    %c0_i32_0 = arith.constant 0 : i32
    %c0_i32_1 = arith.constant 0 : i32
    return %c0_i32, %c0_i32_0 : i32, i32
  }
  func.func @transform_3(%arg0: i32, %arg1: i32) -> (i32, i32) {
    %c0_i32 = arith.constant 0 : i32
    %c0_i32_0 = arith.constant 0 : i32
    %c0_i32_1 = arith.constant 0 : i32
    return %c0_i32, %c0_i32_0 : i32, i32
  }
  func.func @transform_4(%arg0: i32, %arg1: i32) -> (i32, i32) {
    %c0_i32 = arith.constant 0 : i32
    %c0_i32_0 = arith.constant 0 : i32
    %c0_i32_1 = arith.constant 0 : i32
    return %c0_i32, %c0_i32_0 : i32, i32
  }
  func.func @transform_5(%arg0: i32, %arg1: i32) -> (i32, i32, i32) {
    %c0_i32 = arith.constant 0 : i32
    %c0_i32_0 = arith.constant 0 : i32
    %c0_i32_1 = arith.constant 0 : i32
    return %arg0, %c0_i32, %c0_i32_0 : i32, i32, i32
  }
  func.func @transform_6(%arg0: i32, %arg1: i32) -> (i32, i32) {
    %c0_i32 = arith.constant 0 : i32
    %c0_i32_0 = arith.constant 0 : i32
    %c0_i32_1 = arith.constant 0 : i32
    return %c0_i32, %c0_i32_0 : i32, i32
  }
  func.func @transform_7(%arg0: i32, %arg1: i32) -> (i32, i32) {
    %c0_i32 = arith.constant 0 : i32
    %c0_i32_0 = arith.constant 0 : i32
    %c0_i32_1 = arith.constant 0 : i32
    return %c0_i32, %c0_i32_0 : i32, i32
  }
  func.func @transform_8(%arg0: i32, %arg1: i32) -> (i32, i32) {
    %c0_i32 = arith.constant 0 : i32
    %c0_i32_0 = arith.constant 0 : i32
    %c0_i32_1 = arith.constant 0 : i32
    return %c0_i32, %c0_i32_0 : i32, i32
  }
  func.func @transform_9(%arg0: i32, %arg1: i32) -> (i32, i32) {
    %c0_i32 = arith.constant 0 : i32
    %c0_i32_0 = arith.constant 0 : i32
    %c0_i32_1 = arith.constant 0 : i32
    return %c0_i32, %c0_i32_0 : i32, i32
  }
  func.func @transform_10(%arg0: i32, %arg1: i32) -> (i32, i32) {
    %c0_i32 = arith.constant 0 : i32
    %c0_i32_0 = arith.constant 0 : i32
    %c0_i32_1 = arith.constant 0 : i32
    return %c0_i32, %c0_i32_0 : i32, i32
  }
  func.func @transform_11(%arg0: i32, %arg1: i32) -> (i32, i32) {
    %c0_i32 = arith.constant 0 : i32
    %c0_i32_0 = arith.constant 0 : i32
    %c0_i32_1 = arith.constant 0 : i32
    return %c0_i32, %c0_i32_0 : i32, i32
  }
  func.func @transform_12(%arg0: i32, %arg1: i32) -> (i32, i32) {
    %c0_i32 = arith.constant 0 : i32
    %c0_i32_0 = arith.constant 0 : i32
    %c0_i32_1 = arith.constant 0 : i32
    return %c0_i32, %c0_i32_0 : i32, i32
  }
  func.func @transform_13(%arg0: i32, %arg1: i32) -> (i32, i32) {
    %c0_i32 = arith.constant 0 : i32
    %c0_i32_0 = arith.constant 0 : i32
    %c0_i32_1 = arith.constant 0 : i32
    return %c0_i32, %c0_i32_0 : i32, i32
  }
  func.func @transform_14(%arg0: i32, %arg1: i32) -> (i32, i32) {
    %c0_i32 = arith.constant 0 : i32
    %c0_i32_0 = arith.constant 0 : i32
    %c0_i32_1 = arith.constant 0 : i32
    return %c0_i32, %c0_i32_0 : i32, i32
  }
  func.func @transform_15(%arg0: i32, %arg1: i32) -> (i32, i32) {
    %c0_i32 = arith.constant 0 : i32
    %c0_i32_0 = arith.constant 0 : i32
    %c0_i32_1 = arith.constant 0 : i32
    return %c0_i32, %c0_i32_0 : i32, i32
  }
  func.func @transform_16(%arg0: i32, %arg1: i32) -> (i32, i32) {
    %c0_i32 = arith.constant 0 : i32
    %c0_i32_0 = arith.constant 0 : i32
    %c0_i32_1 = arith.constant 0 : i32
    return %c0_i32, %c0_i32_0 : i32, i32
  }
  func.func @transform_17(%arg0: i32, %arg1: i32) -> (i32, i32) {
    %c0_i32 = arith.constant 0 : i32
    %c0_i32_0 = arith.constant 0 : i32
    %c0_i32_1 = arith.constant 0 : i32
    return %c0_i32, %c0_i32_0 : i32, i32
  }
  func.func @transform_18(%arg0: i32, %arg1: i32) -> (i32, i32) {
    %c0_i32 = arith.constant 0 : i32
    %c0_i32_0 = arith.constant 0 : i32
    %c0_i32_1 = arith.constant 0 : i32
    return %c0_i32, %c0_i32_0 : i32, i32
  }
  func.func @transform_19(%arg0: i32, %arg1: i32) -> (i32, i32) {
    %c0_i32 = arith.constant 0 : i32
    %c0_i32_0 = arith.constant 0 : i32
    %c0_i32_1 = arith.constant 0 : i32
    return %c0_i32, %c0_i32_0 : i32, i32
  }
  func.func @transform_20(%arg0: i32, %arg1: i32) -> (i32, i32) {
    %c0_i32 = arith.constant 0 : i32
    %c0_i32_0 = arith.constant 0 : i32
    %c0_i32_1 = arith.constant 0 : i32
    return %c0_i32, %c0_i32_0 : i32, i32
  }
  func.func @transform_21(%arg0: i32, %arg1: i32) -> (i32, i32) {
    %c0_i32 = arith.constant 0 : i32
    %c0_i32_0 = arith.constant 0 : i32
    %c0_i32_1 = arith.constant 0 : i32
    return %c0_i32, %c0_i32_0 : i32, i32
  }
  func.func @transform_22(%arg0: i32, %arg1: i32) -> (i32, i32, i32) {
    %c0_i32 = arith.constant 0 : i32
    %c0_i32_0 = arith.constant 0 : i32
    return %arg0, %arg1, %c0_i32 : i32, i32, i32
  }
}

</mosaic_0001>

<llo_original>
// kernel: tpu_custom_call.1
$region0: #{tpu_custom_call.1}
  #allocation0 [shape = 'u32[]', space=smem, size = 0x4, offset = 0x4, fixed_abs, tag = 'smem constant byte address 0x4 - core index']
  #allocation1 [shape = 'u32[72,128]{1,0:T(1,128)}', space=vmem, size = 0x9000, scoped, tag = 'internal scratch']
  %s0 = inlined_call_operand.hbm [shape: f32[8,128], index: 0, kind: input, shape index: {}]
  %s1 = inlined_call_operand.hbm [shape: f32[8,128], index: 1, kind: output, shape index: {}]
  %s2 = sld [smem:[#allocation0]]
  $region41: #{tpu_custom_call.1} parent=0
    _
  %s4 = ssub.s32 1, %s2
  %s5 = scalar_select 0, %s4, %s2
  $region1: #{tpu_custom_call.1} parent=0
    #allocation2 [shape = 'u8[4096]{0}', space=vmem, size = 0x1000, scoped, tag = 'input window, operand 0, single buffered']
    #allocation3 [shape = 's32[2]{0}', space=sflag, size = 0x8, scoped, tag = 'scoped memory for tpu_custom_call.1']
    #allocation4 [shape = 's32[2]{0}', space=sflag, size = 0x8, scoped, tag = 'scoped memory for tpu_custom_call.1']
    #allocation5 [shape = 'u8[4096]{0}', space=vmem, size = 0x1000, scoped, tag = 'output window, operand 0, single buffered']
    %6 = vsyncpa [#allocation3], 0
    %7 = vsyncpa [#allocation4], 0
    loop: start=0, step=1, limit=4
    $region2: #{tpu_custom_call.1} parent=1 // loop_pre_header
      _
    $region3: #{tpu_custom_call.1} parent=1 // loop_header
      %s9 = sphi 0, %s13
      %p10 = scmp.ge.s32.totalorder %s9, 4
      %s17 = sphi 0, %s17
      %s19 = sphi 0, %s17
      %s20 = sphi 0, %s19
      %s34 = sphi 0, %s20
      %s38 = sphi 0, %s38
      %s40 = sphi 0, %s38
      %s41 = sphi 0, %s40
      %s55 = sphi 0, %s41
    $region4: #{tpu_custom_call.1} parent=1 // loop_header_branch
      %12 = sbr.rel (%p10) target = $region8
    $region5: #{tpu_custom_call.1} parent=1 // loop_body
      %s14 = ssub.s32 %s9, 1
      %s15 = ssub.s32 %s9, 2
      %s16 = sadd.s32 %s9, 1
      %s18 = sadd.s32 %s17, 1
      %p21 = scmp.eq.s32.totalorder %s9, 1
      %p22 = scmp.ne.s32.totalorder %s17, %s19
      %p23 = scmp.eq.s32.totalorder %s9, 0
      %p24 = por %p22, %p23
      %p25 = scmp.ne.s32.totalorder %s17, %s19
      %p26 = scmp.eq.s32.totalorder %s14, 1
      %p27 = por %p25, %p26
      %p28 = scmp.ne.s32.totalorder %s19, %s20
      %p29 = scmp.eq.s32.totalorder %s14, 0
      %p30 = por %p28, %p29
      %p31 = scmp.ne.s32.totalorder %s19, %s20
      %p32 = scmp.eq.s32.totalorder %s15, 1
      %p33 = por %p31, %p32
      %p35 = scmp.ne.s32.totalorder %s20, %s34
      %p36 = scmp.eq.s32.totalorder %s15, 0
      %p37 = por %p35, %p36
      %s39 = sadd.s32 %s38, 1
      %p42 = scmp.eq.s32.totalorder %s9, 1
      %p43 = scmp.ne.s32.totalorder %s38, %s40
      %p44 = scmp.eq.s32.totalorder %s9, 0
      %p45 = por %p43, %p44
      %p46 = scmp.ne.s32.totalorder %s38, %s40
      %p47 = scmp.eq.s32.totalorder %s14, 1
      %p48 = por %p46, %p47
      %p49 = scmp.ne.s32.totalorder %s40, %s41
      %p50 = scmp.eq.s32.totalorder %s14, 0
      %p51 = por %p49, %p50
      %p52 = scmp.ne.s32.totalorder %s40, %s41
      %p53 = scmp.eq.s32.totalorder %s15, 1
      %p54 = por %p52, %p53
      %p56 = scmp.ne.s32.totalorder %s41, %s55
      %p57 = scmp.eq.s32.totalorder %s15, 0
      %p58 = por %p56, %p57
      %p59 = scmp.le.s32.totalorder 1, %s9
      %p60 = scmp.lt.s32.totalorder %s9, 3
      %p61 = pnand %p59, %p60
      %p62 = pneg %p61
      // Predicated region
      $region9: #{tpu_custom_call.1} parent=5 // pred_check
        _
      $region10: #{tpu_custom_call.1} parent=5 // pred_check_branch
        %64 = sbr.rel (%p61) target = $region12
      $region11: #{tpu_custom_call.1} parent=5 // pred_region
        %s65 = ssub.s32 %s9, 1
        // Predicated region
        $region13: #{tpu_custom_call.1} parent=11 // pred_check
          %p66 = pneg %p30
        $region14: #{tpu_custom_call.1} parent=11 // pred_check_branch
          %68 = sbr.rel (%p66) target = $region16
        $region15: #{tpu_custom_call.1} parent=11 // pred_region
          %70 = vsyncadd [#allocation3], 0
          %s72 = sshll.u32 %s0, 4
          %s73 = int_to_ptr.hbm [resolvable:$true] %s72
          %s74 = sshll.u32 [#allocation2], 4
          %s75 = int_to_ptr.vmem [resolvable:$true] %s74
          %77 = dma.hbm_to_vmem [thread:$0]  %s73, 128, %s75, [#allocation3]
        $region16: #{tpu_custom_call.1} parent=11 // pred_fallthru
          _
      $region12: #{tpu_custom_call.1} parent=5 // pred_fallthru
        _
      %p78 = scmp.lt.s32.totalorder %s9, 2
      // Predicated region
      $region17: #{tpu_custom_call.1} parent=5 // pred_check
        %p79 = pneg %p78
      $region18: #{tpu_custom_call.1} parent=5 // pred_check_branch
        %81 = sbr.rel (%p79) target = $region20
      $region19: #{tpu_custom_call.1} parent=5 // pred_region
        _
      $region20: #{tpu_custom_call.1} parent=5 // pred_fallthru
        _
      %p82 = scmp.le.s32.totalorder 1, %s9
      %p83 = scmp.lt.s32.totalorder %s9, 3
      %p84 = pnand %p82, %p83
      %p85 = pneg %p84
      // Predicated region
      $region21: #{tpu_custom_call.1} parent=5 // pred_check
        _
      $region22: #{tpu_custom_call.1} parent=5 // pred_check_branch
        %87 = sbr.rel (%p84) target = $region24
      $region23: #{tpu_custom_call.1} parent=5 // pred_region
        %s88 = ssub.s32 %s9, 1
        // Predicated region
        $region25: #{tpu_custom_call.1} parent=23 // pred_check
          %p89 = pneg %p30
        $region26: #{tpu_custom_call.1} parent=23 // pred_check_branch
          %91 = sbr.rel (%p89) target = $region28
        $region27: #{tpu_custom_call.1} parent=23 // pred_region
          %93 = dma.done [#allocation3], 128
        $region28: #{tpu_custom_call.1} parent=23 // pred_fallthru
          _
        %p94 = pneg %p30
        %p95 = pneg %p27
        %p96 = pneg %p51
        %p97 = pneg %p48
        %v98 = vld [vmem:[#allocation2] sm:$0xff]
        %v99 = vadd.f32 %v98, 1.0
        %100 = vst [vmem:[#allocation5] sm:$0xff] %v99
        // Predicated region
        $region29: #{tpu_custom_call.1} parent=23 // pred_check
          %p101 = pneg %p48
        $region30: #{tpu_custom_call.1} parent=23 // pred_check_branch
          %103 = sbr.rel (%p101) target = $region32
        $region31: #{tpu_custom_call.1} parent=23 // pred_region
          %105 = vsyncadd [#allocation4], 0
          %s107 = sshll.u32 [#allocation5], 4
          %s108 = int_to_ptr.vmem [resolvable:$true] %s107
          %s109 = sshll.u32 %s1, 4
          %s110 = int_to_ptr.hbm [resolvable:$true] %s109
          %112 = dma.vmem_to_hbm [thread:$0]  %s108, 128, %s110, [#allocation4]
        $region32: #{tpu_custom_call.1} parent=23 // pred_fallthru
          _
        // Predicated region
        $region33: #{tpu_custom_call.1} parent=23 // pred_check
          %p113 = pneg %p48
        $region34: #{tpu_custom_call.1} parent=23 // pred_check_branch
          %115 = sbr.rel (%p113) target = $region36
        $region35: #{tpu_custom_call.1} parent=23 // pred_region
          %117 = dma.done [#allocation4], 128
        $region36: #{tpu_custom_call.1} parent=23 // pred_fallthru
          _
      $region24: #{tpu_custom_call.1} parent=5 // pred_fallthru
        _
      %p118 = scmp.le.s32.totalorder 2, %s9
      // Predicated region
      $region37: #{tpu_custom_call.1} parent=5 // pred_check
        %p119 = pneg %p118
      $region38: #{tpu_custom_call.1} parent=5 // pred_check_branch
        %121 = sbr.rel (%p119) target = $region40
      $region39: #{tpu_custom_call.1} parent=5 // pred_region
        %s122 = ssub.s32 %s9, 2
      $region40: #{tpu_custom_call.1} parent=5 // pred_fallthru
        _
    $region6: #{tpu_custom_call.1} parent=1 // loop_footer
      %s13 = sadd.s32 1, %s9
    $region7: #{tpu_custom_call.1} parent=1 // loop_footer_branch
      %8 = sbr.rel target = $region3
    $region8: #{tpu_custom_call.1} parent=1 // loop_exit
      _
    %123 = vsyncpa [#allocation3], 1
    %s124 = scalar_lea.sflag [#allocation3], 1
    %125 = vsyncpa %s124, 1
    %126 = vsyncpa [#allocation4], 1
    %s127 = scalar_lea.sflag [#allocation4], 1
    %128 = vsyncpa %s127, 1

// kernel: forward.5
$region0: #{forward.5}
  #allocation0 [shape = 'u32[]', space=smem, size = 0x4, offset = 0x4, fixed_abs, tag = 'smem constant byte address 0x4 - core index']
  #allocation1 [shape = 'u32[72,128]{1,0:T(1,128)}', space=vmem, size = 0x9000, scoped, tag = 'internal scratch']
  %s0 = inlined_call_operand.vmem [shape: f32[2,16,32], index: 0, kind: input, shape index: {}]
  %s1 = inlined_call_operand.vmem [shape: bf16[32,32], index: 1, kind: input, shape index: {}]
  %s2 = inlined_call_operand.vmem [shape: f32[1,32], index: 2, kind: input, shape index: {}]
  %s3 = inlined_call_operand.vmem [shape: bf16[1,16,32], index: 3, kind: input, shape index: {}]
  %s4 = inlined_call_operand.vmem [shape: bf16[2,16,32], index: 4, kind: output, shape index: {}]
  %s5 = sld [smem:[#allocation0]]
  $region49: #{forward.5} parent=0
    _
  %s7 = ssub.s32 1, %s5
  %s8 = scalar_select 0, %s7, %s5
  loop: start=0, step=1, limit=4
  $region2: #{forward.5} parent=0 // loop_pre_header
    _
  $region3: #{forward.5} parent=0 // loop_header
    %s10 = sphi 0, %s14
    %p11 = scmp.ge.s32.totalorder %s10, 4
    %s17 = sphi 0, %s29
    %s18 = sphi 0, %s25
    %s19 = sphi 0, %s17
    %s20 = sphi 0, %s18
    %s21 = sphi 0, %s19
    %s22 = sphi 0, %s20
    %s34 = sphi 0, %s36
    %s37 = sphi 0, %s34
    %s38 = sphi 0, %s37
    %s54 = sphi 0, %s38
    %s58 = sphi 0, %s58
    %s60 = sphi 0, %s58
    %s61 = sphi 0, %s60
    %s75 = sphi 0, %s61
    %s79 = sphi 0, %s79
    %s81 = sphi 0, %s79
    %s82 = sphi 0, %s81
    %s96 = sphi 0, %s82
    %s102 = sphi 0, %s104
    %s105 = sphi 0, %s102
    %s106 = sphi 0, %s105
    %s122 = sphi 0, %s106
    %s130 = sphi 0, %s132
    %s133 = sphi 0, %s130
    %s134 = sphi 0, %s133
    %s150 = sphi 0, %s134
  $region4: #{forward.5} parent=0 // loop_header_branch
    %13 = sbr.rel (%p11) target = $region8
  $region5: #{forward.5} parent=0 // loop_body
    %s15 = ssub.s32 %s10, 1
    %s16 = ssub.s32 %s10, 2
    %s23 = sadd.s32 1, %s18
    %p24 = scmp.ge.s32.totalorder %s23, 1
    %s25 = scalar_select %p24, 0, %s23
    %s26 = sadd.s32 1, %s17
    %s27 = scalar_select %p24, %s26, %s17
    %p28 = scmp.ge.s32.totalorder %s27, 2
    %s29 = scalar_select %p28, 0, %s27
    %s30 = ssub.s32 %s17, %s29
    %s31 = ssub.s32 %s18, %s25
    %s32 = sor.u32 %s30, %s31
    %p33 = scmp.eq.s32.totalorder %s32, 0
    %s35 = sadd.s32 %s34, 1
    %s36 = scalar_select %p33, %s34, %s35
    %p39 = pneg %p33
    %p40 = scmp.eq.s32.totalorder %s10, 1
    %p41 = por %p39, %p40
    %p42 = scmp.ne.s32.totalorder %s34, %s37
    %p43 = scmp.eq.s32.totalorder %s10, 0
    %p44 = por %p42, %p43
    %p45 = scmp.ne.s32.totalorder %s34, %s37
    %p46 = scmp.eq.s32.totalorder %s15, 1
    %p47 = por %p45, %p46
    %p48 = scmp.ne.s32.totalorder %s37, %s38
    %p49 = scmp.eq.s32.totalorder %s15, 0
    %p50 = por %p48, %p49
    %p51 = scmp.ne.s32.totalorder %s37, %s38
    %p52 = scmp.eq.s32.totalorder %s16, 1
    %p53 = por %p51, %p52
    %p55 = scmp.ne.s32.totalorder %s38, %s54
    %p56 = scmp.eq.s32.totalorder %s16, 0
    %p57 = por %p55, %p56
    %s59 = sadd.s32 %s58, 1
    %p62 = scmp.eq.s32.totalorder %s10, 1
    %p63 = scmp.ne.s32.totalorder %s58, %s60
    %p64 = scmp.eq.s32.totalorder %s10, 0
    %p65 = por %p63, %p64
    %p66 = scmp.ne.s32.totalorder %s58, %s60
    %p67 = scmp.eq.s32.totalorder %s15, 1
    %p68 = por %p66, %p67
    %p69 = scmp.ne.s32.totalorder %s60, %s61
    %p70 = scmp.eq.s32.totalorder %s15, 0
    %p71 = por %p69, %p70
    %p72 = scmp.ne.s32.totalorder %s60, %s61
    %p73 = scmp.eq.s32.totalorder %s16, 1
    %p74 = por %p72, %p73
    %p76 = scmp.ne.s32.totalorder %s61, %s75
    %p77 = scmp.eq.s32.totalorder %s16, 0
    %p78 = por %p76, %p77
    %s80 = sadd.s32 %s79, 1
    %p83 = scmp.eq.s32.totalorder %s10, 1
    %p84 = scmp.ne.s32.totalorder %s79, %s81
    %p85 = scmp.eq.s32.totalorder %s10, 0
    %p86 = por %p84, %p85
    %p87 = scmp.ne.s32.totalorder %s79, %s81
    %p88 = scmp.eq.s32.totalorder %s15, 1
    %p89 = por %p87, %p88
    %p90 = scmp.ne.s32.totalorder %s81, %s82
    %p91 = scmp.eq.s32.totalorder %s15, 0
    %p92 = por %p90, %p91
    %p93 = scmp.ne.s32.totalorder %s81, %s82
    %p94 = scmp.eq.s32.totalorder %s16, 1
    %p95 = por %p93, %p94
    %p97 = scmp.ne.s32.totalorder %s82, %s96
    %p98 = scmp.eq.s32.totalorder %s16, 0
    %p99 = por %p97, %p98
    %s100 = ssub.s32 %s18, %s25
    %p101 = scmp.eq.s32.totalorder %s100, 0
    %s103 = sadd.s32 %s102, 1
    %s104 = scalar_select %p101, %s102, %s103
    %p107 = pneg %p101
    %p108 = scmp.eq.s32.totalorder %s10, 1
    %p109 = por %p107, %p108
    %p110 = scmp.ne.s32.totalorder %s102, %s105
    %p111 = scmp.eq.s32.totalorder %s10, 0
    %p112 = por %p110, %p111
    %p113 = scmp.ne.s32.totalorder %s102, %s105
    %p114 = scmp.eq.s32.totalorder %s15, 1
    %p115 = por %p113, %p114
    %p116 = scmp.ne.s32.totalorder %s105, %s106
    %p117 = scmp.eq.s32.totalorder %s15, 0
    %p118 = por %p116, %p117
    %p119 = scmp.ne.s32.totalorder %s105, %s106
    %p120 = scmp.eq.s32.totalorder %s16, 1
    %p121 = por %p119, %p120
    %p123 = scmp.ne.s32.totalorder %s106, %s122
    %p124 = scmp.eq.s32.totalorder %s16, 0
    %p125 = por %p123, %p124
    %s126 = ssub.s32 %s17, %s29
    %s127 = ssub.s32 %s18, %s25
    %s128 = sor.u32 %s126, %s127
    %p129 = scmp.eq.s32.totalorder %s128, 0
    %s131 = sadd.s32 %s130, 1
    %s132 = scalar_select %p129, %s130, %s131
    %p135 = pneg %p129
    %p136 = scmp.eq.s32.totalorder %s10, 1
    %p137 = por %p135, %p136
    %p138 = scmp.ne.s32.totalorder %s130, %s133
    %p139 = scmp.eq.s32.totalorder %s10, 0
    %p140 = por %p138, %p139
    %p141 = scmp.ne.s32.totalorder %s130, %s133
    %p142 = scmp.eq.s32.totalorder %s15, 1
    %p143 = por %p141, %p142
    %p144 = scmp.ne.s32.totalorder %s133, %s134
    %p145 = scmp.eq.s32.totalorder %s15, 0
    %p146 = por %p144, %p145
    %p147 = scmp.ne.s32.totalorder %s133, %s134
    %p148 = scmp.eq.s32.totalorder %s16, 1
    %p149 = por %p147, %p148
    %p151 = scmp.ne.s32.totalorder %s134, %s150
    %p152 = scmp.eq.s32.totalorder %s16, 0
    %p153 = por %p151, %p152
    %p154 = scmp.le.s32.totalorder 1, %s10
    %p155 = scmp.lt.s32.totalorder %s10, 3
    %p156 = pnand %p154, %p155
    %p157 = pneg %p156
    // Predicated region
    $region9: #{forward.5} parent=5 // pred_check
      _
    $region10: #{forward.5} parent=5 // pred_check_branch
      %159 = sbr.rel (%p156) target = $region12
    $region11: #{forward.5} parent=5 // pred_region
      %s160 = ssub.s32 %s10, 1
      // Predicated region
      $region13: #{forward.5} parent=11 // pred_check
        %p161 = pneg %p71
      $region14: #{forward.5} parent=11 // pred_check_branch
        %163 = sbr.rel (%p161) target = $region16
      $region15: #{forward.5} parent=11 // pred_region
        _
      $region16: #{forward.5} parent=11 // pred_fallthru
        _
      // Predicated region
      $region17: #{forward.5} parent=11 // pred_check
        %p164 = pneg %p92
      $region18: #{forward.5} parent=11 // pred_check_branch
        %166 = sbr.rel (%p164) target = $region20
      $region19: #{forward.5} parent=11 // pred_region
        _
      $region20: #{forward.5} parent=11 // pred_fallthru
        _
      // Predicated region
      $region21: #{forward.5} parent=11 // pred_check
        %p167 = pneg %p118
      $region22: #{forward.5} parent=11 // pred_check_branch
        %169 = sbr.rel (%p167) target = $region24
      $region23: #{forward.5} parent=11 // pred_region
        %s170 = smul.u32 2, %s20
        %p171 = scmp.lt.s32.totalorder %s170, 1
        %s172 = scalar_select %p171, %s170, 1
        %s173 = smul.addr %s172, 4
        %s174 = scalar_lea.vmem %s3, %s173
        %s175 = smul.u32 2, %s20
      $region24: #{forward.5} parent=11 // pred_fallthru
        _
    $region12: #{forward.5} parent=5 // pred_fallthru
      _
    %p176 = scmp.lt.s32.totalorder %s10, 2
    // Predicated region
    $region25: #{forward.5} parent=5 // pred_check
      %p177 = pneg %p176
    $region26: #{forward.5} parent=5 // pred_check_branch
      %179 = sbr.rel (%p177) target = $region28
    $region27: #{forward.5} parent=5 // pred_region
      // Predicated region
      $region29: #{forward.5} parent=27 // pred_check
        %p180 = pneg %p44
      $region30: #{forward.5} parent=27 // pred_check_branch
        %182 = sbr.rel (%p180) target = $region32
      $region31: #{forward.5} parent=27 // pred_region
        %s183 = smul.u32 2, %s18
        %p184 = scmp.lt.s32.totalorder %s17, 1
        %s185 = scalar_select %p184, %s17, 1
        %p186 = scmp.lt.s32.totalorder %s183, 1
        %s187 = scalar_select %p186, %s183, 1
        %s188 = smul.addr %s185, 2
        %s189 = sadd.s32 %s187, %s188
        %s190 = smul.addr %s189, 8
        %s191 = scalar_lea.vmem %s0, %s190
        %s192 = smul.u32 2, %s18
      $region32: #{forward.5} parent=27 // pred_fallthru
        _
    $region28: #{forward.5} parent=5 // pred_fallthru
      _
    %p193 = scmp.le.s32.totalorder 1, %s10
    %p194 = scmp.lt.s32.totalorder %s10, 3
    %p195 = pnand %p193, %p194
    %p196 = pneg %p195
    // Predicated region
    $region33: #{forward.5} parent=5 // pred_check
      _
    $region34: #{forward.5} parent=5 // pred_check_branch
      %198 = sbr.rel (%p195) target = $region36
    $region35: #{forward.5} parent=5 // pred_region
      %s199 = ssub.s32 %s10, 1
      %s200 = smul.u32 2, %s20
      %p201 = scmp.lt.s32.totalorder %s19, 1
      %s202 = scalar_select %p201, %s19, 1
      %p203 = scmp.lt.s32.totalorder %s200, 1
      %s204 = scalar_select %p203, %s200, 1
      %s205 = smul.addr %s202, 2
      %s206 = sadd.s32 %s204, %s205
      %s207 = smul.addr %s206, 8
      %s208 = scalar_lea.vmem %s0, %s207
      %p209 = pneg %p50
      %p210 = pneg %p47
      %p211 = pneg %p71
      %p212 = pneg %p68
      %p213 = pneg %p92
      %p214 = pneg %p89
      %s215 = smul.u32 2, %s20
      %p216 = scmp.lt.s32.totalorder %s215, 1
      %s217 = scalar_select %p216, %s215, 1
      %s218 = smul.addr %s217, 4
      %s219 = scalar_lea.vmem %s3, %s218
      %p220 = pneg %p118
      %p221 = pneg %p115
      %p222 = pneg %p146
      %p223 = pneg %p143
      %s224 = smul.u32 2, %s20
      %p225 = scmp.lt.s32.totalorder %s19, 1
      %s226 = scalar_select %p225, %s19, 1
      %p227 = scmp.lt.s32.totalorder %s224, 1
      %s228 = scalar_select %p227, %s224, 1
      %s229 = smul.addr %s226, 2
      %s230 = sadd.s32 %s228, %s229
      %s231 = smul.addr %s230, 4
      %s232 = scalar_lea.vmem %s4, %s231
      %s233 = smul.u32 2, %s20
      %p234 = scmp.lt.s32.totalorder %s19, 1
      %s235 = scalar_select %p234, %s19, 1
      %p236 = scmp.lt.s32.totalorder %s233, 1
      %s237 = scalar_select %p236, %s233, 1
      %s238 = smul.addr %s235, 2
      %s239 = sadd.s32 %s237, %s238
      %s240 = smul.addr %s239, 8
      %s241 = scalar_lea.vmem %s0, %s240
      %s242 = smul.u32 2, %s20
      %s243 = smul.u32 2, %s20
      %p244 = scmp.lt.s32.totalorder %s243, 1
      %s245 = scalar_select %p244, %s243, 1
      %s246 = smul.addr %s245, 4
      %s247 = scalar_lea.vmem %s3, %s246
      %s248 = smul.u32 2, %s20
      %s249 = smul.u32 2, %s20
      %p250 = scmp.lt.s32.totalorder %s19, 1
      %s251 = scalar_select %p250, %s19, 1
      %p252 = scmp.lt.s32.totalorder %s249, 1
      %s253 = scalar_select %p252, %s249, 1
      %s254 = smul.addr %s251, 2
      %s255 = sadd.s32 %s253, %s254
      %s256 = smul.addr %s255, 4
      %s257 = scalar_lea.vmem %s4, %s256
      %s258 = smul.u32 2, %s20
      %v260 = vld [vmem:[%s241] sm:$0xff]
      %v261 = vld [vmem:[%s241 + $0x8] sm:$0xff]
      %v262 = vld [vmem:[%s1] sm:$0xf]
      %v263 = vld [vmem:[%s1 + $0x4] sm:$0xf]
      %v264 = vld [vmem:[%s1 + $0x8] sm:$0xf]
      %v265 = vld [vmem:[%s1 + $0xc] sm:$0xf]
      %v266 = vpack.c.bf16 %v261, %v260
      %v267 = vld [vmem:[%s2] sm:$0x1]
      %v269 = vperm.slane %v267, 0
      %v275 = vunpack.c.l.b16 %v262
      %v276 = vunpack.c.l.b16 %v263
      %v277 = vunpack.c.l.b16 %v264
      %v278 = vunpack.c.l.b16 %v265
      %v279 = vpack.c.b16 %v276, %v275
      %v280 = vpack.c.b16 %v278, %v277
      %vm283 = vcmask 261120
      %v285 = vsel %vm283, %v266, 0
      %287 = vmatpush.bf16.msra.mxu0 0
      %288 = vmatpush.bf16.msra.mxu0 0
      %289 = vmatpush.bf16.msra.mxu0 0
      %290 = vmatpush.bf16.msra.mxu0 0
      %291 = vmatpush.bf16.msra.mxu0 0
      %292 = vmatpush.bf16.msra.mxu0 0
      %293 = vmatpush.bf16.msra.mxu0 %v280
      %294 = vmatpush.bf16.msra.mxu0 %v279
      %295 = vmatmul.bf16.gmra.mxu0 %v285
      %v296 = vpop.f32.mrf.mxu0
      %v297 = vadd.f32 %v269, %v296
      %v298 = vpop.f32.mrf.mxu0
      %v299 = vadd.f32 %v269, %v298
      %300 = vdwg.mxu0
      %v301 = vld [vmem:[%s247] sm:$0xf]
      %v302 = vld [vmem:[%s247 + $0x4] sm:$0xf]
      %v303 = vunpack.c.l.bf16 %v301
      %v304 = vunpack.c.l.bf16 %v302
      %v305 = vadd.f32 %v297, %v303
      %v306 = vadd.f32 %v299, %v304
      %v307 = vpack.c.bf16 %v305, %v305
      %v308 = vpack.c.bf16 %v306, %v306
      %vm309 = vcmask 257024
      %310 = vst.msk [vmem:[%s257] sm:$0xf] %vm309, %v307
      %311 = vst.msk [vmem:[%s257 + $0x4] sm:$0xf] %vm309, %v308
      %s312 = smul.u32 2, %s20
      %p313 = scmp.lt.s32.totalorder %s19, 1
      %s314 = scalar_select %p313, %s19, 1
      %p315 = scmp.lt.s32.totalorder %s312, 1
      %s316 = scalar_select %p315, %s312, 1
      %s317 = smul.addr %s314, 2
      %s318 = sadd.s32 %s316, %s317
      %s319 = smul.addr %s318, 4
      %s320 = scalar_lea.vmem %s4, %s319
      // Predicated region
      $region37: #{forward.5} parent=35 // pred_check
        %p321 = pneg %p143
      $region38: #{forward.5} parent=35 // pred_check_branch
        %323 = sbr.rel (%p321) target = $region40
      $region39: #{forward.5} parent=35 // pred_region
        %s324 = smul.u32 2, %s20
      $region40: #{forward.5} parent=35 // pred_fallthru
        _
    $region36: #{forward.5} parent=5 // pred_fallthru
      _
    %p325 = scmp.le.s32.totalorder 2, %s10
    // Predicated region
    $region41: #{forward.5} parent=5 // pred_check
      %p326 = pneg %p325
    $region42: #{forward.5} parent=5 // pred_check_branch
      %328 = sbr.rel (%p326) target = $region44
    $region43: #{forward.5} parent=5 // pred_region
      %s329 = ssub.s32 %s10, 2
      // Predicated region
      $region45: #{forward.5} parent=43 // pred_check
        %p330 = pneg %p149
      $region46: #{forward.5} parent=43 // pred_check_branch
        %332 = sbr.rel (%p330) target = $region48
      $region47: #{forward.5} parent=43 // pred_region
        %s333 = smul.u32 2, %s22
        %p334 = scmp.lt.s32.totalorder %s21, 1
        %s335 = scalar_select %p334, %s21, 1
        %p336 = scmp.lt.s32.totalorder %s333, 1
        %s337 = scalar_select %p336, %s333, 1
        %s338 = smul.addr %s335, 2
        %s339 = sadd.s32 %s337, %s338
        %s340 = smul.addr %s339, 4
        %s341 = scalar_lea.vmem %s4, %s340
      $region48: #{forward.5} parent=43 // pred_fallthru
        _
    $region44: #{forward.5} parent=5 // pred_fallthru
      _
  $region6: #{forward.5} parent=0 // loop_footer
    %s14 = sadd.s32 1, %s10
  $region7: #{forward.5} parent=0 // loop_footer_branch
    %9 = sbr.rel target = $region3
  $region8: #{forward.5} parent=0 // loop_exit
    _

// kernel: forward.7
$region0: #{forward.7}
  #allocation0 [shape = 'u32[]', space=smem, size = 0x4, offset = 0x4, fixed_abs, tag = 'smem constant byte address 0x4 - core index']
  #allocation1 [shape = 'u32[72,128]{1,0:T(1,128)}', space=vmem, size = 0x9000, scoped, tag = 'internal scratch']
  %s0 = inlined_call_operand.vmem [shape: bf16[2,8,32], index: 0, kind: input, shape index: {}]
  %s1 = inlined_call_operand.vmem [shape: f32[1,32], index: 1, kind: input, shape index: {}]
  %s2 = inlined_call_operand.vmem [shape: f32[1,32], index: 2, kind: input, shape index: {}]
  %s3 = inlined_call_operand.vmem [shape: bf16[32,32], index: 3, kind: input, shape index: {}]
  %s4 = inlined_call_operand.vmem [shape: f32[1,32], index: 4, kind: input, shape index: {}]
  %s5 = inlined_call_operand.vmem [shape: bf16[32,32], index: 5, kind: input, shape index: {}]
  %s6 = inlined_call_operand.vmem [shape: f32[1,32], index: 6, kind: input, shape index: {}]
  %s7 = inlined_call_operand.vmem [shape: bf16[32,32], index: 7, kind: input, shape index: {}]
  %s8 = inlined_call_operand.vmem [shape: f32[1,32], index: 8, kind: input, shape index: {}]
  %s9 = inlined_call_operand.vmem [shape: bf16[32,32], index: 9, kind: input, shape index: {}]
  %s10 = inlined_call_operand.vmem [shape: f32[1,32], index: 10, kind: input, shape index: {}]
  %s11 = inlined_call_operand.vmem [shape: f32[1,32], index: 11, kind: input, shape index: {}]
  %s12 = inlined_call_operand.vmem [shape: f32[1,32], index: 12, kind: input, shape index: {}]
  %s13 = inlined_call_operand.vmem [shape: bf16[32,64], index: 13, kind: input, shape index: {}]
  %s14 = inlined_call_operand.vmem [shape: f32[1,64], index: 14, kind: input, shape index: {}]
  %s15 = inlined_call_operand.vmem [shape: bf16[64,32], index: 15, kind: input, shape index: {}]
  %s16 = inlined_call_operand.vmem [shape: f32[1,32], index: 16, kind: input, shape index: {}]
  %s17 = inlined_call_operand.vmem [shape: bf16[2,8,32], index: 17, kind: output, shape index: {}]
  %s18 = sld [smem:[#allocation0]]
  $region78: #{forward.7} parent=0
    _
  %s20 = ssub.s32 1, %s18
  %s21 = scalar_select 0, %s20, %s18
  // Predicated region
  $region2: #{forward.7} parent=0 // pred_check
    _
  $region3: #{forward.7} parent=0 // pred_check_branch
    %23 = sbr.rel (0) target = $region5
  $region4: #{forward.7} parent=0 // pred_region
    _
  $region5: #{forward.7} parent=0 // pred_fallthru
    _
  // Predicated region
  $region6: #{forward.7} parent=0 // pred_check
    _
  $region7: #{forward.7} parent=0 // pred_check_branch
    %25 = sbr.rel (0) target = $region9
  $region8: #{forward.7} parent=0 // pred_region
    _
  $region9: #{forward.7} parent=0 // pred_fallthru
    _
  // Predicated region
  $region10: #{forward.7} parent=0 // pred_check
    _
  $region11: #{forward.7} parent=0 // pred_check_branch
    %27 = sbr.rel (0) target = $region13
  $region12: #{forward.7} parent=0 // pred_region
    _
  $region13: #{forward.7} parent=0 // pred_fallthru
    _
  // Predicated region
  $region14: #{forward.7} parent=0 // pred_check
    _
  $region15: #{forward.7} parent=0 // pred_check_branch
    %29 = sbr.rel (0) target = $region17
  $region16: #{forward.7} parent=0 // pred_region
    _
  $region17: #{forward.7} parent=0 // pred_fallthru
    _
  // Predicated region
  $region18: #{forward.7} parent=0 // pred_check
    _
  $region19: #{forward.7} parent=0 // pred_check_branch
    %31 = sbr.rel (0) target = $region21
  $region20: #{forward.7} parent=0 // pred_region
    _
  $region21: #{forward.7} parent=0 // pred_fallthru
    _
  // Predicated region
  $region22: #{forward.7} parent=0 // pred_check
    _
  $region23: #{forward.7} parent=0 // pred_check_branch
    %33 = sbr.rel (0) target = $region25
  $region24: #{forward.7} parent=0 // pred_region
    _
  $region25: #{forward.7} parent=0 // pred_fallthru
    _
  // Predicated region
  $region26: #{forward.7} parent=0 // pred_check
    _
  $region27: #{forward.7} parent=0 // pred_check_branch
    %35 = sbr.rel (0) target = $region29
  $region28: #{forward.7} parent=0 // pred_region
    _
  $region29: #{forward.7} parent=0 // pred_fallthru
    _
  // Predicated region
  $region30: #{forward.7} parent=0 // pred_check
    _
  $region31: #{forward.7} parent=0 // pred_check_branch
    %37 = sbr.rel (0) target = $region33
  $region32: #{forward.7} parent=0 // pred_region
    _
  $region33: #{forward.7} parent=0 // pred_fallthru
    _
  // Predicated region
  $region34: #{forward.7} parent=0 // pred_check
    _
  $region35: #{forward.7} parent=0 // pred_check_branch
    %39 = sbr.rel (0) target = $region37
  $region36: #{forward.7} parent=0 // pred_region
    _
  $region37: #{forward.7} parent=0 // pred_fallthru
    _
  // Predicated region
  $region38: #{forward.7} parent=0 // pred_check
    _
  $region39: #{forward.7} parent=0 // pred_check_branch
    %41 = sbr.rel (0) target = $region41
  $region40: #{forward.7} parent=0 // pred_region
    _
  $region41: #{forward.7} parent=0 // pred_fallthru
    _
  // Predicated region
  $region42: #{forward.7} parent=0 // pred_check
    _
  $region43: #{forward.7} parent=0 // pred_check_branch
    %43 = sbr.rel (0) target = $region45
  $region44: #{forward.7} parent=0 // pred_region
    _
  $region45: #{forward.7} parent=0 // pred_fallthru
    _
  // Predicated region
  $region46: #{forward.7} parent=0 // pred_check
    _
  $region47: #{forward.7} parent=0 // pred_check_branch
    %45 = sbr.rel (0) target = $region49
  $region48: #{forward.7} parent=0 // pred_region
    _
  $region49: #{forward.7} parent=0 // pred_fallthru
    _
  // Predicated region
  $region50: #{forward.7} parent=0 // pred_check
    _
  $region51: #{forward.7} parent=0 // pred_check_branch
    %47 = sbr.rel (0) target = $region53
  $region52: #{forward.7} parent=0 // pred_region
    _
  $region53: #{forward.7} parent=0 // pred_fallthru
    _
  // Predicated region
  $region54: #{forward.7} parent=0 // pred_check
    _
  $region55: #{forward.7} parent=0 // pred_check_branch
    %49 = sbr.rel (0) target = $region57
  $region56: #{forward.7} parent=0 // pred_region
    _
  $region57: #{forward.7} parent=0 // pred_fallthru
    _
  // Predicated region
  $region58: #{forward.7} parent=0 // pred_check
    _
  $region59: #{forward.7} parent=0 // pred_check_branch
    %51 = sbr.rel (0) target = $region61
  $region60: #{forward.7} parent=0 // pred_region
    _
  $region61: #{forward.7} parent=0 // pred_fallthru
    _
  // Predicated region
  $region62: #{forward.7} parent=0 // pred_check
    _
  $region63: #{forward.7} parent=0 // pred_check_branch
    %53 = sbr.rel (0) target = $region65
  $region64: #{forward.7} parent=0 // pred_region
    _
  $region65: #{forward.7} parent=0 // pred_fallthru
    _
  // Predicated region
  $region66: #{forward.7} parent=0 // pred_check
    _
  $region67: #{forward.7} parent=0 // pred_check_branch
    %55 = sbr.rel (0) target = $region69
  $region68: #{forward.7} parent=0 // pred_region
    _
  $region69: #{forward.7} parent=0 // pred_fallthru
    _
  %v57 = vld [vmem:[%s0] sm:$0xf]
  %v58 = vld [vmem:[%s0 + $0x4] sm:$0xf]
  %v59 = vunpack.c.l.bf16 %v57
  %v60 = vunpack.c.l.bf16 %v58
  %v61 = vld [vmem:[%s1] sm:$0x1]
  %v62 = vld [vmem:[%s2] sm:$0x1]
  %vm63 = vcmask 261120
  %v64 = vsel %vm63, %v59, 0.0
  %65 = vadd.xlane.f32.xlu0 %v64
  %v66 = vpop.xlane.xlu0 %65
  %v67 = vsel %vm63, %v60, 0.0
  %68 = vadd.xlane.f32.xlu0 %v67
  %v69 = vpop.xlane.xlu0 %68
  %v70 = vrcp.pop 32.0
  %v71 = vmul.f32 32.0, %v70
  %v72 = vsub.f32 1.0, %v71
  %v73 = vmul.f32 %v70, %v72
  %v74 = vadd.f32 %v70, %v73
  %vm75 = vweird.f32 %v70
  %v76 = vsel %vm75, %v70, %v74
  %v77 = vmul.f32 %v66, %v76
  %v78 = vmul.f32 %v69, %v76
  %v79 = vsub.f32 %v59, %v77
  %v80 = vsub.f32 %v60, %v78
  %v81 = vmul.f32 %v79, %v79
  %v82 = vmul.f32 %v80, %v80
  %v83 = vsel %vm63, %v81, 0.0
  %84 = vadd.xlane.f32.xlu0 %v83
  %v85 = vpop.xlane.xlu0 %84
  %v86 = vsel %vm63, %v82, 0.0
  %87 = vadd.xlane.f32.xlu0 %v86
  %v88 = vpop.xlane.xlu0 %87
  %v89 = vmul.f32 %v85, %v76
  %v90 = vmul.f32 %v88, %v76
  %v91 = vadd.f32 %v89, 1e-05
  %v92 = vadd.f32 %v90, 1e-05
  %v93 = vrsqrt.pop %v91
  %v94 = vmul.f32 %v93, %v91
  %v95 = vmul.f32 %v94, %v93
  %v96 = vmul.f32 0.5, %v95
  %v97 = vsub.f32 1.5, %v96
  %v98 = vmul.f32 %v93, %v97
  %vm99 = vweird.f32 %v91
  %vm100 = vweird.f32 %v93
  %vm101 = vmor %vm99, %vm100
  %v102 = vsel %vm101, %v93, %v98
  %v103 = vrsqrt.pop %v92
  %v104 = vmul.f32 %v103, %v92
  %v105 = vmul.f32 %v104, %v103
  %v106 = vmul.f32 0.5, %v105
  %v107 = vsub.f32 1.5, %v106
  %v108 = vmul.f32 %v103, %v107
  %vm109 = vweird.f32 %v92
  %vm110 = vweird.f32 %v103
  %vm111 = vmor %vm109, %vm110
  %v112 = vsel %vm111, %v103, %v108
  %v113 = vmul.f32 %v79, %v102
  %v114 = vmul.f32 %v80, %v112
  %v116 = vperm.slane %v61, 0
  %v118 = vmul.f32 %v113, %v116
  %v119 = vmul.f32 %v114, %v116
  %v121 = vperm.slane %v62, 0
  %v123 = vadd.f32 %v118, %v121
  %v124 = vadd.f32 %v119, %v121
  %v125 = vld [vmem:[%s3] sm:$0xf]
  %v126 = vld [vmem:[%s3 + $0x4] sm:$0xf]
  %v127 = vld [vmem:[%s3 + $0x8] sm:$0xf]
  %v128 = vld [vmem:[%s3 + $0xc] sm:$0xf]
  %v129 = vpack.c.bf16 %v124, %v123
  %v130 = vld [vmem:[%s4] sm:$0x1]
  %v132 = vperm.slane %v130, 0
  %v138 = vunpack.c.l.b16 %v125
  %v139 = vunpack.c.l.b16 %v126
  %v140 = vunpack.c.l.b16 %v127
  %v141 = vunpack.c.l.b16 %v128
  %v142 = vpack.c.b16 %v139, %v138
  %v143 = vpack.c.b16 %v141, %v140
  %v147 = vsel %vm63, %v129, 0
  %149 = vmatpush.bf16.msra.mxu0 0
  %150 = vmatpush.bf16.msra.mxu0 0
  %151 = vmatpush.bf16.msra.mxu0 0
  %152 = vmatpush.bf16.msra.mxu0 0
  %153 = vmatpush.bf16.msra.mxu0 0
  %154 = vmatpush.bf16.msra.mxu0 0
  %155 = vmatpush.bf16.msra.mxu0 %v143
  %156 = vmatpush.bf16.msra.mxu0 %v142
  %157 = vmatmul.bf16.gmra.mxu0 %v147
  %v158 = vpop.f32.mrf.mxu0
  %v159 = vadd.f32 %v132, %v158
  %v160 = vpop.f32.mrf.mxu0
  %v161 = vadd.f32 %v132, %v160
  %162 = vdwg.mxu0
  %v163 = vld [vmem:[%s5] sm:$0xf]
  %v164 = vld [vmem:[%s5 + $0x4] sm:$0xf]
  %v165 = vld [vmem:[%s5 + $0x8] sm:$0xf]
  %v166 = vld [vmem:[%s5 + $0xc] sm:$0xf]
  %v167 = vld [vmem:[%s6] sm:$0x1]
  %v169 = vperm.slane %v167, 0
  %v175 = vunpack.c.l.b16 %v163
  %v176 = vunpack.c.l.b16 %v164
  %v177 = vunpack.c.l.b16 %v165
  %v178 = vunpack.c.l.b16 %v166
  %v179 = vpack.c.b16 %v176, %v175
  %v180 = vpack.c.b16 %v178, %v177
  %183 = vmatpush.bf16.msra.mxu0 0
  %184 = vmatpush.bf16.msra.mxu0 0
  %185 = vmatpush.bf16.msra.mxu0 0
  %186 = vmatpush.bf16.msra.mxu0 0
  %187 = vmatpush.bf16.msra.mxu0 0
  %188 = vmatpush.bf16.msra.mxu0 0
  %189 = vmatpush.bf16.msra.mxu0 %v180
  %190 = vmatpush.bf16.msra.mxu0 %v179
  %191 = vmatmul.bf16.gmra.mxu0 %v147
  %v192 = vpop.f32.mrf.mxu0
  %v193 = vadd.f32 %v169, %v192
  %v194 = vpop.f32.mrf.mxu0
  %v195 = vadd.f32 %v169, %v194
  %196 = vdwg.mxu0
  %v197 = vld [vmem:[%s7] sm:$0xf]
  %v198 = vld [vmem:[%s7 + $0x4] sm:$0xf]
  %v199 = vld [vmem:[%s7 + $0x8] sm:$0xf]
  %v200 = vld [vmem:[%s7 + $0xc] sm:$0xf]
  %v201 = vld [vmem:[%s8] sm:$0x1]
  %v203 = vperm.slane %v201, 0
  %v209 = vunpack.c.l.b16 %v197
  %v210 = vunpack.c.l.b16 %v198
  %v211 = vunpack.c.l.b16 %v199
  %v212 = vunpack.c.l.b16 %v200
  %v213 = vpack.c.b16 %v210, %v209
  %v214 = vpack.c.b16 %v212, %v211
  %217 = vmatpush.bf16.msra.mxu0 0
  %218 = vmatpush.bf16.msra.mxu0 0
  %219 = vmatpush.bf16.msra.mxu0 0
  %220 = vmatpush.bf16.msra.mxu0 0
  %221 = vmatpush.bf16.msra.mxu0 0
  %222 = vmatpush.bf16.msra.mxu0 0
  %223 = vmatpush.bf16.msra.mxu0 %v214
  %224 = vmatpush.bf16.msra.mxu0 %v213
  %225 = vmatmul.bf16.gmra.mxu0 %v147
  %v226 = vpop.f32.mrf.mxu0
  %v227 = vadd.f32 %v203, %v226
  %v228 = vpop.f32.mrf.mxu0
  %v229 = vadd.f32 %v203, %v228
  %230 = vdwg.mxu0
  %v231 = vlaneseq
  %v232 = vand.u32 %v231, 127
  %vm233 = vcmp.ge.s32.totalorder %v232, 0
  %vm234 = vcmp.lt.s32.totalorder %v232, 8
  %vm235 = vmand %vm233, %vm234
  %v236 = vsel %vm235, 1, 0
  %v237 = vcvt.s32.f32 %v236
  %vm238 = vcmp.ge.s32.totalorder %v232, 8
  %vm239 = vcmp.lt.s32.totalorder %v232, 16
  %vm240 = vmand %vm238, %vm239
  %v241 = vsel %vm240, 1, 0
  %v242 = vcvt.s32.f32 %v241
  %vm243 = vcmp.ge.s32.totalorder %v232, 16
  %vm244 = vcmp.lt.s32.totalorder %v232, 24
  %vm245 = vmand %vm243, %vm244
  %v246 = vsel %vm245, 1, 0
  %v247 = vcvt.s32.f32 %v246
  %vm248 = vcmp.ge.s32.totalorder %v232, 24
  %vm249 = vcmp.lt.s32.totalorder %v232, 32
  %vm250 = vmand %vm248, %vm249
  %v251 = vsel %vm250, 1, 0
  %v252 = vcvt.s32.f32 %v251
  %v253 = vpack.c.bf16 %v193, %v193
  %v254 = vpack.c.bf16 %v195, %v195
  %v255 = vpack.c.bf16 %v227, %v227
  %v256 = vpack.c.bf16 %v229, %v229
  %v257 = vmul.f32 %v159, %v237
  %v258 = vmul.f32 %v161, %v237
  %v259 = vpack.c.bf16 %v257, %v257
  %v260 = vpack.c.bf16 %v258, %v258
  %v262 = vsel %vm63, %v259, 0
  %v265 = vsel %vm63, %v253, 0
  %267 = vmatpush.bf16.xpose.msra.mxu0 0
  %268 = vmatpush.bf16.xpose.msra.mxu0 0
  %269 = vmatpush.bf16.xpose.msra.mxu0 0
  %270 = vmatpush.bf16.xpose.msra.mxu0 0
  %271 = vmatpush.bf16.xpose.msra.mxu0 0
  %272 = vmatpush.bf16.xpose.msra.mxu0 0
  %273 = vmatpush.bf16.xpose.msra.mxu0 0
  %274 = vmatpush.bf16.xpose.msra.mxu0 %v265
  %275 = vmatmul.bf16.gmra.mxu0 %v262
  %v276 = vpop.f32.mrf.mxu0
  %v277 = vadd.f32 0.0, %v276
  %v278 = vpop.f32.mrf.mxu0
  %279 = vdwg.mxu0
  %v281 = vsel %vm63, %v260, 0
  %v284 = vsel %vm63, %v254, 0
  %286 = vmatpush.bf16.xpose.msra.mxu0 0
  %287 = vmatpush.bf16.xpose.msra.mxu0 0
  %288 = vmatpush.bf16.xpose.msra.mxu0 0
  %289 = vmatpush.bf16.xpose.msra.mxu0 0
  %290 = vmatpush.bf16.xpose.msra.mxu0 0
  %291 = vmatpush.bf16.xpose.msra.mxu0 0
  %292 = vmatpush.bf16.xpose.msra.mxu0 0
  %293 = vmatpush.bf16.xpose.msra.mxu0 %v284
  %294 = vmatmul.bf16.gmra.mxu0 %v281
  %v295 = vpop.f32.mrf.mxu0
  %v296 = vadd.f32 0.0, %v295
  %v297 = vpop.f32.mrf.mxu0
  %298 = vdwg.mxu0
  %v299 = vmul.f32 %v277, 0.35355338
  %v300 = vmul.f32 %v296, 0.35355338
  %vm301 = vcmask 64512
  %v302 = vsel %vm301, %v299, -inf
  %303 = vmax.xlane.f32.xlu0 %v302
  %v304 = vpop.xlane.xlu0 %303
  %v305 = vsel %vm301, %v300, -inf
  %306 = vmax.xlane.f32.xlu0 %v305
  %v307 = vpop.xlane.xlu0 %306
  %v308 = vsub.f32 %v299, %v304
  %v309 = vsub.f32 %v300, %v307
  %v310 = vmul.f32 %v308, 1.442695
  %v311 = vpow.pop %v310
  %v312 = vmul.f32 %v309, 1.442695
  %v313 = vpow.pop %v312
  %v314 = vsel %vm301, %v311, 0.0
  %315 = vadd.xlane.f32.xlu0 %v314
  %v316 = vpop.xlane.xlu0 %315
  %v317 = vsel %vm301, %v313, 0.0
  %318 = vadd.xlane.f32.xlu0 %v317
  %v319 = vpop.xlane.xlu0 %318
  %v320 = vrcp.pop %v316
  %v321 = vrcp.pop %v319
  %v322 = vmul.f32 %v311, %v320
  %v323 = vmul.f32 %v313, %v321
  %v324 = vpack.c.bf16 %v322, %v322
  %v325 = vpack.c.bf16 %v323, %v323
  %v327 = vsel %vm301, %v324, 0
  %vm329 = vcmask 1043456
  %v331 = vsel %vm329, %v255, 0
  %333 = vmatpush.bf16.msra.mxu0 0
  %334 = vmatpush.bf16.msra.mxu0 0
  %335 = vmatpush.bf16.msra.mxu0 0
  %336 = vmatpush.bf16.msra.mxu0 0
  %337 = vmatpush.bf16.msra.mxu0 0
  %338 = vmatpush.bf16.msra.mxu0 0
  %339 = vmatpush.bf16.msra.mxu0 0
  %340 = vmatpush.bf16.msra.mxu0 %v331
  %341 = vmatmul.bf16.gmra.mxu0 %v327
  %v342 = vpop.f32.mrf.mxu0
  %v343 = vadd.f32 0.0, %v342
  %v344 = vpop.f32.mrf.mxu0
  %345 = vdwg.mxu0
  %v347 = vsel %vm301, %v325, 0
  %v350 = vsel %vm329, %v256, 0
  %352 = vmatpush.bf16.msra.mxu0 0
  %353 = vmatpush.bf16.msra.mxu0 0
  %354 = vmatpush.bf16.msra.mxu0 0
  %355 = vmatpush.bf16.msra.mxu0 0
  %356 = vmatpush.bf16.msra.mxu0 0
  %357 = vmatpush.bf16.msra.mxu0 0
  %358 = vmatpush.bf16.msra.mxu0 0
  %359 = vmatpush.bf16.msra.mxu0 %v350
  %360 = vmatmul.bf16.gmra.mxu0 %v347
  %v361 = vpop.f32.mrf.mxu0
  %v362 = vadd.f32 0.0, %v361
  %v363 = vpop.f32.mrf.mxu0
  %364 = vdwg.mxu0
  %v365 = vmul.f32 %v343, %v237
  %v366 = vmul.f32 %v362, %v237
  %v367 = vadd.f32 %v365, 0.0
  %v368 = vadd.f32 %v366, 0.0
  %v369 = vmul.f32 %v159, %v242
  %v370 = vmul.f32 %v161, %v242
  %v371 = vpack.c.bf16 %v369, %v369
  %v372 = vpack.c.bf16 %v370, %v370
  %v374 = vsel %vm63, %v371, 0
  %376 = vmatpush.bf16.xpose.msra.mxu0 0
  %377 = vmatpush.bf16.xpose.msra.mxu0 0
  %378 = vmatpush.bf16.xpose.msra.mxu0 0
  %379 = vmatpush.bf16.xpose.msra.mxu0 0
  %380 = vmatpush.bf16.xpose.msra.mxu0 0
  %381 = vmatpush.bf16.xpose.msra.mxu0 0
  %382 = vmatpush.bf16.xpose.msra.mxu0 0
  %383 = vmatpush.bf16.xpose.msra.mxu0 %v265
  %384 = vmatmul.bf16.gmra.mxu0 %v374
  %v385 = vpop.f32.mrf.mxu0
  %v386 = vadd.f32 0.0, %v385
  %v387 = vpop.f32.mrf.mxu0
  %388 = vdwg.mxu0
  %v390 = vsel %vm63, %v372, 0
  %392 = vmatpush.bf16.xpose.msra.mxu0 0
  %393 = vmatpush.bf16.xpose.msra.mxu0 0
  %394 = vmatpush.bf16.xpose.msra.mxu0 0
  %395 = vmatpush.bf16.xpose.msra.mxu0 0
  %396 = vmatpush.bf16.xpose.msra.mxu0 0
  %397 = vmatpush.bf16.xpose.msra.mxu0 0
  %398 = vmatpush.bf16.xpose.msra.mxu0 0
  %399 = vmatpush.bf16.xpose.msra.mxu0 %v284
  %400 = vmatmul.bf16.gmra.mxu0 %v390
  %v401 = vpop.f32.mrf.mxu0
  %v402 = vadd.f32 0.0, %v401
  %v403 = vpop.f32.mrf.mxu0
  %404 = vdwg.mxu0
  %v405 = vmul.f32 %v386, 0.35355338
  %v406 = vmul.f32 %v402, 0.35355338
  %v407 = vsel %vm301, %v405, -inf
  %408 = vmax.xlane.f32.xlu0 %v407
  %v409 = vpop.xlane.xlu0 %408
  %v410 = vsel %vm301, %v406, -inf
  %411 = vmax.xlane.f32.xlu0 %v410
  %v412 = vpop.xlane.xlu0 %411
  %v413 = vsub.f32 %v405, %v409
  %v414 = vsub.f32 %v406, %v412
  %v415 = vmul.f32 %v413, 1.442695
  %v416 = vpow.pop %v415
  %v417 = vmul.f32 %v414, 1.442695
  %v418 = vpow.pop %v417
  %v419 = vsel %vm301, %v416, 0.0
  %420 = vadd.xlane.f32.xlu0 %v419
  %v421 = vpop.xlane.xlu0 %420
  %v422 = vsel %vm301, %v418, 0.0
  %423 = vadd.xlane.f32.xlu0 %v422
  %v424 = vpop.xlane.xlu0 %423
  %v425 = vrcp.pop %v421
  %v426 = vrcp.pop %v424
  %v427 = vmul.f32 %v416, %v425
  %v428 = vmul.f32 %v418, %v426
  %v429 = vpack.c.bf16 %v427, %v427
  %v430 = vpack.c.bf16 %v428, %v428
  %v432 = vsel %vm301, %v429, 0
  %434 = vmatpush.bf16.msra.mxu0 0
  %435 = vmatpush.bf16.msra.mxu0 0
  %436 = vmatpush.bf16.msra.mxu0 0
  %437 = vmatpush.bf16.msra.mxu0 0
  %438 = vmatpush.bf16.msra.mxu0 0
  %439 = vmatpush.bf16.msra.mxu0 0
  %440 = vmatpush.bf16.msra.mxu0 0
  %441 = vmatpush.bf16.msra.mxu0 %v331
  %442 = vmatmul.bf16.gmra.mxu0 %v432
  %v443 = vpop.f32.mrf.mxu0
  %v444 = vadd.f32 0.0, %v443
  %v445 = vpop.f32.mrf.mxu0
  %446 = vdwg.mxu0
  %v448 = vsel %vm301, %v430, 0
  %450 = vmatpush.bf16.msra.mxu0 0
  %451 = vmatpush.bf16.msra.mxu0 0
  %452 = vmatpush.bf16.msra.mxu0 0
  %453 = vmatpush.bf16.msra.mxu0 0
  %454 = vmatpush.bf16.msra.mxu0 0
  %455 = vmatpush.bf16.msra.mxu0 0
  %456 = vmatpush.bf16.msra.mxu0 0
  %457 = vmatpush.bf16.msra.mxu0 %v350
  %458 = vmatmul.bf16.gmra.mxu0 %v448
  %v459 = vpop.f32.mrf.mxu0
  %v460 = vadd.f32 0.0, %v459
  %v461 = vpop.f32.mrf.mxu0
  %462 = vdwg.mxu0
  %v463 = vmul.f32 %v444, %v242
  %v464 = vmul.f32 %v460, %v242
  %v465 = vadd.f32 %v367, %v463
  %v466 = vadd.f32 %v368, %v464
  %v467 = vmul.f32 %v159, %v247
  %v468 = vmul.f32 %v161, %v247
  %v469 = vpack.c.bf16 %v467, %v467
  %v470 = vpack.c.bf16 %v468, %v468
  %v472 = vsel %vm63, %v469, 0
  %474 = vmatpush.bf16.xpose.msra.mxu0 0
  %475 = vmatpush.bf16.xpose.msra.mxu0 0
  %476 = vmatpush.bf16.xpose.msra.mxu0 0
  %477 = vmatpush.bf16.xpose.msra.mxu0 0
  %478 = vmatpush.bf16.xpose.msra.mxu0 0
  %479 = vmatpush.bf16.xpose.msra.mxu0 0
  %480 = vmatpush.bf16.xpose.msra.mxu0 0
  %481 = vmatpush.bf16.xpose.msra.mxu0 %v265
  %482 = vmatmul.bf16.gmra.mxu0 %v472
  %v483 = vpop.f32.mrf.mxu0
  %v484 = vadd.f32 0.0, %v483
  %v485 = vpop.f32.mrf.mxu0
  %486 = vdwg.mxu0
  %v488 = vsel %vm63, %v470, 0
  %490 = vmatpush.bf16.xpose.msra.mxu0 0
  %491 = vmatpush.bf16.xpose.msra.mxu0 0
  %492 = vmatpush.bf16.xpose.msra.mxu0 0
  %493 = vmatpush.bf16.xpose.msra.mxu0 0
  %494 = vmatpush.bf16.xpose.msra.mxu0 0
  %495 = vmatpush.bf16.xpose.msra.mxu0 0
  %496 = vmatpush.bf16.xpose.msra.mxu0 0
  %497 = vmatpush.bf16.xpose.msra.mxu0 %v284
  %498 = vmatmul.bf16.gmra.mxu0 %v488
  %v499 = vpop.f32.mrf.mxu0
  %v500 = vadd.f32 0.0, %v499
  %v501 = vpop.f32.mrf.mxu0
  %502 = vdwg.mxu0
  %v503 = vmul.f32 %v484, 0.35355338
  %v504 = vmul.f32 %v500, 0.35355338
  %v505 = vsel %vm301, %v503, -inf
  %506 = vmax.xlane.f32.xlu0 %v505
  %v507 = vpop.xlane.xlu0 %506
  %v508 = vsel %vm301, %v504, -inf
  %509 = vmax.xlane.f32.xlu0 %v508
  %v510 = vpop.xlane.xlu0 %509
  %v511 = vsub.f32 %v503, %v507
  %v512 = vsub.f32 %v504, %v510
  %v513 = vmul.f32 %v511, 1.442695
  %v514 = vpow.pop %v513
  %v515 = vmul.f32 %v512, 1.442695
  %v516 = vpow.pop %v515
  %v517 = vsel %vm301, %v514, 0.0
  %518 = vadd.xlane.f32.xlu0 %v517
  %v519 = vpop.xlane.xlu0 %518
  %v520 = vsel %vm301, %v516, 0.0
  %521 = vadd.xlane.f32.xlu0 %v520
  %v522 = vpop.xlane.xlu0 %521
  %v523 = vrcp.pop %v519
  %v524 = vrcp.pop %v522
  %v525 = vmul.f32 %v514, %v523
  %v526 = vmul.f32 %v516, %v524
  %v527 = vpack.c.bf16 %v525, %v525
  %v528 = vpack.c.bf16 %v526, %v526
  %v530 = vsel %vm301, %v527, 0
  %532 = vmatpush.bf16.msra.mxu0 0
  %533 = vmatpush.bf16.msra.mxu0 0
  %534 = vmatpush.bf16.msra.mxu0 0
  %535 = vmatpush.bf16.msra.mxu0 0
  %536 = vmatpush.bf16.msra.mxu0 0
  %537 = vmatpush.bf16.msra.mxu0 0
  %538 = vmatpush.bf16.msra.mxu0 0
  %539 = vmatpush.bf16.msra.mxu0 %v331
  %540 = vmatmul.bf16.gmra.mxu0 %v530
  %v541 = vpop.f32.mrf.mxu0
  %v542 = vadd.f32 0.0, %v541
  %v543 = vpop.f32.mrf.mxu0
  %544 = vdwg.mxu0
  %v546 = vsel %vm301, %v528, 0
  %548 = vmatpush.bf16.msra.mxu0 0
  %549 = vmatpush.bf16.msra.mxu0 0
  %550 = vmatpush.bf16.msra.mxu0 0
  %551 = vmatpush.bf16.msra.mxu0 0
  %552 = vmatpush.bf16.msra.mxu0 0
  %553 = vmatpush.bf16.msra.mxu0 0
  %554 = vmatpush.bf16.msra.mxu0 0
  %555 = vmatpush.bf16.msra.mxu0 %v350
  %556 = vmatmul.bf16.gmra.mxu0 %v546
  %v557 = vpop.f32.mrf.mxu0
  %v558 = vadd.f32 0.0, %v557
  %v559 = vpop.f32.mrf.mxu0
  %560 = vdwg.mxu0
  %v561 = vmul.f32 %v542, %v247
  %v562 = vmul.f32 %v558, %v247
  %v563 = vadd.f32 %v465, %v561
  %v564 = vadd.f32 %v466, %v562
  %v565 = vmul.f32 %v159, %v252
  %v566 = vmul.f32 %v161, %v252
  %v567 = vpack.c.bf16 %v565, %v565
  %v568 = vpack.c.bf16 %v566, %v566
  %v570 = vsel %vm63, %v567, 0
  %572 = vmatpush.bf16.xpose.msra.mxu0 0
  %573 = vmatpush.bf16.xpose.msra.mxu0 0
  %574 = vmatpush.bf16.xpose.msra.mxu0 0
  %575 = vmatpush.bf16.xpose.msra.mxu0 0
  %576 = vmatpush.bf16.xpose.msra.mxu0 0
  %577 = vmatpush.bf16.xpose.msra.mxu0 0
  %578 = vmatpush.bf16.xpose.msra.mxu0 0
  %579 = vmatpush.bf16.xpose.msra.mxu0 %v265
  %580 = vmatmul.bf16.gmra.mxu0 %v570
  %v581 = vpop.f32.mrf.mxu0
  %v582 = vadd.f32 0.0, %v581
  %v583 = vpop.f32.mrf.mxu0
  %584 = vdwg.mxu0
  %v586 = vsel %vm63, %v568, 0
  %588 = vmatpush.bf16.xpose.msra.mxu0 0
  %589 = vmatpush.bf16.xpose.msra.mxu0 0
  %590 = vmatpush.bf16.xpose.msra.mxu0 0
  %591 = vmatpush.bf16.xpose.msra.mxu0 0
  %592 = vmatpush.bf16.xpose.msra.mxu0 0
  %593 = vmatpush.bf16.xpose.msra.mxu0 0
  %594 = vmatpush.bf16.xpose.msra.mxu0 0
  %595 = vmatpush.bf16.xpose.msra.mxu0 %v284
  %596 = vmatmul.bf16.gmra.mxu0 %v586
  %v597 = vpop.f32.mrf.mxu0
  %v598 = vadd.f32 0.0, %v597
  %v599 = vpop.f32.mrf.mxu0
  %600 = vdwg.mxu0
  %v601 = vmul.f32 %v582, 0.35355338
  %v602 = vmul.f32 %v598, 0.35355338
  %v603 = vsel %vm301, %v601, -inf
  %604 = vmax.xlane.f32.xlu0 %v603
  %v605 = vpop.xlane.xlu0 %604
  %v606 = vsel %vm301, %v602, -inf
  %607 = vmax.xlane.f32.xlu0 %v606
  %v608 = vpop.xlane.xlu0 %607
  %v609 = vsub.f32 %v601, %v605
  %v610 = vsub.f32 %v602, %v608
  %v611 = vmul.f32 %v609, 1.442695
  %v612 = vpow.pop %v611
  %v613 = vmul.f32 %v610, 1.442695
  %v614 = vpow.pop %v613
  %v615 = vsel %vm301, %v612, 0.0
  %616 = vadd.xlane.f32.xlu0 %v615
  %v617 = vpop.xlane.xlu0 %616
  %v618 = vsel %vm301, %v614, 0.0
  %619 = vadd.xlane.f32.xlu0 %v618
  %v620 = vpop.xlane.xlu0 %619
  %v621 = vrcp.pop %v617
  %v622 = vrcp.pop %v620
  %v623 = vmul.f32 %v612, %v621
  %v624 = vmul.f32 %v614, %v622
  %v625 = vpack.c.bf16 %v623, %v623
  %v626 = vpack.c.bf16 %v624, %v624
  %v628 = vsel %vm301, %v625, 0
  %630 = vmatpush.bf16.msra.mxu0 0
  %631 = vmatpush.bf16.msra.mxu0 0
  %632 = vmatpush.bf16.msra.mxu0 0
  %633 = vmatpush.bf16.msra.mxu0 0
  %634 = vmatpush.bf16.msra.mxu0 0
  %635 = vmatpush.bf16.msra.mxu0 0
  %636 = vmatpush.bf16.msra.mxu0 0
  %637 = vmatpush.bf16.msra.mxu0 %v331
  %638 = vmatmul.bf16.gmra.mxu0 %v628
  %v639 = vpop.f32.mrf.mxu0
  %v640 = vadd.f32 0.0, %v639
  %v641 = vpop.f32.mrf.mxu0
  %642 = vdwg.mxu0
  %v644 = vsel %vm301, %v626, 0
  %646 = vmatpush.bf16.msra.mxu0 0
  %647 = vmatpush.bf16.msra.mxu0 0
  %648 = vmatpush.bf16.msra.mxu0 0
  %649 = vmatpush.bf16.msra.mxu0 0
  %650 = vmatpush.bf16.msra.mxu0 0
  %651 = vmatpush.bf16.msra.mxu0 0
  %652 = vmatpush.bf16.msra.mxu0 0
  %653 = vmatpush.bf16.msra.mxu0 %v350
  %654 = vmatmul.bf16.gmra.mxu0 %v644
  %v655 = vpop.f32.mrf.mxu0
  %v656 = vadd.f32 0.0, %v655
  %v657 = vpop.f32.mrf.mxu0
  %658 = vdwg.mxu0
  %v659 = vmul.f32 %v640, %v252
  %v660 = vmul.f32 %v656, %v252
  %v661 = vadd.f32 %v563, %v659
  %v662 = vadd.f32 %v564, %v660
  %v663 = vld [vmem:[%s9] sm:$0xf]
  %v664 = vld [vmem:[%s9 + $0x4] sm:$0xf]
  %v665 = vld [vmem:[%s9 + $0x8] sm:$0xf]
  %v666 = vld [vmem:[%s9 + $0xc] sm:$0xf]
  %v667 = vpack.c.bf16 %v662, %v661
  %v672 = vunpack.c.l.b16 %v663
  %v673 = vunpack.c.l.b16 %v664
  %v674 = vunpack.c.l.b16 %v665
  %v675 = vunpack.c.l.b16 %v666
  %v676 = vpack.c.b16 %v673, %v672
  %v677 = vpack.c.b16 %v675, %v674
  %v681 = vsel %vm63, %v667, 0
  %683 = vmatpush.bf16.msra.mxu0 0
  %684 = vmatpush.bf16.msra.mxu0 0
  %685 = vmatpush.bf16.msra.mxu0 0
  %686 = vmatpush.bf16.msra.mxu0 0
  %687 = vmatpush.bf16.msra.mxu0 0
  %688 = vmatpush.bf16.msra.mxu0 0
  %689 = vmatpush.bf16.msra.mxu0 %v677
  %690 = vmatpush.bf16.msra.mxu0 %v676
  %691 = vmatmul.bf16.gmra.mxu0 %v681
  %v692 = vpop.f32.mrf.mxu0
  %v693 = vadd.f32 0.0, %v692
  %v694 = vpop.f32.mrf.mxu0
  %v695 = vadd.f32 0.0, %v694
  %696 = vdwg.mxu0
  %v697 = vadd.f32 %v59, %v693
  %v698 = vadd.f32 %v60, %v695
  %v699 = vld [vmem:[%s10] sm:$0x1]
  %v701 = vperm.slane %v699, 0
  %v703 = vadd.f32 %v697, %v701
  %v704 = vadd.f32 %v698, %v701
  %v705 = vld [vmem:[%s11] sm:$0x1]
  %v706 = vld [vmem:[%s12] sm:$0x1]
  %v707 = vsel %vm63, %v703, 0.0
  %708 = vadd.xlane.f32.xlu0 %v707
  %v709 = vpop.xlane.xlu0 %708
  %v710 = vsel %vm63, %v704, 0.0
  %711 = vadd.xlane.f32.xlu0 %v710
  %v712 = vpop.xlane.xlu0 %711
  %v713 = vmul.f32 %v709, %v76
  %v714 = vmul.f32 %v712, %v76
  %v715 = vsub.f32 %v703, %v713
  %v716 = vsub.f32 %v704, %v714
  %v717 = vmul.f32 %v715, %v715
  %v718 = vmul.f32 %v716, %v716
  %v719 = vsel %vm63, %v717, 0.0
  %720 = vadd.xlane.f32.xlu0 %v719
  %v721 = vpop.xlane.xlu0 %720
  %v722 = vsel %vm63, %v718, 0.0
  %723 = vadd.xlane.f32.xlu0 %v722
  %v724 = vpop.xlane.xlu0 %723
  %v725 = vmul.f32 %v721, %v76
  %v726 = vmul.f32 %v724, %v76
  %v727 = vadd.f32 %v725, 1e-05
  %v728 = vadd.f32 %v726, 1e-05
  %v729 = vrsqrt.pop %v727
  %v730 = vmul.f32 %v729, %v727
  %v731 = vmul.f32 %v730, %v729
  %v732 = vmul.f32 0.5, %v731
  %v733 = vsub.f32 1.5, %v732
  %v734 = vmul.f32 %v729, %v733
  %vm735 = vweird.f32 %v727
  %vm736 = vweird.f32 %v729
  %vm737 = vmor %vm735, %vm736
  %v738 = vsel %vm737, %v729, %v734
  %v739 = vrsqrt.pop %v728
  %v740 = vmul.f32 %v739, %v728
  %v741 = vmul.f32 %v740, %v739
  %v742 = vmul.f32 0.5, %v741
  %v743 = vsub.f32 1.5, %v742
  %v744 = vmul.f32 %v739, %v743
  %vm745 = vweird.f32 %v728
  %vm746 = vweird.f32 %v739
  %vm747 = vmor %vm745, %vm746
  %v748 = vsel %vm747, %v739, %v744
  %v749 = vmul.f32 %v715, %v738
  %v750 = vmul.f32 %v716, %v748
  %v752 = vperm.slane %v705, 0
  %v754 = vmul.f32 %v749, %v752
  %v755 = vmul.f32 %v750, %v752
  %v757 = vperm.slane %v706, 0
  %v759 = vadd.f32 %v754, %v757
  %v760 = vadd.f32 %v755, %v757
  %v761 = vld [vmem:[%s13] sm:$0xf]
  %v762 = vld [vmem:[%s13 + $0x4] sm:$0xf]
  %v763 = vld [vmem:[%s13 + $0x8] sm:$0xf]
  %v764 = vld [vmem:[%s13 + $0xc] sm:$0xf]
  %v765 = vpack.c.bf16 %v760, %v759
  %v766 = vld [vmem:[%s14] sm:$0x1]
  %v768 = vperm.slane %v766, 0
  %v774 = vunpack.c.l.b16 %v761
  %v775 = vunpack.c.l.b16 %v762
  %v776 = vunpack.c.l.b16 %v763
  %v777 = vunpack.c.l.b16 %v764
  %v778 = vpack.c.b16 %v775, %v774
  %v779 = vpack.c.b16 %v777, %v776
  %v783 = vsel %vm63, %v765, 0
  %785 = vmatpush.bf16.msra.mxu0 0
  %786 = vmatpush.bf16.msra.mxu0 0
  %787 = vmatpush.bf16.msra.mxu0 0
  %788 = vmatpush.bf16.msra.mxu0 0
  %789 = vmatpush.bf16.msra.mxu0 0
  %790 = vmatpush.bf16.msra.mxu0 0
  %791 = vmatpush.bf16.msra.mxu0 %v779
  %792 = vmatpush.bf16.msra.mxu0 %v778
  %793 = vmatmul.bf16.gmra.mxu0 %v783
  %v794 = vpop.f32.mrf.mxu0
  %v795 = vadd.f32 %v768, %v794
  %v796 = vpop.f32.mrf.mxu0
  %v797 = vadd.f32 %v768, %v796
  %798 = vdwg.mxu0
  %v799 = vmul.f32 %v795, %v795
  %v800 = vmul.f32 %v797, %v797
  %v801 = vmul.f32 %v795, %v799
  %v802 = vmul.f32 %v797, %v800
  %v803 = vmul.f32 %v801, 0.044715
  %v804 = vmul.f32 %v802, 0.044715
  %v805 = vadd.f32 %v795, %v803
  %v806 = vadd.f32 %v797, %v804
  %v807 = vmul.f32 %v805, 0.7978846
  %v808 = vmul.f32 %v806, 0.7978846
  %v809 = vtanh.pop %v807
  %v810 = vtanh.pop %v808
  %v811 = vadd.f32 %v809, 1.0
  %v812 = vadd.f32 %v810, 1.0
  %v813 = vmul.f32 %v811, 0.5
  %v814 = vmul.f32 %v812, 0.5
  %v815 = vmul.f32 %v795, %v813
  %v816 = vmul.f32 %v797, %v814
  %v817 = vld [vmem:[%s15] sm:$0xf]
  %v818 = vld [vmem:[%s15 + $0x4] sm:$0xf]
  %v819 = vld [vmem:[%s15 + $0x8] sm:$0xf]
  %v820 = vld [vmem:[%s15 + $0xc] sm:$0xf]
  %v821 = vld [vmem:[%s15 + $0x10] sm:$0xf]
  %v822 = vld [vmem:[%s15 + $0x14] sm:$0xf]
  %v823 = vld [vmem:[%s15 + $0x18] sm:$0xf]
  %v824 = vld [vmem:[%s15 + $0x1c] sm:$0xf]
  %v825 = vpack.c.bf16 %v816, %v815
  %v834 = vunpack.c.l.b16 %v817
  %v835 = vunpack.c.l.b16 %v818
  %v836 = vunpack.c.l.b16 %v819
  %v837 = vunpack.c.l.b16 %v820
  %v838 = vunpack.c.l.b16 %v821
  %v839 = vunpack.c.l.b16 %v822
  %v840 = vunpack.c.l.b16 %v823
  %v841 = vunpack.c.l.b16 %v824
  %v842 = vpack.c.b16 %v835, %v834
  %v843 = vpack.c.b16 %v837, %v836
  %v844 = vpack.c.b16 %v839, %v838
  %v845 = vpack.c.b16 %v841, %v840
  %vm850 = vcmask 523264
  %v852 = vsel %vm850, %v825, 0
  %854 = vmatpush.bf16.msra.mxu0 0
  %855 = vmatpush.bf16.msra.mxu0 0
  %856 = vmatpush.bf16.msra.mxu0 0
  %857 = vmatpush.bf16.msra.mxu0 0
  %858 = vmatpush.bf16.msra.mxu0 %v845
  %859 = vmatpush.bf16.msra.mxu0 %v844
  %860 = vmatpush.bf16.msra.mxu0 %v843
  %861 = vmatpush.bf16.msra.mxu0 %v842
  %862 = vmatmul.bf16.gmra.mxu0 %v852
  %v863 = vpop.f32.mrf.mxu0
  %v864 = vadd.f32 0.0, %v863
  %v865 = vpop.f32.mrf.mxu0
  %v866 = vadd.f32 0.0, %v865
  %867 = vdwg.mxu0
  %v868 = vadd.f32 %v703, %v864
  %v869 = vadd.f32 %v704, %v866
  %v870 = vld [vmem:[%s16] sm:$0x1]
  %v872 = vperm.slane %v870, 0
  %v874 = vadd.f32 %v868, %v872
  %v875 = vadd.f32 %v869, %v872
  %v876 = vpack.c.bf16 %v874, %v874
  %v877 = vpack.c.bf16 %v875, %v875
  %vm878 = vcmask 257024
  %879 = vst.msk [vmem:[%s17] sm:$0xf] %vm878, %v876
  %880 = vst.msk [vmem:[%s17 + $0x4] sm:$0xf] %vm878, %v877
  // Predicated region
  $region70: #{forward.7} parent=0 // pred_check
    _
  $region71: #{forward.7} parent=0 // pred_check_branch
    %882 = sbr.rel (0) target = $region73
  $region72: #{forward.7} parent=0 // pred_region
    _
  $region73: #{forward.7} parent=0 // pred_fallthru
    _
  // Predicated region
  $region74: #{forward.7} parent=0 // pred_check
    _
  $region75: #{forward.7} parent=0 // pred_check_branch
    %884 = sbr.rel (0) target = $region77
  $region76: #{forward.7} parent=0 // pred_region
    _
  $region77: #{forward.7} parent=0 // pred_fallthru
    _

// kernel: forward.6
$region0: #{forward.6}
  #allocation0 [shape = 'u32[]', space=smem, size = 0x4, offset = 0x4, fixed_abs, tag = 'smem constant byte address 0x4 - core index']
  #allocation1 [shape = 'u32[72,128]{1,0:T(1,128)}', space=vmem, size = 0x9000, scoped, tag = 'internal scratch']
  #allocation2 [shape = 'f32[8,32]{1,0:T(8,128)}', space=vmem, size = 0x1000, scoped, tag = 'scratch operand']
  #allocation3 [shape = 'f32[8,32]{1,0:T(8,128)}', space=vmem, size = 0x1000, scoped, tag = 'scratch operand']
  #allocation4 [shape = 'f32[4,8,1]{2,1,0:T(8,128)}', space=vmem, size = 0x4000, scoped, tag = 'scratch operand']
  #allocation5 [shape = 'f32[4,8,1]{2,1,0:T(8,128)}', space=vmem, size = 0x4000, scoped, tag = 'scratch operand']
  #allocation6 [shape = 'f32[8,32]{1,0:T(8,128)}', space=vmem, size = 0x1000, scoped, tag = 'scratch operand']
  %s0 = inlined_call_operand.vmem [shape: bf16[1,8,32], index: 0, kind: input, shape index: {}]
  %s1 = inlined_call_operand.vmem [shape: f32[1,32], index: 1, kind: input, shape index: {}]
  %s2 = inlined_call_operand.vmem [shape: f32[1,32], index: 2, kind: input, shape index: {}]
  %s3 = inlined_call_operand.vmem [shape: bf16[32,32], index: 3, kind: input, shape index: {}]
  %s4 = inlined_call_operand.vmem [shape: f32[1,32], index: 4, kind: input, shape index: {}]
  %s5 = inlined_call_operand.vmem [shape: bf16[2,16,32], index: 5, kind: input, shape index: {}]
  %s6 = inlined_call_operand.vmem [shape: f32[1,32], index: 6, kind: input, shape index: {}]
  %s7 = inlined_call_operand.vmem [shape: f32[1,32], index: 7, kind: input, shape index: {}]
  %s8 = inlined_call_operand.vmem [shape: bf16[32,32], index: 8, kind: input, shape index: {}]
  %s9 = inlined_call_operand.vmem [shape: f32[1,32], index: 9, kind: input, shape index: {}]
  %s10 = inlined_call_operand.vmem [shape: bf16[32,32], index: 10, kind: input, shape index: {}]
  %s11 = inlined_call_operand.vmem [shape: f32[1,32], index: 11, kind: input, shape index: {}]
  %s12 = inlined_call_operand.vmem [shape: bf16[32,32], index: 12, kind: input, shape index: {}]
  %s13 = inlined_call_operand.vmem [shape: f32[1,32], index: 13, kind: input, shape index: {}]
  %s14 = inlined_call_operand.vmem [shape: f32[1,32], index: 14, kind: input, shape index: {}]
  %s15 = inlined_call_operand.vmem [shape: f32[1,32], index: 15, kind: input, shape index: {}]
  %s16 = inlined_call_operand.vmem [shape: bf16[32,64], index: 16, kind: input, shape index: {}]
  %s17 = inlined_call_operand.vmem [shape: f32[1,64], index: 17, kind: input, shape index: {}]
  %s18 = inlined_call_operand.vmem [shape: bf16[64,32], index: 18, kind: input, shape index: {}]
  %s19 = inlined_call_operand.vmem [shape: f32[1,32], index: 19, kind: input, shape index: {}]
  %s20 = inlined_call_operand.vmem [shape: bf16[2,8,32], index: 20, kind: output, shape index: {}]
  %s21 = sld [smem:[#allocation0]]
  $region121: #{forward.6} parent=0
    _
  %s23 = ssub.s32 1, %s21
  %s24 = scalar_select 0, %s23, %s21
  loop: start=0, step=1, limit=4
  $region2: #{forward.6} parent=0 // loop_pre_header
    _
  $region3: #{forward.6} parent=0 // loop_header
    %s26 = sphi 0, %s30
    %p27 = scmp.ge.s32.totalorder %s26, 4
    %s33 = sphi 0, %s45
    %s34 = sphi 0, %s41
    %s35 = sphi 0, %s33
    %s36 = sphi 0, %s34
    %s37 = sphi 0, %s35
    %s38 = sphi 0, %s36
    %s46 = sphi 0, %s46
    %s48 = sphi 0, %s46
    %s49 = sphi 0, %s48
    %s63 = sphi 0, %s49
    %s67 = sphi 0, %s67
    %s69 = sphi 0, %s67
    %s70 = sphi 0, %s69
    %s84 = sphi 0, %s70
    %s88 = sphi 0, %s88
    %s90 = sphi 0, %s88
    %s91 = sphi 0, %s90
    %s105 = sphi 0, %s91
    %s109 = sphi 0, %s109
    %s111 = sphi 0, %s109
    %s112 = sphi 0, %s111
    %s126 = sphi 0, %s112
    %s130 = sphi 0, %s130
    %s132 = sphi 0, %s130
    %s133 = sphi 0, %s132
    %s147 = sphi 0, %s133
    %s155 = sphi 0, %s157
    %s158 = sphi 0, %s155
    %s159 = sphi 0, %s158
    %s175 = sphi 0, %s159
    %s179 = sphi 0, %s179
    %s181 = sphi 0, %s179
    %s182 = sphi 0, %s181
    %s196 = sphi 0, %s182
    %s200 = sphi 0, %s200
    %s202 = sphi 0, %s200
    %s203 = sphi 0, %s202
    %s217 = sphi 0, %s203
    %s221 = sphi 0, %s221
    %s223 = sphi 0, %s221
    %s224 = sphi 0, %s223
    %s238 = sphi 0, %s224
    %s242 = sphi 0, %s242
    %s244 = sphi 0, %s242
    %s245 = sphi 0, %s244
    %s259 = sphi 0, %s245
    %s263 = sphi 0, %s263
    %s265 = sphi 0, %s263
    %s266 = sphi 0, %s265
    %s280 = sphi 0, %s266
    %s284 = sphi 0, %s284
    %s286 = sphi 0, %s284
    %s287 = sphi 0, %s286
    %s301 = sphi 0, %s287
    %s305 = sphi 0, %s305
    %s307 = sphi 0, %s305
    %s308 = sphi 0, %s307
    %s322 = sphi 0, %s308
    %s326 = sphi 0, %s326
    %s328 = sphi 0, %s326
    %s329 = sphi 0, %s328
    %s343 = sphi 0, %s329
    %s347 = sphi 0, %s347
    %s349 = sphi 0, %s347
    %s350 = sphi 0, %s349
    %s364 = sphi 0, %s350
    %s368 = sphi 0, %s368
    %s370 = sphi 0, %s368
    %s371 = sphi 0, %s370
    %s385 = sphi 0, %s371
    %s389 = sphi 0, %s389
    %s391 = sphi 0, %s389
    %s392 = sphi 0, %s391
    %s406 = sphi 0, %s392
    %s410 = sphi 0, %s410
    %s412 = sphi 0, %s410
    %s413 = sphi 0, %s412
    %s427 = sphi 0, %s413
    %s431 = sphi 0, %s431
    %s433 = sphi 0, %s431
    %s434 = sphi 0, %s433
    %s448 = sphi 0, %s434
    %s452 = sphi 0, %s452
    %s454 = sphi 0, %s452
    %s455 = sphi 0, %s454
    %s469 = sphi 0, %s455
    %s475 = sphi 0, %s477
    %s478 = sphi 0, %s475
    %s479 = sphi 0, %s478
    %s495 = sphi 0, %s479
  $region4: #{forward.6} parent=0 // loop_header_branch
    %29 = sbr.rel (%p27) target = $region8
  $region5: #{forward.6} parent=0 // loop_body
    %s31 = ssub.s32 %s26, 1
    %s32 = ssub.s32 %s26, 2
    %s39 = sadd.s32 1, %s34
    %p40 = scmp.ge.s32.totalorder %s39, 1
    %s41 = scalar_select %p40, 0, %s39
    %s42 = sadd.s32 1, %s33
    %s43 = scalar_select %p40, %s42, %s33
    %p44 = scmp.ge.s32.totalorder %s43, 2
    %s45 = scalar_select %p44, 0, %s43
    %s47 = sadd.s32 %s46, 1
    %p50 = scmp.eq.s32.totalorder %s26, 1
    %p51 = scmp.ne.s32.totalorder %s46, %s48
    %p52 = scmp.eq.s32.totalorder %s26, 0
    %p53 = por %p51, %p52
    %p54 = scmp.ne.s32.totalorder %s46, %s48
    %p55 = scmp.eq.s32.totalorder %s31, 1
    %p56 = por %p54, %p55
    %p57 = scmp.ne.s32.totalorder %s48, %s49
    %p58 = scmp.eq.s32.totalorder %s31, 0
    %p59 = por %p57, %p58
    %p60 = scmp.ne.s32.totalorder %s48, %s49
    %p61 = scmp.eq.s32.totalorder %s32, 1
    %p62 = por %p60, %p61
    %p64 = scmp.ne.s32.totalorder %s49, %s63
    %p65 = scmp.eq.s32.totalorder %s32, 0
    %p66 = por %p64, %p65
    %s68 = sadd.s32 %s67, 1
    %p71 = scmp.eq.s32.totalorder %s26, 1
    %p72 = scmp.ne.s32.totalorder %s67, %s69
    %p73 = scmp.eq.s32.totalorder %s26, 0
    %p74 = por %p72, %p73
    %p75 = scmp.ne.s32.totalorder %s67, %s69
    %p76 = scmp.eq.s32.totalorder %s31, 1
    %p77 = por %p75, %p76
    %p78 = scmp.ne.s32.totalorder %s69, %s70
    %p79 = scmp.eq.s32.totalorder %s31, 0
    %p80 = por %p78, %p79
    %p81 = scmp.ne.s32.totalorder %s69, %s70
    %p82 = scmp.eq.s32.totalorder %s32, 1
    %p83 = por %p81, %p82
    %p85 = scmp.ne.s32.totalorder %s70, %s84
    %p86 = scmp.eq.s32.totalorder %s32, 0
    %p87 = por %p85, %p86
    %s89 = sadd.s32 %s88, 1
    %p92 = scmp.eq.s32.totalorder %s26, 1
    %p93 = scmp.ne.s32.totalorder %s88, %s90
    %p94 = scmp.eq.s32.totalorder %s26, 0
    %p95 = por %p93, %p94
    %p96 = scmp.ne.s32.totalorder %s88, %s90
    %p97 = scmp.eq.s32.totalorder %s31, 1
    %p98 = por %p96, %p97
    %p99 = scmp.ne.s32.totalorder %s90, %s91
    %p100 = scmp.eq.s32.totalorder %s31, 0
    %p101 = por %p99, %p100
    %p102 = scmp.ne.s32.totalorder %s90, %s91
    %p103 = scmp.eq.s32.totalorder %s32, 1
    %p104 = por %p102, %p103
    %p106 = scmp.ne.s32.totalorder %s91, %s105
    %p107 = scmp.eq.s32.totalorder %s32, 0
    %p108 = por %p106, %p107
    %s110 = sadd.s32 %s109, 1
    %p113 = scmp.eq.s32.totalorder %s26, 1
    %p114 = scmp.ne.s32.totalorder %s109, %s111
    %p115 = scmp.eq.s32.totalorder %s26, 0
    %p116 = por %p114, %p115
    %p117 = scmp.ne.s32.totalorder %s109, %s111
    %p118 = scmp.eq.s32.totalorder %s31, 1
    %p119 = por %p117, %p118
    %p120 = scmp.ne.s32.totalorder %s111, %s112
    %p121 = scmp.eq.s32.totalorder %s31, 0
    %p122 = por %p120, %p121
    %p123 = scmp.ne.s32.totalorder %s111, %s112
    %p124 = scmp.eq.s32.totalorder %s32, 1
    %p125 = por %p123, %p124
    %p127 = scmp.ne.s32.totalorder %s112, %s126
    %p128 = scmp.eq.s32.totalorder %s32, 0
    %p129 = por %p127, %p128
    %s131 = sadd.s32 %s130, 1
    %p134 = scmp.eq.s32.totalorder %s26, 1
    %p135 = scmp.ne.s32.totalorder %s130, %s132
    %p136 = scmp.eq.s32.totalorder %s26, 0
    %p137 = por %p135, %p136
    %p138 = scmp.ne.s32.totalorder %s130, %s132
    %p139 = scmp.eq.s32.totalorder %s31, 1
    %p140 = por %p138, %p139
    %p141 = scmp.ne.s32.totalorder %s132, %s133
    %p142 = scmp.eq.s32.totalorder %s31, 0
    %p143 = por %p141, %p142
    %p144 = scmp.ne.s32.totalorder %s132, %s133
    %p145 = scmp.eq.s32.totalorder %s32, 1
    %p146 = por %p144, %p145
    %p148 = scmp.ne.s32.totalorder %s133, %s147
    %p149 = scmp.eq.s32.totalorder %s32, 0
    %p150 = por %p148, %p149
    %s151 = ssub.s32 %s33, %s45
    %s152 = ssub.s32 %s34, %s41
    %s153 = sor.u32 %s151, %s152
    %p154 = scmp.eq.s32.totalorder %s153, 0
    %s156 = sadd.s32 %s155, 1
    %s157 = scalar_select %p154, %s155, %s156
    %p160 = pneg %p154
    %p161 = scmp.eq.s32.totalorder %s26, 1
    %p162 = por %p160, %p161
    %p163 = scmp.ne.s32.totalorder %s155, %s158
    %p164 = scmp.eq.s32.totalorder %s26, 0
    %p165 = por %p163, %p164
    %p166 = scmp.ne.s32.totalorder %s155, %s158
    %p167 = scmp.eq.s32.totalorder %s31, 1
    %p168 = por %p166, %p167
    %p169 = scmp.ne.s32.totalorder %s158, %s159
    %p170 = scmp.eq.s32.totalorder %s31, 0
    %p171 = por %p169, %p170
    %p172 = scmp.ne.s32.totalorder %s158, %s159
    %p173 = scmp.eq.s32.totalorder %s32, 1
    %p174 = por %p172, %p173
    %p176 = scmp.ne.s32.totalorder %s159, %s175
    %p177 = scmp.eq.s32.totalorder %s32, 0
    %p178 = por %p176, %p177
    %s180 = sadd.s32 %s179, 1
    %p183 = scmp.eq.s32.totalorder %s26, 1
    %p184 = scmp.ne.s32.totalorder %s179, %s181
    %p185 = scmp.eq.s32.totalorder %s26, 0
    %p186 = por %p184, %p185
    %p187 = scmp.ne.s32.totalorder %s179, %s181
    %p188 = scmp.eq.s32.totalorder %s31, 1
    %p189 = por %p187, %p188
    %p190 = scmp.ne.s32.totalorder %s181, %s182
    %p191 = scmp.eq.s32.totalorder %s31, 0
    %p192 = por %p190, %p191
    %p193 = scmp.ne.s32.totalorder %s181, %s182
    %p194 = scmp.eq.s32.totalorder %s32, 1
    %p195 = por %p193, %p194
    %p197 = scmp.ne.s32.totalorder %s182, %s196
    %p198 = scmp.eq.s32.totalorder %s32, 0
    %p199 = por %p197, %p198
    %s201 = sadd.s32 %s200, 1
    %p204 = scmp.eq.s32.totalorder %s26, 1
    %p205 = scmp.ne.s32.totalorder %s200, %s202
    %p206 = scmp.eq.s32.totalorder %s26, 0
    %p207 = por %p205, %p206
    %p208 = scmp.ne.s32.totalorder %s200, %s202
    %p209 = scmp.eq.s32.totalorder %s31, 1
    %p210 = por %p208, %p209
    %p211 = scmp.ne.s32.totalorder %s202, %s203
    %p212 = scmp.eq.s32.totalorder %s31, 0
    %p213 = por %p211, %p212
    %p214 = scmp.ne.s32.totalorder %s202, %s203
    %p215 = scmp.eq.s32.totalorder %s32, 1
    %p216 = por %p214, %p215
    %p218 = scmp.ne.s32.totalorder %s203, %s217
    %p219 = scmp.eq.s32.totalorder %s32, 0
    %p220 = por %p218, %p219
    %s222 = sadd.s32 %s221, 1
    %p225 = scmp.eq.s32.totalorder %s26, 1
    %p226 = scmp.ne.s32.totalorder %s221, %s223
    %p227 = scmp.eq.s32.totalorder %s26, 0
    %p228 = por %p226, %p227
    %p229 = scmp.ne.s32.totalorder %s221, %s223
    %p230 = scmp.eq.s32.totalorder %s31, 1
    %p231 = por %p229, %p230
    %p232 = scmp.ne.s32.totalorder %s223, %s224
    %p233 = scmp.eq.s32.totalorder %s31, 0
    %p234 = por %p232, %p233
    %p235 = scmp.ne.s32.totalorder %s223, %s224
    %p236 = scmp.eq.s32.totalorder %s32, 1
    %p237 = por %p235, %p236
    %p239 = scmp.ne.s32.totalorder %s224, %s238
    %p240 = scmp.eq.s32.totalorder %s32, 0
    %p241 = por %p239, %p240
    %s243 = sadd.s32 %s242, 1
    %p246 = scmp.eq.s32.totalorder %s26, 1
    %p247 = scmp.ne.s32.totalorder %s242, %s244
    %p248 = scmp.eq.s32.totalorder %s26, 0
    %p249 = por %p247, %p248
    %p250 = scmp.ne.s32.totalorder %s242, %s244
    %p251 = scmp.eq.s32.totalorder %s31, 1
    %p252 = por %p250, %p251
    %p253 = scmp.ne.s32.totalorder %s244, %s245
    %p254 = scmp.eq.s32.totalorder %s31, 0
    %p255 = por %p253, %p254
    %p256 = scmp.ne.s32.totalorder %s244, %s245
    %p257 = scmp.eq.s32.totalorder %s32, 1
    %p258 = por %p256, %p257
    %p260 = scmp.ne.s32.totalorder %s245, %s259
    %p261 = scmp.eq.s32.totalorder %s32, 0
    %p262 = por %p260, %p261
    %s264 = sadd.s32 %s263, 1
    %p267 = scmp.eq.s32.totalorder %s26, 1
    %p268 = scmp.ne.s32.totalorder %s263, %s265
    %p269 = scmp.eq.s32.totalorder %s26, 0
    %p270 = por %p268, %p269
    %p271 = scmp.ne.s32.totalorder %s263, %s265
    %p272 = scmp.eq.s32.totalorder %s31, 1
    %p273 = por %p271, %p272
    %p274 = scmp.ne.s32.totalorder %s265, %s266
    %p275 = scmp.eq.s32.totalorder %s31, 0
    %p276 = por %p274, %p275
    %p277 = scmp.ne.s32.totalorder %s265, %s266
    %p278 = scmp.eq.s32.totalorder %s32, 1
    %p279 = por %p277, %p278
    %p281 = scmp.ne.s32.totalorder %s266, %s280
    %p282 = scmp.eq.s32.totalorder %s32, 0
    %p283 = por %p281, %p282
    %s285 = sadd.s32 %s284, 1
    %p288 = scmp.eq.s32.totalorder %s26, 1
    %p289 = scmp.ne.s32.totalorder %s284, %s286
    %p290 = scmp.eq.s32.totalorder %s26, 0
    %p291 = por %p289, %p290
    %p292 = scmp.ne.s32.totalorder %s284, %s286
    %p293 = scmp.eq.s32.totalorder %s31, 1
    %p294 = por %p292, %p293
    %p295 = scmp.ne.s32.totalorder %s286, %s287
    %p296 = scmp.eq.s32.totalorder %s31, 0
    %p297 = por %p295, %p296
    %p298 = scmp.ne.s32.totalorder %s286, %s287
    %p299 = scmp.eq.s32.totalorder %s32, 1
    %p300 = por %p298, %p299
    %p302 = scmp.ne.s32.totalorder %s287, %s301
    %p303 = scmp.eq.s32.totalorder %s32, 0
    %p304 = por %p302, %p303
    %s306 = sadd.s32 %s305, 1
    %p309 = scmp.eq.s32.totalorder %s26, 1
    %p310 = scmp.ne.s32.totalorder %s305, %s307
    %p311 = scmp.eq.s32.totalorder %s26, 0
    %p312 = por %p310, %p311
    %p313 = scmp.ne.s32.totalorder %s305, %s307
    %p314 = scmp.eq.s32.totalorder %s31, 1
    %p315 = por %p313, %p314
    %p316 = scmp.ne.s32.totalorder %s307, %s308
    %p317 = scmp.eq.s32.totalorder %s31, 0
    %p318 = por %p316, %p317
    %p319 = scmp.ne.s32.totalorder %s307, %s308
    %p320 = scmp.eq.s32.totalorder %s32, 1
    %p321 = por %p319, %p320
    %p323 = scmp.ne.s32.totalorder %s308, %s322
    %p324 = scmp.eq.s32.totalorder %s32, 0
    %p325 = por %p323, %p324
    %s327 = sadd.s32 %s326, 1
    %p330 = scmp.eq.s32.totalorder %s26, 1
    %p331 = scmp.ne.s32.totalorder %s326, %s328
    %p332 = scmp.eq.s32.totalorder %s26, 0
    %p333 = por %p331, %p332
    %p334 = scmp.ne.s32.totalorder %s326, %s328
    %p335 = scmp.eq.s32.totalorder %s31, 1
    %p336 = por %p334, %p335
    %p337 = scmp.ne.s32.totalorder %s328, %s329
    %p338 = scmp.eq.s32.totalorder %s31, 0
    %p339 = por %p337, %p338
    %p340 = scmp.ne.s32.totalorder %s328, %s329
    %p341 = scmp.eq.s32.totalorder %s32, 1
    %p342 = por %p340, %p341
    %p344 = scmp.ne.s32.totalorder %s329, %s343
    %p345 = scmp.eq.s32.totalorder %s32, 0
    %p346 = por %p344, %p345
    %s348 = sadd.s32 %s347, 1
    %p351 = scmp.eq.s32.totalorder %s26, 1
    %p352 = scmp.ne.s32.totalorder %s347, %s349
    %p353 = scmp.eq.s32.totalorder %s26, 0
    %p354 = por %p352, %p353
    %p355 = scmp.ne.s32.totalorder %s347, %s349
    %p356 = scmp.eq.s32.totalorder %s31, 1
    %p357 = por %p355, %p356
    %p358 = scmp.ne.s32.totalorder %s349, %s350
    %p359 = scmp.eq.s32.totalorder %s31, 0
    %p360 = por %p358, %p359
    %p361 = scmp.ne.s32.totalorder %s349, %s350
    %p362 = scmp.eq.s32.totalorder %s32, 1
    %p363 = por %p361, %p362
    %p365 = scmp.ne.s32.totalorder %s350, %s364
    %p366 = scmp.eq.s32.totalorder %s32, 0
    %p367 = por %p365, %p366
    %s369 = sadd.s32 %s368, 1
    %p372 = scmp.eq.s32.totalorder %s26, 1
    %p373 = scmp.ne.s32.totalorder %s368, %s370
    %p374 = scmp.eq.s32.totalorder %s26, 0
    %p375 = por %p373, %p374
    %p376 = scmp.ne.s32.totalorder %s368, %s370
    %p377 = scmp.eq.s32.totalorder %s31, 1
    %p378 = por %p376, %p377
    %p379 = scmp.ne.s32.totalorder %s370, %s371
    %p380 = scmp.eq.s32.totalorder %s31, 0
    %p381 = por %p379, %p380
    %p382 = scmp.ne.s32.totalorder %s370, %s371
    %p383 = scmp.eq.s32.totalorder %s32, 1
    %p384 = por %p382, %p383
    %p386 = scmp.ne.s32.totalorder %s371, %s385
    %p387 = scmp.eq.s32.totalorder %s32, 0
    %p388 = por %p386, %p387
    %s390 = sadd.s32 %s389, 1
    %p393 = scmp.eq.s32.totalorder %s26, 1
    %p394 = scmp.ne.s32.totalorder %s389, %s391
    %p395 = scmp.eq.s32.totalorder %s26, 0
    %p396 = por %p394, %p395
    %p397 = scmp.ne.s32.totalorder %s389, %s391
    %p398 = scmp.eq.s32.totalorder %s31, 1
    %p399 = por %p397, %p398
    %p400 = scmp.ne.s32.totalorder %s391, %s392
    %p401 = scmp.eq.s32.totalorder %s31, 0
    %p402 = por %p400, %p401
    %p403 = scmp.ne.s32.totalorder %s391, %s392
    %p404 = scmp.eq.s32.totalorder %s32, 1
    %p405 = por %p403, %p404
    %p407 = scmp.ne.s32.totalorder %s392, %s406
    %p408 = scmp.eq.s32.totalorder %s32, 0
    %p409 = por %p407, %p408
    %s411 = sadd.s32 %s410, 1
    %p414 = scmp.eq.s32.totalorder %s26, 1
    %p415 = scmp.ne.s32.totalorder %s410, %s412
    %p416 = scmp.eq.s32.totalorder %s26, 0
    %p417 = por %p415, %p416
    %p418 = scmp.ne.s32.totalorder %s410, %s412
    %p419 = scmp.eq.s32.totalorder %s31, 1
    %p420 = por %p418, %p419
    %p421 = scmp.ne.s32.totalorder %s412, %s413
    %p422 = scmp.eq.s32.totalorder %s31, 0
    %p423 = por %p421, %p422
    %p424 = scmp.ne.s32.totalorder %s412, %s413
    %p425 = scmp.eq.s32.totalorder %s32, 1
    %p426 = por %p424, %p425
    %p428 = scmp.ne.s32.totalorder %s413, %s427
    %p429 = scmp.eq.s32.totalorder %s32, 0
    %p430 = por %p428, %p429
    %s432 = sadd.s32 %s431, 1
    %p435 = scmp.eq.s32.totalorder %s26, 1
    %p436 = scmp.ne.s32.totalorder %s431, %s433
    %p437 = scmp.eq.s32.totalorder %s26, 0
    %p438 = por %p436, %p437
    %p439 = scmp.ne.s32.totalorder %s431, %s433
    %p440 = scmp.eq.s32.totalorder %s31, 1
    %p441 = por %p439, %p440
    %p442 = scmp.ne.s32.totalorder %s433, %s434
    %p443 = scmp.eq.s32.totalorder %s31, 0
    %p444 = por %p442, %p443
    %p445 = scmp.ne.s32.totalorder %s433, %s434
    %p446 = scmp.eq.s32.totalorder %s32, 1
    %p447 = por %p445, %p446
    %p449 = scmp.ne.s32.totalorder %s434, %s448
    %p450 = scmp.eq.s32.totalorder %s32, 0
    %p451 = por %p449, %p450
    %s453 = sadd.s32 %s452, 1
    %p456 = scmp.eq.s32.totalorder %s26, 1
    %p457 = scmp.ne.s32.totalorder %s452, %s454
    %p458 = scmp.eq.s32.totalorder %s26, 0
    %p459 = por %p457, %p458
    %p460 = scmp.ne.s32.totalorder %s452, %s454
    %p461 = scmp.eq.s32.totalorder %s31, 1
    %p462 = por %p460, %p461
    %p463 = scmp.ne.s32.totalorder %s454, %s455
    %p464 = scmp.eq.s32.totalorder %s31, 0
    %p465 = por %p463, %p464
    %p466 = scmp.ne.s32.totalorder %s454, %s455
    %p467 = scmp.eq.s32.totalorder %s32, 1
    %p468 = por %p466, %p467
    %p470 = scmp.ne.s32.totalorder %s455, %s469
    %p471 = scmp.eq.s32.totalorder %s32, 0
    %p472 = por %p470, %p471
    %s473 = ssub.s32 %s33, %s45
    %p474 = scmp.eq.s32.totalorder %s473, 0
    %s476 = sadd.s32 %s475, 1
    %s477 = scalar_select %p474, %s475, %s476
    %p480 = pneg %p474
    %p481 = scmp.eq.s32.totalorder %s26, 1
    %p482 = por %p480, %p481
    %p483 = scmp.ne.s32.totalorder %s475, %s478
    %p484 = scmp.eq.s32.totalorder %s26, 0
    %p485 = por %p483, %p484
    %p486 = scmp.ne.s32.totalorder %s475, %s478
    %p487 = scmp.eq.s32.totalorder %s31, 1
    %p488 = por %p486, %p487
    %p489 = scmp.ne.s32.totalorder %s478, %s479
    %p490 = scmp.eq.s32.totalorder %s31, 0
    %p491 = por %p489, %p490
    %p492 = scmp.ne.s32.totalorder %s478, %s479
    %p493 = scmp.eq.s32.totalorder %s32, 1
    %p494 = por %p492, %p493
    %p496 = scmp.ne.s32.totalorder %s479, %s495
    %p497 = scmp.eq.s32.totalorder %s32, 0
    %p498 = por %p496, %p497
    %p499 = scmp.le.s32.totalorder 1, %s26
    %p500 = scmp.lt.s32.totalorder %s26, 3
    %p501 = pnand %p499, %p500
    %p502 = pneg %p501
    // Predicated region
    $region9: #{forward.6} parent=5 // pred_check
      _
    $region10: #{forward.6} parent=5 // pred_check_branch
      %504 = sbr.rel (%p501) target = $region12
    $region11: #{forward.6} parent=5 // pred_region
      %s505 = ssub.s32 %s26, 1
      // Predicated region
      $region13: #{forward.6} parent=11 // pred_check
        %p506 = pneg %p59
      $region14: #{forward.6} parent=11 // pred_check_branch
        %508 = sbr.rel (%p506) target = $region16
      $region15: #{forward.6} parent=11 // pred_region
        _
      $region16: #{forward.6} parent=11 // pred_fallthru
        _
      // Predicated region
      $region17: #{forward.6} parent=11 // pred_check
        %p509 = pneg %p80
      $region18: #{forward.6} parent=11 // pred_check_branch
        %511 = sbr.rel (%p509) target = $region20
      $region19: #{forward.6} parent=11 // pred_region
        _
      $region20: #{forward.6} parent=11 // pred_fallthru
        _
      // Predicated region
      $region21: #{forward.6} parent=11 // pred_check
        %p512 = pneg %p101
      $region22: #{forward.6} parent=11 // pred_check_branch
        %514 = sbr.rel (%p512) target = $region24
      $region23: #{forward.6} parent=11 // pred_region
        _
      $region24: #{forward.6} parent=11 // pred_fallthru
        _
      // Predicated region
      $region25: #{forward.6} parent=11 // pred_check
        %p515 = pneg %p122
      $region26: #{forward.6} parent=11 // pred_check_branch
        %517 = sbr.rel (%p515) target = $region28
      $region27: #{forward.6} parent=11 // pred_region
        _
      $region28: #{forward.6} parent=11 // pred_fallthru
        _
      // Predicated region
      $region29: #{forward.6} parent=11 // pred_check
        %p518 = pneg %p143
      $region30: #{forward.6} parent=11 // pred_check_branch
        %520 = sbr.rel (%p518) target = $region32
      $region31: #{forward.6} parent=11 // pred_region
        _
      $region32: #{forward.6} parent=11 // pred_fallthru
        _
      // Predicated region
      $region33: #{forward.6} parent=11 // pred_check
        %p521 = pneg %p192
      $region34: #{forward.6} parent=11 // pred_check_branch
        %523 = sbr.rel (%p521) target = $region36
      $region35: #{forward.6} parent=11 // pred_region
        _
      $region36: #{forward.6} parent=11 // pred_fallthru
        _
      // Predicated region
      $region37: #{forward.6} parent=11 // pred_check
        %p524 = pneg %p213
      $region38: #{forward.6} parent=11 // pred_check_branch
        %526 = sbr.rel (%p524) target = $region40
      $region39: #{forward.6} parent=11 // pred_region
        _
      $region40: #{forward.6} parent=11 // pred_fallthru
        _
      // Predicated region
      $region41: #{forward.6} parent=11 // pred_check
        %p527 = pneg %p234
      $region42: #{forward.6} parent=11 // pred_check_branch
        %529 = sbr.rel (%p527) target = $region44
      $region43: #{forward.6} parent=11 // pred_region
        _
      $region44: #{forward.6} parent=11 // pred_fallthru
        _
      // Predicated region
      $region45: #{forward.6} parent=11 // pred_check
        %p530 = pneg %p255
      $region46: #{forward.6} parent=11 // pred_check_branch
        %532 = sbr.rel (%p530) target = $region48
      $region47: #{forward.6} parent=11 // pred_region
        _
      $region48: #{forward.6} parent=11 // pred_fallthru
        _
      // Predicated region
      $region49: #{forward.6} parent=11 // pred_check
        %p533 = pneg %p276
      $region50: #{forward.6} parent=11 // pred_check_branch
        %535 = sbr.rel (%p533) target = $region52
      $region51: #{forward.6} parent=11 // pred_region
        _
      $region52: #{forward.6} parent=11 // pred_fallthru
        _
      // Predicated region
      $region53: #{forward.6} parent=11 // pred_check
        %p536 = pneg %p297
      $region54: #{forward.6} parent=11 // pred_check_branch
        %538 = sbr.rel (%p536) target = $region56
      $region55: #{forward.6} parent=11 // pred_region
        _
      $region56: #{forward.6} parent=11 // pred_fallthru
        _
      // Predicated region
      $region57: #{forward.6} parent=11 // pred_check
        %p539 = pneg %p318
      $region58: #{forward.6} parent=11 // pred_check_branch
        %541 = sbr.rel (%p539) target = $region60
      $region59: #{forward.6} parent=11 // pred_region
        _
      $region60: #{forward.6} parent=11 // pred_fallthru
        _
      // Predicated region
      $region61: #{forward.6} parent=11 // pred_check
        %p542 = pneg %p339
      $region62: #{forward.6} parent=11 // pred_check_branch
        %544 = sbr.rel (%p542) target = $region64
      $region63: #{forward.6} parent=11 // pred_region
        _
      $region64: #{forward.6} parent=11 // pred_fallthru
        _
      // Predicated region
      $region65: #{forward.6} parent=11 // pred_check
        %p545 = pneg %p360
      $region66: #{forward.6} parent=11 // pred_check_branch
        %547 = sbr.rel (%p545) target = $region68
      $region67: #{forward.6} parent=11 // pred_region
        _
      $region68: #{forward.6} parent=11 // pred_fallthru
        _
      // Predicated region
      $region69: #{forward.6} parent=11 // pred_check
        %p548 = pneg %p381
      $region70: #{forward.6} parent=11 // pred_check_branch
        %550 = sbr.rel (%p548) target = $region72
      $region71: #{forward.6} parent=11 // pred_region
        _
      $region72: #{forward.6} parent=11 // pred_fallthru
        _
      // Predicated region
      $region73: #{forward.6} parent=11 // pred_check
        %p551 = pneg %p402
      $region74: #{forward.6} parent=11 // pred_check_branch
        %553 = sbr.rel (%p551) target = $region76
      $region75: #{forward.6} parent=11 // pred_region
        _
      $region76: #{forward.6} parent=11 // pred_fallthru
        _
      // Predicated region
      $region77: #{forward.6} parent=11 // pred_check
        %p554 = pneg %p423
      $region78: #{forward.6} parent=11 // pred_check_branch
        %556 = sbr.rel (%p554) target = $region80
      $region79: #{forward.6} parent=11 // pred_region
        _
      $region80: #{forward.6} parent=11 // pred_fallthru
        _
      // Predicated region
      $region81: #{forward.6} parent=11 // pred_check
        %p557 = pneg %p444
      $region82: #{forward.6} parent=11 // pred_check_branch
        %559 = sbr.rel (%p557) target = $region84
      $region83: #{forward.6} parent=11 // pred_region
        _
      $region84: #{forward.6} parent=11 // pred_fallthru
        _
      // Predicated region
      $region85: #{forward.6} parent=11 // pred_check
        %p560 = pneg %p465
      $region86: #{forward.6} parent=11 // pred_check_branch
        %562 = sbr.rel (%p560) target = $region88
      $region87: #{forward.6} parent=11 // pred_region
        _
      $region88: #{forward.6} parent=11 // pred_fallthru
        _
    $region12: #{forward.6} parent=5 // pred_fallthru
      _
    %p563 = scmp.lt.s32.totalorder %s26, 2
    // Predicated region
    $region89: #{forward.6} parent=5 // pred_check
      %p564 = pneg %p563
    $region90: #{forward.6} parent=5 // pred_check_branch
      %566 = sbr.rel (%p564) target = $region92
    $region91: #{forward.6} parent=5 // pred_region
      // Predicated region
      $region93: #{forward.6} parent=91 // pred_check
        %p567 = pneg %p165
      $region94: #{forward.6} parent=91 // pred_check_branch
        %569 = sbr.rel (%p567) target = $region96
      $region95: #{forward.6} parent=91 // pred_region
        %s570 = smul.u32 2, %s34
        %p571 = scmp.lt.s32.totalorder %s33, 1
        %s572 = scalar_select %p571, %s33, 1
        %p573 = scmp.lt.s32.totalorder %s570, 1
        %s574 = scalar_select %p573, %s570, 1
        %s575 = smul.addr %s572, 2
        %s576 = sadd.s32 %s574, %s575
        %s577 = smul.addr %s576, 4
        %s578 = scalar_lea.vmem %s5, %s577
        %s579 = smul.u32 2, %s34
      $region96: #{forward.6} parent=91 // pred_fallthru
        _
    $region92: #{forward.6} parent=5 // pred_fallthru
      _
    %p580 = scmp.le.s32.totalorder 1, %s26
    %p581 = scmp.lt.s32.totalorder %s26, 3
    %p582 = pnand %p580, %p581
    %p583 = pneg %p582
    // Predicated region
    $region97: #{forward.6} parent=5 // pred_check
      _
    $region98: #{forward.6} parent=5 // pred_check_branch
      %585 = sbr.rel (%p582) target = $region100
    $region99: #{forward.6} parent=5 // pred_region
      %s586 = ssub.s32 %s26, 1
      %p587 = pneg %p59
      %p588 = pneg %p56
      %p589 = pneg %p80
      %p590 = pneg %p77
      %p591 = pneg %p101
      %p592 = pneg %p98
      %p593 = pneg %p122
      %p594 = pneg %p119
      %p595 = pneg %p143
      %p596 = pneg %p140
      %s597 = smul.u32 2, %s36
      %p598 = scmp.lt.s32.totalorder %s35, 1
      %s599 = scalar_select %p598, %s35, 1
      %p600 = scmp.lt.s32.totalorder %s597, 1
      %s601 = scalar_select %p600, %s597, 1
      %s602 = smul.addr %s599, 2
      %s603 = sadd.s32 %s601, %s602
      %s604 = smul.addr %s603, 4
      %s605 = scalar_lea.vmem %s5, %s604
      %p606 = pneg %p171
      %p607 = pneg %p168
      %p608 = pneg %p192
      %p609 = pneg %p189
      %p610 = pneg %p213
      %p611 = pneg %p210
      %p612 = pneg %p234
      %p613 = pneg %p231
      %p614 = pneg %p255
      %p615 = pneg %p252
      %p616 = pneg %p276
      %p617 = pneg %p273
      %p618 = pneg %p297
      %p619 = pneg %p294
      %p620 = pneg %p318
      %p621 = pneg %p315
      %p622 = pneg %p339
      %p623 = pneg %p336
      %p624 = pneg %p360
      %p625 = pneg %p357
      %p626 = pneg %p381
      %p627 = pneg %p378
      %p628 = pneg %p402
      %p629 = pneg %p399
      %p630 = pneg %p423
      %p631 = pneg %p420
      %p632 = pneg %p444
      %p633 = pneg %p441
      %p634 = pneg %p465
      %p635 = pneg %p462
      %p636 = pneg %p491
      %p637 = pneg %p488
      %p638 = scmp.lt.s32.totalorder %s35, 1
      %s639 = scalar_select %p638, %s35, 1
      %s640 = smul.addr %s639, 4
      %s641 = scalar_lea.vmem %s20, %s640
      %s642 = smul.u32 2, %s36
      %p643 = scmp.lt.s32.totalorder %s35, 1
      %s644 = scalar_select %p643, %s35, 1
      %p645 = scmp.lt.s32.totalorder %s642, 1
      %s646 = scalar_select %p645, %s642, 1
      %s647 = smul.addr %s644, 2
      %s648 = sadd.s32 %s646, %s647
      %s649 = smul.addr %s648, 4
      %s650 = scalar_lea.vmem %s5, %s649
      %s651 = smul.u32 2, %s36
      %p652 = scmp.lt.s32.totalorder %s35, 1
      %s653 = scalar_select %p652, %s35, 1
      %s654 = smul.addr %s653, 4
      %s655 = scalar_lea.vmem %s20, %s654
      %v657 = vlaneseq
      %v658 = vand.u32 %v657, 127
      %vm659 = vcmp.ge.s32.totalorder %v658, 0
      %vm660 = vcmp.lt.s32.totalorder %v658, 8
      %vm661 = vmand %vm659, %vm660
      %v662 = vsel %vm661, 1, 0
      %v663 = vcvt.s32.f32 %v662
      %vm664 = vcmp.ge.s32.totalorder %v658, 8
      %vm665 = vcmp.lt.s32.totalorder %v658, 16
      %vm666 = vmand %vm664, %vm665
      %v667 = vsel %vm666, 1, 0
      %v668 = vcvt.s32.f32 %v667
      %vm669 = vcmp.ge.s32.totalorder %v658, 16
      %vm670 = vcmp.lt.s32.totalorder %v658, 24
      %vm671 = vmand %vm669, %vm670
      %v672 = vsel %vm671, 1, 0
      %v673 = vcvt.s32.f32 %v672
      %vm674 = vcmp.ge.s32.totalorder %v658, 24
      %vm675 = vcmp.lt.s32.totalorder %v658, 32
      %vm676 = vmand %vm674, %vm675
      %v677 = vsel %vm676, 1, 0
      %v678 = vcvt.s32.f32 %v677
      %p679 = scmp.eq.s32.totalorder %s36, 0
      // Predicated region
      $region101: #{forward.6} parent=99 // pred_check
        %p680 = pneg %p679
      $region102: #{forward.6} parent=99 // pred_check_branch
        %682 = sbr.rel (%p680) target = $region104
      $region103: #{forward.6} parent=99 // pred_region
        %v683 = vld [vmem:[%s0] sm:$0xf]
        %v684 = vunpack.c.l.bf16 %v683
        %v685 = vld [vmem:[%s1] sm:$0x1]
        %v686 = vld [vmem:[%s2] sm:$0x1]
        %vm687 = vcmask 261120
        %v688 = vsel %vm687, %v684, 0.0
        %689 = vadd.xlane.f32.xlu0 %v688
        %v690 = vpop.xlane.xlu0 %689
        %v691 = vrcp.pop 32.0
        %v692 = vmul.f32 32.0, %v691
        %v693 = vsub.f32 1.0, %v692
        %v694 = vmul.f32 %v691, %v693
        %v695 = vadd.f32 %v691, %v694
        %vm696 = vweird.f32 %v691
        %v697 = vsel %vm696, %v691, %v695
        %v698 = vmul.f32 %v690, %v697
        %v699 = vsub.f32 %v684, %v698
        %v700 = vmul.f32 %v699, %v699
        %v701 = vsel %vm687, %v700, 0.0
        %702 = vadd.xlane.f32.xlu0 %v701
        %v703 = vpop.xlane.xlu0 %702
        %v704 = vmul.f32 %v703, %v697
        %v705 = vadd.f32 %v704, 1e-05
        %v706 = vrsqrt.pop %v705
        %v707 = vmul.f32 %v706, %v705
        %v708 = vmul.f32 %v707, %v706
        %v709 = vmul.f32 0.5, %v708
        %v710 = vsub.f32 1.5, %v709
        %v711 = vmul.f32 %v706, %v710
        %vm712 = vweird.f32 %v705
        %vm713 = vweird.f32 %v706
        %vm714 = vmor %vm712, %vm713
        %v715 = vsel %vm714, %v706, %v711
        %v716 = vmul.f32 %v699, %v715
        %v718 = vperm.slane %v685, 0
        %v720 = vmul.f32 %v716, %v718
        %v722 = vperm.slane %v686, 0
        %v724 = vadd.f32 %v720, %v722
        %725 = vst.msk [vmem:[#allocation2] sm:$0xff] %vm687, %v724
        %v726 = vld [vmem:[%s3] sm:$0xf]
        %v727 = vld [vmem:[%s3 + $0x4] sm:$0xf]
        %v728 = vld [vmem:[%s3 + $0x8] sm:$0xf]
        %v729 = vld [vmem:[%s3 + $0xc] sm:$0xf]
        %v730 = vpack.c.bf16 %v724, %v724
        %v731 = vld [vmem:[%s4] sm:$0x1]
        %v733 = vperm.slane %v731, 0
        %v739 = vunpack.c.l.b16 %v726
        %v740 = vunpack.c.l.b16 %v727
        %v741 = vunpack.c.l.b16 %v728
        %v742 = vunpack.c.l.b16 %v729
        %v743 = vpack.c.b16 %v740, %v739
        %v744 = vpack.c.b16 %v742, %v741
        %v748 = vsel %vm687, %v730, 0
        %750 = vmatpush.bf16.msra.mxu0 0
        %751 = vmatpush.bf16.msra.mxu0 0
        %752 = vmatpush.bf16.msra.mxu0 0
        %753 = vmatpush.bf16.msra.mxu0 0
        %754 = vmatpush.bf16.msra.mxu0 0
        %755 = vmatpush.bf16.msra.mxu0 0
        %756 = vmatpush.bf16.msra.mxu0 %v744
        %757 = vmatpush.bf16.msra.mxu0 %v743
        %758 = vmatmul.bf16.gmra.mxu0 %v748
        %v759 = vpop.f32.mrf.mxu0
        %v760 = vadd.f32 %v733, %v759
        %v761 = vpop.f32.mrf.mxu0
        %762 = vdwg.mxu0
        %763 = vst.msk [vmem:[#allocation3] sm:$0xff] %vm687, %v760
        %vm764 = vcmask 7168
        %765 = vst.msk [vmem:[#allocation4] sm:$0xff] %vm764, -inf
        %766 = vst.msk [vmem:[#allocation4 + $0x8] sm:$0xff] %vm764, -inf
        %767 = vst.msk [vmem:[#allocation4 + $0x10] sm:$0xff] %vm764, -inf
        %768 = vst.msk [vmem:[#allocation4 + $0x18] sm:$0xff] %vm764, -inf
        %769 = vst.msk [vmem:[#allocation5] sm:$0xff] %vm764, 0.0
        %770 = vst.msk [vmem:[#allocation5 + $0x8] sm:$0xff] %vm764, 0.0
        %771 = vst.msk [vmem:[#allocation5 + $0x10] sm:$0xff] %vm764, 0.0
        %772 = vst.msk [vmem:[#allocation5 + $0x18] sm:$0xff] %vm764, 0.0
        %773 = vst.msk [vmem:[#allocation6] sm:$0xff] %vm687, 0.0
      $region104: #{forward.6} parent=99 // pred_fallthru
        _
      %v774 = vld [vmem:[%s650] sm:$0xf]
      %v775 = vld [vmem:[%s650 + $0x4] sm:$0xf]
      %v776 = vunpack.c.l.bf16 %v774
      %v777 = vunpack.c.l.bf16 %v775
      %v778 = vld [vmem:[%s6] sm:$0x1]
      %v779 = vld [vmem:[%s7] sm:$0x1]
      %vm780 = vcmask 261120
      %v781 = vsel %vm780, %v776, 0.0
      %782 = vadd.xlane.f32.xlu0 %v781
      %v783 = vpop.xlane.xlu0 %782
      %v784 = vsel %vm780, %v777, 0.0
      %785 = vadd.xlane.f32.xlu0 %v784
      %v786 = vpop.xlane.xlu0 %785
      %v787 = vrcp.pop 32.0
      %v788 = vmul.f32 32.0, %v787
      %v789 = vsub.f32 1.0, %v788
      %v790 = vmul.f32 %v787, %v789
      %v791 = vadd.f32 %v787, %v790
      %vm792 = vweird.f32 %v787
      %v793 = vsel %vm792, %v787, %v791
      %v794 = vmul.f32 %v783, %v793
      %v795 = vmul.f32 %v786, %v793
      %v796 = vsub.f32 %v776, %v794
      %v797 = vsub.f32 %v777, %v795
      %v798 = vmul.f32 %v796, %v796
      %v799 = vmul.f32 %v797, %v797
      %v800 = vsel %vm780, %v798, 0.0
      %801 = vadd.xlane.f32.xlu0 %v800
      %v802 = vpop.xlane.xlu0 %801
      %v803 = vsel %vm780, %v799, 0.0
      %804 = vadd.xlane.f32.xlu0 %v803
      %v805 = vpop.xlane.xlu0 %804
      %v806 = vmul.f32 %v802, %v793
      %v807 = vmul.f32 %v805, %v793
      %v808 = vadd.f32 %v806, 1e-05
      %v809 = vadd.f32 %v807, 1e-05
      %v810 = vrsqrt.pop %v808
      %v811 = vmul.f32 %v810, %v808
      %v812 = vmul.f32 %v811, %v810
      %v813 = vmul.f32 0.5, %v812
      %v814 = vsub.f32 1.5, %v813
      %v815 = vmul.f32 %v810, %v814
      %vm816 = vweird.f32 %v808
      %vm817 = vweird.f32 %v810
      %vm818 = vmor %vm816, %vm817
      %v819 = vsel %vm818, %v810, %v815
      %v820 = vrsqrt.pop %v809
      %v821 = vmul.f32 %v820, %v809
      %v822 = vmul.f32 %v821, %v820
      %v823 = vmul.f32 0.5, %v822
      %v824 = vsub.f32 1.5, %v823
      %v825 = vmul.f32 %v820, %v824
      %vm826 = vweird.f32 %v809
      %vm827 = vweird.f32 %v820
      %vm828 = vmor %vm826, %vm827
      %v829 = vsel %vm828, %v820, %v825
      %v830 = vmul.f32 %v796, %v819
      %v831 = vmul.f32 %v797, %v829
      %v833 = vperm.slane %v778, 0
      %v835 = vmul.f32 %v830, %v833
      %v836 = vmul.f32 %v831, %v833
      %v838 = vperm.slane %v779, 0
      %v840 = vadd.f32 %v835, %v838
      %v841 = vadd.f32 %v836, %v838
      %v842 = vld [vmem:[%s8] sm:$0xf]
      %v843 = vld [vmem:[%s8 + $0x4] sm:$0xf]
      %v844 = vld [vmem:[%s8 + $0x8] sm:$0xf]
      %v845 = vld [vmem:[%s8 + $0xc] sm:$0xf]
      %v846 = vpack.c.bf16 %v841, %v840
      %v847 = vld [vmem:[%s9] sm:$0x1]
      %v849 = vperm.slane %v847, 0
      %v855 = vunpack.c.l.b16 %v842
      %v856 = vunpack.c.l.b16 %v843
      %v857 = vunpack.c.l.b16 %v844
      %v858 = vunpack.c.l.b16 %v845
      %v859 = vpack.c.b16 %v856, %v855
      %v860 = vpack.c.b16 %v858, %v857
      %v864 = vsel %vm780, %v846, 0
      %866 = vmatpush.bf16.msra.mxu0 0
      %867 = vmatpush.bf16.msra.mxu0 0
      %868 = vmatpush.bf16.msra.mxu0 0
      %869 = vmatpush.bf16.msra.mxu0 0
      %870 = vmatpush.bf16.msra.mxu0 0
      %871 = vmatpush.bf16.msra.mxu0 0
      %872 = vmatpush.bf16.msra.mxu0 %v860
      %873 = vmatpush.bf16.msra.mxu0 %v859
      %874 = vmatmul.bf16.gmra.mxu0 %v864
      %v875 = vpop.f32.mrf.mxu0
      %v876 = vadd.f32 %v849, %v875
      %v877 = vpop.f32.mrf.mxu0
      %v878 = vadd.f32 %v849, %v877
      %879 = vdwg.mxu0
      %v880 = vld [vmem:[%s10] sm:$0xf]
      %v881 = vld [vmem:[%s10 + $0x4] sm:$0xf]
      %v882 = vld [vmem:[%s10 + $0x8] sm:$0xf]
      %v883 = vld [vmem:[%s10 + $0xc] sm:$0xf]
      %v884 = vld [vmem:[%s11] sm:$0x1]
      %v886 = vperm.slane %v884, 0
      %v892 = vunpack.c.l.b16 %v880
      %v893 = vunpack.c.l.b16 %v881
      %v894 = vunpack.c.l.b16 %v882
      %v895 = vunpack.c.l.b16 %v883
      %v896 = vpack.c.b16 %v893, %v892
      %v897 = vpack.c.b16 %v895, %v894
      %900 = vmatpush.bf16.msra.mxu0 0
      %901 = vmatpush.bf16.msra.mxu0 0
      %902 = vmatpush.bf16.msra.mxu0 0
      %903 = vmatpush.bf16.msra.mxu0 0
      %904 = vmatpush.bf16.msra.mxu0 0
      %905 = vmatpush.bf16.msra.mxu0 0
      %906 = vmatpush.bf16.msra.mxu0 %v897
      %907 = vmatpush.bf16.msra.mxu0 %v896
      %908 = vmatmul.bf16.gmra.mxu0 %v864
      %v909 = vpop.f32.mrf.mxu0
      %v910 = vadd.f32 %v886, %v909
      %v911 = vpop.f32.mrf.mxu0
      %v912 = vadd.f32 %v886, %v911
      %913 = vdwg.mxu0
      %v914 = vpack.c.bf16 %v878, %v876
      %v915 = vpack.c.bf16 %v912, %v910
      %v916 = vld [vmem:[#allocation3] sm:$0xff]
      %v917 = vmul.f32 %v916, %v663
      %v918 = vpack.c.bf16 %v917, %v917
      %v920 = vsel %vm780, %v918, 0
      %v923 = vsel %vm780, %v914, 0
      %925 = vmatpush.bf16.xpose.msra.mxu0 0
      %926 = vmatpush.bf16.xpose.msra.mxu0 0
      %927 = vmatpush.bf16.xpose.msra.mxu0 0
      %928 = vmatpush.bf16.xpose.msra.mxu0 0
      %929 = vmatpush.bf16.xpose.msra.mxu0 0
      %930 = vmatpush.bf16.xpose.msra.mxu0 0
      %931 = vmatpush.bf16.xpose.msra.mxu0 0
      %932 = vmatpush.bf16.xpose.msra.mxu0 %v923
      %933 = vmatmul.bf16.gmra.mxu0 %v920
      %v934 = vpop.f32.mrf.mxu0
      %v935 = vadd.f32 0.0, %v934
      %v936 = vpop.f32.mrf.mxu0
      %937 = vdwg.mxu0
      %v938 = vmul.f32 %v935, 0.35355338
      %v939 = vld [vmem:[#allocation4] sm:$0xff]
      %vm940 = vcmask 130048
      %v941 = vsel %vm940, %v938, -inf
      %942 = vmax.xlane.f32.xlu0 %v941
      %v943 = vpop.xlane.xlu0 %942
      %v944 = vmax.f32 %v939, %v943
      %v945 = vsub.f32 %v939, %v944
      %v946 = vmul.f32 %v945, 1.442695
      %v947 = vpow.pop %v946
      %949 = vset.pattern.permute.xlu0 0
      %950 = vperm.xlu0 %949, %v944
      %v951 = vpop.permute.xlu0 %950
      %v953 = vsub.f32 %v938, %v951
      %v954 = vmul.f32 %v953, 1.442695
      %v955 = vpow.pop %v954
      %v956 = vld [vmem:[#allocation5] sm:$0xff]
      %v957 = vmul.f32 %v947, %v956
      %v958 = vsel %vm940, %v955, 0.0
      %959 = vadd.xlane.f32.xlu0 %v958
      %v960 = vpop.xlane.xlu0 %959
      %v961 = vadd.f32 %v957, %v960
      %vm962 = vcmask 7168
      %963 = vst.msk [vmem:[#allocation5] sm:$0xff] %vm962, %v961
      %v964 = vpack.c.bf16 %v955, %v955
      %v966 = vsel %vm940, %v964, 0
      %968 = vmatpush.bf16.msra.mxu0 0
      %969 = vmatpush.bf16.msra.mxu0 0
      %970 = vmatpush.bf16.msra.mxu0 0
      %971 = vmatpush.bf16.msra.mxu0 0
      %972 = vmatpush.bf16.msra.mxu0 0
      %973 = vmatpush.bf16.msra.mxu0 0
      %974 = vmatpush.bf16.msra.mxu0 0
      %975 = vmatpush.bf16.msra.mxu0 %v915
      %976 = vmatmul.bf16.gmra.mxu0 %v966
      %v977 = vpop.f32.mrf.mxu0
      %v978 = vadd.f32 0.0, %v977
      %v979 = vpop.f32.mrf.mxu0
      %980 = vdwg.mxu0
      %v981 = vmul.f32 %v978, %v663
      %v982 = vld [vmem:[#allocation6] sm:$0xff]
      %vm983 = vcmp.gt.f32.partialorder %v663, 0.0
      %v984 = vsel %vm983, 1, 0
      %vm985 = vcmp.eq.s32.totalorder %v984, 1
      %987 = vset.pattern.permute.xlu0 0
      %988 = vperm.xlu0 %987, %v947
      %v989 = vpop.permute.xlu0 %988
      %v991 = vsel %vm985, %v989, 1.0
      %v992 = vmul.f32 %v982, %v991
      %v993 = vadd.f32 %v992, %v981
      %994 = vst.msk [vmem:[#allocation6] sm:$0xff] %vm780, %v993
      %995 = vst.msk [vmem:[#allocation4] sm:$0xff] %vm962, %v944
      %v996 = vmul.f32 %v916, %v668
      %v997 = vpack.c.bf16 %v996, %v996
      %v999 = vsel %vm780, %v997, 0
      %1001 = vmatpush.bf16.xpose.msra.mxu0 0
      %1002 = vmatpush.bf16.xpose.msra.mxu0 0
      %1003 = vmatpush.bf16.xpose.msra.mxu0 0
      %1004 = vmatpush.bf16.xpose.msra.mxu0 0
      %1005 = vmatpush.bf16.xpose.msra.mxu0 0
      %1006 = vmatpush.bf16.xpose.msra.mxu0 0
      %1007 = vmatpush.bf16.xpose.msra.mxu0 0
      %1008 = vmatpush.bf16.xpose.msra.mxu0 %v923
      %1009 = vmatmul.bf16.gmra.mxu0 %v999
      %v1010 = vpop.f32.mrf.mxu0
      %v1011 = vadd.f32 0.0, %v1010
      %v1012 = vpop.f32.mrf.mxu0
      %1013 = vdwg.mxu0
      %v1014 = vmul.f32 %v1011, 0.35355338
      %s1015 = scalar_lea.vmem [#allocation4], 8
      %v1016 = vld [vmem:[%s1015] sm:$0xff]
      %v1017 = vsel %vm940, %v1014, -inf
      %1018 = vmax.xlane.f32.xlu0 %v1017
      %v1019 = vpop.xlane.xlu0 %1018
      %v1020 = vmax.f32 %v1016, %v1019
      %v1021 = vsub.f32 %v1016, %v1020
      %v1022 = vmul.f32 %v1021, 1.442695
      %v1023 = vpow.pop %v1022
      %1025 = vset.pattern.permute.xlu0 0
      %1026 = vperm.xlu0 %1025, %v1020
      %v1027 = vpop.permute.xlu0 %1026
      %v1029 = vsub.f32 %v1014, %v1027
      %v1030 = vmul.f32 %v1029, 1.442695
      %v1031 = vpow.pop %v1030
      %s1032 = scalar_lea.vmem [#allocation5], 8
      %v1033 = vld [vmem:[%s1032] sm:$0xff]
      %v1034 = vmul.f32 %v1023, %v1033
      %v1035 = vsel %vm940, %v1031, 0.0
      %1036 = vadd.xlane.f32.xlu0 %v1035
      %v1037 = vpop.xlane.xlu0 %1036
      %v1038 = vadd.f32 %v1034, %v1037
      %1039 = vst.msk [vmem:[%s1032] sm:$0xff] %vm962, %v1038
      %v1040 = vpack.c.bf16 %v1031, %v1031
      %v1042 = vsel %vm940, %v1040, 0
      %1044 = vmatpush.bf16.msra.mxu0 0
      %1045 = vmatpush.bf16.msra.mxu0 0
      %1046 = vmatpush.bf16.msra.mxu0 0
      %1047 = vmatpush.bf16.msra.mxu0 0
      %1048 = vmatpush.bf16.msra.mxu0 0
      %1049 = vmatpush.bf16.msra.mxu0 0
      %1050 = vmatpush.bf16.msra.mxu0 0
      %1051 = vmatpush.bf16.msra.mxu0 %v915
      %1052 = vmatmul.bf16.gmra.mxu0 %v1042
      %v1053 = vpop.f32.mrf.mxu0
      %v1054 = vadd.f32 0.0, %v1053
      %v1055 = vpop.f32.mrf.mxu0
      %1056 = vdwg.mxu0
      %v1057 = vmul.f32 %v1054, %v668
      %v1058 = vld [vmem:[#allocation6] sm:$0xff]
      %vm1059 = vcmp.gt.f32.partialorder %v668, 0.0
      %v1060 = vsel %vm1059, 1, 0
      %vm1061 = vcmp.eq.s32.totalorder %v1060, 1
      %1063 = vset.pattern.permute.xlu0 0
      %1064 = vperm.xlu0 %1063, %v1023
      %v1065 = vpop.permute.xlu0 %1064
      %v1067 = vsel %vm1061, %v1065, 1.0
      %v1068 = vmul.f32 %v1058, %v1067
      %v1069 = vadd.f32 %v1068, %v1057
      %1070 = vst.msk [vmem:[#allocation6] sm:$0xff] %vm780, %v1069
      %1071 = vst.msk [vmem:[%s1015] sm:$0xff] %vm962, %v1020
      %v1072 = vmul.f32 %v916, %v673
      %v1073 = vpack.c.bf16 %v1072, %v1072
      %v1075 = vsel %vm780, %v1073, 0
      %1077 = vmatpush.bf16.xpose.msra.mxu0 0
      %1078 = vmatpush.bf16.xpose.msra.mxu0 0
      %1079 = vmatpush.bf16.xpose.msra.mxu0 0
      %1080 = vmatpush.bf16.xpose.msra.mxu0 0
      %1081 = vmatpush.bf16.xpose.msra.mxu0 0
      %1082 = vmatpush.bf16.xpose.msra.mxu0 0
      %1083 = vmatpush.bf16.xpose.msra.mxu0 0
      %1084 = vmatpush.bf16.xpose.msra.mxu0 %v923
      %1085 = vmatmul.bf16.gmra.mxu0 %v1075
      %v1086 = vpop.f32.mrf.mxu0
      %v1087 = vadd.f32 0.0, %v1086
      %v1088 = vpop.f32.mrf.mxu0
      %1089 = vdwg.mxu0
      %v1090 = vmul.f32 %v1087, 0.35355338
      %s1091 = scalar_lea.vmem [#allocation4], 16
      %v1092 = vld [vmem:[%s1091] sm:$0xff]
      %v1093 = vsel %vm940, %v1090, -inf
      %1094 = vmax.xlane.f32.xlu0 %v1093
      %v1095 = vpop.xlane.xlu0 %1094
      %v1096 = vmax.f32 %v1092, %v1095
      %v1097 = vsub.f32 %v1092, %v1096
      %v1098 = vmul.f32 %v1097, 1.442695
      %v1099 = vpow.pop %v1098
      %1101 = vset.pattern.permute.xlu0 0
      %1102 = vperm.xlu0 %1101, %v1096
      %v1103 = vpop.permute.xlu0 %1102
      %v1105 = vsub.f32 %v1090, %v1103
      %v1106 = vmul.f32 %v1105, 1.442695
      %v1107 = vpow.pop %v1106
      %s1108 = scalar_lea.vmem [#allocation5], 16
      %v1109 = vld [vmem:[%s1108] sm:$0xff]
      %v1110 = vmul.f32 %v1099, %v1109
      %v1111 = vsel %vm940, %v1107, 0.0
      %1112 = vadd.xlane.f32.xlu0 %v1111
      %v1113 = vpop.xlane.xlu0 %1112
      %v1114 = vadd.f32 %v1110, %v1113
      %1115 = vst.msk [vmem:[%s1108] sm:$0xff] %vm962, %v1114
      %v1116 = vpack.c.bf16 %v1107, %v1107
      %v1118 = vsel %vm940, %v1116, 0
      %1120 = vmatpush.bf16.msra.mxu0 0
      %1121 = vmatpush.bf16.msra.mxu0 0
      %1122 = vmatpush.bf16.msra.mxu0 0
      %1123 = vmatpush.bf16.msra.mxu0 0
      %1124 = vmatpush.bf16.msra.mxu0 0
      %1125 = vmatpush.bf16.msra.mxu0 0
      %1126 = vmatpush.bf16.msra.mxu0 0
      %1127 = vmatpush.bf16.msra.mxu0 %v915
      %1128 = vmatmul.bf16.gmra.mxu0 %v1118
      %v1129 = vpop.f32.mrf.mxu0
      %v1130 = vadd.f32 0.0, %v1129
      %v1131 = vpop.f32.mrf.mxu0
      %1132 = vdwg.mxu0
      %v1133 = vmul.f32 %v1130, %v673
      %v1134 = vld [vmem:[#allocation6] sm:$0xff]
      %vm1135 = vcmp.gt.f32.partialorder %v673, 0.0
      %v1136 = vsel %vm1135, 1, 0
      %vm1137 = vcmp.eq.s32.totalorder %v1136, 1
      %1139 = vset.pattern.permute.xlu0 0
      %1140 = vperm.xlu0 %1139, %v1099
      %v1141 = vpop.permute.xlu0 %1140
      %v1143 = vsel %vm1137, %v1141, 1.0
      %v1144 = vmul.f32 %v1134, %v1143
      %v1145 = vadd.f32 %v1144, %v1133
      %1146 = vst.msk [vmem:[#allocation6] sm:$0xff] %vm780, %v1145
      %1147 = vst.msk [vmem:[%s1091] sm:$0xff] %vm962, %v1096
      %v1148 = vmul.f32 %v916, %v678
      %v1149 = vpack.c.bf16 %v1148, %v1148
      %v1151 = vsel %vm780, %v1149, 0
      %1153 = vmatpush.bf16.xpose.msra.mxu0 0
      %1154 = vmatpush.bf16.xpose.msra.mxu0 0
      %1155 = vmatpush.bf16.xpose.msra.mxu0 0
      %1156 = vmatpush.bf16.xpose.msra.mxu0 0
      %1157 = vmatpush.bf16.xpose.msra.mxu0 0
      %1158 = vmatpush.bf16.xpose.msra.mxu0 0
      %1159 = vmatpush.bf16.xpose.msra.mxu0 0
      %1160 = vmatpush.bf16.xpose.msra.mxu0 %v923
      %1161 = vmatmul.bf16.gmra.mxu0 %v1151
      %v1162 = vpop.f32.mrf.mxu0
      %v1163 = vadd.f32 0.0, %v1162
      %v1164 = vpop.f32.mrf.mxu0
      %1165 = vdwg.mxu0
      %v1166 = vmul.f32 %v1163, 0.35355338
      %s1167 = scalar_lea.vmem [#allocation4], 24
      %v1168 = vld [vmem:[%s1167] sm:$0xff]
      %v1169 = vsel %vm940, %v1166, -inf
      %1170 = vmax.xlane.f32.xlu0 %v1169
      %v1171 = vpop.xlane.xlu0 %1170
      %v1172 = vmax.f32 %v1168, %v1171
      %v1173 = vsub.f32 %v1168, %v1172
      %v1174 = vmul.f32 %v1173, 1.442695
      %v1175 = vpow.pop %v1174
      %1177 = vset.pattern.permute.xlu0 0
      %1178 = vperm.xlu0 %1177, %v1172
      %v1179 = vpop.permute.xlu0 %1178
      %v1181 = vsub.f32 %v1166, %v1179
      %v1182 = vmul.f32 %v1181, 1.442695
      %v1183 = vpow.pop %v1182
      %s1184 = scalar_lea.vmem [#allocation5], 24
      %v1185 = vld [vmem:[%s1184] sm:$0xff]
      %v1186 = vmul.f32 %v1175, %v1185
      %v1187 = vsel %vm940, %v1183, 0.0
      %1188 = vadd.xlane.f32.xlu0 %v1187
      %v1189 = vpop.xlane.xlu0 %1188
      %v1190 = vadd.f32 %v1186, %v1189
      %1191 = vst.msk [vmem:[%s1184] sm:$0xff] %vm962, %v1190
      %v1192 = vpack.c.bf16 %v1183, %v1183
      %v1194 = vsel %vm940, %v1192, 0
      %1196 = vmatpush.bf16.msra.mxu0 0
      %1197 = vmatpush.bf16.msra.mxu0 0
      %1198 = vmatpush.bf16.msra.mxu0 0
      %1199 = vmatpush.bf16.msra.mxu0 0
      %1200 = vmatpush.bf16.msra.mxu0 0
      %1201 = vmatpush.bf16.msra.mxu0 0
      %1202 = vmatpush.bf16.msra.mxu0 0
      %1203 = vmatpush.bf16.msra.mxu0 %v915
      %1204 = vmatmul.bf16.gmra.mxu0 %v1194
      %v1205 = vpop.f32.mrf.mxu0
      %v1206 = vadd.f32 0.0, %v1205
      %v1207 = vpop.f32.mrf.mxu0
      %1208 = vdwg.mxu0
      %v1209 = vmul.f32 %v1206, %v678
      %v1210 = vld [vmem:[#allocation6] sm:$0xff]
      %vm1211 = vcmp.gt.f32.partialorder %v678, 0.0
      %v1212 = vsel %vm1211, 1, 0
      %vm1213 = vcmp.eq.s32.totalorder %v1212, 1
      %1215 = vset.pattern.permute.xlu0 0
      %1216 = vperm.xlu0 %1215, %v1175
      %v1217 = vpop.permute.xlu0 %1216
      %v1219 = vsel %vm1213, %v1217, 1.0
      %v1220 = vmul.f32 %v1210, %v1219
      %v1221 = vadd.f32 %v1220, %v1209
      %1222 = vst.msk [vmem:[#allocation6] sm:$0xff] %vm780, %v1221
      %1223 = vst.msk [vmem:[%s1167] sm:$0xff] %vm962, %v1172
      // Predicated region
      $region105: #{forward.6} parent=99 // pred_check
        %p1224 = pneg %p679
      $region106: #{forward.6} parent=99 // pred_check_branch
        %1226 = sbr.rel (%p1224) target = $region108
      $region107: #{forward.6} parent=99 // pred_region
        %v1227 = vld [vmem:[#allocation5] sm:$0xff]
        %v1228 = vrcp.pop %v1227
        %1230 = vset.pattern.permute.xlu0 0
        %1231 = vperm.xlu0 %1230, %v1228
        %v1232 = vpop.permute.xlu0 %1231
        %v1234 = vmul.f32 %v663, %v1232
        %v1235 = vadd.f32 %v1234, 0.0
        %v1236 = vld [vmem:[%s1032] sm:$0xff]
        %v1237 = vrcp.pop %v1236
        %1239 = vset.pattern.permute.xlu0 0
        %1240 = vperm.xlu0 %1239, %v1237
        %v1241 = vpop.permute.xlu0 %1240
        %v1243 = vmul.f32 %v668, %v1241
        %v1244 = vadd.f32 %v1235, %v1243
        %v1245 = vld [vmem:[%s1108] sm:$0xff]
        %v1246 = vrcp.pop %v1245
        %1248 = vset.pattern.permute.xlu0 0
        %1249 = vperm.xlu0 %1248, %v1246
        %v1250 = vpop.permute.xlu0 %1249
        %v1252 = vmul.f32 %v673, %v1250
        %v1253 = vadd.f32 %v1244, %v1252
        %v1254 = vld [vmem:[%s1184] sm:$0xff]
        %v1255 = vrcp.pop %v1254
        %1257 = vset.pattern.permute.xlu0 0
        %1258 = vperm.xlu0 %1257, %v1255
        %v1259 = vpop.permute.xlu0 %1258
        %v1261 = vmul.f32 %v678, %v1259
        %v1262 = vadd.f32 %v1253, %v1261
        %v1263 = vld [vmem:[#allocation6] sm:$0xff]
        %v1264 = vmul.f32 %v1263, %v1262
        %v1265 = vld [vmem:[%s12] sm:$0xf]
        %v1266 = vld [vmem:[%s12 + $0x4] sm:$0xf]
        %v1267 = vld [vmem:[%s12 + $0x8] sm:$0xf]
        %v1268 = vld [vmem:[%s12 + $0xc] sm:$0xf]
        %v1269 = vpack.c.bf16 %v1264, %v1264
        %v1270 = vld [vmem:[%s13] sm:$0x1]
        %v1272 = vperm.slane %v1270, 0
        %v1278 = vunpack.c.l.b16 %v1265
        %v1279 = vunpack.c.l.b16 %v1266
        %v1280 = vunpack.c.l.b16 %v1267
        %v1281 = vunpack.c.l.b16 %v1268
        %v1282 = vpack.c.b16 %v1279, %v1278
        %v1283 = vpack.c.b16 %v1281, %v1280
        %v1287 = vsel %vm780, %v1269, 0
        %1289 = vmatpush.bf16.msra.mxu0 0
        %1290 = vmatpush.bf16.msra.mxu0 0
        %1291 = vmatpush.bf16.msra.mxu0 0
        %1292 = vmatpush.bf16.msra.mxu0 0
        %1293 = vmatpush.bf16.msra.mxu0 0
        %1294 = vmatpush.bf16.msra.mxu0 0
        %1295 = vmatpush.bf16.msra.mxu0 %v1283
        %1296 = vmatpush.bf16.msra.mxu0 %v1282
        %1297 = vmatmul.bf16.gmra.mxu0 %v1287
        %v1298 = vpop.f32.mrf.mxu0
        %v1299 = vadd.f32 %v1272, %v1298
        %v1300 = vpop.f32.mrf.mxu0
        %1301 = vdwg.mxu0
        %v1302 = vld [vmem:[#allocation2] sm:$0xff]
        %v1303 = vadd.f32 %v1299, %v1302
        %v1304 = vld [vmem:[%s14] sm:$0x1]
        %v1305 = vld [vmem:[%s15] sm:$0x1]
        %v1306 = vsel %vm780, %v1303, 0.0
        %1307 = vadd.xlane.f32.xlu0 %v1306
        %v1308 = vpop.xlane.xlu0 %1307
        %v1309 = vmul.f32 %v1308, %v793
        %v1310 = vsub.f32 %v1303, %v1309
        %v1311 = vmul.f32 %v1310, %v1310
        %v1312 = vsel %vm780, %v1311, 0.0
        %1313 = vadd.xlane.f32.xlu0 %v1312
        %v1314 = vpop.xlane.xlu0 %1313
        %v1315 = vmul.f32 %v1314, %v793
        %v1316 = vadd.f32 %v1315, 1e-05
        %v1317 = vrsqrt.pop %v1316
        %v1318 = vmul.f32 %v1317, %v1316
        %v1319 = vmul.f32 %v1318, %v1317
        %v1320 = vmul.f32 0.5, %v1319
        %v1321 = vsub.f32 1.5, %v1320
        %v1322 = vmul.f32 %v1317, %v1321
        %vm1323 = vweird.f32 %v1316
        %vm1324 = vweird.f32 %v1317
        %vm1325 = vmor %vm1323, %vm1324
        %v1326 = vsel %vm1325, %v1317, %v1322
        %v1327 = vmul.f32 %v1310, %v1326
        %v1329 = vperm.slane %v1304, 0
        %v1331 = vmul.f32 %v1327, %v1329
        %v1333 = vperm.slane %v1305, 0
        %v1335 = vadd.f32 %v1331, %v1333
        %v1336 = vld [vmem:[%s16] sm:$0xf]
        %v1337 = vld [vmem:[%s16 + $0x4] sm:$0xf]
        %v1338 = vld [vmem:[%s16 + $0x8] sm:$0xf]
        %v1339 = vld [vmem:[%s16 + $0xc] sm:$0xf]
        %v1340 = vpack.c.bf16 %v1335, %v1335
        %v1341 = vld [vmem:[%s17] sm:$0x1]
        %v1343 = vperm.slane %v1341, 0
        %v1349 = vunpack.c.l.b16 %v1336
        %v1350 = vunpack.c.l.b16 %v1337
        %v1351 = vunpack.c.l.b16 %v1338
        %v1352 = vunpack.c.l.b16 %v1339
        %v1353 = vpack.c.b16 %v1350, %v1349
        %v1354 = vpack.c.b16 %v1352, %v1351
        %v1358 = vsel %vm780, %v1340, 0
        %1360 = vmatpush.bf16.msra.mxu0 0
        %1361 = vmatpush.bf16.msra.mxu0 0
        %1362 = vmatpush.bf16.msra.mxu0 0
        %1363 = vmatpush.bf16.msra.mxu0 0
        %1364 = vmatpush.bf16.msra.mxu0 0
        %1365 = vmatpush.bf16.msra.mxu0 0
        %1366 = vmatpush.bf16.msra.mxu0 %v1354
        %1367 = vmatpush.bf16.msra.mxu0 %v1353
        %1368 = vmatmul.bf16.gmra.mxu0 %v1358
        %v1369 = vpop.f32.mrf.mxu0
        %v1370 = vadd.f32 %v1343, %v1369
        %v1371 = vpop.f32.mrf.mxu0
        %1372 = vdwg.mxu0
        %v1373 = vmul.f32 %v1370, %v1370
        %v1374 = vmul.f32 %v1370, %v1373
        %v1375 = vmul.f32 %v1374, 0.044715
        %v1376 = vadd.f32 %v1370, %v1375
        %v1377 = vmul.f32 %v1376, 0.7978846
        %v1378 = vtanh.pop %v1377
        %v1379 = vadd.f32 %v1378, 1.0
        %v1380 = vmul.f32 %v1379, 0.5
        %v1381 = vmul.f32 %v1370, %v1380
        %v1382 = vld [vmem:[%s18] sm:$0xf]
        %v1383 = vld [vmem:[%s18 + $0x4] sm:$0xf]
        %v1384 = vld [vmem:[%s18 + $0x8] sm:$0xf]
        %v1385 = vld [vmem:[%s18 + $0xc] sm:$0xf]
        %v1386 = vld [vmem:[%s18 + $0x10] sm:$0xf]
        %v1387 = vld [vmem:[%s18 + $0x14] sm:$0xf]
        %v1388 = vld [vmem:[%s18 + $0x18] sm:$0xf]
        %v1389 = vld [vmem:[%s18 + $0x1c] sm:$0xf]
        %v1390 = vpack.c.bf16 %v1381, %v1381
        %v1399 = vunpack.c.l.b16 %v1382
        %v1400 = vunpack.c.l.b16 %v1383
        %v1401 = vunpack.c.l.b16 %v1384
        %v1402 = vunpack.c.l.b16 %v1385
        %v1403 = vunpack.c.l.b16 %v1386
        %v1404 = vunpack.c.l.b16 %v1387
        %v1405 = vunpack.c.l.b16 %v1388
        %v1406 = vunpack.c.l.b16 %v1389
        %v1407 = vpack.c.b16 %v1400, %v1399
        %v1408 = vpack.c.b16 %v1402, %v1401
        %v1409 = vpack.c.b16 %v1404, %v1403
        %v1410 = vpack.c.b16 %v1406, %v1405
        %vm1415 = vcmask 523264
        %v1417 = vsel %vm1415, %v1390, 0
        %1419 = vmatpush.bf16.msra.mxu0 0
        %1420 = vmatpush.bf16.msra.mxu0 0
        %1421 = vmatpush.bf16.msra.mxu0 0
        %1422 = vmatpush.bf16.msra.mxu0 0
        %1423 = vmatpush.bf16.msra.mxu0 %v1410
        %1424 = vmatpush.bf16.msra.mxu0 %v1409
        %1425 = vmatpush.bf16.msra.mxu0 %v1408
        %1426 = vmatpush.bf16.msra.mxu0 %v1407
        %1427 = vmatmul.bf16.gmra.mxu0 %v1417
        %v1428 = vpop.f32.mrf.mxu0
        %v1429 = vadd.f32 0.0, %v1428
        %v1430 = vpop.f32.mrf.mxu0
        %1431 = vdwg.mxu0
        %v1432 = vadd.f32 %v1303, %v1429
        %v1433 = vld [vmem:[%s19] sm:$0x1]
        %v1435 = vperm.slane %v1433, 0
        %v1437 = vadd.f32 %v1432, %v1435
        %v1438 = vpack.c.bf16 %v1437, %v1437
        %vm1439 = vcmask 257024
        %1440 = vst.msk [vmem:[%s655] sm:$0xf] %vm1439, %v1438
      $region108: #{forward.6} parent=99 // pred_fallthru
        _
      %p1441 = scmp.lt.s32.totalorder %s35, 1
      %s1442 = scalar_select %p1441, %s35, 1
      %s1443 = smul.addr %s1442, 4
      %s1444 = scalar_lea.vmem %s20, %s1443
      // Predicated region
      $region109: #{forward.6} parent=99 // pred_check
        %p1445 = pneg %p488
      $region110: #{forward.6} parent=99 // pred_check_branch
        %1447 = sbr.rel (%p1445) target = $region112
      $region111: #{forward.6} parent=99 // pred_region
        _
      $region112: #{forward.6} parent=99 // pred_fallthru
        _
    $region100: #{forward.6} parent=5 // pred_fallthru
      _
    %p1448 = scmp.le.s32.totalorder 2, %s26
    // Predicated region
    $region113: #{forward.6} parent=5 // pred_check
      %p1449 = pneg %p1448
    $region114: #{forward.6} parent=5 // pred_check_branch
      %1451 = sbr.rel (%p1449) target = $region116
    $region115: #{forward.6} parent=5 // pred_region
      %s1452 = ssub.s32 %s26, 2
      // Predicated region
      $region117: #{forward.6} parent=115 // pred_check
        %p1453 = pneg %p494
      $region118: #{forward.6} parent=115 // pred_check_branch
        %1455 = sbr.rel (%p1453) target = $region120
      $region119: #{forward.6} parent=115 // pred_region
        %p1456 = scmp.lt.s32.totalorder %s37, 1
        %s1457 = scalar_select %p1456, %s37, 1
        %s1458 = smul.addr %s1457, 4
        %s1459 = scalar_lea.vmem %s20, %s1458
      $region120: #{forward.6} parent=115 // pred_fallthru
        _
    $region116: #{forward.6} parent=5 // pred_fallthru
      _
  $region6: #{forward.6} parent=0 // loop_footer
    %s30 = sadd.s32 1, %s26
  $region7: #{forward.6} parent=0 // loop_footer_branch
    %25 = sbr.rel target = $region3
  $region8: #{forward.6} parent=0 // loop_exit
    _

// kernel: forward.9
$region0: #{forward.9}
  #allocation0 [shape = 'u32[]', space=smem, size = 0x4, offset = 0x4, fixed_abs, tag = 'smem constant byte address 0x4 - core index']
  #allocation1 [shape = 'u32[72,128]{1,0:T(1,128)}', space=vmem, size = 0x9000, scoped, tag = 'internal scratch']
  %s0 = inlined_call_operand.vmem [shape: bf16[1,32,32], index: 0, kind: input, shape index: {}]
  %s1 = inlined_call_operand.vmem [shape: f32[1,32], index: 1, kind: input, shape index: {}]
  %s2 = inlined_call_operand.vmem [shape: f32[1,32], index: 2, kind: input, shape index: {}]
  %s3 = inlined_call_operand.vmem [shape: bf16[32,32], index: 3, kind: input, shape index: {}]
  %s4 = inlined_call_operand.vmem [shape: f32[1,32], index: 4, kind: input, shape index: {}]
  %s5 = inlined_call_operand.vmem [shape: bf16[2,7,32], index: 5, kind: input, shape index: {}]
  %s6 = inlined_call_operand.vmem [shape: f32[1,32], index: 6, kind: input, shape index: {}]
  %s7 = inlined_call_operand.vmem [shape: f32[1,32], index: 7, kind: input, shape index: {}]
  %s8 = inlined_call_operand.vmem [shape: bf16[32,32], index: 8, kind: input, shape index: {}]
  %s9 = inlined_call_operand.vmem [shape: f32[1,32], index: 9, kind: input, shape index: {}]
  %s10 = inlined_call_operand.vmem [shape: bf16[32,32], index: 10, kind: input, shape index: {}]
  %s11 = inlined_call_operand.vmem [shape: f32[1,32], index: 11, kind: input, shape index: {}]
  %s12 = inlined_call_operand.vmem [shape: bf16[32,32], index: 12, kind: input, shape index: {}]
  %s13 = inlined_call_operand.hbm [shape: f32[1,32], index: 13, kind: input, shape index: {}]
  %s14 = inlined_call_operand.hbm [shape: f32[1,32], index: 14, kind: input, shape index: {}]
  %s15 = inlined_call_operand.hbm [shape: f32[1,32], index: 15, kind: input, shape index: {}]
  %s16 = inlined_call_operand.vmem [shape: bf16[32,64], index: 16, kind: input, shape index: {}]
  %s17 = inlined_call_operand.hbm [shape: f32[1,64], index: 17, kind: input, shape index: {}]
  %s18 = inlined_call_operand.vmem [shape: bf16[64,32], index: 18, kind: input, shape index: {}]
  %s19 = inlined_call_operand.hbm [shape: f32[1,32], index: 19, kind: input, shape index: {}]
  %s20 = inlined_call_operand.vmem [shape: bf16[32,128], index: 20, kind: input, shape index: {}]
  %s21 = inlined_call_operand.vmem [shape: f32[1,128], index: 21, kind: input, shape index: {}]
  %s22 = inlined_call_operand.vmem [shape: f32[2,32,128], index: 22, kind: output, shape index: {}]
  %s23 = sld [smem:[#allocation0]]
  $region141: #{forward.9} parent=0
    _
  %s25 = ssub.s32 1, %s23
  %s26 = scalar_select 0, %s25, %s23
  $region1: #{forward.9} parent=0
    #allocation2 [shape = 'u8[512]{0}', space=vmem, size = 0x400, scoped, tag = 'input window, operand 13, single buffered']
    #allocation3 [shape = 's32[2]{0}', space=sflag, size = 0x8, scoped, tag = 'scoped memory for forward.9']
    #allocation4 [shape = 'u8[512]{0}', space=vmem, size = 0x400, scoped, tag = 'input window, operand 14, single buffered']
    #allocation5 [shape = 's32[1]{0}', space=sflag, size = 0x4, scoped, tag = 'scoped memory for forward.9']
    #allocation6 [shape = 'u8[512]{0}', space=vmem, size = 0x400, scoped, tag = 'input window, operand 15, single buffered']
    #allocation7 [shape = 'u8[512]{0}', space=vmem, size = 0x400, scoped, tag = 'input window, operand 17, single buffered']
    #allocation8 [shape = 's32[1]{0}', space=sflag, size = 0x4, scoped, tag = 'scoped memory for forward.9']
    #allocation9 [shape = 'u8[512]{0}', space=vmem, size = 0x400, scoped, tag = 'input window, operand 19, single buffered']
    %27 = vsyncpa [#allocation3], 0
    %28 = vsyncpa [#allocation5], 0
    %29 = vsyncpa [#allocation8], 0
    loop: start=0, step=1, limit=4
    $region2: #{forward.9} parent=1 // loop_pre_header
      _
    $region3: #{forward.9} parent=1 // loop_header
      %s31 = sphi 0, %s35
      %p32 = scmp.ge.s32.totalorder %s31, 4
      %s38 = sphi 0, %s50
      %s39 = sphi 0, %s46
      %s40 = sphi 0, %s38
      %s41 = sphi 0, %s39
      %s42 = sphi 0, %s40
      %s43 = sphi 0, %s41
      %s53 = sphi 0, %s55
      %s56 = sphi 0, %s53
      %s57 = sphi 0, %s56
      %s73 = sphi 0, %s57
      %s77 = sphi 0, %s77
      %s79 = sphi 0, %s77
      %s80 = sphi 0, %s79
      %s94 = sphi 0, %s80
      %s98 = sphi 0, %s98
      %s100 = sphi 0, %s98
      %s101 = sphi 0, %s100
      %s115 = sphi 0, %s101
      %s119 = sphi 0, %s119
      %s121 = sphi 0, %s119
      %s122 = sphi 0, %s121
      %s136 = sphi 0, %s122
      %s140 = sphi 0, %s140
      %s142 = sphi 0, %s140
      %s143 = sphi 0, %s142
      %s157 = sphi 0, %s143
      %s163 = sphi 0, %s165
      %s166 = sphi 0, %s163
      %s167 = sphi 0, %s166
      %s183 = sphi 0, %s167
      %s187 = sphi 0, %s187
      %s189 = sphi 0, %s187
      %s190 = sphi 0, %s189
      %s204 = sphi 0, %s190
      %s208 = sphi 0, %s208
      %s210 = sphi 0, %s208
      %s211 = sphi 0, %s210
      %s225 = sphi 0, %s211
      %s229 = sphi 0, %s229
      %s231 = sphi 0, %s229
      %s232 = sphi 0, %s231
      %s246 = sphi 0, %s232
      %s250 = sphi 0, %s250
      %s252 = sphi 0, %s250
      %s253 = sphi 0, %s252
      %s267 = sphi 0, %s253
      %s271 = sphi 0, %s271
      %s273 = sphi 0, %s271
      %s274 = sphi 0, %s273
      %s288 = sphi 0, %s274
      %s292 = sphi 0, %s292
      %s294 = sphi 0, %s292
      %s295 = sphi 0, %s294
      %s309 = sphi 0, %s295
      %s313 = sphi 0, %s313
      %s315 = sphi 0, %s313
      %s316 = sphi 0, %s315
      %s330 = sphi 0, %s316
      %s334 = sphi 0, %s334
      %s336 = sphi 0, %s334
      %s337 = sphi 0, %s336
      %s351 = sphi 0, %s337
      %s355 = sphi 0, %s355
      %s357 = sphi 0, %s355
      %s358 = sphi 0, %s357
      %s372 = sphi 0, %s358
      %s376 = sphi 0, %s376
      %s378 = sphi 0, %s376
      %s379 = sphi 0, %s378
      %s393 = sphi 0, %s379
      %s397 = sphi 0, %s397
      %s399 = sphi 0, %s397
      %s400 = sphi 0, %s399
      %s414 = sphi 0, %s400
      %s418 = sphi 0, %s418
      %s420 = sphi 0, %s418
      %s421 = sphi 0, %s420
      %s435 = sphi 0, %s421
      %s439 = sphi 0, %s439
      %s441 = sphi 0, %s439
      %s442 = sphi 0, %s441
      %s456 = sphi 0, %s442
      %s460 = sphi 0, %s460
      %s462 = sphi 0, %s460
      %s463 = sphi 0, %s462
      %s477 = sphi 0, %s463
      %s481 = sphi 0, %s481
      %s483 = sphi 0, %s481
      %s484 = sphi 0, %s483
      %s498 = sphi 0, %s484
      %s502 = sphi 0, %s502
      %s504 = sphi 0, %s502
      %s505 = sphi 0, %s504
      %s519 = sphi 0, %s505
      %s527 = sphi 0, %s529
      %s530 = sphi 0, %s527
      %s531 = sphi 0, %s530
      %s547 = sphi 0, %s531
    $region4: #{forward.9} parent=1 // loop_header_branch
      %34 = sbr.rel (%p32) target = $region8
    $region5: #{forward.9} parent=1 // loop_body
      %s36 = ssub.s32 %s31, 1
      %s37 = ssub.s32 %s31, 2
      %s44 = sadd.s32 1, %s39
      %p45 = scmp.ge.s32.totalorder %s44, 1
      %s46 = scalar_select %p45, 0, %s44
      %s47 = sadd.s32 1, %s38
      %s48 = scalar_select %p45, %s47, %s38
      %p49 = scmp.ge.s32.totalorder %s48, 2
      %s50 = scalar_select %p49, 0, %s48
      %s51 = ssub.s32 %s39, %s46
      %p52 = scmp.eq.s32.totalorder %s51, 0
      %s54 = sadd.s32 %s53, 1
      %s55 = scalar_select %p52, %s53, %s54
      %p58 = pneg %p52
      %p59 = scmp.eq.s32.totalorder %s31, 1
      %p60 = por %p58, %p59
      %p61 = scmp.ne.s32.totalorder %s53, %s56
      %p62 = scmp.eq.s32.totalorder %s31, 0
      %p63 = por %p61, %p62
      %p64 = scmp.ne.s32.totalorder %s53, %s56
      %p65 = scmp.eq.s32.totalorder %s36, 1
      %p66 = por %p64, %p65
      %p67 = scmp.ne.s32.totalorder %s56, %s57
      %p68 = scmp.eq.s32.totalorder %s36, 0
      %p69 = por %p67, %p68
      %p70 = scmp.ne.s32.totalorder %s56, %s57
      %p71 = scmp.eq.s32.totalorder %s37, 1
      %p72 = por %p70, %p71
      %p74 = scmp.ne.s32.totalorder %s57, %s73
      %p75 = scmp.eq.s32.totalorder %s37, 0
      %p76 = por %p74, %p75
      %s78 = sadd.s32 %s77, 1
      %p81 = scmp.eq.s32.totalorder %s31, 1
      %p82 = scmp.ne.s32.totalorder %s77, %s79
      %p83 = scmp.eq.s32.totalorder %s31, 0
      %p84 = por %p82, %p83
      %p85 = scmp.ne.s32.totalorder %s77, %s79
      %p86 = scmp.eq.s32.totalorder %s36, 1
      %p87 = por %p85, %p86
      %p88 = scmp.ne.s32.totalorder %s79, %s80
      %p89 = scmp.eq.s32.totalorder %s36, 0
      %p90 = por %p88, %p89
      %p91 = scmp.ne.s32.totalorder %s79, %s80
      %p92 = scmp.eq.s32.totalorder %s37, 1
      %p93 = por %p91, %p92
      %p95 = scmp.ne.s32.totalorder %s80, %s94
      %p96 = scmp.eq.s32.totalorder %s37, 0
      %p97 = por %p95, %p96
      %s99 = sadd.s32 %s98, 1
      %p102 = scmp.eq.s32.totalorder %s31, 1
      %p103 = scmp.ne.s32.totalorder %s98, %s100
      %p104 = scmp.eq.s32.totalorder %s31, 0
      %p105 = por %p103, %p104
      %p106 = scmp.ne.s32.totalorder %s98, %s100
      %p107 = scmp.eq.s32.totalorder %s36, 1
      %p108 = por %p106, %p107
      %p109 = scmp.ne.s32.totalorder %s100, %s101
      %p110 = scmp.eq.s32.totalorder %s36, 0
      %p111 = por %p109, %p110
      %p112 = scmp.ne.s32.totalorder %s100, %s101
      %p113 = scmp.eq.s32.totalorder %s37, 1
      %p114 = por %p112, %p113
      %p116 = scmp.ne.s32.totalorder %s101, %s115
      %p117 = scmp.eq.s32.totalorder %s37, 0
      %p118 = por %p116, %p117
      %s120 = sadd.s32 %s119, 1
      %p123 = scmp.eq.s32.totalorder %s31, 1
      %p124 = scmp.ne.s32.totalorder %s119, %s121
      %p125 = scmp.eq.s32.totalorder %s31, 0
      %p126 = por %p124, %p125
      %p127 = scmp.ne.s32.totalorder %s119, %s121
      %p128 = scmp.eq.s32.totalorder %s36, 1
      %p129 = por %p127, %p128
      %p130 = scmp.ne.s32.totalorder %s121, %s122
      %p131 = scmp.eq.s32.totalorder %s36, 0
      %p132 = por %p130, %p131
      %p133 = scmp.ne.s32.totalorder %s121, %s122
      %p134 = scmp.eq.s32.totalorder %s37, 1
      %p135 = por %p133, %p134
      %p137 = scmp.ne.s32.totalorder %s122, %s136
      %p138 = scmp.eq.s32.totalorder %s37, 0
      %p139 = por %p137, %p138
      %s141 = sadd.s32 %s140, 1
      %p144 = scmp.eq.s32.totalorder %s31, 1
      %p145 = scmp.ne.s32.totalorder %s140, %s142
      %p146 = scmp.eq.s32.totalorder %s31, 0
      %p147 = por %p145, %p146
      %p148 = scmp.ne.s32.totalorder %s140, %s142
      %p149 = scmp.eq.s32.totalorder %s36, 1
      %p150 = por %p148, %p149
      %p151 = scmp.ne.s32.totalorder %s142, %s143
      %p152 = scmp.eq.s32.totalorder %s36, 0
      %p153 = por %p151, %p152
      %p154 = scmp.ne.s32.totalorder %s142, %s143
      %p155 = scmp.eq.s32.totalorder %s37, 1
      %p156 = por %p154, %p155
      %p158 = scmp.ne.s32.totalorder %s143, %s157
      %p159 = scmp.eq.s32.totalorder %s37, 0
      %p160 = por %p158, %p159
      %s161 = ssub.s32 %s38, %s50
      %p162 = scmp.eq.s32.totalorder %s161, 0
      %s164 = sadd.s32 %s163, 1
      %s165 = scalar_select %p162, %s163, %s164
      %p168 = pneg %p162
      %p169 = scmp.eq.s32.totalorder %s31, 1
      %p170 = por %p168, %p169
      %p171 = scmp.ne.s32.totalorder %s163, %s166
      %p172 = scmp.eq.s32.totalorder %s31, 0
      %p173 = por %p171, %p172
      %p174 = scmp.ne.s32.totalorder %s163, %s166
      %p175 = scmp.eq.s32.totalorder %s36, 1
      %p176 = por %p174, %p175
      %p177 = scmp.ne.s32.totalorder %s166, %s167
      %p178 = scmp.eq.s32.totalorder %s36, 0
      %p179 = por %p177, %p178
      %p180 = scmp.ne.s32.totalorder %s166, %s167
      %p181 = scmp.eq.s32.totalorder %s37, 1
      %p182 = por %p180, %p181
      %p184 = scmp.ne.s32.totalorder %s167, %s183
      %p185 = scmp.eq.s32.totalorder %s37, 0
      %p186 = por %p184, %p185
      %s188 = sadd.s32 %s187, 1
      %p191 = scmp.eq.s32.totalorder %s31, 1
      %p192 = scmp.ne.s32.totalorder %s187, %s189
      %p193 = scmp.eq.s32.totalorder %s31, 0
      %p194 = por %p192, %p193
      %p195 = scmp.ne.s32.totalorder %s187, %s189
      %p196 = scmp.eq.s32.totalorder %s36, 1
      %p197 = por %p195, %p196
      %p198 = scmp.ne.s32.totalorder %s189, %s190
      %p199 = scmp.eq.s32.totalorder %s36, 0
      %p200 = por %p198, %p199
      %p201 = scmp.ne.s32.totalorder %s189, %s190
      %p202 = scmp.eq.s32.totalorder %s37, 1
      %p203 = por %p201, %p202
      %p205 = scmp.ne.s32.totalorder %s190, %s204
      %p206 = scmp.eq.s32.totalorder %s37, 0
      %p207 = por %p205, %p206
      %s209 = sadd.s32 %s208, 1
      %p212 = scmp.eq.s32.totalorder %s31, 1
      %p213 = scmp.ne.s32.totalorder %s208, %s210
      %p214 = scmp.eq.s32.totalorder %s31, 0
      %p215 = por %p213, %p214
      %p216 = scmp.ne.s32.totalorder %s208, %s210
      %p217 = scmp.eq.s32.totalorder %s36, 1
      %p218 = por %p216, %p217
      %p219 = scmp.ne.s32.totalorder %s210, %s211
      %p220 = scmp.eq.s32.totalorder %s36, 0
      %p221 = por %p219, %p220
      %p222 = scmp.ne.s32.totalorder %s210, %s211
      %p223 = scmp.eq.s32.totalorder %s37, 1
      %p224 = por %p222, %p223
      %p226 = scmp.ne.s32.totalorder %s211, %s225
      %p227 = scmp.eq.s32.totalorder %s37, 0
      %p228 = por %p226, %p227
      %s230 = sadd.s32 %s229, 1
      %p233 = scmp.eq.s32.totalorder %s31, 1
      %p234 = scmp.ne.s32.totalorder %s229, %s231
      %p235 = scmp.eq.s32.totalorder %s31, 0
      %p236 = por %p234, %p235
      %p237 = scmp.ne.s32.totalorder %s229, %s231
      %p238 = scmp.eq.s32.totalorder %s36, 1
      %p239 = por %p237, %p238
      %p240 = scmp.ne.s32.totalorder %s231, %s232
      %p241 = scmp.eq.s32.totalorder %s36, 0
      %p242 = por %p240, %p241
      %p243 = scmp.ne.s32.totalorder %s231, %s232
      %p244 = scmp.eq.s32.totalorder %s37, 1
      %p245 = por %p243, %p244
      %p247 = scmp.ne.s32.totalorder %s232, %s246
      %p248 = scmp.eq.s32.totalorder %s37, 0
      %p249 = por %p247, %p248
      %s251 = sadd.s32 %s250, 1
      %p254 = scmp.eq.s32.totalorder %s31, 1
      %p255 = scmp.ne.s32.totalorder %s250, %s252
      %p256 = scmp.eq.s32.totalorder %s31, 0
      %p257 = por %p255, %p256
      %p258 = scmp.ne.s32.totalorder %s250, %s252
      %p259 = scmp.eq.s32.totalorder %s36, 1
      %p260 = por %p258, %p259
      %p261 = scmp.ne.s32.totalorder %s252, %s253
      %p262 = scmp.eq.s32.totalorder %s36, 0
      %p263 = por %p261, %p262
      %p264 = scmp.ne.s32.totalorder %s252, %s253
      %p265 = scmp.eq.s32.totalorder %s37, 1
      %p266 = por %p264, %p265
      %p268 = scmp.ne.s32.totalorder %s253, %s267
      %p269 = scmp.eq.s32.totalorder %s37, 0
      %p270 = por %p268, %p269
      %s272 = sadd.s32 %s271, 1
      %p275 = scmp.eq.s32.totalorder %s31, 1
      %p276 = scmp.ne.s32.totalorder %s271, %s273
      %p277 = scmp.eq.s32.totalorder %s31, 0
      %p278 = por %p276, %p277
      %p279 = scmp.ne.s32.totalorder %s271, %s273
      %p280 = scmp.eq.s32.totalorder %s36, 1
      %p281 = por %p279, %p280
      %p282 = scmp.ne.s32.totalorder %s273, %s274
      %p283 = scmp.eq.s32.totalorder %s36, 0
      %p284 = por %p282, %p283
      %p285 = scmp.ne.s32.totalorder %s273, %s274
      %p286 = scmp.eq.s32.totalorder %s37, 1
      %p287 = por %p285, %p286
      %p289 = scmp.ne.s32.totalorder %s274, %s288
      %p290 = scmp.eq.s32.totalorder %s37, 0
      %p291 = por %p289, %p290
      %s293 = sadd.s32 %s292, 1
      %p296 = scmp.eq.s32.totalorder %s31, 1
      %p297 = scmp.ne.s32.totalorder %s292, %s294
      %p298 = scmp.eq.s32.totalorder %s31, 0
      %p299 = por %p297, %p298
      %p300 = scmp.ne.s32.totalorder %s292, %s294
      %p301 = scmp.eq.s32.totalorder %s36, 1
      %p302 = por %p300, %p301
      %p303 = scmp.ne.s32.totalorder %s294, %s295
      %p304 = scmp.eq.s32.totalorder %s36, 0
      %p305 = por %p303, %p304
      %p306 = scmp.ne.s32.totalorder %s294, %s295
      %p307 = scmp.eq.s32.totalorder %s37, 1
      %p308 = por %p306, %p307
      %p310 = scmp.ne.s32.totalorder %s295, %s309
      %p311 = scmp.eq.s32.totalorder %s37, 0
      %p312 = por %p310, %p311
      %s314 = sadd.s32 %s313, 1
      %p317 = scmp.eq.s32.totalorder %s31, 1
      %p318 = scmp.ne.s32.totalorder %s313, %s315
      %p319 = scmp.eq.s32.totalorder %s31, 0
      %p320 = por %p318, %p319
      %p321 = scmp.ne.s32.totalorder %s313, %s315
      %p322 = scmp.eq.s32.totalorder %s36, 1
      %p323 = por %p321, %p322
      %p324 = scmp.ne.s32.totalorder %s315, %s316
      %p325 = scmp.eq.s32.totalorder %s36, 0
      %p326 = por %p324, %p325
      %p327 = scmp.ne.s32.totalorder %s315, %s316
      %p328 = scmp.eq.s32.totalorder %s37, 1
      %p329 = por %p327, %p328
      %p331 = scmp.ne.s32.totalorder %s316, %s330
      %p332 = scmp.eq.s32.totalorder %s37, 0
      %p333 = por %p331, %p332
      %s335 = sadd.s32 %s334, 1
      %p338 = scmp.eq.s32.totalorder %s31, 1
      %p339 = scmp.ne.s32.totalorder %s334, %s336
      %p340 = scmp.eq.s32.totalorder %s31, 0
      %p341 = por %p339, %p340
      %p342 = scmp.ne.s32.totalorder %s334, %s336
      %p343 = scmp.eq.s32.totalorder %s36, 1
      %p344 = por %p342, %p343
      %p345 = scmp.ne.s32.totalorder %s336, %s337
      %p346 = scmp.eq.s32.totalorder %s36, 0
      %p347 = por %p345, %p346
      %p348 = scmp.ne.s32.totalorder %s336, %s337
      %p349 = scmp.eq.s32.totalorder %s37, 1
      %p350 = por %p348, %p349
      %p352 = scmp.ne.s32.totalorder %s337, %s351
      %p353 = scmp.eq.s32.totalorder %s37, 0
      %p354 = por %p352, %p353
      %s356 = sadd.s32 %s355, 1
      %p359 = scmp.eq.s32.totalorder %s31, 1
      %p360 = scmp.ne.s32.totalorder %s355, %s357
      %p361 = scmp.eq.s32.totalorder %s31, 0
      %p362 = por %p360, %p361
      %p363 = scmp.ne.s32.totalorder %s355, %s357
      %p364 = scmp.eq.s32.totalorder %s36, 1
      %p365 = por %p363, %p364
      %p366 = scmp.ne.s32.totalorder %s357, %s358
      %p367 = scmp.eq.s32.totalorder %s36, 0
      %p368 = por %p366, %p367
      %p369 = scmp.ne.s32.totalorder %s357, %s358
      %p370 = scmp.eq.s32.totalorder %s37, 1
      %p371 = por %p369, %p370
      %p373 = scmp.ne.s32.totalorder %s358, %s372
      %p374 = scmp.eq.s32.totalorder %s37, 0
      %p375 = por %p373, %p374
      %s377 = sadd.s32 %s376, 1
      %p380 = scmp.eq.s32.totalorder %s31, 1
      %p381 = scmp.ne.s32.totalorder %s376, %s378
      %p382 = scmp.eq.s32.totalorder %s31, 0
      %p383 = por %p381, %p382
      %p384 = scmp.ne.s32.totalorder %s376, %s378
      %p385 = scmp.eq.s32.totalorder %s36, 1
      %p386 = por %p384, %p385
      %p387 = scmp.ne.s32.totalorder %s378, %s379
      %p388 = scmp.eq.s32.totalorder %s36, 0
      %p389 = por %p387, %p388
      %p390 = scmp.ne.s32.totalorder %s378, %s379
      %p391 = scmp.eq.s32.totalorder %s37, 1
      %p392 = por %p390, %p391
      %p394 = scmp.ne.s32.totalorder %s379, %s393
      %p395 = scmp.eq.s32.totalorder %s37, 0
      %p396 = por %p394, %p395
      %s398 = sadd.s32 %s397, 1
      %p401 = scmp.eq.s32.totalorder %s31, 1
      %p402 = scmp.ne.s32.totalorder %s397, %s399
      %p403 = scmp.eq.s32.totalorder %s31, 0
      %p404 = por %p402, %p403
      %p405 = scmp.ne.s32.totalorder %s397, %s399
      %p406 = scmp.eq.s32.totalorder %s36, 1
      %p407 = por %p405, %p406
      %p408 = scmp.ne.s32.totalorder %s399, %s400
      %p409 = scmp.eq.s32.totalorder %s36, 0
      %p410 = por %p408, %p409
      %p411 = scmp.ne.s32.totalorder %s399, %s400
      %p412 = scmp.eq.s32.totalorder %s37, 1
      %p413 = por %p411, %p412
      %p415 = scmp.ne.s32.totalorder %s400, %s414
      %p416 = scmp.eq.s32.totalorder %s37, 0
      %p417 = por %p415, %p416
      %s419 = sadd.s32 %s418, 1
      %p422 = scmp.eq.s32.totalorder %s31, 1
      %p423 = scmp.ne.s32.totalorder %s418, %s420
      %p424 = scmp.eq.s32.totalorder %s31, 0
      %p425 = por %p423, %p424
      %p426 = scmp.ne.s32.totalorder %s418, %s420
      %p427 = scmp.eq.s32.totalorder %s36, 1
      %p428 = por %p426, %p427
      %p429 = scmp.ne.s32.totalorder %s420, %s421
      %p430 = scmp.eq.s32.totalorder %s36, 0
      %p431 = por %p429, %p430
      %p432 = scmp.ne.s32.totalorder %s420, %s421
      %p433 = scmp.eq.s32.totalorder %s37, 1
      %p434 = por %p432, %p433
      %p436 = scmp.ne.s32.totalorder %s421, %s435
      %p437 = scmp.eq.s32.totalorder %s37, 0
      %p438 = por %p436, %p437
      %s440 = sadd.s32 %s439, 1
      %p443 = scmp.eq.s32.totalorder %s31, 1
      %p444 = scmp.ne.s32.totalorder %s439, %s441
      %p445 = scmp.eq.s32.totalorder %s31, 0
      %p446 = por %p444, %p445
      %p447 = scmp.ne.s32.totalorder %s439, %s441
      %p448 = scmp.eq.s32.totalorder %s36, 1
      %p449 = por %p447, %p448
      %p450 = scmp.ne.s32.totalorder %s441, %s442
      %p451 = scmp.eq.s32.totalorder %s36, 0
      %p452 = por %p450, %p451
      %p453 = scmp.ne.s32.totalorder %s441, %s442
      %p454 = scmp.eq.s32.totalorder %s37, 1
      %p455 = por %p453, %p454
      %p457 = scmp.ne.s32.totalorder %s442, %s456
      %p458 = scmp.eq.s32.totalorder %s37, 0
      %p459 = por %p457, %p458
      %s461 = sadd.s32 %s460, 1
      %p464 = scmp.eq.s32.totalorder %s31, 1
      %p465 = scmp.ne.s32.totalorder %s460, %s462
      %p466 = scmp.eq.s32.totalorder %s31, 0
      %p467 = por %p465, %p466
      %p468 = scmp.ne.s32.totalorder %s460, %s462
      %p469 = scmp.eq.s32.totalorder %s36, 1
      %p470 = por %p468, %p469
      %p471 = scmp.ne.s32.totalorder %s462, %s463
      %p472 = scmp.eq.s32.totalorder %s36, 0
      %p473 = por %p471, %p472
      %p474 = scmp.ne.s32.totalorder %s462, %s463
      %p475 = scmp.eq.s32.totalorder %s37, 1
      %p476 = por %p474, %p475
      %p478 = scmp.ne.s32.totalorder %s463, %s477
      %p479 = scmp.eq.s32.totalorder %s37, 0
      %p480 = por %p478, %p479
      %s482 = sadd.s32 %s481, 1
      %p485 = scmp.eq.s32.totalorder %s31, 1
      %p486 = scmp.ne.s32.totalorder %s481, %s483
      %p487 = scmp.eq.s32.totalorder %s31, 0
      %p488 = por %p486, %p487
      %p489 = scmp.ne.s32.totalorder %s481, %s483
      %p490 = scmp.eq.s32.totalorder %s36, 1
      %p491 = por %p489, %p490
      %p492 = scmp.ne.s32.totalorder %s483, %s484
      %p493 = scmp.eq.s32.totalorder %s36, 0
      %p494 = por %p492, %p493
      %p495 = scmp.ne.s32.totalorder %s483, %s484
      %p496 = scmp.eq.s32.totalorder %s37, 1
      %p497 = por %p495, %p496
      %p499 = scmp.ne.s32.totalorder %s484, %s498
      %p500 = scmp.eq.s32.totalorder %s37, 0
      %p501 = por %p499, %p500
      %s503 = sadd.s32 %s502, 1
      %p506 = scmp.eq.s32.totalorder %s31, 1
      %p507 = scmp.ne.s32.totalorder %s502, %s504
      %p508 = scmp.eq.s32.totalorder %s31, 0
      %p509 = por %p507, %p508
      %p510 = scmp.ne.s32.totalorder %s502, %s504
      %p511 = scmp.eq.s32.totalorder %s36, 1
      %p512 = por %p510, %p511
      %p513 = scmp.ne.s32.totalorder %s504, %s505
      %p514 = scmp.eq.s32.totalorder %s36, 0
      %p515 = por %p513, %p514
      %p516 = scmp.ne.s32.totalorder %s504, %s505
      %p517 = scmp.eq.s32.totalorder %s37, 1
      %p518 = por %p516, %p517
      %p520 = scmp.ne.s32.totalorder %s505, %s519
      %p521 = scmp.eq.s32.totalorder %s37, 0
      %p522 = por %p520, %p521
      %s523 = ssub.s32 %s38, %s50
      %s524 = ssub.s32 %s39, %s46
      %s525 = sor.u32 %s523, %s524
      %p526 = scmp.eq.s32.totalorder %s525, 0
      %s528 = sadd.s32 %s527, 1
      %s529 = scalar_select %p526, %s527, %s528
      %p532 = pneg %p526
      %p533 = scmp.eq.s32.totalorder %s31, 1
      %p534 = por %p532, %p533
      %p535 = scmp.ne.s32.totalorder %s527, %s530
      %p536 = scmp.eq.s32.totalorder %s31, 0
      %p537 = por %p535, %p536
      %p538 = scmp.ne.s32.totalorder %s527, %s530
      %p539 = scmp.eq.s32.totalorder %s36, 1
      %p540 = por %p538, %p539
      %p541 = scmp.ne.s32.totalorder %s530, %s531
      %p542 = scmp.eq.s32.totalorder %s36, 0
      %p543 = por %p541, %p542
      %p544 = scmp.ne.s32.totalorder %s530, %s531
      %p545 = scmp.eq.s32.totalorder %s37, 1
      %p546 = por %p544, %p545
      %p548 = scmp.ne.s32.totalorder %s531, %s547
      %p549 = scmp.eq.s32.totalorder %s37, 0
      %p550 = por %p548, %p549
      %p551 = scmp.le.s32.totalorder 1, %s31
      %p552 = scmp.lt.s32.totalorder %s31, 3
      %p553 = pnand %p551, %p552
      %p554 = pneg %p553
      // Predicated region
      $region9: #{forward.9} parent=5 // pred_check
        _
      $region10: #{forward.9} parent=5 // pred_check_branch
        %556 = sbr.rel (%p553) target = $region12
      $region11: #{forward.9} parent=5 // pred_region
        %s557 = ssub.s32 %s31, 1
        // Predicated region
        $region13: #{forward.9} parent=11 // pred_check
          %p558 = pneg %p69
        $region14: #{forward.9} parent=11 // pred_check_branch
          %560 = sbr.rel (%p558) target = $region16
        $region15: #{forward.9} parent=11 // pred_region
          %s561 = smul.u32 4, %s41
          %p562 = scmp.lt.s32.totalorder %s561, 3
          %s563 = scalar_select %p562, %s561, 3
          %s564 = smul.addr %s563, 4
          %s565 = scalar_lea.vmem %s0, %s564
          %s566 = smul.u32 4, %s41
        $region16: #{forward.9} parent=11 // pred_fallthru
          _
        // Predicated region
        $region17: #{forward.9} parent=11 // pred_check
          %p567 = pneg %p90
        $region18: #{forward.9} parent=11 // pred_check_branch
          %569 = sbr.rel (%p567) target = $region20
        $region19: #{forward.9} parent=11 // pred_region
          _
        $region20: #{forward.9} parent=11 // pred_fallthru
          _
        // Predicated region
        $region21: #{forward.9} parent=11 // pred_check
          %p570 = pneg %p111
        $region22: #{forward.9} parent=11 // pred_check_branch
          %572 = sbr.rel (%p570) target = $region24
        $region23: #{forward.9} parent=11 // pred_region
          _
        $region24: #{forward.9} parent=11 // pred_fallthru
          _
        // Predicated region
        $region25: #{forward.9} parent=11 // pred_check
          %p573 = pneg %p132
        $region26: #{forward.9} parent=11 // pred_check_branch
          %575 = sbr.rel (%p573) target = $region28
        $region27: #{forward.9} parent=11 // pred_region
          _
        $region28: #{forward.9} parent=11 // pred_fallthru
          _
        // Predicated region
        $region29: #{forward.9} parent=11 // pred_check
          %p576 = pneg %p153
        $region30: #{forward.9} parent=11 // pred_check_branch
          %578 = sbr.rel (%p576) target = $region32
        $region31: #{forward.9} parent=11 // pred_region
          _
        $region32: #{forward.9} parent=11 // pred_fallthru
          _
        // Predicated region
        $region33: #{forward.9} parent=11 // pred_check
          %p579 = pneg %p200
        $region34: #{forward.9} parent=11 // pred_check_branch
          %581 = sbr.rel (%p579) target = $region36
        $region35: #{forward.9} parent=11 // pred_region
          _
        $region36: #{forward.9} parent=11 // pred_fallthru
          _
        // Predicated region
        $region37: #{forward.9} parent=11 // pred_check
          %p582 = pneg %p221
        $region38: #{forward.9} parent=11 // pred_check_branch
          %584 = sbr.rel (%p582) target = $region40
        $region39: #{forward.9} parent=11 // pred_region
          _
        $region40: #{forward.9} parent=11 // pred_fallthru
          _
        // Predicated region
        $region41: #{forward.9} parent=11 // pred_check
          %p585 = pneg %p242
        $region42: #{forward.9} parent=11 // pred_check_branch
          %587 = sbr.rel (%p585) target = $region44
        $region43: #{forward.9} parent=11 // pred_region
          _
        $region44: #{forward.9} parent=11 // pred_fallthru
          _
        // Predicated region
        $region45: #{forward.9} parent=11 // pred_check
          %p588 = pneg %p263
        $region46: #{forward.9} parent=11 // pred_check_branch
          %590 = sbr.rel (%p588) target = $region48
        $region47: #{forward.9} parent=11 // pred_region
          _
        $region48: #{forward.9} parent=11 // pred_fallthru
          _
        // Predicated region
        $region49: #{forward.9} parent=11 // pred_check
          %p591 = pneg %p284
        $region50: #{forward.9} parent=11 // pred_check_branch
          %593 = sbr.rel (%p591) target = $region52
        $region51: #{forward.9} parent=11 // pred_region
          _
        $region52: #{forward.9} parent=11 // pred_fallthru
          _
        // Predicated region
        $region53: #{forward.9} parent=11 // pred_check
          %p594 = pneg %p305
        $region54: #{forward.9} parent=11 // pred_check_branch
          %596 = sbr.rel (%p594) target = $region56
        $region55: #{forward.9} parent=11 // pred_region
          _
        $region56: #{forward.9} parent=11 // pred_fallthru
          _
        // Predicated region
        $region57: #{forward.9} parent=11 // pred_check
          %p597 = pneg %p326
        $region58: #{forward.9} parent=11 // pred_check_branch
          %599 = sbr.rel (%p597) target = $region60
        $region59: #{forward.9} parent=11 // pred_region
          _
        $region60: #{forward.9} parent=11 // pred_fallthru
          _
        // Predicated region
        $region61: #{forward.9} parent=11 // pred_check
          %p600 = pneg %p347
        $region62: #{forward.9} parent=11 // pred_check_branch
          %602 = sbr.rel (%p600) target = $region64
        $region63: #{forward.9} parent=11 // pred_region
          %604 = vsyncadd [#allocation3], 0
          %s606 = sshll.u32 %s13, 4
          %s607 = int_to_ptr.hbm [resolvable:$true] %s606
          %s608 = sshll.u32 [#allocation2], 4
          %s609 = int_to_ptr.vmem [resolvable:$true] %s608
          %611 = dma.hbm_to_vmem [thread:$0]  %s607, 16, %s609, [#allocation3]
        $region64: #{forward.9} parent=11 // pred_fallthru
          _
        // Predicated region
        $region65: #{forward.9} parent=11 // pred_check
          %p612 = pneg %p368
        $region66: #{forward.9} parent=11 // pred_check_branch
          %614 = sbr.rel (%p612) target = $region68
        $region67: #{forward.9} parent=11 // pred_region
          %616 = vsyncadd [#allocation5], 0
          %s618 = sshll.u32 %s14, 4
          %s619 = int_to_ptr.hbm [resolvable:$true] %s618
          %s620 = sshll.u32 [#allocation4], 4
          %s621 = int_to_ptr.vmem [resolvable:$true] %s620
          %623 = dma.hbm_to_vmem [thread:$0]  %s619, 16, %s621, [#allocation5]
        $region68: #{forward.9} parent=11 // pred_fallthru
          _
        // Predicated region
        $region69: #{forward.9} parent=11 // pred_check
          %p624 = pneg %p389
        $region70: #{forward.9} parent=11 // pred_check_branch
          %626 = sbr.rel (%p624) target = $region72
        $region71: #{forward.9} parent=11 // pred_region
          %628 = vsyncadd [#allocation5], 0
          %s630 = sshll.u32 %s15, 4
          %s631 = int_to_ptr.hbm [resolvable:$true] %s630
          %s632 = sshll.u32 [#allocation6], 4
          %s633 = int_to_ptr.vmem [resolvable:$true] %s632
          %635 = dma.hbm_to_vmem [thread:$0]  %s631, 16, %s633, [#allocation5]
        $region72: #{forward.9} parent=11 // pred_fallthru
          _
        // Predicated region
        $region73: #{forward.9} parent=11 // pred_check
          %p636 = pneg %p410
        $region74: #{forward.9} parent=11 // pred_check_branch
          %638 = sbr.rel (%p636) target = $region76
        $region75: #{forward.9} parent=11 // pred_region
          _
        $region76: #{forward.9} parent=11 // pred_fallthru
          _
        // Predicated region
        $region77: #{forward.9} parent=11 // pred_check
          %p639 = pneg %p431
        $region78: #{forward.9} parent=11 // pred_check_branch
          %641 = sbr.rel (%p639) target = $region80
        $region79: #{forward.9} parent=11 // pred_region
          %643 = vsyncadd [#allocation8], 0
          %s645 = sshll.u32 %s17, 4
          %s646 = int_to_ptr.hbm [resolvable:$true] %s645
          %s647 = sshll.u32 [#allocation7], 4
          %s648 = int_to_ptr.vmem [resolvable:$true] %s647
          %650 = dma.hbm_to_vmem [thread:$0]  %s646, 16, %s648, [#allocation8]
        $region80: #{forward.9} parent=11 // pred_fallthru
          _
        // Predicated region
        $region81: #{forward.9} parent=11 // pred_check
          %p651 = pneg %p452
        $region82: #{forward.9} parent=11 // pred_check_branch
          %653 = sbr.rel (%p651) target = $region84
        $region83: #{forward.9} parent=11 // pred_region
          _
        $region84: #{forward.9} parent=11 // pred_fallthru
          _
        // Predicated region
        $region85: #{forward.9} parent=11 // pred_check
          %p654 = pneg %p473
        $region86: #{forward.9} parent=11 // pred_check_branch
          %656 = sbr.rel (%p654) target = $region88
        $region87: #{forward.9} parent=11 // pred_region
          %658 = vsyncadd [#allocation8], 0
          %s660 = sshll.u32 %s19, 4
          %s661 = int_to_ptr.hbm [resolvable:$true] %s660
          %s662 = sshll.u32 [#allocation9], 4
          %s663 = int_to_ptr.vmem [resolvable:$true] %s662
          %665 = dma.hbm_to_vmem [thread:$0]  %s661, 16, %s663, [#allocation8]
        $region88: #{forward.9} parent=11 // pred_fallthru
          _
        // Predicated region
        $region89: #{forward.9} parent=11 // pred_check
          %p666 = pneg %p494
        $region90: #{forward.9} parent=11 // pred_check_branch
          %668 = sbr.rel (%p666) target = $region92
        $region91: #{forward.9} parent=11 // pred_region
          _
        $region92: #{forward.9} parent=11 // pred_fallthru
          _
        // Predicated region
        $region93: #{forward.9} parent=11 // pred_check
          %p669 = pneg %p515
        $region94: #{forward.9} parent=11 // pred_check_branch
          %671 = sbr.rel (%p669) target = $region96
        $region95: #{forward.9} parent=11 // pred_region
          _
        $region96: #{forward.9} parent=11 // pred_fallthru
          _
      $region12: #{forward.9} parent=5 // pred_fallthru
        _
      %p672 = scmp.lt.s32.totalorder %s31, 2
      // Predicated region
      $region97: #{forward.9} parent=5 // pred_check
        %p673 = pneg %p672
      $region98: #{forward.9} parent=5 // pred_check_branch
        %675 = sbr.rel (%p673) target = $region100
      $region99: #{forward.9} parent=5 // pred_region
        // Predicated region
        $region101: #{forward.9} parent=99 // pred_check
          %p676 = pneg %p173
        $region102: #{forward.9} parent=99 // pred_check_branch
          %678 = sbr.rel (%p676) target = $region104
        $region103: #{forward.9} parent=99 // pred_region
          %p679 = scmp.lt.s32.totalorder %s38, 1
          %s680 = scalar_select %p679, %s38, 1
          %s681 = smul.addr %s680, 4
          %s682 = scalar_lea.vmem %s5, %s681
        $region104: #{forward.9} parent=99 // pred_fallthru
          _
      $region100: #{forward.9} parent=5 // pred_fallthru
        _
      %p683 = scmp.le.s32.totalorder 1, %s31
      %p684 = scmp.lt.s32.totalorder %s31, 3
      %p685 = pnand %p683, %p684
      %p686 = pneg %p685
      // Predicated region
      $region105: #{forward.9} parent=5 // pred_check
        _
      $region106: #{forward.9} parent=5 // pred_check_branch
        %688 = sbr.rel (%p685) target = $region108
      $region107: #{forward.9} parent=5 // pred_region
        %s689 = ssub.s32 %s31, 1
        // Predicated region
        $region109: #{forward.9} parent=107 // pred_check
          %p690 = pneg %p347
        $region110: #{forward.9} parent=107 // pred_check_branch
          %692 = sbr.rel (%p690) target = $region112
        $region111: #{forward.9} parent=107 // pred_region
          %694 = dma.done [#allocation3], 16
        $region112: #{forward.9} parent=107 // pred_fallthru
          _
        // Predicated region
        $region113: #{forward.9} parent=107 // pred_check
          %p695 = pneg %p368
        $region114: #{forward.9} parent=107 // pred_check_branch
          %697 = sbr.rel (%p695) target = $region116
        $region115: #{forward.9} parent=107 // pred_region
          %699 = dma.done [#allocation5], 16
        $region116: #{forward.9} parent=107 // pred_fallthru
          _
        // Predicated region
        $region117: #{forward.9} parent=107 // pred_check
          %p700 = pneg %p389
        $region118: #{forward.9} parent=107 // pred_check_branch
          %702 = sbr.rel (%p700) target = $region120
        $region119: #{forward.9} parent=107 // pred_region
          %704 = dma.done [#allocation5], 16
        $region120: #{forward.9} parent=107 // pred_fallthru
          _
        // Predicated region
        $region121: #{forward.9} parent=107 // pred_check
          %p705 = pneg %p431
        $region122: #{forward.9} parent=107 // pred_check_branch
          %707 = sbr.rel (%p705) target = $region124
        $region123: #{forward.9} parent=107 // pred_region
          %709 = dma.done [#allocation8], 16
        $region124: #{forward.9} parent=107 // pred_fallthru
          _
        // Predicated region
        $region125: #{forward.9} parent=107 // pred_check
          %p710 = pneg %p473
        $region126: #{forward.9} parent=107 // pred_check_branch
          %712 = sbr.rel (%p710) target = $region128
        $region127: #{forward.9} parent=107 // pred_region
          %714 = dma.done [#allocation8], 16
        $region128: #{forward.9} parent=107 // pred_fallthru
          _
        %s715 = smul.u32 4, %s41
        %p716 = scmp.lt.s32.totalorder %s715, 3
        %s717 = scalar_select %p716, %s715, 3
        %s718 = smul.addr %s717, 4
        %s719 = scalar_lea.vmem %s0, %s718
        %p720 = pneg %p69
        %p721 = pneg %p66
        %p722 = pneg %p90
        %p723 = pneg %p87
        %p724 = pneg %p111
        %p725 = pneg %p108
        %p726 = pneg %p132
        %p727 = pneg %p129
        %p728 = pneg %p153
        %p729 = pneg %p150
        %p730 = scmp.lt.s32.totalorder %s40, 1
        %s731 = scalar_select %p730, %s40, 1
        %s732 = smul.addr %s731, 4
        %s733 = scalar_lea.vmem %s5, %s732
        %p734 = pneg %p179
        %p735 = pneg %p176
        %p736 = pneg %p200
        %p737 = pneg %p197
        %p738 = pneg %p221
        %p739 = pneg %p218
        %p740 = pneg %p242
        %p741 = pneg %p239
        %p742 = pneg %p263
        %p743 = pneg %p260
        %p744 = pneg %p284
        %p745 = pneg %p281
        %p746 = pneg %p305
        %p747 = pneg %p302
        %p748 = pneg %p326
        %p749 = pneg %p323
        %p750 = pneg %p347
        %p751 = pneg %p344
        %p752 = pneg %p368
        %p753 = pneg %p365
        %p754 = pneg %p389
        %p755 = pneg %p386
        %p756 = pneg %p410
        %p757 = pneg %p407
        %p758 = pneg %p431
        %p759 = pneg %p428
        %p760 = pneg %p452
        %p761 = pneg %p449
        %p762 = pneg %p473
        %p763 = pneg %p470
        %p764 = pneg %p494
        %p765 = pneg %p491
        %p766 = pneg %p515
        %p767 = pneg %p512
        %p768 = pneg %p543
        %p769 = pneg %p540
        %s770 = smul.u32 4, %s41
        %p771 = scmp.lt.s32.totalorder %s40, 1
        %s772 = scalar_select %p771, %s40, 1
        %p773 = scmp.lt.s32.totalorder %s770, 3
        %s774 = scalar_select %p773, %s770, 3
        %s775 = smul.addr %s772, 4
        %s776 = sadd.s32 %s774, %s775
        %s777 = smul.addr %s776, 8
        %s778 = scalar_lea.vmem %s22, %s777
        %s779 = smul.u32 4, %s41
        %p780 = scmp.lt.s32.totalorder %s779, 3
        %s781 = scalar_select %p780, %s779, 3
        %s782 = smul.addr %s781, 4
        %s783 = scalar_lea.vmem %s0, %s782
        %s784 = smul.u32 4, %s41
        %p785 = scmp.lt.s32.totalorder %s40, 1
        %s786 = scalar_select %p785, %s40, 1
        %s787 = smul.addr %s786, 4
        %s788 = scalar_lea.vmem %s5, %s787
        %s789 = smul.u32 4, %s41
        %p790 = scmp.lt.s32.totalorder %s40, 1
        %s791 = scalar_select %p790, %s40, 1
        %p792 = scmp.lt.s32.totalorder %s789, 3
        %s793 = scalar_select %p792, %s789, 3
        %s794 = smul.addr %s791, 4
        %s795 = sadd.s32 %s793, %s794
        %s796 = smul.addr %s795, 8
        %s797 = scalar_lea.vmem %s22, %s796
        %s798 = smul.u32 4, %s41
        %v800 = vld [vmem:[%s783] sm:$0xf]
        %v801 = vld [vmem:[%s783 + $0x4] sm:$0xf]
        %v802 = vld [vmem:[%s783 + $0x8] sm:$0xf]
        %v803 = vld [vmem:[%s783 + $0xc] sm:$0xf]
        %v804 = vunpack.c.l.bf16 %v800
        %v805 = vunpack.c.l.bf16 %v801
        %v806 = vunpack.c.l.bf16 %v802
        %v807 = vunpack.c.l.bf16 %v803
        %v808 = vld [vmem:[%s1] sm:$0x1]
        %v809 = vld [vmem:[%s2] sm:$0x1]
        %vm810 = vcmask 261120
        %v811 = vsel %vm810, %v804, 0.0
        %812 = vadd.xlane.f32.xlu0 %v811
        %v813 = vpop.xlane.xlu0 %812
        %v814 = vsel %vm810, %v805, 0.0
        %815 = vadd.xlane.f32.xlu0 %v814
        %v816 = vpop.xlane.xlu0 %815
        %v817 = vsel %vm810, %v806, 0.0
        %818 = vadd.xlane.f32.xlu0 %v817
        %v819 = vpop.xlane.xlu0 %818
        %v820 = vsel %vm810, %v807, 0.0
        %821 = vadd.xlane.f32.xlu0 %v820
        %v822 = vpop.xlane.xlu0 %821
        %v823 = vrcp.pop 32.0
        %v824 = vmul.f32 32.0, %v823
        %v825 = vsub.f32 1.0, %v824
        %v826 = vmul.f32 %v823, %v825
        %v827 = vadd.f32 %v823, %v826
        %vm828 = vweird.f32 %v823
        %v829 = vsel %vm828, %v823, %v827
        %v830 = vmul.f32 %v813, %v829
        %v831 = vmul.f32 %v816, %v829
        %v832 = vmul.f32 %v819, %v829
        %v833 = vmul.f32 %v822, %v829
        %v834 = vsub.f32 %v804, %v830
        %v835 = vsub.f32 %v805, %v831
        %v836 = vsub.f32 %v806, %v832
        %v837 = vsub.f32 %v807, %v833
        %v838 = vmul.f32 %v834, %v834
        %v839 = vmul.f32 %v835, %v835
        %v840 = vmul.f32 %v836, %v836
        %v841 = vmul.f32 %v837, %v837
        %v842 = vsel %vm810, %v838, 0.0
        %843 = vadd.xlane.f32.xlu0 %v842
        %v844 = vpop.xlane.xlu0 %843
        %v845 = vsel %vm810, %v839, 0.0
        %846 = vadd.xlane.f32.xlu0 %v845
        %v847 = vpop.xlane.xlu0 %846
        %v848 = vsel %vm810, %v840, 0.0
        %849 = vadd.xlane.f32.xlu0 %v848
        %v850 = vpop.xlane.xlu0 %849
        %v851 = vsel %vm810, %v841, 0.0
        %852 = vadd.xlane.f32.xlu0 %v851
        %v853 = vpop.xlane.xlu0 %852
        %v854 = vmul.f32 %v844, %v829
        %v855 = vmul.f32 %v847, %v829
        %v856 = vmul.f32 %v850, %v829
        %v857 = vmul.f32 %v853, %v829
        %v858 = vadd.f32 %v854, 1e-05
        %v859 = vadd.f32 %v855, 1e-05
        %v860 = vadd.f32 %v856, 1e-05
        %v861 = vadd.f32 %v857, 1e-05
        %v862 = vrsqrt.pop %v858
        %v863 = vmul.f32 %v862, %v858
        %v864 = vmul.f32 %v863, %v862
        %v865 = vmul.f32 0.5, %v864
        %v866 = vsub.f32 1.5, %v865
        %v867 = vmul.f32 %v862, %v866
        %vm868 = vweird.f32 %v858
        %vm869 = vweird.f32 %v862
        %vm870 = vmor %vm868, %vm869
        %v871 = vsel %vm870, %v862, %v867
        %v872 = vrsqrt.pop %v859
        %v873 = vmul.f32 %v872, %v859
        %v874 = vmul.f32 %v873, %v872
        %v875 = vmul.f32 0.5, %v874
        %v876 = vsub.f32 1.5, %v875
        %v877 = vmul.f32 %v872, %v876
        %vm878 = vweird.f32 %v859
        %vm879 = vweird.f32 %v872
        %vm880 = vmor %vm878, %vm879
        %v881 = vsel %vm880, %v872, %v877
        %v882 = vrsqrt.pop %v860
        %v883 = vmul.f32 %v882, %v860
        %v884 = vmul.f32 %v883, %v882
        %v885 = vmul.f32 0.5, %v884
        %v886 = vsub.f32 1.5, %v885
        %v887 = vmul.f32 %v882, %v886
        %vm888 = vweird.f32 %v860
        %vm889 = vweird.f32 %v882
        %vm890 = vmor %vm888, %vm889
        %v891 = vsel %vm890, %v882, %v887
        %v892 = vrsqrt.pop %v861
        %v893 = vmul.f32 %v892, %v861
        %v894 = vmul.f32 %v893, %v892
        %v895 = vmul.f32 0.5, %v894
        %v896 = vsub.f32 1.5, %v895
        %v897 = vmul.f32 %v892, %v896
        %vm898 = vweird.f32 %v861
        %vm899 = vweird.f32 %v892
        %vm900 = vmor %vm898, %vm899
        %v901 = vsel %vm900, %v892, %v897
        %v902 = vmul.f32 %v834, %v871
        %v903 = vmul.f32 %v835, %v881
        %v904 = vmul.f32 %v836, %v891
        %v905 = vmul.f32 %v837, %v901
        %v907 = vperm.slane %v808, 0
        %v909 = vmul.f32 %v902, %v907
        %v910 = vmul.f32 %v903, %v907
        %v911 = vmul.f32 %v904, %v907
        %v912 = vmul.f32 %v905, %v907
        %v914 = vperm.slane %v809, 0
        %v916 = vadd.f32 %v909, %v914
        %v917 = vadd.f32 %v910, %v914
        %v918 = vadd.f32 %v911, %v914
        %v919 = vadd.f32 %v912, %v914
        %v920 = vld [vmem:[%s3] sm:$0xf]
        %v921 = vld [vmem:[%s3 + $0x4] sm:$0xf]
        %v922 = vld [vmem:[%s3 + $0x8] sm:$0xf]
        %v923 = vld [vmem:[%s3 + $0xc] sm:$0xf]
        %v924 = vpack.c.bf16 %v917, %v916
        %v925 = vpack.c.bf16 %v919, %v918
        %v926 = vld [vmem:[%s4] sm:$0x1]
        %v928 = vperm.slane %v926, 0
        %v934 = vunpack.c.l.b16 %v920
        %v935 = vunpack.c.l.b16 %v921
        %v936 = vunpack.c.l.b16 %v922
        %v937 = vunpack.c.l.b16 %v923
        %v938 = vpack.c.b16 %v935, %v934
        %v939 = vpack.c.b16 %v937, %v936
        %v943 = vsel %vm810, %v924, 0
        %v946 = vsel %vm810, %v925, 0
        %948 = vmatpush.bf16.msra.mxu0 0
        %949 = vmatpush.bf16.msra.mxu0 0
        %950 = vmatpush.bf16.msra.mxu0 0
        %951 = vmatpush.bf16.msra.mxu0 0
        %952 = vmatpush.bf16.msra.mxu0 0
        %953 = vmatpush.bf16.msra.mxu0 0
        %954 = vmatpush.bf16.msra.mxu0 %v939
        %955 = vmatpush.bf16.msra.mxu0 %v938
        %956 = vmatmul.bf16.gmra.mxu0 %v943
        %v957 = vpop.f32.mrf.mxu0
        %v958 = vadd.f32 %v928, %v957
        %v959 = vpop.f32.mrf.mxu0
        %v960 = vadd.f32 %v928, %v959
        %961 = vmatmul.bf16.gmra.mxu0 %v946
        %v962 = vpop.f32.mrf.mxu0
        %v963 = vadd.f32 %v928, %v962
        %v964 = vpop.f32.mrf.mxu0
        %v965 = vadd.f32 %v928, %v964
        %966 = vdwg.mxu0
        %v967 = vld [vmem:[%s788] sm:$0xf]
        %v968 = vunpack.c.l.bf16 %v967
        %v969 = vld [vmem:[%s6] sm:$0x1]
        %v970 = vld [vmem:[%s7] sm:$0x1]
        %vm971 = vcmask 260096
        %v972 = vsel %vm971, %v968, 0.0
        %973 = vadd.xlane.f32.xlu0 %v972
        %v974 = vpop.xlane.xlu0 %973
        %v975 = vmul.f32 %v974, %v829
        %v976 = vsub.f32 %v968, %v975
        %v977 = vmul.f32 %v976, %v976
        %v978 = vsel %vm971, %v977, 0.0
        %979 = vadd.xlane.f32.xlu0 %v978
        %v980 = vpop.xlane.xlu0 %979
        %v981 = vmul.f32 %v980, %v829
        %v982 = vadd.f32 %v981, 1e-05
        %v983 = vrsqrt.pop %v982
        %v984 = vmul.f32 %v983, %v982
        %v985 = vmul.f32 %v984, %v983
        %v986 = vmul.f32 0.5, %v985
        %v987 = vsub.f32 1.5, %v986
        %v988 = vmul.f32 %v983, %v987
        %vm989 = vweird.f32 %v982
        %vm990 = vweird.f32 %v983
        %vm991 = vmor %vm989, %vm990
        %v992 = vsel %vm991, %v983, %v988
        %v993 = vmul.f32 %v976, %v992
        %v995 = vperm.slane %v969, 0
        %v997 = vmul.f32 %v993, %v995
        %v999 = vperm.slane %v970, 0
        %v1001 = vadd.f32 %v997, %v999
        %v1002 = vld [vmem:[%s8] sm:$0xf]
        %v1003 = vld [vmem:[%s8 + $0x4] sm:$0xf]
        %v1004 = vld [vmem:[%s8 + $0x8] sm:$0xf]
        %v1005 = vld [vmem:[%s8 + $0xc] sm:$0xf]
        %v1006 = vpack.c.bf16 %v1001, %v1001
        %v1007 = vld [vmem:[%s9] sm:$0x1]
        %v1009 = vperm.slane %v1007, 0
        %v1015 = vunpack.c.l.b16 %v1002
        %v1016 = vunpack.c.l.b16 %v1003
        %v1017 = vunpack.c.l.b16 %v1004
        %v1018 = vunpack.c.l.b16 %v1005
        %v1019 = vpack.c.b16 %v1016, %v1015
        %v1020 = vpack.c.b16 %v1018, %v1017
        %v1024 = vsel %vm810, %v1006, 0
        %1026 = vmatpush.bf16.msra.mxu0 0
        %1027 = vmatpush.bf16.msra.mxu0 0
        %1028 = vmatpush.bf16.msra.mxu0 0
        %1029 = vmatpush.bf16.msra.mxu0 0
        %1030 = vmatpush.bf16.msra.mxu0 0
        %1031 = vmatpush.bf16.msra.mxu0 0
        %1032 = vmatpush.bf16.msra.mxu0 %v1020
        %1033 = vmatpush.bf16.msra.mxu0 %v1019
        %1034 = vmatmul.bf16.gmra.mxu0 %v1024
        %v1035 = vpop.f32.mrf.mxu0
        %v1036 = vadd.f32 %v1009, %v1035
        %v1037 = vpop.f32.mrf.mxu0
        %1038 = vdwg.mxu0
        %v1039 = vld [vmem:[%s10] sm:$0xf]
        %v1040 = vld [vmem:[%s10 + $0x4] sm:$0xf]
        %v1041 = vld [vmem:[%s10 + $0x8] sm:$0xf]
        %v1042 = vld [vmem:[%s10 + $0xc] sm:$0xf]
        %v1043 = vld [vmem:[%s11] sm:$0x1]
        %v1045 = vperm.slane %v1043, 0
        %v1051 = vunpack.c.l.b16 %v1039
        %v1052 = vunpack.c.l.b16 %v1040
        %v1053 = vunpack.c.l.b16 %v1041
        %v1054 = vunpack.c.l.b16 %v1042
        %v1055 = vpack.c.b16 %v1052, %v1051
        %v1056 = vpack.c.b16 %v1054, %v1053
        %1059 = vmatpush.bf16.msra.mxu0 0
        %1060 = vmatpush.bf16.msra.mxu0 0
        %1061 = vmatpush.bf16.msra.mxu0 0
        %1062 = vmatpush.bf16.msra.mxu0 0
        %1063 = vmatpush.bf16.msra.mxu0 0
        %1064 = vmatpush.bf16.msra.mxu0 0
        %1065 = vmatpush.bf16.msra.mxu0 %v1056
        %1066 = vmatpush.bf16.msra.mxu0 %v1055
        %1067 = vmatmul.bf16.gmra.mxu0 %v1024
        %v1068 = vpop.f32.mrf.mxu0
        %v1069 = vadd.f32 %v1045, %v1068
        %v1070 = vpop.f32.mrf.mxu0
        %1071 = vdwg.mxu0
        %v1072 = vlaneseq
        %v1073 = vand.u32 %v1072, 127
        %vm1074 = vcmp.ge.s32.totalorder %v1073, 0
        %vm1075 = vcmp.lt.s32.totalorder %v1073, 8
        %vm1076 = vmand %vm1074, %vm1075
        %v1077 = vsel %vm1076, 1, 0
        %v1078 = vcvt.s32.f32 %v1077
        %vm1079 = vcmp.ge.s32.totalorder %v1073, 8
        %vm1080 = vcmp.lt.s32.totalorder %v1073, 16
        %vm1081 = vmand %vm1079, %vm1080
        %v1082 = vsel %vm1081, 1, 0
        %v1083 = vcvt.s32.f32 %v1082
        %vm1084 = vcmp.ge.s32.totalorder %v1073, 16
        %vm1085 = vcmp.lt.s32.totalorder %v1073, 24
        %vm1086 = vmand %vm1084, %vm1085
        %v1087 = vsel %vm1086, 1, 0
        %v1088 = vcvt.s32.f32 %v1087
        %vm1089 = vcmp.ge.s32.totalorder %v1073, 24
        %vm1090 = vcmp.lt.s32.totalorder %v1073, 32
        %vm1091 = vmand %vm1089, %vm1090
        %v1092 = vsel %vm1091, 1, 0
        %v1093 = vcvt.s32.f32 %v1092
        %v1094 = vpack.c.bf16 %v1036, %v1036
        %v1095 = vpack.c.bf16 %v1069, %v1069
        %v1096 = vmul.f32 %v958, %v1078
        %v1097 = vmul.f32 %v960, %v1078
        %v1098 = vmul.f32 %v963, %v1078
        %v1099 = vmul.f32 %v965, %v1078
        %v1100 = vpack.c.bf16 %v1097, %v1096
        %v1101 = vpack.c.bf16 %v1099, %v1098
        %v1103 = vsel %vm810, %v1100, 0
        %v1106 = vsel %vm810, %v1101, 0
        %v1109 = vsel %vm810, %v1094, 0
        %1111 = vmatpush.bf16.xpose.msra.mxu0 0
        %1112 = vmatpush.bf16.xpose.msra.mxu0 0
        %1113 = vmatpush.bf16.xpose.msra.mxu0 0
        %1114 = vmatpush.bf16.xpose.msra.mxu0 0
        %1115 = vmatpush.bf16.xpose.msra.mxu0 0
        %1116 = vmatpush.bf16.xpose.msra.mxu0 0
        %1117 = vmatpush.bf16.xpose.msra.mxu0 0
        %1118 = vmatpush.bf16.xpose.msra.mxu0 %v1109
        %1119 = vmatmul.bf16.gmra.mxu0 %v1103
        %v1120 = vpop.f32.mrf.mxu0
        %v1121 = vadd.f32 0.0, %v1120
        %v1122 = vpop.f32.mrf.mxu0
        %v1123 = vadd.f32 0.0, %v1122
        %1124 = vmatmul.bf16.gmra.mxu0 %v1106
        %v1125 = vpop.f32.mrf.mxu0
        %v1126 = vadd.f32 0.0, %v1125
        %v1127 = vpop.f32.mrf.mxu0
        %v1128 = vadd.f32 0.0, %v1127
        %1129 = vdwg.mxu0
        %v1130 = vmul.f32 %v1121, 0.35355338
        %v1131 = vmul.f32 %v1123, 0.35355338
        %v1132 = vmul.f32 %v1126, 0.35355338
        %v1133 = vmul.f32 %v1128, 0.35355338
        %vm1134 = vcmask 56320
        %v1135 = vsel %vm1134, %v1130, -inf
        %1136 = vmax.xlane.f32.xlu0 %v1135
        %v1137 = vpop.xlane.xlu0 %1136
        %v1138 = vsel %vm1134, %v1131, -inf
        %1139 = vmax.xlane.f32.xlu0 %v1138
        %v1140 = vpop.xlane.xlu0 %1139
        %v1141 = vsel %vm1134, %v1132, -inf
        %1142 = vmax.xlane.f32.xlu0 %v1141
        %v1143 = vpop.xlane.xlu0 %1142
        %v1144 = vsel %vm1134, %v1133, -inf
        %1145 = vmax.xlane.f32.xlu0 %v1144
        %v1146 = vpop.xlane.xlu0 %1145
        %v1147 = vsub.f32 %v1130, %v1137
        %v1148 = vsub.f32 %v1131, %v1140
        %v1149 = vsub.f32 %v1132, %v1143
        %v1150 = vsub.f32 %v1133, %v1146
        %v1151 = vmul.f32 %v1147, 1.442695
        %v1152 = vpow.pop %v1151
        %v1153 = vmul.f32 %v1148, 1.442695
        %v1154 = vpow.pop %v1153
        %v1155 = vmul.f32 %v1149, 1.442695
        %v1156 = vpow.pop %v1155
        %v1157 = vmul.f32 %v1150, 1.442695
        %v1158 = vpow.pop %v1157
        %v1159 = vsel %vm1134, %v1152, 0.0
        %1160 = vadd.xlane.f32.xlu0 %v1159
        %v1161 = vpop.xlane.xlu0 %1160
        %v1162 = vsel %vm1134, %v1154, 0.0
        %1163 = vadd.xlane.f32.xlu0 %v1162
        %v1164 = vpop.xlane.xlu0 %1163
        %v1165 = vsel %vm1134, %v1156, 0.0
        %1166 = vadd.xlane.f32.xlu0 %v1165
        %v1167 = vpop.xlane.xlu0 %1166
        %v1168 = vsel %vm1134, %v1158, 0.0
        %1169 = vadd.xlane.f32.xlu0 %v1168
        %v1170 = vpop.xlane.xlu0 %1169
        %v1171 = vrcp.pop %v1161
        %v1172 = vrcp.pop %v1164
        %v1173 = vrcp.pop %v1167
        %v1174 = vrcp.pop %v1170
        %v1175 = vmul.f32 %v1152, %v1171
        %v1176 = vmul.f32 %v1154, %v1172
        %v1177 = vmul.f32 %v1156, %v1173
        %v1178 = vmul.f32 %v1158, %v1174
        %v1179 = vpack.c.bf16 %v1176, %v1175
        %v1180 = vpack.c.bf16 %v1178, %v1177
        %v1182 = vsel %vm1134, %v1179, 0
        %v1185 = vsel %vm1134, %v1180, 0
        %vm1187 = vcmask 1042432
        %vm1188 = vcmask 1043456
        %v1189 = vsel %vm1187, 4294967295, 65535
        %v1190 = vsel %vm1188, %v1189, 0
        %v1192 = vand.u32 %v1095, %v1190
        %1194 = vmatpush.bf16.msra.mxu0 0
        %1195 = vmatpush.bf16.msra.mxu0 0
        %1196 = vmatpush.bf16.msra.mxu0 0
        %1197 = vmatpush.bf16.msra.mxu0 0
        %1198 = vmatpush.bf16.msra.mxu0 0
        %1199 = vmatpush.bf16.msra.mxu0 0
        %1200 = vmatpush.bf16.msra.mxu0 0
        %1201 = vmatpush.bf16.msra.mxu0 %v1192
        %1202 = vmatmul.bf16.gmra.mxu0 %v1182
        %v1203 = vpop.f32.mrf.mxu0
        %v1204 = vadd.f32 0.0, %v1203
        %v1205 = vpop.f32.mrf.mxu0
        %v1206 = vadd.f32 0.0, %v1205
        %1207 = vmatmul.bf16.gmra.mxu0 %v1185
        %v1208 = vpop.f32.mrf.mxu0
        %v1209 = vadd.f32 0.0, %v1208
        %v1210 = vpop.f32.mrf.mxu0
        %v1211 = vadd.f32 0.0, %v1210
        %1212 = vdwg.mxu0
        %v1213 = vmul.f32 %v1204, %v1078
        %v1214 = vmul.f32 %v1206, %v1078
        %v1215 = vmul.f32 %v1209, %v1078
        %v1216 = vmul.f32 %v1211, %v1078
        %v1217 = vadd.f32 %v1213, 0.0
        %v1218 = vadd.f32 %v1214, 0.0
        %v1219 = vadd.f32 %v1215, 0.0
        %v1220 = vadd.f32 %v1216, 0.0
        %v1221 = vmul.f32 %v958, %v1083
        %v1222 = vmul.f32 %v960, %v1083
        %v1223 = vmul.f32 %v963, %v1083
        %v1224 = vmul.f32 %v965, %v1083
        %v1225 = vpack.c.bf16 %v1222, %v1221
        %v1226 = vpack.c.bf16 %v1224, %v1223
        %v1228 = vsel %vm810, %v1225, 0
        %v1231 = vsel %vm810, %v1226, 0
        %1233 = vmatpush.bf16.xpose.msra.mxu0 0
        %1234 = vmatpush.bf16.xpose.msra.mxu0 0
        %1235 = vmatpush.bf16.xpose.msra.mxu0 0
        %1236 = vmatpush.bf16.xpose.msra.mxu0 0
        %1237 = vmatpush.bf16.xpose.msra.mxu0 0
        %1238 = vmatpush.bf16.xpose.msra.mxu0 0
        %1239 = vmatpush.bf16.xpose.msra.mxu0 0
        %1240 = vmatpush.bf16.xpose.msra.mxu0 %v1109
        %1241 = vmatmul.bf16.gmra.mxu0 %v1228
        %v1242 = vpop.f32.mrf.mxu0
        %v1243 = vadd.f32 0.0, %v1242
        %v1244 = vpop.f32.mrf.mxu0
        %v1245 = vadd.f32 0.0, %v1244
        %1246 = vmatmul.bf16.gmra.mxu0 %v1231
        %v1247 = vpop.f32.mrf.mxu0
        %v1248 = vadd.f32 0.0, %v1247
        %v1249 = vpop.f32.mrf.mxu0
        %v1250 = vadd.f32 0.0, %v1249
        %1251 = vdwg.mxu0
        %v1252 = vmul.f32 %v1243, 0.35355338
        %v1253 = vmul.f32 %v1245, 0.35355338
        %v1254 = vmul.f32 %v1248, 0.35355338
        %v1255 = vmul.f32 %v1250, 0.35355338
        %v1256 = vsel %vm1134, %v1252, -inf
        %1257 = vmax.xlane.f32.xlu0 %v1256
        %v1258 = vpop.xlane.xlu0 %1257
        %v1259 = vsel %vm1134, %v1253, -inf
        %1260 = vmax.xlane.f32.xlu0 %v1259
        %v1261 = vpop.xlane.xlu0 %1260
        %v1262 = vsel %vm1134, %v1254, -inf
        %1263 = vmax.xlane.f32.xlu0 %v1262
        %v1264 = vpop.xlane.xlu0 %1263
        %v1265 = vsel %vm1134, %v1255, -inf
        %1266 = vmax.xlane.f32.xlu0 %v1265
        %v1267 = vpop.xlane.xlu0 %1266
        %v1268 = vsub.f32 %v1252, %v1258
        %v1269 = vsub.f32 %v1253, %v1261
        %v1270 = vsub.f32 %v1254, %v1264
        %v1271 = vsub.f32 %v1255, %v1267
        %v1272 = vmul.f32 %v1268, 1.442695
        %v1273 = vpow.pop %v1272
        %v1274 = vmul.f32 %v1269, 1.442695
        %v1275 = vpow.pop %v1274
        %v1276 = vmul.f32 %v1270, 1.442695
        %v1277 = vpow.pop %v1276
        %v1278 = vmul.f32 %v1271, 1.442695
        %v1279 = vpow.pop %v1278
        %v1280 = vsel %vm1134, %v1273, 0.0
        %1281 = vadd.xlane.f32.xlu0 %v1280
        %v1282 = vpop.xlane.xlu0 %1281
        %v1283 = vsel %vm1134, %v1275, 0.0
        %1284 = vadd.xlane.f32.xlu0 %v1283
        %v1285 = vpop.xlane.xlu0 %1284
        %v1286 = vsel %vm1134, %v1277, 0.0
        %1287 = vadd.xlane.f32.xlu0 %v1286
        %v1288 = vpop.xlane.xlu0 %1287
        %v1289 = vsel %vm1134, %v1279, 0.0
        %1290 = vadd.xlane.f32.xlu0 %v1289
        %v1291 = vpop.xlane.xlu0 %1290
        %v1292 = vrcp.pop %v1282
        %v1293 = vrcp.pop %v1285
        %v1294 = vrcp.pop %v1288
        %v1295 = vrcp.pop %v1291
        %v1296 = vmul.f32 %v1273, %v1292
        %v1297 = vmul.f32 %v1275, %v1293
        %v1298 = vmul.f32 %v1277, %v1294
        %v1299 = vmul.f32 %v1279, %v1295
        %v1300 = vpack.c.bf16 %v1297, %v1296
        %v1301 = vpack.c.bf16 %v1299, %v1298
        %v1303 = vsel %vm1134, %v1300, 0
        %v1306 = vsel %vm1134, %v1301, 0
        %1308 = vmatpush.bf16.msra.mxu0 0
        %1309 = vmatpush.bf16.msra.mxu0 0
        %1310 = vmatpush.bf16.msra.mxu0 0
        %1311 = vmatpush.bf16.msra.mxu0 0
        %1312 = vmatpush.bf16.msra.mxu0 0
        %1313 = vmatpush.bf16.msra.mxu0 0
        %1314 = vmatpush.bf16.msra.mxu0 0
        %1315 = vmatpush.bf16.msra.mxu0 %v1192
        %1316 = vmatmul.bf16.gmra.mxu0 %v1303
        %v1317 = vpop.f32.mrf.mxu0
        %v1318 = vadd.f32 0.0, %v1317
        %v1319 = vpop.f32.mrf.mxu0
        %v1320 = vadd.f32 0.0, %v1319
        %1321 = vmatmul.bf16.gmra.mxu0 %v1306
        %v1322 = vpop.f32.mrf.mxu0
        %v1323 = vadd.f32 0.0, %v1322
        %v1324 = vpop.f32.mrf.mxu0
        %v1325 = vadd.f32 0.0, %v1324
        %1326 = vdwg.mxu0
        %v1327 = vmul.f32 %v1318, %v1083
        %v1328 = vmul.f32 %v1320, %v1083
        %v1329 = vmul.f32 %v1323, %v1083
        %v1330 = vmul.f32 %v1325, %v1083
        %v1331 = vadd.f32 %v1217, %v1327
        %v1332 = vadd.f32 %v1218, %v1328
        %v1333 = vadd.f32 %v1219, %v1329
        %v1334 = vadd.f32 %v1220, %v1330
        %v1335 = vmul.f32 %v958, %v1088
        %v1336 = vmul.f32 %v960, %v1088
        %v1337 = vmul.f32 %v963, %v1088
        %v1338 = vmul.f32 %v965, %v1088
        %v1339 = vpack.c.bf16 %v1336, %v1335
        %v1340 = vpack.c.bf16 %v1338, %v1337
        %v1342 = vsel %vm810, %v1339, 0
        %v1345 = vsel %vm810, %v1340, 0
        %1347 = vmatpush.bf16.xpose.msra.mxu0 0
        %1348 = vmatpush.bf16.xpose.msra.mxu0 0
        %1349 = vmatpush.bf16.xpose.msra.mxu0 0
        %1350 = vmatpush.bf16.xpose.msra.mxu0 0
        %1351 = vmatpush.bf16.xpose.msra.mxu0 0
        %1352 = vmatpush.bf16.xpose.msra.mxu0 0
        %1353 = vmatpush.bf16.xpose.msra.mxu0 0
        %1354 = vmatpush.bf16.xpose.msra.mxu0 %v1109
        %1355 = vmatmul.bf16.gmra.mxu0 %v1342
        %v1356 = vpop.f32.mrf.mxu0
        %v1357 = vadd.f32 0.0, %v1356
        %v1358 = vpop.f32.mrf.mxu0
        %v1359 = vadd.f32 0.0, %v1358
        %1360 = vmatmul.bf16.gmra.mxu0 %v1345
        %v1361 = vpop.f32.mrf.mxu0
        %v1362 = vadd.f32 0.0, %v1361
        %v1363 = vpop.f32.mrf.mxu0
        %v1364 = vadd.f32 0.0, %v1363
        %1365 = vdwg.mxu0
        %v1366 = vmul.f32 %v1357, 0.35355338
        %v1367 = vmul.f32 %v1359, 0.35355338
        %v1368 = vmul.f32 %v1362, 0.35355338
        %v1369 = vmul.f32 %v1364, 0.35355338
        %v1370 = vsel %vm1134, %v1366, -inf
        %1371 = vmax.xlane.f32.xlu0 %v1370
        %v1372 = vpop.xlane.xlu0 %1371
        %v1373 = vsel %vm1134, %v1367, -inf
        %1374 = vmax.xlane.f32.xlu0 %v1373
        %v1375 = vpop.xlane.xlu0 %1374
        %v1376 = vsel %vm1134, %v1368, -inf
        %1377 = vmax.xlane.f32.xlu0 %v1376
        %v1378 = vpop.xlane.xlu0 %1377
        %v1379 = vsel %vm1134, %v1369, -inf
        %1380 = vmax.xlane.f32.xlu0 %v1379
        %v1381 = vpop.xlane.xlu0 %1380
        %v1382 = vsub.f32 %v1366, %v1372
        %v1383 = vsub.f32 %v1367, %v1375
        %v1384 = vsub.f32 %v1368, %v1378
        %v1385 = vsub.f32 %v1369, %v1381
        %v1386 = vmul.f32 %v1382, 1.442695
        %v1387 = vpow.pop %v1386
        %v1388 = vmul.f32 %v1383, 1.442695
        %v1389 = vpow.pop %v1388
        %v1390 = vmul.f32 %v1384, 1.442695
        %v1391 = vpow.pop %v1390
        %v1392 = vmul.f32 %v1385, 1.442695
        %v1393 = vpow.pop %v1392
        %v1394 = vsel %vm1134, %v1387, 0.0
        %1395 = vadd.xlane.f32.xlu0 %v1394
        %v1396 = vpop.xlane.xlu0 %1395
        %v1397 = vsel %vm1134, %v1389, 0.0
        %1398 = vadd.xlane.f32.xlu0 %v1397
        %v1399 = vpop.xlane.xlu0 %1398
        %v1400 = vsel %vm1134, %v1391, 0.0
        %1401 = vadd.xlane.f32.xlu0 %v1400
        %v1402 = vpop.xlane.xlu0 %1401
        %v1403 = vsel %vm1134, %v1393, 0.0
        %1404 = vadd.xlane.f32.xlu0 %v1403
        %v1405 = vpop.xlane.xlu0 %1404
        %v1406 = vrcp.pop %v1396
        %v1407 = vrcp.pop %v1399
        %v1408 = vrcp.pop %v1402
        %v1409 = vrcp.pop %v1405
        %v1410 = vmul.f32 %v1387, %v1406
        %v1411 = vmul.f32 %v1389, %v1407
        %v1412 = vmul.f32 %v1391, %v1408
        %v1413 = vmul.f32 %v1393, %v1409
        %v1414 = vpack.c.bf16 %v1411, %v1410
        %v1415 = vpack.c.bf16 %v1413, %v1412
        %v1417 = vsel %vm1134, %v1414, 0
        %v1420 = vsel %vm1134, %v1415, 0
        %1422 = vmatpush.bf16.msra.mxu0 0
        %1423 = vmatpush.bf16.msra.mxu0 0
        %1424 = vmatpush.bf16.msra.mxu0 0
        %1425 = vmatpush.bf16.msra.mxu0 0
        %1426 = vmatpush.bf16.msra.mxu0 0
        %1427 = vmatpush.bf16.msra.mxu0 0
        %1428 = vmatpush.bf16.msra.mxu0 0
        %1429 = vmatpush.bf16.msra.mxu0 %v1192
        %1430 = vmatmul.bf16.gmra.mxu0 %v1417
        %v1431 = vpop.f32.mrf.mxu0
        %v1432 = vadd.f32 0.0, %v1431
        %v1433 = vpop.f32.mrf.mxu0
        %v1434 = vadd.f32 0.0, %v1433
        %1435 = vmatmul.bf16.gmra.mxu0 %v1420
        %v1436 = vpop.f32.mrf.mxu0
        %v1437 = vadd.f32 0.0, %v1436
        %v1438 = vpop.f32.mrf.mxu0
        %v1439 = vadd.f32 0.0, %v1438
        %1440 = vdwg.mxu0
        %v1441 = vmul.f32 %v1432, %v1088
        %v1442 = vmul.f32 %v1434, %v1088
        %v1443 = vmul.f32 %v1437, %v1088
        %v1444 = vmul.f32 %v1439, %v1088
        %v1445 = vadd.f32 %v1331, %v1441
        %v1446 = vadd.f32 %v1332, %v1442
        %v1447 = vadd.f32 %v1333, %v1443
        %v1448 = vadd.f32 %v1334, %v1444
        %v1449 = vmul.f32 %v958, %v1093
        %v1450 = vmul.f32 %v960, %v1093
        %v1451 = vmul.f32 %v963, %v1093
        %v1452 = vmul.f32 %v965, %v1093
        %v1453 = vpack.c.bf16 %v1450, %v1449
        %v1454 = vpack.c.bf16 %v1452, %v1451
        %v1456 = vsel %vm810, %v1453, 0
        %v1459 = vsel %vm810, %v1454, 0
        %1461 = vmatpush.bf16.xpose.msra.mxu0 0
        %1462 = vmatpush.bf16.xpose.msra.mxu0 0
        %1463 = vmatpush.bf16.xpose.msra.mxu0 0
        %1464 = vmatpush.bf16.xpose.msra.mxu0 0
        %1465 = vmatpush.bf16.xpose.msra.mxu0 0
        %1466 = vmatpush.bf16.xpose.msra.mxu0 0
        %1467 = vmatpush.bf16.xpose.msra.mxu0 0
        %1468 = vmatpush.bf16.xpose.msra.mxu0 %v1109
        %1469 = vmatmul.bf16.gmra.mxu0 %v1456
        %v1470 = vpop.f32.mrf.mxu0
        %v1471 = vadd.f32 0.0, %v1470
        %v1472 = vpop.f32.mrf.mxu0
        %v1473 = vadd.f32 0.0, %v1472
        %1474 = vmatmul.bf16.gmra.mxu0 %v1459
        %v1475 = vpop.f32.mrf.mxu0
        %v1476 = vadd.f32 0.0, %v1475
        %v1477 = vpop.f32.mrf.mxu0
        %v1478 = vadd.f32 0.0, %v1477
        %1479 = vdwg.mxu0
        %v1480 = vmul.f32 %v1471, 0.35355338
        %v1481 = vmul.f32 %v1473, 0.35355338
        %v1482 = vmul.f32 %v1476, 0.35355338
        %v1483 = vmul.f32 %v1478, 0.35355338
        %v1484 = vsel %vm1134, %v1480, -inf
        %1485 = vmax.xlane.f32.xlu0 %v1484
        %v1486 = vpop.xlane.xlu0 %1485
        %v1487 = vsel %vm1134, %v1481, -inf
        %1488 = vmax.xlane.f32.xlu0 %v1487
        %v1489 = vpop.xlane.xlu0 %1488
        %v1490 = vsel %vm1134, %v1482, -inf
        %1491 = vmax.xlane.f32.xlu0 %v1490
        %v1492 = vpop.xlane.xlu0 %1491
        %v1493 = vsel %vm1134, %v1483, -inf
        %1494 = vmax.xlane.f32.xlu0 %v1493
        %v1495 = vpop.xlane.xlu0 %1494
        %v1496 = vsub.f32 %v1480, %v1486
        %v1497 = vsub.f32 %v1481, %v1489
        %v1498 = vsub.f32 %v1482, %v1492
        %v1499 = vsub.f32 %v1483, %v1495
        %v1500 = vmul.f32 %v1496, 1.442695
        %v1501 = vpow.pop %v1500
        %v1502 = vmul.f32 %v1497, 1.442695
        %v1503 = vpow.pop %v1502
        %v1504 = vmul.f32 %v1498, 1.442695
        %v1505 = vpow.pop %v1504
        %v1506 = vmul.f32 %v1499, 1.442695
        %v1507 = vpow.pop %v1506
        %v1508 = vsel %vm1134, %v1501, 0.0
        %1509 = vadd.xlane.f32.xlu0 %v1508
        %v1510 = vpop.xlane.xlu0 %1509
        %v1511 = vsel %vm1134, %v1503, 0.0
        %1512 = vadd.xlane.f32.xlu0 %v1511
        %v1513 = vpop.xlane.xlu0 %1512
        %v1514 = vsel %vm1134, %v1505, 0.0
        %1515 = vadd.xlane.f32.xlu0 %v1514
        %v1516 = vpop.xlane.xlu0 %1515
        %v1517 = vsel %vm1134, %v1507, 0.0
        %1518 = vadd.xlane.f32.xlu0 %v1517
        %v1519 = vpop.xlane.xlu0 %1518
        %v1520 = vrcp.pop %v1510
        %v1521 = vrcp.pop %v1513
        %v1522 = vrcp.pop %v1516
        %v1523 = vrcp.pop %v1519
        %v1524 = vmul.f32 %v1501, %v1520
        %v1525 = vmul.f32 %v1503, %v1521
        %v1526 = vmul.f32 %v1505, %v1522
        %v1527 = vmul.f32 %v1507, %v1523
        %v1528 = vpack.c.bf16 %v1525, %v1524
        %v1529 = vpack.c.bf16 %v1527, %v1526
        %v1531 = vsel %vm1134, %v1528, 0
        %v1534 = vsel %vm1134, %v1529, 0
        %1536 = vmatpush.bf16.msra.mxu0 0
        %1537 = vmatpush.bf16.msra.mxu0 0
        %1538 = vmatpush.bf16.msra.mxu0 0
        %1539 = vmatpush.bf16.msra.mxu0 0
        %1540 = vmatpush.bf16.msra.mxu0 0
        %1541 = vmatpush.bf16.msra.mxu0 0
        %1542 = vmatpush.bf16.msra.mxu0 0
        %1543 = vmatpush.bf16.msra.mxu0 %v1192
        %1544 = vmatmul.bf16.gmra.mxu0 %v1531
        %v1545 = vpop.f32.mrf.mxu0
        %v1546 = vadd.f32 0.0, %v1545
        %v1547 = vpop.f32.mrf.mxu0
        %v1548 = vadd.f32 0.0, %v1547
        %1549 = vmatmul.bf16.gmra.mxu0 %v1534
        %v1550 = vpop.f32.mrf.mxu0
        %v1551 = vadd.f32 0.0, %v1550
        %v1552 = vpop.f32.mrf.mxu0
        %v1553 = vadd.f32 0.0, %v1552
        %1554 = vdwg.mxu0
        %v1555 = vmul.f32 %v1546, %v1093
        %v1556 = vmul.f32 %v1548, %v1093
        %v1557 = vmul.f32 %v1551, %v1093
        %v1558 = vmul.f32 %v1553, %v1093
        %v1559 = vadd.f32 %v1445, %v1555
        %v1560 = vadd.f32 %v1446, %v1556
        %v1561 = vadd.f32 %v1447, %v1557
        %v1562 = vadd.f32 %v1448, %v1558
        %v1563 = vld [vmem:[%s12] sm:$0xf]
        %v1564 = vld [vmem:[%s12 + $0x4] sm:$0xf]
        %v1565 = vld [vmem:[%s12 + $0x8] sm:$0xf]
        %v1566 = vld [vmem:[%s12 + $0xc] sm:$0xf]
        %v1567 = vpack.c.bf16 %v1560, %v1559
        %v1568 = vpack.c.bf16 %v1562, %v1561
        %v1569 = vld [vmem:[#allocation2] sm:$0x1]
        %v1571 = vperm.slane %v1569, 0
        %v1577 = vunpack.c.l.b16 %v1563
        %v1578 = vunpack.c.l.b16 %v1564
        %v1579 = vunpack.c.l.b16 %v1565
        %v1580 = vunpack.c.l.b16 %v1566
        %v1581 = vpack.c.b16 %v1578, %v1577
        %v1582 = vpack.c.b16 %v1580, %v1579
        %v1586 = vsel %vm810, %v1567, 0
        %v1589 = vsel %vm810, %v1568, 0
        %1591 = vmatpush.bf16.msra.mxu0 0
        %1592 = vmatpush.bf16.msra.mxu0 0
        %1593 = vmatpush.bf16.msra.mxu0 0
        %1594 = vmatpush.bf16.msra.mxu0 0
        %1595 = vmatpush.bf16.msra.mxu0 0
        %1596 = vmatpush.bf16.msra.mxu0 0
        %1597 = vmatpush.bf16.msra.mxu0 %v1582
        %1598 = vmatpush.bf16.msra.mxu0 %v1581
        %1599 = vmatmul.bf16.gmra.mxu0 %v1586
        %v1600 = vpop.f32.mrf.mxu0
        %v1601 = vadd.f32 %v1571, %v1600
        %v1602 = vpop.f32.mrf.mxu0
        %v1603 = vadd.f32 %v1571, %v1602
        %1604 = vmatmul.bf16.gmra.mxu0 %v1589
        %v1605 = vpop.f32.mrf.mxu0
        %v1606 = vadd.f32 %v1571, %v1605
        %v1607 = vpop.f32.mrf.mxu0
        %v1608 = vadd.f32 %v1571, %v1607
        %1609 = vdwg.mxu0
        %v1610 = vld [vmem:[#allocation4] sm:$0x1]
        %v1611 = vld [vmem:[#allocation6] sm:$0x1]
        %v1612 = vsel %vm810, %v1601, 0.0
        %1613 = vadd.xlane.f32.xlu0 %v1612
        %v1614 = vpop.xlane.xlu0 %1613
        %v1615 = vsel %vm810, %v1603, 0.0
        %1616 = vadd.xlane.f32.xlu0 %v1615
        %v1617 = vpop.xlane.xlu0 %1616
        %v1618 = vsel %vm810, %v1606, 0.0
        %1619 = vadd.xlane.f32.xlu0 %v1618
        %v1620 = vpop.xlane.xlu0 %1619
        %v1621 = vsel %vm810, %v1608, 0.0
        %1622 = vadd.xlane.f32.xlu0 %v1621
        %v1623 = vpop.xlane.xlu0 %1622
        %v1624 = vmul.f32 %v1614, %v829
        %v1625 = vmul.f32 %v1617, %v829
        %v1626 = vmul.f32 %v1620, %v829
        %v1627 = vmul.f32 %v1623, %v829
        %v1628 = vsub.f32 %v1601, %v1624
        %v1629 = vsub.f32 %v1603, %v1625
        %v1630 = vsub.f32 %v1606, %v1626
        %v1631 = vsub.f32 %v1608, %v1627
        %v1632 = vmul.f32 %v1628, %v1628
        %v1633 = vmul.f32 %v1629, %v1629
        %v1634 = vmul.f32 %v1630, %v1630
        %v1635 = vmul.f32 %v1631, %v1631
        %v1636 = vsel %vm810, %v1632, 0.0
        %1637 = vadd.xlane.f32.xlu0 %v1636
        %v1638 = vpop.xlane.xlu0 %1637
        %v1639 = vsel %vm810, %v1633, 0.0
        %1640 = vadd.xlane.f32.xlu0 %v1639
        %v1641 = vpop.xlane.xlu0 %1640
        %v1642 = vsel %vm810, %v1634, 0.0
        %1643 = vadd.xlane.f32.xlu0 %v1642
        %v1644 = vpop.xlane.xlu0 %1643
        %v1645 = vsel %vm810, %v1635, 0.0
        %1646 = vadd.xlane.f32.xlu0 %v1645
        %v1647 = vpop.xlane.xlu0 %1646
        %v1648 = vmul.f32 %v1638, %v829
        %v1649 = vmul.f32 %v1641, %v829
        %v1650 = vmul.f32 %v1644, %v829
        %v1651 = vmul.f32 %v1647, %v829
        %v1652 = vadd.f32 %v1648, 1e-05
        %v1653 = vadd.f32 %v1649, 1e-05
        %v1654 = vadd.f32 %v1650, 1e-05
        %v1655 = vadd.f32 %v1651, 1e-05
        %v1656 = vrsqrt.pop %v1652
        %v1657 = vmul.f32 %v1656, %v1652
        %v1658 = vmul.f32 %v1657, %v1656
        %v1659 = vmul.f32 0.5, %v1658
        %v1660 = vsub.f32 1.5, %v1659
        %v1661 = vmul.f32 %v1656, %v1660
        %vm1662 = vweird.f32 %v1652
        %vm1663 = vweird.f32 %v1656
        %vm1664 = vmor %vm1662, %vm1663
        %v1665 = vsel %vm1664, %v1656, %v1661
        %v1666 = vrsqrt.pop %v1653
        %v1667 = vmul.f32 %v1666, %v1653
        %v1668 = vmul.f32 %v1667, %v1666
        %v1669 = vmul.f32 0.5, %v1668
        %v1670 = vsub.f32 1.5, %v1669
        %v1671 = vmul.f32 %v1666, %v1670
        %vm1672 = vweird.f32 %v1653
        %vm1673 = vweird.f32 %v1666
        %vm1674 = vmor %vm1672, %vm1673
        %v1675 = vsel %vm1674, %v1666, %v1671
        %v1676 = vrsqrt.pop %v1654
        %v1677 = vmul.f32 %v1676, %v1654
        %v1678 = vmul.f32 %v1677, %v1676
        %v1679 = vmul.f32 0.5, %v1678
        %v1680 = vsub.f32 1.5, %v1679
        %v1681 = vmul.f32 %v1676, %v1680
        %vm1682 = vweird.f32 %v1654
        %vm1683 = vweird.f32 %v1676
        %vm1684 = vmor %vm1682, %vm1683
        %v1685 = vsel %vm1684, %v1676, %v1681
        %v1686 = vrsqrt.pop %v1655
        %v1687 = vmul.f32 %v1686, %v1655
        %v1688 = vmul.f32 %v1687, %v1686
        %v1689 = vmul.f32 0.5, %v1688
        %v1690 = vsub.f32 1.5, %v1689
        %v1691 = vmul.f32 %v1686, %v1690
        %vm1692 = vweird.f32 %v1655
        %vm1693 = vweird.f32 %v1686
        %vm1694 = vmor %vm1692, %vm1693
        %v1695 = vsel %vm1694, %v1686, %v1691
        %v1696 = vmul.f32 %v1628, %v1665
        %v1697 = vmul.f32 %v1629, %v1675
        %v1698 = vmul.f32 %v1630, %v1685
        %v1699 = vmul.f32 %v1631, %v1695
        %v1701 = vperm.slane %v1610, 0
        %v1703 = vmul.f32 %v1696, %v1701
        %v1704 = vmul.f32 %v1697, %v1701
        %v1705 = vmul.f32 %v1698, %v1701
        %v1706 = vmul.f32 %v1699, %v1701
        %v1708 = vperm.slane %v1611, 0
        %v1710 = vadd.f32 %v1703, %v1708
        %v1711 = vadd.f32 %v1704, %v1708
        %v1712 = vadd.f32 %v1705, %v1708
        %v1713 = vadd.f32 %v1706, %v1708
        %v1714 = vld [vmem:[%s16] sm:$0xf]
        %v1715 = vld [vmem:[%s16 + $0x4] sm:$0xf]
        %v1716 = vld [vmem:[%s16 + $0x8] sm:$0xf]
        %v1717 = vld [vmem:[%s16 + $0xc] sm:$0xf]
        %v1718 = vpack.c.bf16 %v1711, %v1710
        %v1719 = vpack.c.bf16 %v1713, %v1712
        %v1720 = vld [vmem:[#allocation7] sm:$0x1]
        %v1722 = vperm.slane %v1720, 0
        %v1728 = vunpack.c.l.b16 %v1714
        %v1729 = vunpack.c.l.b16 %v1715
        %v1730 = vunpack.c.l.b16 %v1716
        %v1731 = vunpack.c.l.b16 %v1717
        %v1732 = vpack.c.b16 %v1729, %v1728
        %v1733 = vpack.c.b16 %v1731, %v1730
        %v1737 = vsel %vm810, %v1718, 0
        %v1740 = vsel %vm810, %v1719, 0
        %1742 = vmatpush.bf16.msra.mxu0 0
        %1743 = vmatpush.bf16.msra.mxu0 0
        %1744 = vmatpush.bf16.msra.mxu0 0
        %1745 = vmatpush.bf16.msra.mxu0 0
        %1746 = vmatpush.bf16.msra.mxu0 0
        %1747 = vmatpush.bf16.msra.mxu0 0
        %1748 = vmatpush.bf16.msra.mxu0 %v1733
        %1749 = vmatpush.bf16.msra.mxu0 %v1732
        %1750 = vmatmul.bf16.gmra.mxu0 %v1737
        %v1751 = vpop.f32.mrf.mxu0
        %v1752 = vadd.f32 %v1722, %v1751
        %v1753 = vpop.f32.mrf.mxu0
        %v1754 = vadd.f32 %v1722, %v1753
        %1755 = vmatmul.bf16.gmra.mxu0 %v1740
        %v1756 = vpop.f32.mrf.mxu0
        %v1757 = vadd.f32 %v1722, %v1756
        %v1758 = vpop.f32.mrf.mxu0
        %v1759 = vadd.f32 %v1722, %v1758
        %1760 = vdwg.mxu0
        %v1761 = vmul.f32 %v1752, %v1752
        %v1762 = vmul.f32 %v1754, %v1754
        %v1763 = vmul.f32 %v1757, %v1757
        %v1764 = vmul.f32 %v1759, %v1759
        %v1765 = vmul.f32 %v1752, %v1761
        %v1766 = vmul.f32 %v1754, %v1762
        %v1767 = vmul.f32 %v1757, %v1763
        %v1768 = vmul.f32 %v1759, %v1764
        %v1769 = vmul.f32 %v1765, 0.044715
        %v1770 = vmul.f32 %v1766, 0.044715
        %v1771 = vmul.f32 %v1767, 0.044715
        %v1772 = vmul.f32 %v1768, 0.044715
        %v1773 = vadd.f32 %v1752, %v1769
        %v1774 = vadd.f32 %v1754, %v1770
        %v1775 = vadd.f32 %v1757, %v1771
        %v1776 = vadd.f32 %v1759, %v1772
        %v1777 = vmul.f32 %v1773, 0.7978846
        %v1778 = vmul.f32 %v1774, 0.7978846
        %v1779 = vmul.f32 %v1775, 0.7978846
        %v1780 = vmul.f32 %v1776, 0.7978846
        %v1781 = vtanh.pop %v1777
        %v1782 = vtanh.pop %v1778
        %v1783 = vtanh.pop %v1779
        %v1784 = vtanh.pop %v1780
        %v1785 = vadd.f32 %v1781, 1.0
        %v1786 = vadd.f32 %v1782, 1.0
        %v1787 = vadd.f32 %v1783, 1.0
        %v1788 = vadd.f32 %v1784, 1.0
        %v1789 = vmul.f32 %v1785, 0.5
        %v1790 = vmul.f32 %v1786, 0.5
        %v1791 = vmul.f32 %v1787, 0.5
        %v1792 = vmul.f32 %v1788, 0.5
        %v1793 = vmul.f32 %v1752, %v1789
        %v1794 = vmul.f32 %v1754, %v1790
        %v1795 = vmul.f32 %v1757, %v1791
        %v1796 = vmul.f32 %v1759, %v1792
        %v1797 = vld [vmem:[%s18] sm:$0xf]
        %v1798 = vld [vmem:[%s18 + $0x4] sm:$0xf]
        %v1799 = vld [vmem:[%s18 + $0x8] sm:$0xf]
        %v1800 = vld [vmem:[%s18 + $0xc] sm:$0xf]
        %v1801 = vld [vmem:[%s18 + $0x10] sm:$0xf]
        %v1802 = vld [vmem:[%s18 + $0x14] sm:$0xf]
        %v1803 = vld [vmem:[%s18 + $0x18] sm:$0xf]
        %v1804 = vld [vmem:[%s18 + $0x1c] sm:$0xf]
        %v1805 = vpack.c.bf16 %v1794, %v1793
        %v1806 = vpack.c.bf16 %v1796, %v1795
        %v1815 = vunpack.c.l.b16 %v1797
        %v1816 = vunpack.c.l.b16 %v1798
        %v1817 = vunpack.c.l.b16 %v1799
        %v1818 = vunpack.c.l.b16 %v1800
        %v1819 = vunpack.c.l.b16 %v1801
        %v1820 = vunpack.c.l.b16 %v1802
        %v1821 = vunpack.c.l.b16 %v1803
        %v1822 = vunpack.c.l.b16 %v1804
        %v1823 = vpack.c.b16 %v1816, %v1815
        %v1824 = vpack.c.b16 %v1818, %v1817
        %v1825 = vpack.c.b16 %v1820, %v1819
        %v1826 = vpack.c.b16 %v1822, %v1821
        %vm1831 = vcmask 523264
        %v1833 = vsel %vm1831, %v1805, 0
        %v1836 = vsel %vm1831, %v1806, 0
        %1838 = vmatpush.bf16.msra.mxu0 0
        %1839 = vmatpush.bf16.msra.mxu0 0
        %1840 = vmatpush.bf16.msra.mxu0 0
        %1841 = vmatpush.bf16.msra.mxu0 0
        %1842 = vmatpush.bf16.msra.mxu0 %v1826
        %1843 = vmatpush.bf16.msra.mxu0 %v1825
        %1844 = vmatpush.bf16.msra.mxu0 %v1824
        %1845 = vmatpush.bf16.msra.mxu0 %v1823
        %1846 = vmatmul.bf16.gmra.mxu0 %v1833
        %v1847 = vpop.f32.mrf.mxu0
        %v1848 = vadd.f32 0.0, %v1847
        %v1849 = vpop.f32.mrf.mxu0
        %v1850 = vadd.f32 0.0, %v1849
        %1851 = vmatmul.bf16.gmra.mxu0 %v1836
        %v1852 = vpop.f32.mrf.mxu0
        %v1853 = vadd.f32 0.0, %v1852
        %v1854 = vpop.f32.mrf.mxu0
        %v1855 = vadd.f32 0.0, %v1854
        %1856 = vdwg.mxu0
        %v1857 = vadd.f32 %v1601, %v1848
        %v1858 = vadd.f32 %v1603, %v1850
        %v1859 = vadd.f32 %v1606, %v1853
        %v1860 = vadd.f32 %v1608, %v1855
        %v1861 = vld [vmem:[#allocation9] sm:$0x1]
        %v1863 = vperm.slane %v1861, 0
        %v1865 = vadd.f32 %v1857, %v1863
        %v1866 = vadd.f32 %v1858, %v1863
        %v1867 = vadd.f32 %v1859, %v1863
        %v1868 = vadd.f32 %v1860, %v1863
        %v1869 = vld [vmem:[%s20] sm:$0xf]
        %v1870 = vld [vmem:[%s20 + $0x4] sm:$0xf]
        %v1871 = vld [vmem:[%s20 + $0x8] sm:$0xf]
        %v1872 = vld [vmem:[%s20 + $0xc] sm:$0xf]
        %v1873 = vpack.c.bf16 %v1866, %v1865
        %v1874 = vpack.c.bf16 %v1868, %v1867
        %v1875 = vld [vmem:[%s21] sm:$0x1]
        %v1877 = vperm.slane %v1875, 0
        %v1883 = vunpack.c.l.b16 %v1869
        %v1884 = vunpack.c.l.b16 %v1870
        %v1885 = vunpack.c.l.b16 %v1871
        %v1886 = vunpack.c.l.b16 %v1872
        %v1887 = vpack.c.b16 %v1884, %v1883
        %v1888 = vpack.c.b16 %v1886, %v1885
        %v1892 = vsel %vm810, %v1873, 0
        %v1895 = vsel %vm810, %v1874, 0
        %1897 = vmatpush.bf16.msra.mxu0 0
        %1898 = vmatpush.bf16.msra.mxu0 0
        %1899 = vmatpush.bf16.msra.mxu0 0
        %1900 = vmatpush.bf16.msra.mxu0 0
        %1901 = vmatpush.bf16.msra.mxu0 0
        %1902 = vmatpush.bf16.msra.mxu0 0
        %1903 = vmatpush.bf16.msra.mxu0 %v1888
        %1904 = vmatpush.bf16.msra.mxu0 %v1887
        %1905 = vmatmul.bf16.gmra.mxu0 %v1892
        %v1906 = vpop.f32.mrf.mxu0
        %v1907 = vadd.f32 %v1877, %v1906
        %v1908 = vpop.f32.mrf.mxu0
        %v1909 = vadd.f32 %v1877, %v1908
        %1910 = vmatmul.bf16.gmra.mxu0 %v1895
        %v1911 = vpop.f32.mrf.mxu0
        %v1912 = vadd.f32 %v1877, %v1911
        %v1913 = vpop.f32.mrf.mxu0
        %v1914 = vadd.f32 %v1877, %v1913
        %1915 = vdwg.mxu0
        %1916 = vst [vmem:[%s797] sm:$0xff] %v1907
        %1917 = vst [vmem:[%s797 + $0x8] sm:$0xff] %v1909
        %1918 = vst [vmem:[%s797 + $0x10] sm:$0xff] %v1912
        %1919 = vst [vmem:[%s797 + $0x18] sm:$0xff] %v1914
        %s1920 = smul.u32 4, %s41
        %p1921 = scmp.lt.s32.totalorder %s40, 1
        %s1922 = scalar_select %p1921, %s40, 1
        %p1923 = scmp.lt.s32.totalorder %s1920, 3
        %s1924 = scalar_select %p1923, %s1920, 3
        %s1925 = smul.addr %s1922, 4
        %s1926 = sadd.s32 %s1924, %s1925
        %s1927 = smul.addr %s1926, 8
        %s1928 = scalar_lea.vmem %s22, %s1927
        // Predicated region
        $region129: #{forward.9} parent=107 // pred_check
          %p1929 = pneg %p540
        $region130: #{forward.9} parent=107 // pred_check_branch
          %1931 = sbr.rel (%p1929) target = $region132
        $region131: #{forward.9} parent=107 // pred_region
          %s1932 = smul.u32 4, %s41
        $region132: #{forward.9} parent=107 // pred_fallthru
          _
      $region108: #{forward.9} parent=5 // pred_fallthru
        _
      %p1933 = scmp.le.s32.totalorder 2, %s31
      // Predicated region
      $region133: #{forward.9} parent=5 // pred_check
        %p1934 = pneg %p1933
      $region134: #{forward.9} parent=5 // pred_check_branch
        %1936 = sbr.rel (%p1934) target = $region136
      $region135: #{forward.9} parent=5 // pred_region
        %s1937 = ssub.s32 %s31, 2
        // Predicated region
        $region137: #{forward.9} parent=135 // pred_check
          %p1938 = pneg %p546
        $region138: #{forward.9} parent=135 // pred_check_branch
          %1940 = sbr.rel (%p1938) target = $region140
        $region139: #{forward.9} parent=135 // pred_region
          %s1941 = smul.u32 4, %s43
          %p1942 = scmp.lt.s32.totalorder %s42, 1
          %s1943 = scalar_select %p1942, %s42, 1
          %p1944 = scmp.lt.s32.totalorder %s1941, 3
          %s1945 = scalar_select %p1944, %s1941, 3
          %s1946 = smul.addr %s1943, 4
          %s1947 = sadd.s32 %s1945, %s1946
          %s1948 = smul.addr %s1947, 8
          %s1949 = scalar_lea.vmem %s22, %s1948
        $region140: #{forward.9} parent=135 // pred_fallthru
          _
      $region136: #{forward.9} parent=5 // pred_fallthru
        _
    $region6: #{forward.9} parent=1 // loop_footer
      %s35 = sadd.s32 1, %s31
    $region7: #{forward.9} parent=1 // loop_footer_branch
      %30 = sbr.rel target = $region3
    $region8: #{forward.9} parent=1 // loop_exit
      _
    %1950 = vsyncpa [#allocation3], 1
    %s1951 = scalar_lea.sflag [#allocation3], 1
    %1952 = vsyncpa %s1951, 1
    %1953 = vsyncpa [#allocation5], 1
    %1954 = vsyncpa [#allocation8], 1

</llo_original>
